<compile_context>
chip_gen: v7x
topology: tpu7x:2x2x1
jax: 0.10.0
libtpu: 0.0.40
codegen_flags: <defaults>
</compile_context>

<pallas_src>
import math

import jax
import jax.numpy as jnp
from jax.experimental import pallas as pl
from jax.experimental.pallas import tpu as pltpu


# ------------------------------ kernel helpers --------------------------------

def _mm(h_bf16, w_ref):
    """bf16 matmul with f32 MXU accumulation."""
    return jnp.dot(h_bf16, w_ref[...], preferred_element_type=jnp.float32)


def _layer(h_bf16, w_ref, c_ref):
    """Matmul + folded-BN shift + relu; result stored as bf16 so the next
    layer's dot consumes it directly (halves inter-layer VMEM / vst traffic)."""
    y = _mm(h_bf16, w_ref) + c_ref[...]
    return jnp.maximum(y, 0.0).astype(jnp.bfloat16)


# --------------------------------- kernels -------------------------------------

def _stn_kernel(x_ref, w1, c1, w2, c2, w3, c3,
                hw1, hc1, hw2, hc2, hw3, hb3,
                t9_ref, max_acc):
    """STN3d: point MLP 3->64->128->1024, running max over point tiles, then the
    fused head 1024->512->256->9 on the last point tile.  The bn3 shift + relu
    of the 1024-wide layer are deferred to after the pool (shift commutes with
    max, relu is monotone), so the widest intermediate is a raw bf16 matmul
    result with no per-point epilogue."""
    n = pl.program_id(1)

    @pl.when(n == 0)
    def _init():
        max_acc[...] = jnp.full(max_acc.shape, -jnp.inf, max_acc.dtype)

    bb, _, nt = x_ref.shape
    # (bb, 3, nt) -> (bb, nt, 3): tiny minor-dim transpose, then flatten so every
    # layer is a single plain 2-D matmul with shared weights.
    xt = jnp.transpose(x_ref[...], (0, 2, 1)).astype(jnp.bfloat16)
    h = _layer(xt.reshape(bb * nt, 3), w1, c1)               # (rows, 64)
    h = _layer(h, w2, c2)                                     # (rows, 128)
    y = _mm(h, w3).astype(jnp.bfloat16)                       # (rows, 1024) raw
    tile_max = jnp.max(y.reshape(bb, nt, y.shape[-1]), axis=1)
    max_acc[...] = jnp.maximum(max_acc[...], tile_max.astype(jnp.float32))

    @pl.when(n == pl.num_programs(1) - 1)
    def _head():
        # Deferred bn3 shift + relu on the pooled feature, then the fused head.
        feat = jnp.maximum(max_acc[...] + c3[...], 0.0).astype(jnp.bfloat16)
        f = _layer(feat, hw1, hc1)                            # (bb, 512)
        f = _layer(f, hw2, hc2)                               # (bb, 256)
        t9_ref[...] = _mm(f, hw3) + hb3[...]                  # (bb, 9)


def _enc_kernel(x_ref, rot_ref,
                w1, c1, w2, c2, w3, c3, w4, c4,
                mw1, mc1, mw2, mc2, mw3, mb3,
                vw1, vc1, vw2, vc2, vw3, vb3,
                m_ref, v_ref, max_acc):
    """Fused bmm(x, rot) + encoder convs 3->128->128->256->512 (last layer has
    no relu), running max over point tiles, then both MLP heads.  bmm(x, rot)
    is one batched einsum (no per-cloud unroll / concatenate); the bn4 shift of
    the 512-wide layer is deferred to after the pool."""
    n = pl.program_id(1)

    @pl.when(n == 0)
    def _init():
        max_acc[...] = jnp.full(max_acc.shape, -jnp.inf, max_acc.dtype)

    bb, _, nt = x_ref.shape
    xt = jnp.transpose(x_ref[...], (0, 2, 1)).astype(jnp.bfloat16)    # (bb, nt, 3)
    rot = rot_ref[...].astype(jnp.bfloat16)                           # (bb, 3, 3)
    xr = jnp.einsum("bnd,bde->bne", xt, rot,
                    preferred_element_type=jnp.float32).astype(jnp.bfloat16)
    h = _layer(xr.reshape(bb * nt, 3), w1, c1)               # (rows, 128)
    h = _layer(h, w2, c2)                                     # (rows, 128)
    h = _layer(h, w3, c3)                                     # (rows, 256)
    y = _mm(h, w4).astype(jnp.bfloat16)                       # (rows, 512) raw
    tile_max = jnp.max(y.reshape(bb, nt, y.shape[-1]), axis=1)
    max_acc[...] = jnp.maximum(max_acc[...], tile_max.astype(jnp.float32))

    @pl.when(n == pl.num_programs(1) - 1)
    def _heads():
        feat = (max_acc[...] + c4[...]).astype(jnp.bfloat16)  # conv4: no relu
        hm = _layer(feat, mw1, mc1)
        hm = _layer(hm, mw2, mc2)
        m_ref[...] = _mm(hm, mw3) + mb3[...]
        hv = _layer(feat, vw1, vc1)
        hv = _layer(hv, vw2, vc2)
        v_ref[...] = _mm(hv, vw3) + vb3[...]


# -------------------------------- wrappers -------------------------------------

def _weight_spec(a):
    """Full-array weight block, constant across the (batch, point-tile) grid."""
    return pl.BlockSpec(a.shape, lambda b, n: (0, 0))


def _stn_forward(xt, kp, *, bb, nt, vmem_limit):
    B, _, n_pad = xt.shape
    flat = [t for layer in list(kp["stn_conv"]) + list(kp["stn_head"])
            for t in layer]
    return pl.pallas_call(
        _stn_kernel,
        out_shape=jax.ShapeDtypeStruct((B, 9), jnp.float32),
        grid=(B // bb, n_pad // nt),
        in_specs=[pl.BlockSpec((bb, 3, nt), lambda b, n: (b, 0, n))]
                 + [_weight_spec(a) for a in flat],
        out_specs=pl.BlockSpec((bb, 9), lambda b, n: (b, 0)),
        scratch_shapes=[pltpu.VMEM((bb, 1024), jnp.float32)],
        compiler_params=pltpu.CompilerParams(
            dimension_semantics=("parallel", "arbitrary"),
            vmem_limit_bytes=vmem_limit),
    )(xt, *flat)


def _encoder_forward(xt, rot, kp, *, bb, nt, vmem_limit):
    B, _, n_pad = xt.shape
    zdim = kp["m_head"][-1][0].shape[1]
    flat = [t for layer in
            list(kp["enc_conv"]) + list(kp["m_head"]) + list(kp["v_head"])
            for t in layer]
    return pl.pallas_call(
        _enc_kernel,
        out_shape=(jax.ShapeDtypeStruct((B, zdim), jnp.float32),
                   jax.ShapeDtypeStruct((B, zdim), jnp.float32)),
        grid=(B // bb, n_pad // nt),
        in_specs=[pl.BlockSpec((bb, 3, nt), lambda b, n: (b, 0, n)),
                  pl.BlockSpec((bb, 3, 3), lambda b, n: (b, 0, 0))]
                 + [_weight_spec(a) for a in flat],
        out_specs=(pl.BlockSpec((bb, zdim), lambda b, n: (b, 0)),
                   pl.BlockSpec((bb, zdim), lambda b, n: (b, 0))),
        scratch_shapes=[pltpu.VMEM((bb, 512), jnp.float32)],
        compiler_params=pltpu.CompilerParams(
            dimension_semantics=("parallel", "arbitrary"),
            vmem_limit_bytes=vmem_limit),
    )(xt, rot, *flat)


# ------------------------------- sizing helpers ---------------------------------

def _tpu_vmem_bytes():
    """Physical VMEM per core; conservative v7x default if the query fails."""
    try:
        cap = getattr(pltpu.get_tpu_info(), "vmem_capacity_bytes", 0) or 0
        if cap > 0:
            return int(cap)
    except Exception:
        pass
    return 64 << 20


def _budgets():
    """(max rows per grid step, vmem_limit_bytes) sized per TPU generation."""
    cap = _tpu_vmem_bytes()
    if cap >= (96 << 20):          # v5e / v6e: 128 MiB VMEM
        return 4096, 96 << 20
    return 2048, 48 << 20          # v7x: 64 MiB VMEM per TensorCore


def _pad_and_transpose(x):
    """(B, N, 3) -> (B, 3, N_pad) with N_pad a multiple of 128 (lane-aligned
    point tiles); repeating the last point is harmless under max-pool."""
    B, N, C = x.shape
    n_pad = ((N + 127) // 128) * 128
    if n_pad != N:
        tail = jnp.broadcast_to(x[:, -1:, :], (B, n_pad - N, C))
        x = jnp.concatenate([x, tail], axis=1)
    return jnp.transpose(x, (0, 2, 1)), n_pad


def _choose_blocks(B, n_pad, max_rows):
    """Pick (bb clouds, nt points) per grid step maximising rows = bb*nt while
    respecting the VMEM rows budget.  bb must be B itself or a multiple of 8
    dividing B (sublane-aligned output blocks); nt is a lane-aligned divisor of
    the padded point count."""
    nt_cands = [c for c in (4096, 2048, 1024, 512, 256, 128)
                if c <= n_pad and n_pad % c == 0]
    bb_cands = sorted({c for c in (B, 8, 16, 32, 64, 128)
                       if 0 < c <= B and B % c == 0 and (c == B or c % 8 == 0)},
                      reverse=True)
    best = None
    for nt in nt_cands:            # descending nt: prefer larger nt on ties
        for bb in bb_cands:
            rows = bb * nt
            if rows <= max_rows and (best is None or rows > best[0]):
                best = (rows, bb, nt)
    if best is None:
        # Nothing satisfies the budget (e.g. B not divisible by 8 and large):
        # take the smallest legal tile so per-step VMEM stays bounded.
        return min(bb_cands), nt_cands[-1]
    return best[1], best[2]


def rot_encoder_forward(x, kernel_params):
    """x: (B, N, 3) float32 -> (m, v), each (B, zdim)."""
    B = x.shape[0]
    xt, n_pad = _pad_and_transpose(x)                         # (B, 3, N_pad)
    max_rows, vmem_limit = _budgets()
    bb, nt = _choose_blocks(B, n_pad, max_rows)
    # STN3d -> 9 values; identity add + reshape are tiny and done outside.
    t9 = _stn_forward(xt, kernel_params, bb=bb, nt=nt, vmem_limit=vmem_limit)
    rot = (t9 + jnp.eye(3, dtype=jnp.float32).reshape(1, 9)).reshape(B, 3, 3)
    # bmm(x, rot) is fused into the encoder kernel as a batched einsum.
    return _encoder_forward(xt, rot, kernel_params, bb=bb, nt=nt,
                            vmem_limit=vmem_limit)


# ------------------------- deterministic parameters ----------------------------

def _bn_fold(bias, cout, idx, eps=1e-5):
    """Deterministic eval-mode BatchNorm folded with the conv/linear bias."""
    r = jnp.arange(cout, dtype=jnp.float32)
    gamma = 1.0 + 0.01 * jnp.cos(r + idx)
    beta = 0.02 * jnp.sin(0.5 * r + idx)
    mean = 0.01 * jnp.sin(r + idx)
    var = 1.0 + 0.05 * jnp.cos(0.3 * r + idx)
    scale = gamma / jnp.sqrt(var + eps)
    shift = (bias - mean) * scale + beta
    return scale[None, :], shift[None, :]


def _bn_layer(key, din, dout, idx):
    kw, kb = jax.random.split(key)
    w = jax.random.normal(kw, (din, dout), jnp.float32) / math.sqrt(din)
    b = 0.01 * jax.random.normal(kb, (dout,), jnp.float32)
    s, c = _bn_fold(b, dout, idx)
    return (w, s, c)


def _final_layer(key, din, dout):
    kw, kb = jax.random.split(key)
    w = jax.random.normal(kw, (din, dout), jnp.float32) / math.sqrt(din)
    b = 0.01 * jax.random.normal(kb, (dout,), jnp.float32)
    return (w, b[None, :])


def make_params(key, zdim):
    keys = iter(jax.random.split(key, 32))
    p = {}
    # STN3d convs: 3->64->128->1024 (all bn+relu)
    p["stn_conv"] = [_bn_layer(next(keys), 3, 64, 0),
                     _bn_layer(next(keys), 64, 128, 1),
                     _bn_layer(next(keys), 128, 1024, 2)]
    # STN3d head: 1024->512->256->9
    p["stn_head"] = (_bn_layer(next(keys), 1024, 512, 3),
                     _bn_layer(next(keys), 512, 256, 4),
                     _final_layer(next(keys), 256, 9))
    # Encoder convs: 3->128->128->256->512 (last one bn, no relu)
    p["enc_conv"] = [_bn_layer(next(keys), 3, 128, 5),
                     _bn_layer(next(keys), 128, 128, 6),
                     _bn_layer(next(keys), 128, 256, 7),
                     _bn_layer(next(keys), 256, 512, 8)]
    # mean / variance heads: 512->256->128->zdim
    p["m_head"] = (_bn_layer(next(keys), 512, 256, 9),
                   _bn_layer(next(keys), 256, 128, 10),
                   _final_layer(next(keys), 128, zdim))
    p["v_head"] = (_bn_layer(next(keys), 512, 256, 11),
                   _bn_layer(next(keys), 256, 128, 12),
                   _final_layer(next(keys), 128, zdim))
    return p


def prepare_kernel_params(params):
    """Fold the BN scale into the weight columns and cast weights to bf16
    (shifts / biases stay f32 for the f32 epilogue)."""
    def fold(layer):
        if len(layer) == 3:
            w, s, c = layer
            return ((w * s).astype(jnp.bfloat16), c)
        w, b = layer
        return (w.astype(jnp.bfloat16), b)
    return {k: [fold(l) for l in v] for k, v in params.items()}


# ------------------------------ pure-JAX reference ------------------------------

def _ref_forward(x, p):
    def bn_layer(h, layer, relu=True):
        w, s, c = layer
        h = h @ w * s + c
        return jnp.maximum(h, 0.0) if relu else h

    def head(f, hp):
        l1, l2, (w3, b3) = hp
        h = bn_layer(f, l1)
        h = bn_layer(h, l2)
        return h @ w3 + b3

    B = x.shape[0]
    h = x
    for layer in p["stn_conv"]:
        h = bn_layer(h, layer)
    feat = jnp.max(h, axis=1)
    trans9 = head(feat, p["stn_head"])
    rot = (trans9 + jnp.eye(3, dtype=jnp.float32).reshape(1, 9)).reshape(B, 3, 3)
    xr = jnp.einsum("bnd,bde->bne", x, rot)
    h = xr
    n = len(p["enc_conv"])
    for i, layer in enumerate(p["enc_conv"]):
        h = bn_layer(h, layer, relu=(i < n - 1))
    ef = jnp.max(h, axis=1)
    return head(ef, p["m_head"]), head(ef, p["v_head"])


# ----------------------------------- main ---------------------------------------

if __name__ == "__main__":
    B, N, point_dim, zdim = 2, 32, 3, 16
    key = jax.random.PRNGKey(0)
    kx, kparam = jax.random.split(key)
    x = jax.random.normal(kx, (B, N, point_dim), jnp.float32)
    params = make_params(kparam, zdim)
    kernel_params = prepare_kernel_params(params)

    fwd = jax.jit(rot_encoder_forward)
    m, v = fwd(x, kernel_params)
    jax.block_until_ready((m, v))

    m_ref, v_ref = _ref_forward(x, params)
    assert m.shape == (B, zdim) and v.shape == (B, zdim)
    err_m = float(jnp.max(jnp.abs(m - m_ref)))
    err_v = float(jnp.max(jnp.abs(v - v_ref)))
    # Tolerance accounts for bf16 weights/activations (f32 accumulation) vs f32 ref.
    assert jnp.allclose(m, m_ref, rtol=5e-2, atol=5e-2), f"m mismatch, max|err|={err_m}"
    assert jnp.allclose(v, v_ref, rtol=5e-2, atol=5e-2), f"v mismatch, max|err|={err_v}"

    print("KERNEL_OK")
</pallas_src>

<mosaic_0001>
module attributes {stable_mosaic.version = 11 : i64} {
  func.func @_stn_kernel(%arg0: i32, %arg1: i32, %arg2: memref<2x3x128xf32, #tpu.memory_space<vmem>>, %arg3: memref<3x64xbf16, #tpu.memory_space<vmem>>, %arg4: memref<1x64xf32, #tpu.memory_space<vmem>>, %arg5: memref<64x128xbf16, #tpu.memory_space<vmem>>, %arg6: memref<1x128xf32, #tpu.memory_space<vmem>>, %arg7: memref<128x1024xbf16, #tpu.memory_space<vmem>>, %arg8: memref<1x1024xf32, #tpu.memory_space<vmem>>, %arg9: memref<1024x512xbf16, #tpu.memory_space<vmem>>, %arg10: memref<1x512xf32, #tpu.memory_space<vmem>>, %arg11: memref<512x256xbf16, #tpu.memory_space<vmem>>, %arg12: memref<1x256xf32, #tpu.memory_space<vmem>>, %arg13: memref<256x9xbf16, #tpu.memory_space<vmem>>, %arg14: memref<1x9xf32, #tpu.memory_space<vmem>>, %arg15: memref<2x9xf32, #tpu.memory_space<vmem>>, %arg16: memref<2x1024xf32, #tpu.memory_space<vmem>>) attributes {dimension_semantics = [#tpu.dimension_semantics<parallel>, #tpu.dimension_semantics<arbitrary>], iteration_bounds = array<i64: 1, 1>, scalar_prefetch = 0 : i64, scratch_operands = 1 : i64, tpu.core_type = #tpu.core_type<tc>, window_params = [{transform_indices = @transform_0, window_bounds = array<i64: 2, 3, 128>}, {pipeline_mode = #tpu.pipeline_mode<synchronous>, transform_indices = @transform_1, window_bounds = array<i64: 3, 64>}, {pipeline_mode = #tpu.pipeline_mode<synchronous>, transform_indices = @transform_2, window_bounds = array<i64: 1, 64>}, {pipeline_mode = #tpu.pipeline_mode<synchronous>, transform_indices = @transform_3, window_bounds = array<i64: 64, 128>}, {pipeline_mode = #tpu.pipeline_mode<synchronous>, transform_indices = @transform_4, window_bounds = array<i64: 1, 128>}, {pipeline_mode = #tpu.pipeline_mode<synchronous>, transform_indices = @transform_5, window_bounds = array<i64: 128, 1024>}, {pipeline_mode = #tpu.pipeline_mode<synchronous>, transform_indices = @transform_6, window_bounds = array<i64: 1, 1024>}, {pipeline_mode = #tpu.pipeline_mode<synchronous>, transform_indices = @transform_7, window_bounds = array<i64: 1024, 512>}, {pipeline_mode = #tpu.pipeline_mode<synchronous>, transform_indices = @transform_8, window_bounds = array<i64: 1, 512>}, {pipeline_mode = #tpu.pipeline_mode<synchronous>, transform_indices = @transform_9, window_bounds = array<i64: 512, 256>}, {pipeline_mode = #tpu.pipeline_mode<synchronous>, transform_indices = @transform_10, window_bounds = array<i64: 1, 256>}, {pipeline_mode = #tpu.pipeline_mode<synchronous>, transform_indices = @transform_11, window_bounds = array<i64: 256, 9>}, {pipeline_mode = #tpu.pipeline_mode<synchronous>, transform_indices = @transform_12, window_bounds = array<i64: 1, 9>}, {transform_indices = @transform_13, window_bounds = array<i64: 2, 9>}]} {
    %c0_i32 = arith.constant 0 : i32
    %0 = arith.cmpi eq, %arg1, %c0_i32 : i32
    %1 = arith.extui %0 : i1 to i32
    %c0_i32_0 = arith.constant 0 : i32
    %2 = arith.cmpi ne, %1, %c0_i32_0 : i32
    scf.if %2 {
      %cst_24 = arith.constant 0xFF800000 : f32
      %35 = vector.broadcast %cst_24 : f32 to vector<2x1024xf32>
      %c0_25 = arith.constant 0 : index
      %c0_26 = arith.constant 0 : index
      %36 = vector.load %arg16[%c0_25, %c0_26] : memref<2x1024xf32, #tpu.memory_space<vmem>>, vector<2x1024xf32>
      tpu.vector_store %arg16[%c0_25, %c0_26], %35 {strides = array<i32>} : memref<2x1024xf32, #tpu.memory_space<vmem>>, vector<2x1024xf32>,
    } else {
    }
    %c0 = arith.constant 0 : index
    %c0_1 = arith.constant 0 : index
    %c0_2 = arith.constant 0 : index
    %3 = vector.load %arg2[%c0, %c0_1, %c0_2] : memref<2x3x128xf32, #tpu.memory_space<vmem>>, vector<2x3x128xf32>
    %4 = tpu.transpose %3, [0, 2, 1] : vector<2x3x128xf32> -> vector<2x128x3xf32>
    %5 = arith.truncf %4 : vector<2x128x3xf32> to vector<2x128x3xbf16>
    %6 = vector.shape_cast %5 : vector<2x128x3xbf16> to vector<256x3xbf16>
    %c0_3 = arith.constant 0 : index
    %c0_4 = arith.constant 0 : index
    %7 = vector.load %arg3[%c0_3, %c0_4] : memref<3x64xbf16, #tpu.memory_space<vmem>>, vector<3x64xbf16>
    %cst = arith.constant dense<0.000000e+00> : vector<256x64xf32>
    %8 = tpu.matmul %6, %7, %cst {dimension_numbers = #tpu.dot_dimension_numbers<[1], [0], [0], [1], [0, 0, 1, 1], [], []>} : vector<256x3xbf16>, vector<3x64xbf16>, vector<256x64xf32> -> vector<256x64xf32>
    %c0_5 = arith.constant 0 : index
    %c0_6 = arith.constant 0 : index
    %9 = vector.load %arg4[%c0_5, %c0_6] : memref<1x64xf32, #tpu.memory_space<vmem>>, vector<1x64xf32>
    %10 = vector.broadcast %9 : vector<1x64xf32> to vector<256x64xf32>
    %11 = arith.addf %8, %10 : vector<256x64xf32>
    %cst_7 = arith.constant 0.000000e+00 : f32
    %12 = vector.broadcast %cst_7 : f32 to vector<256x64xf32>
    %13 = arith.maximumf %11, %12 : vector<256x64xf32>
    %14 = arith.truncf %13 : vector<256x64xf32> to vector<256x64xbf16>
    %c0_8 = arith.constant 0 : index
    %c0_9 = arith.constant 0 : index
    %15 = vector.load %arg5[%c0_8, %c0_9] : memref<64x128xbf16, #tpu.memory_space<vmem>>, vector<64x128xbf16>
    %cst_10 = arith.constant dense<0.000000e+00> : vector<256x128xf32>
    %16 = tpu.matmul %14, %15, %cst_10 {dimension_numbers = #tpu.dot_dimension_numbers<[1], [0], [0], [1], [0, 0, 1, 1], [], []>} : vector<256x64xbf16>, vector<64x128xbf16>, vector<256x128xf32> -> vector<256x128xf32>
    %c0_11 = arith.constant 0 : index
    %c0_12 = arith.constant 0 : index
    %17 = vector.load %arg6[%c0_11, %c0_12] : memref<1x128xf32, #tpu.memory_space<vmem>>, vector<1x128xf32>
    %18 = vector.broadcast %17 : vector<1x128xf32> to vector<256x128xf32>
    %19 = arith.addf %16, %18 : vector<256x128xf32>
    %cst_13 = arith.constant 0.000000e+00 : f32
    %20 = vector.broadcast %cst_13 : f32 to vector<256x128xf32>
    %21 = arith.maximumf %19, %20 : vector<256x128xf32>
    %22 = arith.truncf %21 : vector<256x128xf32> to vector<256x128xbf16>
    %c0_14 = arith.constant 0 : index
    %c0_15 = arith.constant 0 : index
    %23 = vector.load %arg7[%c0_14, %c0_15] : memref<128x1024xbf16, #tpu.memory_space<vmem>>, vector<128x1024xbf16>
    %cst_16 = arith.constant dense<0.000000e+00> : vector<256x1024xf32>
    %24 = tpu.matmul %22, %23, %cst_16 {dimension_numbers = #tpu.dot_dimension_numbers<[1], [0], [0], [1], [0, 0, 1, 1], [], []>} : vector<256x128xbf16>, vector<128x1024xbf16>, vector<256x1024xf32> -> vector<256x1024xf32>
    %25 = arith.truncf %24 : vector<256x1024xf32> to vector<256x1024xbf16>
    %26 = vector.shape_cast %25 : vector<256x1024xbf16> to vector<2x128x1024xbf16>
    %cst_17 = arith.constant dense<0xFF80> : vector<2x1024xbf16>
    %27 = vector.multi_reduction <maximumf>, %26, %cst_17 [1] : vector<2x128x1024xbf16> to vector<2x1024xbf16>
    %c0_18 = arith.constant 0 : index
    %c0_19 = arith.constant 0 : index
    %28 = vector.load %arg16[%c0_18, %c0_19] : memref<2x1024xf32, #tpu.memory_space<vmem>>, vector<2x1024xf32>
    %29 = arith.extf %27 : vector<2x1024xbf16> to vector<2x1024xf32>
    %30 = arith.maximumf %28, %29 : vector<2x1024xf32>
    %c0_20 = arith.constant 0 : index
    %c0_21 = arith.constant 0 : index
    %31 = vector.load %arg16[%c0_20, %c0_21] : memref<2x1024xf32, #tpu.memory_space<vmem>>, vector<2x1024xf32>
    tpu.vector_store %arg16[%c0_20, %c0_21], %30 {strides = array<i32>} : memref<2x1024xf32, #tpu.memory_space<vmem>>, vector<2x1024xf32>,
    %c0_i32_22 = arith.constant 0 : i32
    %32 = arith.cmpi eq, %arg1, %c0_i32_22 : i32
    %33 = arith.extui %32 : i1 to i32
    %c0_i32_23 = arith.constant 0 : i32
    %34 = arith.cmpi ne, %33, %c0_i32_23 : i32
    scf.if %34 {
      %c0_24 = arith.constant 0 : index
      %c0_25 = arith.constant 0 : index
      %35 = vector.load %arg16[%c0_24, %c0_25] : memref<2x1024xf32, #tpu.memory_space<vmem>>, vector<2x1024xf32>
      %c0_26 = arith.constant 0 : index
      %c0_27 = arith.constant 0 : index
      %36 = vector.load %arg8[%c0_26, %c0_27] : memref<1x1024xf32, #tpu.memory_space<vmem>>, vector<1x1024xf32>
      %37 = vector.broadcast %36 : vector<1x1024xf32> to vector<2x1024xf32>
      %38 = arith.addf %35, %37 : vector<2x1024xf32>
      %cst_28 = arith.constant 0.000000e+00 : f32
      %39 = vector.broadcast %cst_28 : f32 to vector<2x1024xf32>
      %40 = arith.maximumf %38, %39 : vector<2x1024xf32>
      %41 = arith.truncf %40 : vector<2x1024xf32> to vector<2x1024xbf16>
      %c0_29 = arith.constant 0 : index
      %c0_30 = arith.constant 0 : index
      %42 = vector.load %arg9[%c0_29, %c0_30] : memref<1024x512xbf16, #tpu.memory_space<vmem>>, vector<1024x512xbf16>
      %cst_31 = arith.constant dense<0.000000e+00> : vector<2x512xf32>
      %43 = tpu.matmul %41, %42, %cst_31 {dimension_numbers = #tpu.dot_dimension_numbers<[1], [0], [0], [1], [0, 0, 1, 1], [], []>} : vector<2x1024xbf16>, vector<1024x512xbf16>, vector<2x512xf32> -> vector<2x512xf32>
      %c0_32 = arith.constant 0 : index
      %c0_33 = arith.constant 0 : index
      %44 = vector.load %arg10[%c0_32, %c0_33] : memref<1x512xf32, #tpu.memory_space<vmem>>, vector<1x512xf32>
      %45 = vector.broadcast %44 : vector<1x512xf32> to vector<2x512xf32>
      %46 = arith.addf %43, %45 : vector<2x512xf32>
      %cst_34 = arith.constant 0.000000e+00 : f32
      %47 = vector.broadcast %cst_34 : f32 to vector<2x512xf32>
      %48 = arith.maximumf %46, %47 : vector<2x512xf32>
      %49 = arith.truncf %48 : vector<2x512xf32> to vector<2x512xbf16>
      %c0_35 = arith.constant 0 : index
      %c0_36 = arith.constant 0 : index
      %50 = vector.load %arg11[%c0_35, %c0_36] : memref<512x256xbf16, #tpu.memory_space<vmem>>, vector<512x256xbf16>
      %cst_37 = arith.constant dense<0.000000e+00> : vector<2x256xf32>
      %51 = tpu.matmul %49, %50, %cst_37 {dimension_numbers = #tpu.dot_dimension_numbers<[1], [0], [0], [1], [0, 0, 1, 1], [], []>} : vector<2x512xbf16>, vector<512x256xbf16>, vector<2x256xf32> -> vector<2x256xf32>
      %c0_38 = arith.constant 0 : index
      %c0_39 = arith.constant 0 : index
      %52 = vector.load %arg12[%c0_38, %c0_39] : memref<1x256xf32, #tpu.memory_space<vmem>>, vector<1x256xf32>
      %53 = vector.broadcast %52 : vector<1x256xf32> to vector<2x256xf32>
      %54 = arith.addf %51, %53 : vector<2x256xf32>
      %cst_40 = arith.constant 0.000000e+00 : f32
      %55 = vector.broadcast %cst_40 : f32 to vector<2x256xf32>
      %56 = arith.maximumf %54, %55 : vector<2x256xf32>
      %57 = arith.truncf %56 : vector<2x256xf32> to vector<2x256xbf16>
      %c0_41 = arith.constant 0 : index
      %c0_42 = arith.constant 0 : index
      %58 = vector.load %arg13[%c0_41, %c0_42] : memref<256x9xbf16, #tpu.memory_space<vmem>>, vector<256x9xbf16>
      %cst_43 = arith.constant dense<0.000000e+00> : vector<2x9xf32>
      %59 = tpu.matmul %57, %58, %cst_43 {dimension_numbers = #tpu.dot_dimension_numbers<[1], [0], [0], [1], [0, 0, 1, 1], [], []>} : vector<2x256xbf16>, vector<256x9xbf16>, vector<2x9xf32> -> vector<2x9xf32>
      %c0_44 = arith.constant 0 : index
      %c0_45 = arith.constant 0 : index
      %60 = vector.load %arg14[%c0_44, %c0_45] : memref<1x9xf32, #tpu.memory_space<vmem>>, vector<1x9xf32>
      %61 = vector.broadcast %60 : vector<1x9xf32> to vector<2x9xf32>
      %62 = arith.addf %59, %61 : vector<2x9xf32>
      %c0_46 = arith.constant 0 : index
      %c0_47 = arith.constant 0 : index
      %63 = vector.load %arg15[%c0_46, %c0_47] : memref<2x9xf32, #tpu.memory_space<vmem>>, vector<2x9xf32>
      tpu.vector_store %arg15[%c0_46, %c0_47], %62 {strides = array<i32>} : memref<2x9xf32, #tpu.memory_space<vmem>>, vector<2x9xf32>,
    } else {
    }
    return
  }
  func.func @transform_0(%arg0: i32, %arg1: i32) -> (i32, i32, i32) {
    %c0_i32 = arith.constant 0 : i32
    %c0_i32_0 = arith.constant 0 : i32
    return %arg0, %c0_i32, %arg1 : i32, i32, i32
  }
  func.func @transform_1(%arg0: i32, %arg1: i32) -> (i32, i32) {
    %c0_i32 = arith.constant 0 : i32
    %c0_i32_0 = arith.constant 0 : i32
    %c0_i32_1 = arith.constant 0 : i32
    return %c0_i32, %c0_i32_0 : i32, i32
  }
  func.func @transform_2(%arg0: i32, %arg1: i32) -> (i32, i32) {
    %c0_i32 = arith.constant 0 : i32
    %c0_i32_0 = arith.constant 0 : i32
    %c0_i32_1 = arith.constant 0 : i32
    return %c0_i32, %c0_i32_0 : i32, i32
  }
  func.func @transform_3(%arg0: i32, %arg1: i32) -> (i32, i32) {
    %c0_i32 = arith.constant 0 : i32
    %c0_i32_0 = arith.constant 0 : i32
    %c0_i32_1 = arith.constant 0 : i32
    return %c0_i32, %c0_i32_0 : i32, i32
  }
  func.func @transform_4(%arg0: i32, %arg1: i32) -> (i32, i32) {
    %c0_i32 = arith.constant 0 : i32
    %c0_i32_0 = arith.constant 0 : i32
    %c0_i32_1 = arith.constant 0 : i32
    return %c0_i32, %c0_i32_0 : i32, i32
  }
  func.func @transform_5(%arg0: i32, %arg1: i32) -> (i32, i32) {
    %c0_i32 = arith.constant 0 : i32
    %c0_i32_0 = arith.constant 0 : i32
    %c0_i32_1 = arith.constant 0 : i32
    return %c0_i32, %c0_i32_0 : i32, i32
  }
  func.func @transform_6(%arg0: i32, %arg1: i32) -> (i32, i32) {
    %c0_i32 = arith.constant 0 : i32
    %c0_i32_0 = arith.constant 0 : i32
    %c0_i32_1 = arith.constant 0 : i32
    return %c0_i32, %c0_i32_0 : i32, i32
  }
  func.func @transform_7(%arg0: i32, %arg1: i32) -> (i32, i32) {
    %c0_i32 = arith.constant 0 : i32
    %c0_i32_0 = arith.constant 0 : i32
    %c0_i32_1 = arith.constant 0 : i32
    return %c0_i32, %c0_i32_0 : i32, i32
  }
  func.func @transform_8(%arg0: i32, %arg1: i32) -> (i32, i32) {
    %c0_i32 = arith.constant 0 : i32
    %c0_i32_0 = arith.constant 0 : i32
    %c0_i32_1 = arith.constant 0 : i32
    return %c0_i32, %c0_i32_0 : i32, i32
  }
  func.func @transform_9(%arg0: i32, %arg1: i32) -> (i32, i32) {
    %c0_i32 = arith.constant 0 : i32
    %c0_i32_0 = arith.constant 0 : i32
    %c0_i32_1 = arith.constant 0 : i32
    return %c0_i32, %c0_i32_0 : i32, i32
  }
  func.func @transform_10(%arg0: i32, %arg1: i32) -> (i32, i32) {
    %c0_i32 = arith.constant 0 : i32
    %c0_i32_0 = arith.constant 0 : i32
    %c0_i32_1 = arith.constant 0 : i32
    return %c0_i32, %c0_i32_0 : i32, i32
  }
  func.func @transform_11(%arg0: i32, %arg1: i32) -> (i32, i32) {
    %c0_i32 = arith.constant 0 : i32
    %c0_i32_0 = arith.constant 0 : i32
    %c0_i32_1 = arith.constant 0 : i32
    return %c0_i32, %c0_i32_0 : i32, i32
  }
  func.func @transform_12(%arg0: i32, %arg1: i32) -> (i32, i32) {
    %c0_i32 = arith.constant 0 : i32
    %c0_i32_0 = arith.constant 0 : i32
    %c0_i32_1 = arith.constant 0 : i32
    return %c0_i32, %c0_i32_0 : i32, i32
  }
  func.func @transform_13(%arg0: i32, %arg1: i32) -> (i32, i32) {
    %c0_i32 = arith.constant 0 : i32
    %c0_i32_0 = arith.constant 0 : i32
    return %arg0, %c0_i32 : i32, i32
  }
}

module attributes {stable_mosaic.version = 11 : i64} {
  func.func @_enc_kernel(%arg0: i32, %arg1: i32, %arg2: memref<2x3x128xf32, #tpu.memory_space<vmem>>, %arg3: memref<2x3x3xf32, #tpu.memory_space<vmem>>, %arg4: memref<3x128xbf16, #tpu.memory_space<vmem>>, %arg5: memref<1x128xf32, #tpu.memory_space<vmem>>, %arg6: memref<128x128xbf16, #tpu.memory_space<vmem>>, %arg7: memref<1x128xf32, #tpu.memory_space<vmem>>, %arg8: memref<128x256xbf16, #tpu.memory_space<vmem>>, %arg9: memref<1x256xf32, #tpu.memory_space<vmem>>, %arg10: memref<256x512xbf16, #tpu.memory_space<vmem>>, %arg11: memref<1x512xf32, #tpu.memory_space<vmem>>, %arg12: memref<512x256xbf16, #tpu.memory_space<vmem>>, %arg13: memref<1x256xf32, #tpu.memory_space<vmem>>, %arg14: memref<256x128xbf16, #tpu.memory_space<vmem>>, %arg15: memref<1x128xf32, #tpu.memory_space<vmem>>, %arg16: memref<128x16xbf16, #tpu.memory_space<vmem>>, %arg17: memref<1x16xf32, #tpu.memory_space<vmem>>, %arg18: memref<512x256xbf16, #tpu.memory_space<vmem>>, %arg19: memref<1x256xf32, #tpu.memory_space<vmem>>, %arg20: memref<256x128xbf16, #tpu.memory_space<vmem>>, %arg21: memref<1x128xf32, #tpu.memory_space<vmem>>, %arg22: memref<128x16xbf16, #tpu.memory_space<vmem>>, %arg23: memref<1x16xf32, #tpu.memory_space<vmem>>, %arg24: memref<2x16xf32, #tpu.memory_space<vmem>>, %arg25: memref<2x16xf32, #tpu.memory_space<vmem>>, %arg26: memref<2x512xf32, #tpu.memory_space<vmem>>) attributes {dimension_semantics = [#tpu.dimension_semantics<parallel>, #tpu.dimension_semantics<arbitrary>], iteration_bounds = array<i64: 1, 1>, scalar_prefetch = 0 : i64, scratch_operands = 1 : i64, tpu.core_type = #tpu.core_type<tc>, window_params = [{transform_indices = @transform_0, window_bounds = array<i64: 2, 3, 128>}, {transform_indices = @transform_1, window_bounds = array<i64: 2, 3, 3>}, {pipeline_mode = #tpu.pipeline_mode<synchronous>, transform_indices = @transform_2, window_bounds = array<i64: 3, 128>}, {pipeline_mode = #tpu.pipeline_mode<synchronous>, transform_indices = @transform_3, window_bounds = array<i64: 1, 128>}, {pipeline_mode = #tpu.pipeline_mode<synchronous>, transform_indices = @transform_4, window_bounds = array<i64: 128, 128>}, {pipeline_mode = #tpu.pipeline_mode<synchronous>, transform_indices = @transform_5, window_bounds = array<i64: 1, 128>}, {pipeline_mode = #tpu.pipeline_mode<synchronous>, transform_indices = @transform_6, window_bounds = array<i64: 128, 256>}, {pipeline_mode = #tpu.pipeline_mode<synchronous>, transform_indices = @transform_7, window_bounds = array<i64: 1, 256>}, {pipeline_mode = #tpu.pipeline_mode<synchronous>, transform_indices = @transform_8, window_bounds = array<i64: 256, 512>}, {pipeline_mode = #tpu.pipeline_mode<synchronous>, transform_indices = @transform_9, window_bounds = array<i64: 1, 512>}, {pipeline_mode = #tpu.pipeline_mode<synchronous>, transform_indices = @transform_10, window_bounds = array<i64: 512, 256>}, {pipeline_mode = #tpu.pipeline_mode<synchronous>, transform_indices = @transform_11, window_bounds = array<i64: 1, 256>}, {pipeline_mode = #tpu.pipeline_mode<synchronous>, transform_indices = @transform_12, window_bounds = array<i64: 256, 128>}, {pipeline_mode = #tpu.pipeline_mode<synchronous>, transform_indices = @transform_13, window_bounds = array<i64: 1, 128>}, {pipeline_mode = #tpu.pipeline_mode<synchronous>, transform_indices = @transform_14, window_bounds = array<i64: 128, 16>}, {pipeline_mode = #tpu.pipeline_mode<synchronous>, transform_indices = @transform_15, window_bounds = array<i64: 1, 16>}, {pipeline_mode = #tpu.pipeline_mode<synchronous>, transform_indices = @transform_16, window_bounds = array<i64: 512, 256>}, {pipeline_mode = #tpu.pipeline_mode<synchronous>, transform_indices = @transform_17, window_bounds = array<i64: 1, 256>}, {pipeline_mode = #tpu.pipeline_mode<synchronous>, transform_indices = @transform_18, window_bounds = array<i64: 256, 128>}, {pipeline_mode = #tpu.pipeline_mode<synchronous>, transform_indices = @transform_19, window_bounds = array<i64: 1, 128>}, {pipeline_mode = #tpu.pipeline_mode<synchronous>, transform_indices = @transform_20, window_bounds = array<i64: 128, 16>}, {pipeline_mode = #tpu.pipeline_mode<synchronous>, transform_indices = @transform_21, window_bounds = array<i64: 1, 16>}, {transform_indices = @transform_22, window_bounds = array<i64: 2, 16>}, {transform_indices = @transform_23, window_bounds = array<i64: 2, 16>}]} {
    %c0_i32 = arith.constant 0 : i32
    %0 = arith.cmpi eq, %arg1, %c0_i32 : i32
    %1 = arith.extui %0 : i1 to i32
    %c0_i32_0 = arith.constant 0 : i32
    %2 = arith.cmpi ne, %1, %c0_i32_0 : i32
    scf.if %2 {
      %cst_34 = arith.constant 0xFF800000 : f32
      %47 = vector.broadcast %cst_34 : f32 to vector<2x512xf32>
      %c0_35 = arith.constant 0 : index
      %c0_36 = arith.constant 0 : index
      %48 = vector.load %arg26[%c0_35, %c0_36] : memref<2x512xf32, #tpu.memory_space<vmem>>, vector<2x512xf32>
      tpu.vector_store %arg26[%c0_35, %c0_36], %47 {strides = array<i32>} : memref<2x512xf32, #tpu.memory_space<vmem>>, vector<2x512xf32>,
    } else {
    }
    %c0 = arith.constant 0 : index
    %c0_1 = arith.constant 0 : index
    %c0_2 = arith.constant 0 : index
    %3 = vector.load %arg2[%c0, %c0_1, %c0_2] : memref<2x3x128xf32, #tpu.memory_space<vmem>>, vector<2x3x128xf32>
    %4 = tpu.transpose %3, [0, 2, 1] : vector<2x3x128xf32> -> vector<2x128x3xf32>
    %5 = arith.truncf %4 : vector<2x128x3xf32> to vector<2x128x3xbf16>
    %c0_3 = arith.constant 0 : index
    %c0_4 = arith.constant 0 : index
    %c0_5 = arith.constant 0 : index
    %6 = vector.load %arg3[%c0_3, %c0_4, %c0_5] : memref<2x3x3xf32, #tpu.memory_space<vmem>>, vector<2x3x3xf32>
    %7 = arith.truncf %6 : vector<2x3x3xf32> to vector<2x3x3xbf16>
    "tpu.trace_start"() <{level = 10 : i32, message = "bnd,bde->bne"}> : () -> ()
    %cst = arith.constant dense<0.000000e+00> : vector<2x128x3xf32>
    %8 = tpu.matmul %5, %7, %cst {dimension_numbers = #tpu.dot_dimension_numbers<[2], [1], [1], [2], [0, 0, 0, 1, 1, 2], [0], [0]>} : vector<2x128x3xbf16>, vector<2x3x3xbf16>, vector<2x128x3xf32> -> vector<2x128x3xf32>
    "tpu.trace_stop"() : () -> ()
    %9 = arith.truncf %8 : vector<2x128x3xf32> to vector<2x128x3xbf16>
    %10 = vector.shape_cast %9 : vector<2x128x3xbf16> to vector<256x3xbf16>
    %c0_6 = arith.constant 0 : index
    %c0_7 = arith.constant 0 : index
    %11 = vector.load %arg4[%c0_6, %c0_7] : memref<3x128xbf16, #tpu.memory_space<vmem>>, vector<3x128xbf16>
    %cst_8 = arith.constant dense<0.000000e+00> : vector<256x128xf32>
    %12 = tpu.matmul %10, %11, %cst_8 {dimension_numbers = #tpu.dot_dimension_numbers<[1], [0], [0], [1], [0, 0, 1, 1], [], []>} : vector<256x3xbf16>, vector<3x128xbf16>, vector<256x128xf32> -> vector<256x128xf32>
    %c0_9 = arith.constant 0 : index
    %c0_10 = arith.constant 0 : index
    %13 = vector.load %arg5[%c0_9, %c0_10] : memref<1x128xf32, #tpu.memory_space<vmem>>, vector<1x128xf32>
    %14 = vector.broadcast %13 : vector<1x128xf32> to vector<256x128xf32>
    %15 = arith.addf %12, %14 : vector<256x128xf32>
    %cst_11 = arith.constant 0.000000e+00 : f32
    %16 = vector.broadcast %cst_11 : f32 to vector<256x128xf32>
    %17 = arith.maximumf %15, %16 : vector<256x128xf32>
    %18 = arith.truncf %17 : vector<256x128xf32> to vector<256x128xbf16>
    %c0_12 = arith.constant 0 : index
    %c0_13 = arith.constant 0 : index
    %19 = vector.load %arg6[%c0_12, %c0_13] : memref<128x128xbf16, #tpu.memory_space<vmem>>, vector<128x128xbf16>
    %cst_14 = arith.constant dense<0.000000e+00> : vector<256x128xf32>
    %20 = tpu.matmul %18, %19, %cst_14 {dimension_numbers = #tpu.dot_dimension_numbers<[1], [0], [0], [1], [0, 0, 1, 1], [], []>} : vector<256x128xbf16>, vector<128x128xbf16>, vector<256x128xf32> -> vector<256x128xf32>
    %c0_15 = arith.constant 0 : index
    %c0_16 = arith.constant 0 : index
    %21 = vector.load %arg7[%c0_15, %c0_16] : memref<1x128xf32, #tpu.memory_space<vmem>>, vector<1x128xf32>
    %22 = vector.broadcast %21 : vector<1x128xf32> to vector<256x128xf32>
    %23 = arith.addf %20, %22 : vector<256x128xf32>
    %cst_17 = arith.constant 0.000000e+00 : f32
    %24 = vector.broadcast %cst_17 : f32 to vector<256x128xf32>
    %25 = arith.maximumf %23, %24 : vector<256x128xf32>
    %26 = arith.truncf %25 : vector<256x128xf32> to vector<256x128xbf16>
    %c0_18 = arith.constant 0 : index
    %c0_19 = arith.constant 0 : index
    %27 = vector.load %arg8[%c0_18, %c0_19] : memref<128x256xbf16, #tpu.memory_space<vmem>>, vector<128x256xbf16>
    %cst_20 = arith.constant dense<0.000000e+00> : vector<256x256xf32>
    %28 = tpu.matmul %26, %27, %cst_20 {dimension_numbers = #tpu.dot_dimension_numbers<[1], [0], [0], [1], [0, 0, 1, 1], [], []>} : vector<256x128xbf16>, vector<128x256xbf16>, vector<256x256xf32> -> vector<256x256xf32>
    %c0_21 = arith.constant 0 : index
    %c0_22 = arith.constant 0 : index
    %29 = vector.load %arg9[%c0_21, %c0_22] : memref<1x256xf32, #tpu.memory_space<vmem>>, vector<1x256xf32>
    %30 = vector.broadcast %29 : vector<1x256xf32> to vector<256x256xf32>
    %31 = arith.addf %28, %30 : vector<256x256xf32>
    %cst_23 = arith.constant 0.000000e+00 : f32
    %32 = vector.broadcast %cst_23 : f32 to vector<256x256xf32>
    %33 = arith.maximumf %31, %32 : vector<256x256xf32>
    %34 = arith.truncf %33 : vector<256x256xf32> to vector<256x256xbf16>
    %c0_24 = arith.constant 0 : index
    %c0_25 = arith.constant 0 : index
    %35 = vector.load %arg10[%c0_24, %c0_25] : memref<256x512xbf16, #tpu.memory_space<vmem>>, vector<256x512xbf16>
    %cst_26 = arith.constant dense<0.000000e+00> : vector<256x512xf32>
    %36 = tpu.matmul %34, %35, %cst_26 {dimension_numbers = #tpu.dot_dimension_numbers<[1], [0], [0], [1], [0, 0, 1, 1], [], []>} : vector<256x256xbf16>, vector<256x512xbf16>, vector<256x512xf32> -> vector<256x512xf32>
    %37 = arith.truncf %36 : vector<256x512xf32> to vector<256x512xbf16>
    %38 = vector.shape_cast %37 : vector<256x512xbf16> to vector<2x128x512xbf16>
    %cst_27 = arith.constant dense<0xFF80> : vector<2x512xbf16>
    %39 = vector.multi_reduction <maximumf>, %38, %cst_27 [1] : vector<2x128x512xbf16> to vector<2x512xbf16>
    %c0_28 = arith.constant 0 : index
    %c0_29 = arith.constant 0 : index
    %40 = vector.load %arg26[%c0_28, %c0_29] : memref<2x512xf32, #tpu.memory_space<vmem>>, vector<2x512xf32>
    %41 = arith.extf %39 : vector<2x512xbf16> to vector<2x512xf32>
    %42 = arith.maximumf %40, %41 : vector<2x512xf32>
    %c0_30 = arith.constant 0 : index
    %c0_31 = arith.constant 0 : index
    %43 = vector.load %arg26[%c0_30, %c0_31] : memref<2x512xf32, #tpu.memory_space<vmem>>, vector<2x512xf32>
    tpu.vector_store %arg26[%c0_30, %c0_31], %42 {strides = array<i32>} : memref<2x512xf32, #tpu.memory_space<vmem>>, vector<2x512xf32>,
    %c0_i32_32 = arith.constant 0 : i32
    %44 = arith.cmpi eq, %arg1, %c0_i32_32 : i32
    %45 = arith.extui %44 : i1 to i32
    %c0_i32_33 = arith.constant 0 : i32
    %46 = arith.cmpi ne, %45, %c0_i32_33 : i32
    scf.if %46 {
      %c0_34 = arith.constant 0 : index
      %c0_35 = arith.constant 0 : index
      %47 = vector.load %arg26[%c0_34, %c0_35] : memref<2x512xf32, #tpu.memory_space<vmem>>, vector<2x512xf32>
      %c0_36 = arith.constant 0 : index
      %c0_37 = arith.constant 0 : index
      %48 = vector.load %arg11[%c0_36, %c0_37] : memref<1x512xf32, #tpu.memory_space<vmem>>, vector<1x512xf32>
      %49 = vector.broadcast %48 : vector<1x512xf32> to vector<2x512xf32>
      %50 = arith.addf %47, %49 : vector<2x512xf32>
      %51 = arith.truncf %50 : vector<2x512xf32> to vector<2x512xbf16>
      %c0_38 = arith.constant 0 : index
      %c0_39 = arith.constant 0 : index
      %52 = vector.load %arg12[%c0_38, %c0_39] : memref<512x256xbf16, #tpu.memory_space<vmem>>, vector<512x256xbf16>
      %cst_40 = arith.constant dense<0.000000e+00> : vector<2x256xf32>
      %53 = tpu.matmul %51, %52, %cst_40 {dimension_numbers = #tpu.dot_dimension_numbers<[1], [0], [0], [1], [0, 0, 1, 1], [], []>} : vector<2x512xbf16>, vector<512x256xbf16>, vector<2x256xf32> -> vector<2x256xf32>
      %c0_41 = arith.constant 0 : index
      %c0_42 = arith.constant 0 : index
      %54 = vector.load %arg13[%c0_41, %c0_42] : memref<1x256xf32, #tpu.memory_space<vmem>>, vector<1x256xf32>
      %55 = vector.broadcast %54 : vector<1x256xf32> to vector<2x256xf32>
      %56 = arith.addf %53, %55 : vector<2x256xf32>
      %cst_43 = arith.constant 0.000000e+00 : f32
      %57 = vector.broadcast %cst_43 : f32 to vector<2x256xf32>
      %58 = arith.maximumf %56, %57 : vector<2x256xf32>
      %59 = arith.truncf %58 : vector<2x256xf32> to vector<2x256xbf16>
      %c0_44 = arith.constant 0 : index
      %c0_45 = arith.constant 0 : index
      %60 = vector.load %arg14[%c0_44, %c0_45] : memref<256x128xbf16, #tpu.memory_space<vmem>>, vector<256x128xbf16>
      %cst_46 = arith.constant dense<0.000000e+00> : vector<2x128xf32>
      %61 = tpu.matmul %59, %60, %cst_46 {dimension_numbers = #tpu.dot_dimension_numbers<[1], [0], [0], [1], [0, 0, 1, 1], [], []>} : vector<2x256xbf16>, vector<256x128xbf16>, vector<2x128xf32> -> vector<2x128xf32>
      %c0_47 = arith.constant 0 : index
      %c0_48 = arith.constant 0 : index
      %62 = vector.load %arg15[%c0_47, %c0_48] : memref<1x128xf32, #tpu.memory_space<vmem>>, vector<1x128xf32>
      %63 = vector.broadcast %62 : vector<1x128xf32> to vector<2x128xf32>
      %64 = arith.addf %61, %63 : vector<2x128xf32>
      %cst_49 = arith.constant 0.000000e+00 : f32
      %65 = vector.broadcast %cst_49 : f32 to vector<2x128xf32>
      %66 = arith.maximumf %64, %65 : vector<2x128xf32>
      %67 = arith.truncf %66 : vector<2x128xf32> to vector<2x128xbf16>
      %c0_50 = arith.constant 0 : index
      %c0_51 = arith.constant 0 : index
      %68 = vector.load %arg16[%c0_50, %c0_51] : memref<128x16xbf16, #tpu.memory_space<vmem>>, vector<128x16xbf16>
      %cst_52 = arith.constant dense<0.000000e+00> : vector<2x16xf32>
      %69 = tpu.matmul %67, %68, %cst_52 {dimension_numbers = #tpu.dot_dimension_numbers<[1], [0], [0], [1], [0, 0, 1, 1], [], []>} : vector<2x128xbf16>, vector<128x16xbf16>, vector<2x16xf32> -> vector<2x16xf32>
      %c0_53 = arith.constant 0 : index
      %c0_54 = arith.constant 0 : index
      %70 = vector.load %arg17[%c0_53, %c0_54] : memref<1x16xf32, #tpu.memory_space<vmem>>, vector<1x16xf32>
      %71 = vector.broadcast %70 : vector<1x16xf32> to vector<2x16xf32>
      %72 = arith.addf %69, %71 : vector<2x16xf32>
      %c0_55 = arith.constant 0 : index
      %c0_56 = arith.constant 0 : index
      %73 = vector.load %arg24[%c0_55, %c0_56] : memref<2x16xf32, #tpu.memory_space<vmem>>, vector<2x16xf32>
      tpu.vector_store %arg24[%c0_55, %c0_56], %72 {strides = array<i32>} : memref<2x16xf32, #tpu.memory_space<vmem>>, vector<2x16xf32>,
      %c0_57 = arith.constant 0 : index
      %c0_58 = arith.constant 0 : index
      %74 = vector.load %arg18[%c0_57, %c0_58] : memref<512x256xbf16, #tpu.memory_space<vmem>>, vector<512x256xbf16>
      %cst_59 = arith.constant dense<0.000000e+00> : vector<2x256xf32>
      %75 = tpu.matmul %51, %74, %cst_59 {dimension_numbers = #tpu.dot_dimension_numbers<[1], [0], [0], [1], [0, 0, 1, 1], [], []>} : vector<2x512xbf16>, vector<512x256xbf16>, vector<2x256xf32> -> vector<2x256xf32>
      %c0_60 = arith.constant 0 : index
      %c0_61 = arith.constant 0 : index
      %76 = vector.load %arg19[%c0_60, %c0_61] : memref<1x256xf32, #tpu.memory_space<vmem>>, vector<1x256xf32>
      %77 = vector.broadcast %76 : vector<1x256xf32> to vector<2x256xf32>
      %78 = arith.addf %75, %77 : vector<2x256xf32>
      %cst_62 = arith.constant 0.000000e+00 : f32
      %79 = vector.broadcast %cst_62 : f32 to vector<2x256xf32>
      %80 = arith.maximumf %78, %79 : vector<2x256xf32>
      %81 = arith.truncf %80 : vector<2x256xf32> to vector<2x256xbf16>
      %c0_63 = arith.constant 0 : index
      %c0_64 = arith.constant 0 : index
      %82 = vector.load %arg20[%c0_63, %c0_64] : memref<256x128xbf16, #tpu.memory_space<vmem>>, vector<256x128xbf16>
      %cst_65 = arith.constant dense<0.000000e+00> : vector<2x128xf32>
      %83 = tpu.matmul %81, %82, %cst_65 {dimension_numbers = #tpu.dot_dimension_numbers<[1], [0], [0], [1], [0, 0, 1, 1], [], []>} : vector<2x256xbf16>, vector<256x128xbf16>, vector<2x128xf32> -> vector<2x128xf32>
      %c0_66 = arith.constant 0 : index
      %c0_67 = arith.constant 0 : index
      %84 = vector.load %arg21[%c0_66, %c0_67] : memref<1x128xf32, #tpu.memory_space<vmem>>, vector<1x128xf32>
      %85 = vector.broadcast %84 : vector<1x128xf32> to vector<2x128xf32>
      %86 = arith.addf %83, %85 : vector<2x128xf32>
      %cst_68 = arith.constant 0.000000e+00 : f32
      %87 = vector.broadcast %cst_68 : f32 to vector<2x128xf32>
      %88 = arith.maximumf %86, %87 : vector<2x128xf32>
      %89 = arith.truncf %88 : vector<2x128xf32> to vector<2x128xbf16>
      %c0_69 = arith.constant 0 : index
      %c0_70 = arith.constant 0 : index
      %90 = vector.load %arg22[%c0_69, %c0_70] : memref<128x16xbf16, #tpu.memory_space<vmem>>, vector<128x16xbf16>
      %cst_71 = arith.constant dense<0.000000e+00> : vector<2x16xf32>
      %91 = tpu.matmul %89, %90, %cst_71 {dimension_numbers = #tpu.dot_dimension_numbers<[1], [0], [0], [1], [0, 0, 1, 1], [], []>} : vector<2x128xbf16>, vector<128x16xbf16>, vector<2x16xf32> -> vector<2x16xf32>
      %c0_72 = arith.constant 0 : index
      %c0_73 = arith.constant 0 : index
      %92 = vector.load %arg23[%c0_72, %c0_73] : memref<1x16xf32, #tpu.memory_space<vmem>>, vector<1x16xf32>
      %93 = vector.broadcast %92 : vector<1x16xf32> to vector<2x16xf32>
      %94 = arith.addf %91, %93 : vector<2x16xf32>
      %c0_74 = arith.constant 0 : index
      %c0_75 = arith.constant 0 : index
      %95 = vector.load %arg25[%c0_74, %c0_75] : memref<2x16xf32, #tpu.memory_space<vmem>>, vector<2x16xf32>
      tpu.vector_store %arg25[%c0_74, %c0_75], %94 {strides = array<i32>} : memref<2x16xf32, #tpu.memory_space<vmem>>, vector<2x16xf32>,
    } else {
    }
    return
  }
  func.func @transform_0(%arg0: i32, %arg1: i32) -> (i32, i32, i32) {
    %c0_i32 = arith.constant 0 : i32
    %c0_i32_0 = arith.constant 0 : i32
    return %arg0, %c0_i32, %arg1 : i32, i32, i32
  }
  func.func @transform_1(%arg0: i32, %arg1: i32) -> (i32, i32, i32) {
    %c0_i32 = arith.constant 0 : i32
    %c0_i32_0 = arith.constant 0 : i32
    %c0_i32_1 = arith.constant 0 : i32
    return %arg0, %c0_i32, %c0_i32_0 : i32, i32, i32
  }
  func.func @transform_2(%arg0: i32, %arg1: i32) -> (i32, i32) {
    %c0_i32 = arith.constant 0 : i32
    %c0_i32_0 = arith.constant 0 : i32
    %c0_i32_1 = arith.constant 0 : i32
    return %c0_i32, %c0_i32_0 : i32, i32
  }
  func.func @transform_3(%arg0: i32, %arg1: i32) -> (i32, i32) {
    %c0_i32 = arith.constant 0 : i32
    %c0_i32_0 = arith.constant 0 : i32
    %c0_i32_1 = arith.constant 0 : i32
    return %c0_i32, %c0_i32_0 : i32, i32
  }
  func.func @transform_4(%arg0: i32, %arg1: i32) -> (i32, i32) {
    %c0_i32 = arith.constant 0 : i32
    %c0_i32_0 = arith.constant 0 : i32
    %c0_i32_1 = arith.constant 0 : i32
    return %c0_i32, %c0_i32_0 : i32, i32
  }
  func.func @transform_5(%arg0: i32, %arg1: i32) -> (i32, i32) {
    %c0_i32 = arith.constant 0 : i32
    %c0_i32_0 = arith.constant 0 : i32
    %c0_i32_1 = arith.constant 0 : i32
    return %c0_i32, %c0_i32_0 : i32, i32
  }
  func.func @transform_6(%arg0: i32, %arg1: i32) -> (i32, i32) {
    %c0_i32 = arith.constant 0 : i32
    %c0_i32_0 = arith.constant 0 : i32
    %c0_i32_1 = arith.constant 0 : i32
    return %c0_i32, %c0_i32_0 : i32, i32
  }
  func.func @transform_7(%arg0: i32, %arg1: i32) -> (i32, i32) {
    %c0_i32 = arith.constant 0 : i32
    %c0_i32_0 = arith.constant 0 : i32
    %c0_i32_1 = arith.constant 0 : i32
    return %c0_i32, %c0_i32_0 : i32, i32
  }
  func.func @transform_8(%arg0: i32, %arg1: i32) -> (i32, i32) {
    %c0_i32 = arith.constant 0 : i32
    %c0_i32_0 = arith.constant 0 : i32
    %c0_i32_1 = arith.constant 0 : i32
    return %c0_i32, %c0_i32_0 : i32, i32
  }
  func.func @transform_9(%arg0: i32, %arg1: i32) -> (i32, i32) {
    %c0_i32 = arith.constant 0 : i32
    %c0_i32_0 = arith.constant 0 : i32
    %c0_i32_1 = arith.constant 0 : i32
    return %c0_i32, %c0_i32_0 : i32, i32
  }
  func.func @transform_10(%arg0: i32, %arg1: i32) -> (i32, i32) {
    %c0_i32 = arith.constant 0 : i32
    %c0_i32_0 = arith.constant 0 : i32
    %c0_i32_1 = arith.constant 0 : i32
    return %c0_i32, %c0_i32_0 : i32, i32
  }
  func.func @transform_11(%arg0: i32, %arg1: i32) -> (i32, i32) {
    %c0_i32 = arith.constant 0 : i32
    %c0_i32_0 = arith.constant 0 : i32
    %c0_i32_1 = arith.constant 0 : i32
    return %c0_i32, %c0_i32_0 : i32, i32
  }
  func.func @transform_12(%arg0: i32, %arg1: i32) -> (i32, i32) {
    %c0_i32 = arith.constant 0 : i32
    %c0_i32_0 = arith.constant 0 : i32
    %c0_i32_1 = arith.constant 0 : i32
    return %c0_i32, %c0_i32_0 : i32, i32
  }
  func.func @transform_13(%arg0: i32, %arg1: i32) -> (i32, i32) {
    %c0_i32 = arith.constant 0 : i32
    %c0_i32_0 = arith.constant 0 : i32
    %c0_i32_1 = arith.constant 0 : i32
    return %c0_i32, %c0_i32_0 : i32, i32
  }
  func.func @transform_14(%arg0: i32, %arg1: i32) -> (i32, i32) {
    %c0_i32 = arith.constant 0 : i32
    %c0_i32_0 = arith.constant 0 : i32
    %c0_i32_1 = arith.constant 0 : i32
    return %c0_i32, %c0_i32_0 : i32, i32
  }
  func.func @transform_15(%arg0: i32, %arg1: i32) -> (i32, i32) {
    %c0_i32 = arith.constant 0 : i32
    %c0_i32_0 = arith.constant 0 : i32
    %c0_i32_1 = arith.constant 0 : i32
    return %c0_i32, %c0_i32_0 : i32, i32
  }
  func.func @transform_16(%arg0: i32, %arg1: i32) -> (i32, i32) {
    %c0_i32 = arith.constant 0 : i32
    %c0_i32_0 = arith.constant 0 : i32
    %c0_i32_1 = arith.constant 0 : i32
    return %c0_i32, %c0_i32_0 : i32, i32
  }
  func.func @transform_17(%arg0: i32, %arg1: i32) -> (i32, i32) {
    %c0_i32 = arith.constant 0 : i32
    %c0_i32_0 = arith.constant 0 : i32
    %c0_i32_1 = arith.constant 0 : i32
    return %c0_i32, %c0_i32_0 : i32, i32
  }
  func.func @transform_18(%arg0: i32, %arg1: i32) -> (i32, i32) {
    %c0_i32 = arith.constant 0 : i32
    %c0_i32_0 = arith.constant 0 : i32
    %c0_i32_1 = arith.constant 0 : i32
    return %c0_i32, %c0_i32_0 : i32, i32
  }
  func.func @transform_19(%arg0: i32, %arg1: i32) -> (i32, i32) {
    %c0_i32 = arith.constant 0 : i32
    %c0_i32_0 = arith.constant 0 : i32
    %c0_i32_1 = arith.constant 0 : i32
    return %c0_i32, %c0_i32_0 : i32, i32
  }
  func.func @transform_20(%arg0: i32, %arg1: i32) -> (i32, i32) {
    %c0_i32 = arith.constant 0 : i32
    %c0_i32_0 = arith.constant 0 : i32
    %c0_i32_1 = arith.constant 0 : i32
    return %c0_i32, %c0_i32_0 : i32, i32
  }
  func.func @transform_21(%arg0: i32, %arg1: i32) -> (i32, i32) {
    %c0_i32 = arith.constant 0 : i32
    %c0_i32_0 = arith.constant 0 : i32
    %c0_i32_1 = arith.constant 0 : i32
    return %c0_i32, %c0_i32_0 : i32, i32
  }
  func.func @transform_22(%arg0: i32, %arg1: i32) -> (i32, i32) {
    %c0_i32 = arith.constant 0 : i32
    %c0_i32_0 = arith.constant 0 : i32
    return %arg0, %c0_i32 : i32, i32
  }
  func.func @transform_23(%arg0: i32, %arg1: i32) -> (i32, i32) {
    %c0_i32 = arith.constant 0 : i32
    %c0_i32_0 = arith.constant 0 : i32
    return %arg0, %c0_i32 : i32, i32
  }
}

</mosaic_0001>

<llo_original>
// kernel: rot_encoder_forward.3
$region0: #{rot_encoder_forward.3}
  #allocation0 [shape = 'u32[]', space=smem, size = 0x4, offset = 0x4, fixed_abs, tag = 'smem constant byte address 0x4 - core index']
  #allocation1 [shape = 'u32[144,128]{1,0:T(1,128)}', space=vmem, size = 0x12000, scoped, tag = 'internal scratch']
  #allocation2 [shape = 'f32[2,512]{1,0:T(2,128)}', space=vmem, size = 0x1000, scoped, tag = 'scratch operand']
  %s0 = inlined_call_operand.vmem [shape: f32[2,3,128], index: 0, kind: input, shape index: {}]
  %s1 = inlined_call_operand.vmem [shape: f32[2,3,3], index: 1, kind: input, shape index: {}]
  %s2 = inlined_call_operand.vmem [shape: bf16[3,128], index: 2, kind: input, shape index: {}]
  %s3 = inlined_call_operand.vmem [shape: f32[1,128], index: 3, kind: input, shape index: {}]
  %s4 = inlined_call_operand.vmem [shape: bf16[128,128], index: 4, kind: input, shape index: {}]
  %s5 = inlined_call_operand.vmem [shape: f32[1,128], index: 5, kind: input, shape index: {}]
  %s6 = inlined_call_operand.vmem [shape: bf16[128,256], index: 6, kind: input, shape index: {}]
  %s7 = inlined_call_operand.vmem [shape: f32[1,256], index: 7, kind: input, shape index: {}]
  %s8 = inlined_call_operand.vmem [shape: bf16[256,512], index: 8, kind: input, shape index: {}]
  %s9 = inlined_call_operand.vmem [shape: f32[1,512], index: 9, kind: input, shape index: {}]
  %s10 = inlined_call_operand.vmem [shape: bf16[512,256], index: 10, kind: input, shape index: {}]
  %s11 = inlined_call_operand.vmem [shape: f32[1,256], index: 11, kind: input, shape index: {}]
  %s12 = inlined_call_operand.vmem [shape: bf16[256,128], index: 12, kind: input, shape index: {}]
  %s13 = inlined_call_operand.vmem [shape: f32[1,128], index: 13, kind: input, shape index: {}]
  %s14 = inlined_call_operand.vmem [shape: bf16[128,16], index: 14, kind: input, shape index: {}]
  %s15 = inlined_call_operand.vmem [shape: f32[1,16], index: 15, kind: input, shape index: {}]
  %s16 = inlined_call_operand.vmem [shape: bf16[512,256], index: 16, kind: input, shape index: {}]
  %s17 = inlined_call_operand.vmem [shape: f32[1,256], index: 17, kind: input, shape index: {}]
  %s18 = inlined_call_operand.vmem [shape: bf16[256,128], index: 18, kind: input, shape index: {}]
  %s19 = inlined_call_operand.vmem [shape: f32[1,128], index: 19, kind: input, shape index: {}]
  %s20 = inlined_call_operand.vmem [shape: bf16[128,16], index: 20, kind: input, shape index: {}]
  %s21 = inlined_call_operand.vmem [shape: f32[1,16], index: 21, kind: input, shape index: {}]
  %s22 = inlined_call_operand.hbm [shape: f32[2,16], index: 22, kind: output, shape index: {0}]
  %s23 = inlined_call_operand.hbm [shape: f32[2,16], index: 23, kind: output, shape index: {1}]
  %24 = xla_tuple %s22, %s23
  %s25 = sld [smem:[#allocation0]]
  $region114: #{rot_encoder_forward.3} parent=0
    _
  %s27 = ssub.s32 1, %s25
  %s28 = scalar_select 0, %s27, %s25
  $region1: #{rot_encoder_forward.3} parent=0
    #allocation3 [shape = 'u8[1024]{0}', space=vmem, size = 0x400, scoped, tag = 'output window, operand 0, single buffered']
    #allocation4 [shape = 's32[1]{0}', space=sflag, size = 0x4, scoped, tag = 'scoped memory for rot_encoder_forward.3']
    #allocation5 [shape = 'u8[1024]{0}', space=vmem, size = 0x400, scoped, tag = 'output window, operand 1, single buffered']
    #allocation6 [shape = 's32[1]{0}', space=sflag, size = 0x4, scoped, tag = 'scoped memory for rot_encoder_forward.3']
    %29 = vsyncpa [#allocation4], 0
    %30 = vsyncpa [#allocation6], 0
    // Predicated region
    $region2: #{rot_encoder_forward.3} parent=1 // pred_check
      _
    $region3: #{rot_encoder_forward.3} parent=1 // pred_check_branch
      %32 = sbr.rel (0) target = $region5
    $region4: #{rot_encoder_forward.3} parent=1 // pred_region
      _
    $region5: #{rot_encoder_forward.3} parent=1 // pred_fallthru
      _
    // Predicated region
    $region6: #{rot_encoder_forward.3} parent=1 // pred_check
      _
    $region7: #{rot_encoder_forward.3} parent=1 // pred_check_branch
      %34 = sbr.rel (0) target = $region9
    $region8: #{rot_encoder_forward.3} parent=1 // pred_region
      _
    $region9: #{rot_encoder_forward.3} parent=1 // pred_fallthru
      _
    // Predicated region
    $region10: #{rot_encoder_forward.3} parent=1 // pred_check
      _
    $region11: #{rot_encoder_forward.3} parent=1 // pred_check_branch
      %36 = sbr.rel (0) target = $region13
    $region12: #{rot_encoder_forward.3} parent=1 // pred_region
      _
    $region13: #{rot_encoder_forward.3} parent=1 // pred_fallthru
      _
    // Predicated region
    $region14: #{rot_encoder_forward.3} parent=1 // pred_check
      _
    $region15: #{rot_encoder_forward.3} parent=1 // pred_check_branch
      %38 = sbr.rel (0) target = $region17
    $region16: #{rot_encoder_forward.3} parent=1 // pred_region
      _
    $region17: #{rot_encoder_forward.3} parent=1 // pred_fallthru
      _
    // Predicated region
    $region18: #{rot_encoder_forward.3} parent=1 // pred_check
      _
    $region19: #{rot_encoder_forward.3} parent=1 // pred_check_branch
      %40 = sbr.rel (0) target = $region21
    $region20: #{rot_encoder_forward.3} parent=1 // pred_region
      _
    $region21: #{rot_encoder_forward.3} parent=1 // pred_fallthru
      _
    // Predicated region
    $region22: #{rot_encoder_forward.3} parent=1 // pred_check
      _
    $region23: #{rot_encoder_forward.3} parent=1 // pred_check_branch
      %42 = sbr.rel (0) target = $region25
    $region24: #{rot_encoder_forward.3} parent=1 // pred_region
      _
    $region25: #{rot_encoder_forward.3} parent=1 // pred_fallthru
      _
    // Predicated region
    $region26: #{rot_encoder_forward.3} parent=1 // pred_check
      _
    $region27: #{rot_encoder_forward.3} parent=1 // pred_check_branch
      %44 = sbr.rel (0) target = $region29
    $region28: #{rot_encoder_forward.3} parent=1 // pred_region
      _
    $region29: #{rot_encoder_forward.3} parent=1 // pred_fallthru
      _
    // Predicated region
    $region30: #{rot_encoder_forward.3} parent=1 // pred_check
      _
    $region31: #{rot_encoder_forward.3} parent=1 // pred_check_branch
      %46 = sbr.rel (0) target = $region33
    $region32: #{rot_encoder_forward.3} parent=1 // pred_region
      _
    $region33: #{rot_encoder_forward.3} parent=1 // pred_fallthru
      _
    // Predicated region
    $region34: #{rot_encoder_forward.3} parent=1 // pred_check
      _
    $region35: #{rot_encoder_forward.3} parent=1 // pred_check_branch
      %48 = sbr.rel (0) target = $region37
    $region36: #{rot_encoder_forward.3} parent=1 // pred_region
      _
    $region37: #{rot_encoder_forward.3} parent=1 // pred_fallthru
      _
    // Predicated region
    $region38: #{rot_encoder_forward.3} parent=1 // pred_check
      _
    $region39: #{rot_encoder_forward.3} parent=1 // pred_check_branch
      %50 = sbr.rel (0) target = $region41
    $region40: #{rot_encoder_forward.3} parent=1 // pred_region
      _
    $region41: #{rot_encoder_forward.3} parent=1 // pred_fallthru
      _
    // Predicated region
    $region42: #{rot_encoder_forward.3} parent=1 // pred_check
      _
    $region43: #{rot_encoder_forward.3} parent=1 // pred_check_branch
      %52 = sbr.rel (0) target = $region45
    $region44: #{rot_encoder_forward.3} parent=1 // pred_region
      _
    $region45: #{rot_encoder_forward.3} parent=1 // pred_fallthru
      _
    // Predicated region
    $region46: #{rot_encoder_forward.3} parent=1 // pred_check
      _
    $region47: #{rot_encoder_forward.3} parent=1 // pred_check_branch
      %54 = sbr.rel (0) target = $region49
    $region48: #{rot_encoder_forward.3} parent=1 // pred_region
      _
    $region49: #{rot_encoder_forward.3} parent=1 // pred_fallthru
      _
    // Predicated region
    $region50: #{rot_encoder_forward.3} parent=1 // pred_check
      _
    $region51: #{rot_encoder_forward.3} parent=1 // pred_check_branch
      %56 = sbr.rel (0) target = $region53
    $region52: #{rot_encoder_forward.3} parent=1 // pred_region
      _
    $region53: #{rot_encoder_forward.3} parent=1 // pred_fallthru
      _
    // Predicated region
    $region54: #{rot_encoder_forward.3} parent=1 // pred_check
      _
    $region55: #{rot_encoder_forward.3} parent=1 // pred_check_branch
      %58 = sbr.rel (0) target = $region57
    $region56: #{rot_encoder_forward.3} parent=1 // pred_region
      _
    $region57: #{rot_encoder_forward.3} parent=1 // pred_fallthru
      _
    // Predicated region
    $region58: #{rot_encoder_forward.3} parent=1 // pred_check
      _
    $region59: #{rot_encoder_forward.3} parent=1 // pred_check_branch
      %60 = sbr.rel (0) target = $region61
    $region60: #{rot_encoder_forward.3} parent=1 // pred_region
      _
    $region61: #{rot_encoder_forward.3} parent=1 // pred_fallthru
      _
    // Predicated region
    $region62: #{rot_encoder_forward.3} parent=1 // pred_check
      _
    $region63: #{rot_encoder_forward.3} parent=1 // pred_check_branch
      %62 = sbr.rel (0) target = $region65
    $region64: #{rot_encoder_forward.3} parent=1 // pred_region
      _
    $region65: #{rot_encoder_forward.3} parent=1 // pred_fallthru
      _
    // Predicated region
    $region66: #{rot_encoder_forward.3} parent=1 // pred_check
      _
    $region67: #{rot_encoder_forward.3} parent=1 // pred_check_branch
      %64 = sbr.rel (0) target = $region69
    $region68: #{rot_encoder_forward.3} parent=1 // pred_region
      _
    $region69: #{rot_encoder_forward.3} parent=1 // pred_fallthru
      _
    // Predicated region
    $region70: #{rot_encoder_forward.3} parent=1 // pred_check
      _
    $region71: #{rot_encoder_forward.3} parent=1 // pred_check_branch
      %66 = sbr.rel (0) target = $region73
    $region72: #{rot_encoder_forward.3} parent=1 // pred_region
      _
    $region73: #{rot_encoder_forward.3} parent=1 // pred_fallthru
      _
    // Predicated region
    $region74: #{rot_encoder_forward.3} parent=1 // pred_check
      _
    $region75: #{rot_encoder_forward.3} parent=1 // pred_check_branch
      %68 = sbr.rel (0) target = $region77
    $region76: #{rot_encoder_forward.3} parent=1 // pred_region
      _
    $region77: #{rot_encoder_forward.3} parent=1 // pred_fallthru
      _
    // Predicated region
    $region78: #{rot_encoder_forward.3} parent=1 // pred_check
      _
    $region79: #{rot_encoder_forward.3} parent=1 // pred_check_branch
      %70 = sbr.rel (0) target = $region81
    $region80: #{rot_encoder_forward.3} parent=1 // pred_region
      _
    $region81: #{rot_encoder_forward.3} parent=1 // pred_fallthru
      _
    // Predicated region
    $region82: #{rot_encoder_forward.3} parent=1 // pred_check
      _
    $region83: #{rot_encoder_forward.3} parent=1 // pred_check_branch
      %72 = sbr.rel (0) target = $region85
    $region84: #{rot_encoder_forward.3} parent=1 // pred_region
      _
    $region85: #{rot_encoder_forward.3} parent=1 // pred_fallthru
      _
    // Predicated region
    $region86: #{rot_encoder_forward.3} parent=1 // pred_check
      _
    $region87: #{rot_encoder_forward.3} parent=1 // pred_check_branch
      %74 = sbr.rel (0) target = $region89
    $region88: #{rot_encoder_forward.3} parent=1 // pred_region
      _
    $region89: #{rot_encoder_forward.3} parent=1 // pred_fallthru
      _
    %p76 = scmp.eq.s32.totalorder 0, 0
    // Predicated region
    $region90: #{rot_encoder_forward.3} parent=1 // pred_check
      %p77 = pneg %p76
    $region91: #{rot_encoder_forward.3} parent=1 // pred_check_branch
      %79 = sbr.rel (%p77) target = $region93
    $region92: #{rot_encoder_forward.3} parent=1 // pred_region
      %80 = vst [vmem:[#allocation2] sm:$0xff] -inf
    $region93: #{rot_encoder_forward.3} parent=1 // pred_fallthru
      _
    %v81 = vld [vmem:[%s0] sm:$0x7]
    %v82 = vld [vmem:[%s0 + $0x4] sm:$0x7]
    %83 = vxpose.xlu0.b32.start [1/16] %v81, 128
    %84 = vxpose.xlu0.b32.cont [2/16] 0.0, 128
    %85 = vxpose.xlu0.b32.cont [3/16] 0.0, 128
    %86 = vxpose.xlu0.b32.cont [4/16] 0.0, 128
    %87 = vxpose.xlu0.b32.cont [5/16] 0.0, 128
    %88 = vxpose.xlu0.b32.cont [6/16] 0.0, 128
    %89 = vxpose.xlu0.b32.cont [7/16] 0.0, 128
    %90 = vxpose.xlu0.b32.cont [8/16] 0.0, 128
    %91 = vxpose.xlu0.b32.cont [9/16] 0.0, 128
    %92 = vxpose.xlu0.b32.cont [10/16] 0.0, 128
    %93 = vxpose.xlu0.b32.cont [11/16] 0.0, 128
    %94 = vxpose.xlu0.b32.cont [12/16] 0.0, 128
    %95 = vxpose.xlu0.b32.cont [13/16] 0.0, 128
    %96 = vxpose.xlu0.b32.cont [14/16] 0.0, 128
    %97 = vxpose.xlu0.b32.cont [15/16] 0.0, 128
    %98 = vxpose.xlu0.b32.end [16/16] 0.0, 128
    %v99 = vpop.trf.xlu0
    %v100 = vpop.trf.xlu0
    %v101 = vpop.trf.xlu0
    %v102 = vpop.trf.xlu0
    %v103 = vpop.trf.xlu0
    %v104 = vpop.trf.xlu0
    %v105 = vpop.trf.xlu0
    %v106 = vpop.trf.xlu0
    %v107 = vpop.trf.xlu0
    %v108 = vpop.trf.xlu0
    %v109 = vpop.trf.xlu0
    %v110 = vpop.trf.xlu0
    %v111 = vpop.trf.xlu0
    %v112 = vpop.trf.xlu0
    %v113 = vpop.trf.xlu0
    %v114 = vpop.trf.xlu0
    %115 = vxpose.xlu0.b32.start [1/16] %v82, 128
    %116 = vxpose.xlu0.b32.cont [2/16] 0.0, 128
    %117 = vxpose.xlu0.b32.cont [3/16] 0.0, 128
    %118 = vxpose.xlu0.b32.cont [4/16] 0.0, 128
    %119 = vxpose.xlu0.b32.cont [5/16] 0.0, 128
    %120 = vxpose.xlu0.b32.cont [6/16] 0.0, 128
    %121 = vxpose.xlu0.b32.cont [7/16] 0.0, 128
    %122 = vxpose.xlu0.b32.cont [8/16] 0.0, 128
    %123 = vxpose.xlu0.b32.cont [9/16] 0.0, 128
    %124 = vxpose.xlu0.b32.cont [10/16] 0.0, 128
    %125 = vxpose.xlu0.b32.cont [11/16] 0.0, 128
    %126 = vxpose.xlu0.b32.cont [12/16] 0.0, 128
    %127 = vxpose.xlu0.b32.cont [13/16] 0.0, 128
    %128 = vxpose.xlu0.b32.cont [14/16] 0.0, 128
    %129 = vxpose.xlu0.b32.cont [15/16] 0.0, 128
    %130 = vxpose.xlu0.b32.end [16/16] 0.0, 128
    %v131 = vpop.trf.xlu0
    %v132 = vpop.trf.xlu0
    %v133 = vpop.trf.xlu0
    %v134 = vpop.trf.xlu0
    %v135 = vpop.trf.xlu0
    %v136 = vpop.trf.xlu0
    %v137 = vpop.trf.xlu0
    %v138 = vpop.trf.xlu0
    %v139 = vpop.trf.xlu0
    %v140 = vpop.trf.xlu0
    %v141 = vpop.trf.xlu0
    %v142 = vpop.trf.xlu0
    %v143 = vpop.trf.xlu0
    %v144 = vpop.trf.xlu0
    %v145 = vpop.trf.xlu0
    %v146 = vpop.trf.xlu0
    %v147 = vpack.c.bf16 %v100, %v99
    %v148 = vpack.c.bf16 %v102, %v101
    %v149 = vpack.c.bf16 %v104, %v103
    %v150 = vpack.c.bf16 %v106, %v105
    %v151 = vpack.c.bf16 %v108, %v107
    %v152 = vpack.c.bf16 %v110, %v109
    %v153 = vpack.c.bf16 %v112, %v111
    %v154 = vpack.c.bf16 %v114, %v113
    %v155 = vpack.c.bf16 %v132, %v131
    %v156 = vpack.c.bf16 %v134, %v133
    %v157 = vpack.c.bf16 %v136, %v135
    %v158 = vpack.c.bf16 %v138, %v137
    %v159 = vpack.c.bf16 %v140, %v139
    %v160 = vpack.c.bf16 %v142, %v141
    %v161 = vpack.c.bf16 %v144, %v143
    %v162 = vpack.c.bf16 %v146, %v145
    %v163 = vld [vmem:[%s1] sm:$0x7]
    %v164 = vld [vmem:[%s1 + $0x4] sm:$0x7]
    %v165 = vpack.c.bf16 %v163, %v163
    %v166 = vpack.c.bf16 %v164, %v164
    %vm167 = vcmask 23552
    %v169 = vsel %vm167, %v147, 0
    %v172 = vsel %vm167, %v148, 0
    %v175 = vsel %vm167, %v149, 0
    %v178 = vsel %vm167, %v150, 0
    %v181 = vsel %vm167, %v151, 0
    %v184 = vsel %vm167, %v152, 0
    %v187 = vsel %vm167, %v153, 0
    %v190 = vsel %vm167, %v154, 0
    %vm192 = vcmask 1040384
    %vm193 = vcmask 1041408
    %v194 = vsel %vm192, 4294967295, 65535
    %v195 = vsel %vm193, %v194, 0
    %v197 = vand.u32 %v165, %v195
    %199 = vmatprep.subr.bf16.mxu0 0
    %200 = vmatpush1.bf16.msra.mxu0 %v197
    %201 = vmatprep.subr.bf16.mxu0 0
    %202 = vmatpush1.bf16.msra.mxu0 0
    %203 = vmatprep.subr.bf16.mxu0 0
    %204 = vmatpush1.bf16.msra.mxu0 0
    %205 = vmatprep.subr.bf16.mxu0 0
    %206 = vmatpush1.bf16.msra.mxu0 0
    %207 = vmatprep.subr.bf16.mxu0 0
    %208 = vmatpush1.bf16.msra.mxu0 0
    %209 = vmatprep.subr.bf16.mxu0 0
    %210 = vmatpush1.bf16.msra.mxu0 0
    %211 = vmatprep.subr.bf16.mxu0 0
    %212 = vmatpush1.bf16.msra.mxu0 0
    %213 = vmatprep.subr.bf16.mxu0 0
    %214 = vmatpush1.bf16.msra.mxu0 0
    %215 = vmatprep.subr.bf16.mxu0 0
    %216 = vmatpush1.bf16.msra.mxu0 0
    %217 = vmatprep.subr.bf16.mxu0 0
    %218 = vmatpush1.bf16.msra.mxu0 0
    %219 = vmatprep.subr.bf16.mxu0 0
    %220 = vmatpush1.bf16.msra.mxu0 0
    %221 = vmatprep.subr.bf16.mxu0 0
    %222 = vmatpush1.bf16.msra.mxu0 0
    %223 = vmatprep.subr.bf16.mxu0 0
    %224 = vmatpush1.bf16.msra.mxu0 0
    %225 = vmatprep.subr.bf16.mxu0 0
    %226 = vmatpush1.bf16.msra.mxu0 0
    %227 = vmatprep.subr.bf16.mxu0 0
    %228 = vmatpush1.bf16.msra.mxu0 0
    %229 = vmatprep.subr.bf16.mxu0 0
    %230 = vmatpush1.bf16.msra.mxu0 0
    %231 = vmatprep.mubr.bf16.mxu0 0
    %232 = vmatmul.mubr.bf16.gmra.mrb[0].mxu0 %v169
    %v233 = vpop.f32.mrb[0].mxu0
    %v234 = vadd.f32 0.0, %v233
    %v235 = vpop.f32.mrb[0].mxu0
    %v236 = vpop.f32.mrb[0].mxu0
    %v237 = vadd.f32 0.0, %v236
    %v238 = vpop.f32.mrb[0].mxu0
    %239 = vmatprep.mubr.bf16.mxu0 0
    %240 = vmatmul.mubr.bf16.gmra.mrb[0].mxu0 %v172
    %v241 = vpop.f32.mrb[0].mxu0
    %v242 = vadd.f32 0.0, %v241
    %v243 = vpop.f32.mrb[0].mxu0
    %v244 = vpop.f32.mrb[0].mxu0
    %v245 = vadd.f32 0.0, %v244
    %v246 = vpop.f32.mrb[0].mxu0
    %247 = vmatprep.mubr.bf16.mxu0 0
    %248 = vmatmul.mubr.bf16.gmra.mrb[0].mxu0 %v175
    %v249 = vpop.f32.mrb[0].mxu0
    %v250 = vadd.f32 0.0, %v249
    %v251 = vpop.f32.mrb[0].mxu0
    %v252 = vpop.f32.mrb[0].mxu0
    %v253 = vadd.f32 0.0, %v252
    %v254 = vpop.f32.mrb[0].mxu0
    %255 = vmatprep.mubr.bf16.mxu0 0
    %256 = vmatmul.mubr.bf16.gmra.mrb[0].mxu0 %v178
    %v257 = vpop.f32.mrb[0].mxu0
    %v258 = vadd.f32 0.0, %v257
    %v259 = vpop.f32.mrb[0].mxu0
    %v260 = vpop.f32.mrb[0].mxu0
    %v261 = vadd.f32 0.0, %v260
    %v262 = vpop.f32.mrb[0].mxu0
    %263 = vmatprep.mubr.bf16.mxu0 0
    %264 = vmatmul.mubr.bf16.gmra.mrb[0].mxu0 %v181
    %v265 = vpop.f32.mrb[0].mxu0
    %v266 = vadd.f32 0.0, %v265
    %v267 = vpop.f32.mrb[0].mxu0
    %v268 = vpop.f32.mrb[0].mxu0
    %v269 = vadd.f32 0.0, %v268
    %v270 = vpop.f32.mrb[0].mxu0
    %271 = vmatprep.mubr.bf16.mxu0 0
    %272 = vmatmul.mubr.bf16.gmra.mrb[0].mxu0 %v184
    %v273 = vpop.f32.mrb[0].mxu0
    %v274 = vadd.f32 0.0, %v273
    %v275 = vpop.f32.mrb[0].mxu0
    %v276 = vpop.f32.mrb[0].mxu0
    %v277 = vadd.f32 0.0, %v276
    %v278 = vpop.f32.mrb[0].mxu0
    %279 = vmatprep.mubr.bf16.mxu0 0
    %280 = vmatmul.mubr.bf16.gmra.mrb[0].mxu0 %v187
    %v281 = vpop.f32.mrb[0].mxu0
    %v282 = vadd.f32 0.0, %v281
    %v283 = vpop.f32.mrb[0].mxu0
    %v284 = vpop.f32.mrb[0].mxu0
    %v285 = vadd.f32 0.0, %v284
    %v286 = vpop.f32.mrb[0].mxu0
    %287 = vmatprep.mubr.bf16.mxu0 0
    %288 = vmatmul.mubr.bf16.gmra.mrb[0].mxu0 %v190
    %v289 = vpop.f32.mrb[0].mxu0
    %v290 = vadd.f32 0.0, %v289
    %v291 = vpop.f32.mrb[0].mxu0
    %v292 = vpop.f32.mrb[0].mxu0
    %v293 = vadd.f32 0.0, %v292
    %v294 = vpop.f32.mrb[0].mxu0
    %295 = vdwg.mxu0
    %v297 = vsel %vm167, %v155, 0
    %v300 = vsel %vm167, %v156, 0
    %v303 = vsel %vm167, %v157, 0
    %v306 = vsel %vm167, %v158, 0
    %v309 = vsel %vm167, %v159, 0
    %v312 = vsel %vm167, %v160, 0
    %v315 = vsel %vm167, %v161, 0
    %v318 = vsel %vm167, %v162, 0
    %v321 = vand.u32 %v166, %v195
    %323 = vmatprep.subr.bf16.mxu0 0
    %324 = vmatpush1.bf16.msra.mxu0 %v321
    %325 = vmatprep.subr.bf16.mxu0 0
    %326 = vmatpush1.bf16.msra.mxu0 0
    %327 = vmatprep.subr.bf16.mxu0 0
    %328 = vmatpush1.bf16.msra.mxu0 0
    %329 = vmatprep.subr.bf16.mxu0 0
    %330 = vmatpush1.bf16.msra.mxu0 0
    %331 = vmatprep.subr.bf16.mxu0 0
    %332 = vmatpush1.bf16.msra.mxu0 0
    %333 = vmatprep.subr.bf16.mxu0 0
    %334 = vmatpush1.bf16.msra.mxu0 0
    %335 = vmatprep.subr.bf16.mxu0 0
    %336 = vmatpush1.bf16.msra.mxu0 0
    %337 = vmatprep.subr.bf16.mxu0 0
    %338 = vmatpush1.bf16.msra.mxu0 0
    %339 = vmatprep.subr.bf16.mxu0 0
    %340 = vmatpush1.bf16.msra.mxu0 0
    %341 = vmatprep.subr.bf16.mxu0 0
    %342 = vmatpush1.bf16.msra.mxu0 0
    %343 = vmatprep.subr.bf16.mxu0 0
    %344 = vmatpush1.bf16.msra.mxu0 0
    %345 = vmatprep.subr.bf16.mxu0 0
    %346 = vmatpush1.bf16.msra.mxu0 0
    %347 = vmatprep.subr.bf16.mxu0 0
    %348 = vmatpush1.bf16.msra.mxu0 0
    %349 = vmatprep.subr.bf16.mxu0 0
    %350 = vmatpush1.bf16.msra.mxu0 0
    %351 = vmatprep.subr.bf16.mxu0 0
    %352 = vmatpush1.bf16.msra.mxu0 0
    %353 = vmatprep.subr.bf16.mxu0 0
    %354 = vmatpush1.bf16.msra.mxu0 0
    %355 = vmatprep.mubr.bf16.mxu0 0
    %356 = vmatmul.mubr.bf16.gmra.mrb[0].mxu0 %v297
    %v357 = vpop.f32.mrb[0].mxu0
    %v358 = vadd.f32 0.0, %v357
    %v359 = vpop.f32.mrb[0].mxu0
    %v360 = vpop.f32.mrb[0].mxu0
    %v361 = vadd.f32 0.0, %v360
    %v362 = vpop.f32.mrb[0].mxu0
    %363 = vmatprep.mubr.bf16.mxu0 0
    %364 = vmatmul.mubr.bf16.gmra.mrb[0].mxu0 %v300
    %v365 = vpop.f32.mrb[0].mxu0
    %v366 = vadd.f32 0.0, %v365
    %v367 = vpop.f32.mrb[0].mxu0
    %v368 = vpop.f32.mrb[0].mxu0
    %v369 = vadd.f32 0.0, %v368
    %v370 = vpop.f32.mrb[0].mxu0
    %371 = vmatprep.mubr.bf16.mxu0 0
    %372 = vmatmul.mubr.bf16.gmra.mrb[0].mxu0 %v303
    %v373 = vpop.f32.mrb[0].mxu0
    %v374 = vadd.f32 0.0, %v373
    %v375 = vpop.f32.mrb[0].mxu0
    %v376 = vpop.f32.mrb[0].mxu0
    %v377 = vadd.f32 0.0, %v376
    %v378 = vpop.f32.mrb[0].mxu0
    %379 = vmatprep.mubr.bf16.mxu0 0
    %380 = vmatmul.mubr.bf16.gmra.mrb[0].mxu0 %v306
    %v381 = vpop.f32.mrb[0].mxu0
    %v382 = vadd.f32 0.0, %v381
    %v383 = vpop.f32.mrb[0].mxu0
    %v384 = vpop.f32.mrb[0].mxu0
    %v385 = vadd.f32 0.0, %v384
    %v386 = vpop.f32.mrb[0].mxu0
    %387 = vmatprep.mubr.bf16.mxu0 0
    %388 = vmatmul.mubr.bf16.gmra.mrb[0].mxu0 %v309
    %v389 = vpop.f32.mrb[0].mxu0
    %v390 = vadd.f32 0.0, %v389
    %v391 = vpop.f32.mrb[0].mxu0
    %v392 = vpop.f32.mrb[0].mxu0
    %v393 = vadd.f32 0.0, %v392
    %v394 = vpop.f32.mrb[0].mxu0
    %395 = vmatprep.mubr.bf16.mxu0 0
    %396 = vmatmul.mubr.bf16.gmra.mrb[0].mxu0 %v312
    %v397 = vpop.f32.mrb[0].mxu0
    %v398 = vadd.f32 0.0, %v397
    %v399 = vpop.f32.mrb[0].mxu0
    %v400 = vpop.f32.mrb[0].mxu0
    %v401 = vadd.f32 0.0, %v400
    %v402 = vpop.f32.mrb[0].mxu0
    %403 = vmatprep.mubr.bf16.mxu0 0
    %404 = vmatmul.mubr.bf16.gmra.mrb[0].mxu0 %v315
    %v405 = vpop.f32.mrb[0].mxu0
    %v406 = vadd.f32 0.0, %v405
    %v407 = vpop.f32.mrb[0].mxu0
    %v408 = vpop.f32.mrb[0].mxu0
    %v409 = vadd.f32 0.0, %v408
    %v410 = vpop.f32.mrb[0].mxu0
    %411 = vmatprep.mubr.bf16.mxu0 0
    %412 = vmatmul.mubr.bf16.gmra.mrb[0].mxu0 %v318
    %v413 = vpop.f32.mrb[0].mxu0
    %v414 = vadd.f32 0.0, %v413
    %v415 = vpop.f32.mrb[0].mxu0
    %v416 = vpop.f32.mrb[0].mxu0
    %v417 = vadd.f32 0.0, %v416
    %v418 = vpop.f32.mrb[0].mxu0
    %419 = vdwg.mxu0
    %v420 = vpack.c.bf16 %v237, %v234
    %v421 = vpack.c.bf16 %v245, %v242
    %v422 = vpack.c.bf16 %v253, %v250
    %v423 = vpack.c.bf16 %v261, %v258
    %v424 = vpack.c.bf16 %v269, %v266
    %v425 = vpack.c.bf16 %v277, %v274
    %v426 = vpack.c.bf16 %v285, %v282
    %v427 = vpack.c.bf16 %v293, %v290
    %v428 = vpack.c.bf16 %v361, %v358
    %v429 = vpack.c.bf16 %v369, %v366
    %v430 = vpack.c.bf16 %v377, %v374
    %v431 = vpack.c.bf16 %v385, %v382
    %v432 = vpack.c.bf16 %v393, %v390
    %v433 = vpack.c.bf16 %v401, %v398
    %v434 = vpack.c.bf16 %v409, %v406
    %v435 = vpack.c.bf16 %v417, %v414
    %v436 = vld [vmem:[%s2] sm:$0x3]
    %v437 = vld [vmem:[%s3] sm:$0x1]
    %v439 = vlaneseq
    %v440 = vshrl.u32 %v439, 7
    %v441 = vsub.s32 0, %v440
    %v442 = vrot.slane %v437, %v441
    %v445 = vsel %vm167, %v420, 0
    %v448 = vsel %vm167, %v421, 0
    %v451 = vsel %vm167, %v422, 0
    %v454 = vsel %vm167, %v423, 0
    %v457 = vsel %vm167, %v424, 0
    %v460 = vsel %vm167, %v425, 0
    %v463 = vsel %vm167, %v426, 0
    %v466 = vsel %vm167, %v427, 0
    %v469 = vsel %vm167, %v428, 0
    %v472 = vsel %vm167, %v429, 0
    %v475 = vsel %vm167, %v430, 0
    %v478 = vsel %vm167, %v431, 0
    %v481 = vsel %vm167, %v432, 0
    %v484 = vsel %vm167, %v433, 0
    %v487 = vsel %vm167, %v434, 0
    %v490 = vsel %vm167, %v435, 0
    %v493 = vand.u32 %v436, %v195
    %495 = vmatprep.subr.bf16.mxu0 0
    %496 = vmatpush1.bf16.msra.mxu0 %v493
    %497 = vmatprep.subr.bf16.mxu0 0
    %498 = vmatpush1.bf16.msra.mxu0 0
    %499 = vmatprep.subr.bf16.mxu0 0
    %500 = vmatpush1.bf16.msra.mxu0 0
    %501 = vmatprep.subr.bf16.mxu0 0
    %502 = vmatpush1.bf16.msra.mxu0 0
    %503 = vmatprep.subr.bf16.mxu0 0
    %504 = vmatpush1.bf16.msra.mxu0 0
    %505 = vmatprep.subr.bf16.mxu0 0
    %506 = vmatpush1.bf16.msra.mxu0 0
    %507 = vmatprep.subr.bf16.mxu0 0
    %508 = vmatpush1.bf16.msra.mxu0 0
    %509 = vmatprep.subr.bf16.mxu0 0
    %510 = vmatpush1.bf16.msra.mxu0 0
    %511 = vmatprep.subr.bf16.mxu0 0
    %512 = vmatpush1.bf16.msra.mxu0 0
    %513 = vmatprep.subr.bf16.mxu0 0
    %514 = vmatpush1.bf16.msra.mxu0 0
    %515 = vmatprep.subr.bf16.mxu0 0
    %516 = vmatpush1.bf16.msra.mxu0 0
    %517 = vmatprep.subr.bf16.mxu0 0
    %518 = vmatpush1.bf16.msra.mxu0 0
    %519 = vmatprep.subr.bf16.mxu0 0
    %520 = vmatpush1.bf16.msra.mxu0 0
    %521 = vmatprep.subr.bf16.mxu0 0
    %522 = vmatpush1.bf16.msra.mxu0 0
    %523 = vmatprep.subr.bf16.mxu0 0
    %524 = vmatpush1.bf16.msra.mxu0 0
    %525 = vmatprep.subr.bf16.mxu0 0
    %526 = vmatpush1.bf16.msra.mxu0 0
    %527 = vmatprep.mubr.bf16.mxu0 0
    %528 = vmatmul.mubr.bf16.gmra.mrb[0].mxu0 %v445
    %v529 = vpop.f32.mrb[0].mxu0
    %v530 = vadd.f32 %v442, %v529
    %v531 = vpop.f32.mrb[0].mxu0
    %v532 = vpop.f32.mrb[0].mxu0
    %v533 = vadd.f32 %v442, %v532
    %v534 = vpop.f32.mrb[0].mxu0
    %535 = vmatprep.mubr.bf16.mxu0 0
    %536 = vmatmul.mubr.bf16.gmra.mrb[0].mxu0 %v448
    %v537 = vpop.f32.mrb[0].mxu0
    %v538 = vadd.f32 %v442, %v537
    %v539 = vpop.f32.mrb[0].mxu0
    %v540 = vpop.f32.mrb[0].mxu0
    %v541 = vadd.f32 %v442, %v540
    %v542 = vpop.f32.mrb[0].mxu0
    %543 = vmatprep.mubr.bf16.mxu0 0
    %544 = vmatmul.mubr.bf16.gmra.mrb[0].mxu0 %v451
    %v545 = vpop.f32.mrb[0].mxu0
    %v546 = vadd.f32 %v442, %v545
    %v547 = vpop.f32.mrb[0].mxu0
    %v548 = vpop.f32.mrb[0].mxu0
    %v549 = vadd.f32 %v442, %v548
    %v550 = vpop.f32.mrb[0].mxu0
    %551 = vmatprep.mubr.bf16.mxu0 0
    %552 = vmatmul.mubr.bf16.gmra.mrb[0].mxu0 %v454
    %v553 = vpop.f32.mrb[0].mxu0
    %v554 = vadd.f32 %v442, %v553
    %v555 = vpop.f32.mrb[0].mxu0
    %v556 = vpop.f32.mrb[0].mxu0
    %v557 = vadd.f32 %v442, %v556
    %v558 = vpop.f32.mrb[0].mxu0
    %559 = vmatprep.mubr.bf16.mxu0 0
    %560 = vmatmul.mubr.bf16.gmra.mrb[0].mxu0 %v457
    %v561 = vpop.f32.mrb[0].mxu0
    %v562 = vadd.f32 %v442, %v561
    %v563 = vpop.f32.mrb[0].mxu0
    %v564 = vpop.f32.mrb[0].mxu0
    %v565 = vadd.f32 %v442, %v564
    %v566 = vpop.f32.mrb[0].mxu0
    %567 = vmatprep.mubr.bf16.mxu0 0
    %568 = vmatmul.mubr.bf16.gmra.mrb[0].mxu0 %v460
    %v569 = vpop.f32.mrb[0].mxu0
    %v570 = vadd.f32 %v442, %v569
    %v571 = vpop.f32.mrb[0].mxu0
    %v572 = vpop.f32.mrb[0].mxu0
    %v573 = vadd.f32 %v442, %v572
    %v574 = vpop.f32.mrb[0].mxu0
    %575 = vmatprep.mubr.bf16.mxu0 0
    %576 = vmatmul.mubr.bf16.gmra.mrb[0].mxu0 %v463
    %v577 = vpop.f32.mrb[0].mxu0
    %v578 = vadd.f32 %v442, %v577
    %v579 = vpop.f32.mrb[0].mxu0
    %v580 = vpop.f32.mrb[0].mxu0
    %v581 = vadd.f32 %v442, %v580
    %v582 = vpop.f32.mrb[0].mxu0
    %583 = vmatprep.mubr.bf16.mxu0 0
    %584 = vmatmul.mubr.bf16.gmra.mrb[0].mxu0 %v466
    %v585 = vpop.f32.mrb[0].mxu0
    %v586 = vadd.f32 %v442, %v585
    %v587 = vpop.f32.mrb[0].mxu0
    %v588 = vpop.f32.mrb[0].mxu0
    %v589 = vadd.f32 %v442, %v588
    %v590 = vpop.f32.mrb[0].mxu0
    %591 = vmatprep.mubr.bf16.mxu0 0
    %592 = vmatmul.mubr.bf16.gmra.mrb[0].mxu0 %v469
    %v593 = vpop.f32.mrb[0].mxu0
    %v594 = vadd.f32 %v442, %v593
    %v595 = vpop.f32.mrb[0].mxu0
    %v596 = vpop.f32.mrb[0].mxu0
    %v597 = vadd.f32 %v442, %v596
    %v598 = vpop.f32.mrb[0].mxu0
    %599 = vmatprep.mubr.bf16.mxu0 0
    %600 = vmatmul.mubr.bf16.gmra.mrb[0].mxu0 %v472
    %v601 = vpop.f32.mrb[0].mxu0
    %v602 = vadd.f32 %v442, %v601
    %v603 = vpop.f32.mrb[0].mxu0
    %v604 = vpop.f32.mrb[0].mxu0
    %v605 = vadd.f32 %v442, %v604
    %v606 = vpop.f32.mrb[0].mxu0
    %607 = vmatprep.mubr.bf16.mxu0 0
    %608 = vmatmul.mubr.bf16.gmra.mrb[0].mxu0 %v475
    %v609 = vpop.f32.mrb[0].mxu0
    %v610 = vadd.f32 %v442, %v609
    %v611 = vpop.f32.mrb[0].mxu0
    %v612 = vpop.f32.mrb[0].mxu0
    %v613 = vadd.f32 %v442, %v612
    %v614 = vpop.f32.mrb[0].mxu0
    %615 = vmatprep.mubr.bf16.mxu0 0
    %616 = vmatmul.mubr.bf16.gmra.mrb[0].mxu0 %v478
    %v617 = vpop.f32.mrb[0].mxu0
    %v618 = vadd.f32 %v442, %v617
    %v619 = vpop.f32.mrb[0].mxu0
    %v620 = vpop.f32.mrb[0].mxu0
    %v621 = vadd.f32 %v442, %v620
    %v622 = vpop.f32.mrb[0].mxu0
    %623 = vmatprep.mubr.bf16.mxu0 0
    %624 = vmatmul.mubr.bf16.gmra.mrb[0].mxu0 %v481
    %v625 = vpop.f32.mrb[0].mxu0
    %v626 = vadd.f32 %v442, %v625
    %v627 = vpop.f32.mrb[0].mxu0
    %v628 = vpop.f32.mrb[0].mxu0
    %v629 = vadd.f32 %v442, %v628
    %v630 = vpop.f32.mrb[0].mxu0
    %631 = vmatprep.mubr.bf16.mxu0 0
    %632 = vmatmul.mubr.bf16.gmra.mrb[0].mxu0 %v484
    %v633 = vpop.f32.mrb[0].mxu0
    %v634 = vadd.f32 %v442, %v633
    %v635 = vpop.f32.mrb[0].mxu0
    %v636 = vpop.f32.mrb[0].mxu0
    %v637 = vadd.f32 %v442, %v636
    %v638 = vpop.f32.mrb[0].mxu0
    %639 = vmatprep.mubr.bf16.mxu0 0
    %640 = vmatmul.mubr.bf16.gmra.mrb[0].mxu0 %v487
    %v641 = vpop.f32.mrb[0].mxu0
    %v642 = vadd.f32 %v442, %v641
    %v643 = vpop.f32.mrb[0].mxu0
    %v644 = vpop.f32.mrb[0].mxu0
    %v645 = vadd.f32 %v442, %v644
    %v646 = vpop.f32.mrb[0].mxu0
    %647 = vmatprep.mubr.bf16.mxu0 0
    %648 = vmatmul.mubr.bf16.gmra.mrb[0].mxu0 %v490
    %v649 = vpop.f32.mrb[0].mxu0
    %v650 = vadd.f32 %v442, %v649
    %v651 = vpop.f32.mrb[0].mxu0
    %v652 = vpop.f32.mrb[0].mxu0
    %v653 = vadd.f32 %v442, %v652
    %v654 = vpop.f32.mrb[0].mxu0
    %655 = vdwg.mxu0
    %v656 = vmax.f32 %v530, 0.0
    %v657 = vmax.f32 %v533, 0.0
    %v658 = vmax.f32 %v538, 0.0
    %v659 = vmax.f32 %v541, 0.0
    %v660 = vmax.f32 %v546, 0.0
    %v661 = vmax.f32 %v549, 0.0
    %v662 = vmax.f32 %v554, 0.0
    %v663 = vmax.f32 %v557, 0.0
    %v664 = vmax.f32 %v562, 0.0
    %v665 = vmax.f32 %v565, 0.0
    %v666 = vmax.f32 %v570, 0.0
    %v667 = vmax.f32 %v573, 0.0
    %v668 = vmax.f32 %v578, 0.0
    %v669 = vmax.f32 %v581, 0.0
    %v670 = vmax.f32 %v586, 0.0
    %v671 = vmax.f32 %v589, 0.0
    %v672 = vmax.f32 %v594, 0.0
    %v673 = vmax.f32 %v597, 0.0
    %v674 = vmax.f32 %v602, 0.0
    %v675 = vmax.f32 %v605, 0.0
    %v676 = vmax.f32 %v610, 0.0
    %v677 = vmax.f32 %v613, 0.0
    %v678 = vmax.f32 %v618, 0.0
    %v679 = vmax.f32 %v621, 0.0
    %v680 = vmax.f32 %v626, 0.0
    %v681 = vmax.f32 %v629, 0.0
    %v682 = vmax.f32 %v634, 0.0
    %v683 = vmax.f32 %v637, 0.0
    %v684 = vmax.f32 %v642, 0.0
    %v685 = vmax.f32 %v645, 0.0
    %v686 = vmax.f32 %v650, 0.0
    %v687 = vmax.f32 %v653, 0.0
    %v688 = vpack.c.bf16 %v657, %v656
    %v689 = vpack.c.bf16 %v659, %v658
    %v690 = vpack.c.bf16 %v661, %v660
    %v691 = vpack.c.bf16 %v663, %v662
    %v692 = vpack.c.bf16 %v665, %v664
    %v693 = vpack.c.bf16 %v667, %v666
    %v694 = vpack.c.bf16 %v669, %v668
    %v695 = vpack.c.bf16 %v671, %v670
    %v696 = vpack.c.bf16 %v673, %v672
    %v697 = vpack.c.bf16 %v675, %v674
    %v698 = vpack.c.bf16 %v677, %v676
    %v699 = vpack.c.bf16 %v679, %v678
    %v700 = vpack.c.bf16 %v681, %v680
    %v701 = vpack.c.bf16 %v683, %v682
    %v702 = vpack.c.bf16 %v685, %v684
    %v703 = vpack.c.bf16 %v687, %v686
    %v704 = vld [vmem:[%s4] sm:$0xf]
    %v705 = vld [vmem:[%s4 + $0x4] sm:$0xf]
    %v706 = vld [vmem:[%s4 + $0x8] sm:$0xf]
    %v707 = vld [vmem:[%s4 + $0xc] sm:$0xf]
    %v708 = vld [vmem:[%s4 + $0x10] sm:$0xf]
    %v709 = vld [vmem:[%s4 + $0x14] sm:$0xf]
    %v710 = vld [vmem:[%s4 + $0x18] sm:$0xf]
    %v711 = vld [vmem:[%s4 + $0x1c] sm:$0xf]
    %v712 = vld [vmem:[%s4 + $0x20] sm:$0xf]
    %v713 = vld [vmem:[%s4 + $0x24] sm:$0xf]
    %v714 = vld [vmem:[%s4 + $0x28] sm:$0xf]
    %v715 = vld [vmem:[%s4 + $0x2c] sm:$0xf]
    %v716 = vld [vmem:[%s4 + $0x30] sm:$0xf]
    %v717 = vld [vmem:[%s4 + $0x34] sm:$0xf]
    %v718 = vld [vmem:[%s4 + $0x38] sm:$0xf]
    %v719 = vld [vmem:[%s4 + $0x3c] sm:$0xf]
    %v720 = vld [vmem:[%s5] sm:$0x1]
    %v722 = vlaneseq
    %v723 = vshrl.u32 %v722, 7
    %v724 = vsub.s32 0, %v723
    %v725 = vrot.slane %v720, %v724
    %v743 = vunpack.c.l.b16 %v704
    %v744 = vunpack.c.l.b16 %v705
    %v745 = vunpack.c.l.b16 %v706
    %v746 = vunpack.c.l.b16 %v707
    %v747 = vunpack.c.l.b16 %v708
    %v748 = vunpack.c.l.b16 %v709
    %v749 = vunpack.c.l.b16 %v710
    %v750 = vunpack.c.l.b16 %v711
    %v751 = vunpack.c.l.b16 %v712
    %v752 = vunpack.c.l.b16 %v713
    %v753 = vunpack.c.l.b16 %v714
    %v754 = vunpack.c.l.b16 %v715
    %v755 = vunpack.c.l.b16 %v716
    %v756 = vunpack.c.l.b16 %v717
    %v757 = vunpack.c.l.b16 %v718
    %v758 = vunpack.c.l.b16 %v719
    %v759 = vpack.c.b16 %v744, %v743
    %v760 = vpack.c.b16 %v746, %v745
    %v761 = vpack.c.b16 %v748, %v747
    %v762 = vpack.c.b16 %v750, %v749
    %v763 = vpack.c.b16 %v752, %v751
    %v764 = vpack.c.b16 %v754, %v753
    %v765 = vpack.c.b16 %v756, %v755
    %v766 = vpack.c.b16 %v758, %v757
    %775 = vmatprep.subr.bf16.mxu0 0
    %776 = vmatpush1.bf16.msra.mxu0 %v759
    %777 = vmatprep.subr.bf16.mxu0 0
    %778 = vmatpush1.bf16.msra.mxu0 %v760
    %779 = vmatprep.subr.bf16.mxu0 0
    %780 = vmatpush1.bf16.msra.mxu0 %v761
    %781 = vmatprep.subr.bf16.mxu0 0
    %782 = vmatpush1.bf16.msra.mxu0 %v762
    %783 = vmatprep.subr.bf16.mxu0 0
    %784 = vmatpush1.bf16.msra.mxu0 %v763
    %785 = vmatprep.subr.bf16.mxu0 0
    %786 = vmatpush1.bf16.msra.mxu0 %v764
    %787 = vmatprep.subr.bf16.mxu0 0
    %788 = vmatpush1.bf16.msra.mxu0 %v765
    %789 = vmatprep.subr.bf16.mxu0 0
    %790 = vmatpush1.bf16.msra.mxu0 %v766
    %791 = vmatprep.subr.bf16.mxu0 0
    %792 = vmatpush1.bf16.msra.mxu0 0
    %793 = vmatprep.subr.bf16.mxu0 0
    %794 = vmatpush1.bf16.msra.mxu0 0
    %795 = vmatprep.subr.bf16.mxu0 0
    %796 = vmatpush1.bf16.msra.mxu0 0
    %797 = vmatprep.subr.bf16.mxu0 0
    %798 = vmatpush1.bf16.msra.mxu0 0
    %799 = vmatprep.subr.bf16.mxu0 0
    %800 = vmatpush1.bf16.msra.mxu0 0
    %801 = vmatprep.subr.bf16.mxu0 0
    %802 = vmatpush1.bf16.msra.mxu0 0
    %803 = vmatprep.subr.bf16.mxu0 0
    %804 = vmatpush1.bf16.msra.mxu0 0
    %805 = vmatprep.subr.bf16.mxu0 0
    %806 = vmatpush1.bf16.msra.mxu0 0
    %807 = vmatprep.mubr.bf16.mxu0 0
    %808 = vmatmul.mubr.bf16.gmra.mrb[0].mxu0 %v688
    %v809 = vpop.f32.mrb[0].mxu0
    %v810 = vadd.f32 %v725, %v809
    %v811 = vpop.f32.mrb[0].mxu0
    %v812 = vpop.f32.mrb[0].mxu0
    %v813 = vadd.f32 %v725, %v812
    %v814 = vpop.f32.mrb[0].mxu0
    %815 = vmatprep.mubr.bf16.mxu0 0
    %816 = vmatmul.mubr.bf16.gmra.mrb[0].mxu0 %v689
    %v817 = vpop.f32.mrb[0].mxu0
    %v818 = vadd.f32 %v725, %v817
    %v819 = vpop.f32.mrb[0].mxu0
    %v820 = vpop.f32.mrb[0].mxu0
    %v821 = vadd.f32 %v725, %v820
    %v822 = vpop.f32.mrb[0].mxu0
    %823 = vmatprep.mubr.bf16.mxu0 0
    %824 = vmatmul.mubr.bf16.gmra.mrb[0].mxu0 %v690
    %v825 = vpop.f32.mrb[0].mxu0
    %v826 = vadd.f32 %v725, %v825
    %v827 = vpop.f32.mrb[0].mxu0
    %v828 = vpop.f32.mrb[0].mxu0
    %v829 = vadd.f32 %v725, %v828
    %v830 = vpop.f32.mrb[0].mxu0
    %831 = vmatprep.mubr.bf16.mxu0 0
    %832 = vmatmul.mubr.bf16.gmra.mrb[0].mxu0 %v691
    %v833 = vpop.f32.mrb[0].mxu0
    %v834 = vadd.f32 %v725, %v833
    %v835 = vpop.f32.mrb[0].mxu0
    %v836 = vpop.f32.mrb[0].mxu0
    %v837 = vadd.f32 %v725, %v836
    %v838 = vpop.f32.mrb[0].mxu0
    %839 = vmatprep.mubr.bf16.mxu0 0
    %840 = vmatmul.mubr.bf16.gmra.mrb[0].mxu0 %v692
    %v841 = vpop.f32.mrb[0].mxu0
    %v842 = vadd.f32 %v725, %v841
    %v843 = vpop.f32.mrb[0].mxu0
    %v844 = vpop.f32.mrb[0].mxu0
    %v845 = vadd.f32 %v725, %v844
    %v846 = vpop.f32.mrb[0].mxu0
    %847 = vmatprep.mubr.bf16.mxu0 0
    %848 = vmatmul.mubr.bf16.gmra.mrb[0].mxu0 %v693
    %v849 = vpop.f32.mrb[0].mxu0
    %v850 = vadd.f32 %v725, %v849
    %v851 = vpop.f32.mrb[0].mxu0
    %v852 = vpop.f32.mrb[0].mxu0
    %v853 = vadd.f32 %v725, %v852
    %v854 = vpop.f32.mrb[0].mxu0
    %855 = vmatprep.mubr.bf16.mxu0 0
    %856 = vmatmul.mubr.bf16.gmra.mrb[0].mxu0 %v694
    %v857 = vpop.f32.mrb[0].mxu0
    %v858 = vadd.f32 %v725, %v857
    %v859 = vpop.f32.mrb[0].mxu0
    %v860 = vpop.f32.mrb[0].mxu0
    %v861 = vadd.f32 %v725, %v860
    %v862 = vpop.f32.mrb[0].mxu0
    %863 = vmatprep.mubr.bf16.mxu0 0
    %864 = vmatmul.mubr.bf16.gmra.mrb[0].mxu0 %v695
    %v865 = vpop.f32.mrb[0].mxu0
    %v866 = vadd.f32 %v725, %v865
    %v867 = vpop.f32.mrb[0].mxu0
    %v868 = vpop.f32.mrb[0].mxu0
    %v869 = vadd.f32 %v725, %v868
    %v870 = vpop.f32.mrb[0].mxu0
    %871 = vmatprep.mubr.bf16.mxu0 0
    %872 = vmatmul.mubr.bf16.gmra.mrb[0].mxu0 %v696
    %v873 = vpop.f32.mrb[0].mxu0
    %v874 = vadd.f32 %v725, %v873
    %v875 = vpop.f32.mrb[0].mxu0
    %v876 = vpop.f32.mrb[0].mxu0
    %v877 = vadd.f32 %v725, %v876
    %v878 = vpop.f32.mrb[0].mxu0
    %879 = vmatprep.mubr.bf16.mxu0 0
    %880 = vmatmul.mubr.bf16.gmra.mrb[0].mxu0 %v697
    %v881 = vpop.f32.mrb[0].mxu0
    %v882 = vadd.f32 %v725, %v881
    %v883 = vpop.f32.mrb[0].mxu0
    %v884 = vpop.f32.mrb[0].mxu0
    %v885 = vadd.f32 %v725, %v884
    %v886 = vpop.f32.mrb[0].mxu0
    %887 = vmatprep.mubr.bf16.mxu0 0
    %888 = vmatmul.mubr.bf16.gmra.mrb[0].mxu0 %v698
    %v889 = vpop.f32.mrb[0].mxu0
    %v890 = vadd.f32 %v725, %v889
    %v891 = vpop.f32.mrb[0].mxu0
    %v892 = vpop.f32.mrb[0].mxu0
    %v893 = vadd.f32 %v725, %v892
    %v894 = vpop.f32.mrb[0].mxu0
    %895 = vmatprep.mubr.bf16.mxu0 0
    %896 = vmatmul.mubr.bf16.gmra.mrb[0].mxu0 %v699
    %v897 = vpop.f32.mrb[0].mxu0
    %v898 = vadd.f32 %v725, %v897
    %v899 = vpop.f32.mrb[0].mxu0
    %v900 = vpop.f32.mrb[0].mxu0
    %v901 = vadd.f32 %v725, %v900
    %v902 = vpop.f32.mrb[0].mxu0
    %903 = vmatprep.mubr.bf16.mxu0 0
    %904 = vmatmul.mubr.bf16.gmra.mrb[0].mxu0 %v700
    %v905 = vpop.f32.mrb[0].mxu0
    %v906 = vadd.f32 %v725, %v905
    %v907 = vpop.f32.mrb[0].mxu0
    %v908 = vpop.f32.mrb[0].mxu0
    %v909 = vadd.f32 %v725, %v908
    %v910 = vpop.f32.mrb[0].mxu0
    %911 = vmatprep.mubr.bf16.mxu0 0
    %912 = vmatmul.mubr.bf16.gmra.mrb[0].mxu0 %v701
    %v913 = vpop.f32.mrb[0].mxu0
    %v914 = vadd.f32 %v725, %v913
    %v915 = vpop.f32.mrb[0].mxu0
    %v916 = vpop.f32.mrb[0].mxu0
    %v917 = vadd.f32 %v725, %v916
    %v918 = vpop.f32.mrb[0].mxu0
    %919 = vmatprep.mubr.bf16.mxu0 0
    %920 = vmatmul.mubr.bf16.gmra.mrb[0].mxu0 %v702
    %v921 = vpop.f32.mrb[0].mxu0
    %v922 = vadd.f32 %v725, %v921
    %v923 = vpop.f32.mrb[0].mxu0
    %v924 = vpop.f32.mrb[0].mxu0
    %v925 = vadd.f32 %v725, %v924
    %v926 = vpop.f32.mrb[0].mxu0
    %927 = vmatprep.mubr.bf16.mxu0 0
    %928 = vmatmul.mubr.bf16.gmra.mrb[0].mxu0 %v703
    %v929 = vpop.f32.mrb[0].mxu0
    %v930 = vadd.f32 %v725, %v929
    %v931 = vpop.f32.mrb[0].mxu0
    %v932 = vpop.f32.mrb[0].mxu0
    %v933 = vadd.f32 %v725, %v932
    %v934 = vpop.f32.mrb[0].mxu0
    %935 = vdwg.mxu0
    %v936 = vmax.f32 %v810, 0.0
    %v937 = vmax.f32 %v813, 0.0
    %v938 = vmax.f32 %v818, 0.0
    %v939 = vmax.f32 %v821, 0.0
    %v940 = vmax.f32 %v826, 0.0
    %v941 = vmax.f32 %v829, 0.0
    %v942 = vmax.f32 %v834, 0.0
    %v943 = vmax.f32 %v837, 0.0
    %v944 = vmax.f32 %v842, 0.0
    %v945 = vmax.f32 %v845, 0.0
    %v946 = vmax.f32 %v850, 0.0
    %v947 = vmax.f32 %v853, 0.0
    %v948 = vmax.f32 %v858, 0.0
    %v949 = vmax.f32 %v861, 0.0
    %v950 = vmax.f32 %v866, 0.0
    %v951 = vmax.f32 %v869, 0.0
    %v952 = vmax.f32 %v874, 0.0
    %v953 = vmax.f32 %v877, 0.0
    %v954 = vmax.f32 %v882, 0.0
    %v955 = vmax.f32 %v885, 0.0
    %v956 = vmax.f32 %v890, 0.0
    %v957 = vmax.f32 %v893, 0.0
    %v958 = vmax.f32 %v898, 0.0
    %v959 = vmax.f32 %v901, 0.0
    %v960 = vmax.f32 %v906, 0.0
    %v961 = vmax.f32 %v909, 0.0
    %v962 = vmax.f32 %v914, 0.0
    %v963 = vmax.f32 %v917, 0.0
    %v964 = vmax.f32 %v922, 0.0
    %v965 = vmax.f32 %v925, 0.0
    %v966 = vmax.f32 %v930, 0.0
    %v967 = vmax.f32 %v933, 0.0
    %v968 = vpack.c.bf16 %v937, %v936
    %v969 = vpack.c.bf16 %v939, %v938
    %v970 = vpack.c.bf16 %v941, %v940
    %v971 = vpack.c.bf16 %v943, %v942
    %v972 = vpack.c.bf16 %v945, %v944
    %v973 = vpack.c.bf16 %v947, %v946
    %v974 = vpack.c.bf16 %v949, %v948
    %v975 = vpack.c.bf16 %v951, %v950
    %v976 = vpack.c.bf16 %v953, %v952
    %v977 = vpack.c.bf16 %v955, %v954
    %v978 = vpack.c.bf16 %v957, %v956
    %v979 = vpack.c.bf16 %v959, %v958
    %v980 = vpack.c.bf16 %v961, %v960
    %v981 = vpack.c.bf16 %v963, %v962
    %v982 = vpack.c.bf16 %v965, %v964
    %v983 = vpack.c.bf16 %v967, %v966
    %v984 = vld [vmem:[%s6] sm:$0xff]
    %v985 = vld [vmem:[%s6 + $0x8] sm:$0xff]
    %v986 = vld [vmem:[%s6 + $0x10] sm:$0xff]
    %v987 = vld [vmem:[%s6 + $0x18] sm:$0xff]
    %v988 = vld [vmem:[%s6 + $0x20] sm:$0xff]
    %v989 = vld [vmem:[%s6 + $0x28] sm:$0xff]
    %v990 = vld [vmem:[%s6 + $0x30] sm:$0xff]
    %v991 = vld [vmem:[%s6 + $0x38] sm:$0xff]
    %v992 = vld [vmem:[%s6 + $0x40] sm:$0xff]
    %v993 = vld [vmem:[%s6 + $0x48] sm:$0xff]
    %v994 = vld [vmem:[%s6 + $0x50] sm:$0xff]
    %v995 = vld [vmem:[%s6 + $0x58] sm:$0xff]
    %v996 = vld [vmem:[%s6 + $0x60] sm:$0xff]
    %v997 = vld [vmem:[%s6 + $0x68] sm:$0xff]
    %v998 = vld [vmem:[%s6 + $0x70] sm:$0xff]
    %v999 = vld [vmem:[%s6 + $0x78] sm:$0xff]
    %v1000 = vld [vmem:[%s7] sm:$0x3]
    %v1002 = vlaneseq
    %v1003 = vshrl.u32 %v1002, 7
    %v1004 = vsub.s32 0, %v1003
    %v1005 = vrot.slane %v1000, %v1004
    %v1006 = vlaneseq
    %v1007 = vshrl.u32 %v1006, 7
    %v1008 = vsub.s32 1, %v1007
    %v1009 = vrot.slane %v1000, %v1008
    %v1028 = vunpack.c.l.b16 %v984
    %v1029 = vunpack.c.h.b16 %v984
    %v1030 = vunpack.c.l.b16 %v985
    %v1031 = vunpack.c.h.b16 %v985
    %v1032 = vunpack.c.l.b16 %v986
    %v1033 = vunpack.c.h.b16 %v986
    %v1034 = vunpack.c.l.b16 %v987
    %v1035 = vunpack.c.h.b16 %v987
    %v1036 = vunpack.c.l.b16 %v988
    %v1037 = vunpack.c.h.b16 %v988
    %v1038 = vunpack.c.l.b16 %v989
    %v1039 = vunpack.c.h.b16 %v989
    %v1040 = vunpack.c.l.b16 %v990
    %v1041 = vunpack.c.h.b16 %v990
    %v1042 = vunpack.c.l.b16 %v991
    %v1043 = vunpack.c.h.b16 %v991
    %v1044 = vunpack.c.l.b16 %v992
    %v1045 = vunpack.c.h.b16 %v992
    %v1046 = vunpack.c.l.b16 %v993
    %v1047 = vunpack.c.h.b16 %v993
    %v1048 = vunpack.c.l.b16 %v994
    %v1049 = vunpack.c.h.b16 %v994
    %v1050 = vunpack.c.l.b16 %v995
    %v1051 = vunpack.c.h.b16 %v995
    %v1052 = vunpack.c.l.b16 %v996
    %v1053 = vunpack.c.h.b16 %v996
    %v1054 = vunpack.c.l.b16 %v997
    %v1055 = vunpack.c.h.b16 %v997
    %v1056 = vunpack.c.l.b16 %v998
    %v1057 = vunpack.c.h.b16 %v998
    %v1058 = vunpack.c.l.b16 %v999
    %v1059 = vunpack.c.h.b16 %v999
    %v1060 = vpack.c.b16 %v1030, %v1028
    %v1061 = vpack.c.b16 %v1031, %v1029
    %v1062 = vpack.c.b16 %v1034, %v1032
    %v1063 = vpack.c.b16 %v1035, %v1033
    %v1064 = vpack.c.b16 %v1038, %v1036
    %v1065 = vpack.c.b16 %v1039, %v1037
    %v1066 = vpack.c.b16 %v1042, %v1040
    %v1067 = vpack.c.b16 %v1043, %v1041
    %v1068 = vpack.c.b16 %v1046, %v1044
    %v1069 = vpack.c.b16 %v1047, %v1045
    %v1070 = vpack.c.b16 %v1050, %v1048
    %v1071 = vpack.c.b16 %v1051, %v1049
    %v1072 = vpack.c.b16 %v1054, %v1052
    %v1073 = vpack.c.b16 %v1055, %v1053
    %v1074 = vpack.c.b16 %v1058, %v1056
    %v1075 = vpack.c.b16 %v1059, %v1057
    %1092 = vmatprep.subr.bf16.mxu0 %v1061
    %1093 = vmatpush1.bf16.msra.mxu0 %v1060
    %1094 = vmatprep.subr.bf16.mxu0 %v1063
    %1095 = vmatpush1.bf16.msra.mxu0 %v1062
    %1096 = vmatprep.subr.bf16.mxu0 %v1065
    %1097 = vmatpush1.bf16.msra.mxu0 %v1064
    %1098 = vmatprep.subr.bf16.mxu0 %v1067
    %1099 = vmatpush1.bf16.msra.mxu0 %v1066
    %1100 = vmatprep.subr.bf16.mxu0 %v1069
    %1101 = vmatpush1.bf16.msra.mxu0 %v1068
    %1102 = vmatprep.subr.bf16.mxu0 %v1071
    %1103 = vmatpush1.bf16.msra.mxu0 %v1070
    %1104 = vmatprep.subr.bf16.mxu0 %v1073
    %1105 = vmatpush1.bf16.msra.mxu0 %v1072
    %1106 = vmatprep.subr.bf16.mxu0 %v1075
    %1107 = vmatpush1.bf16.msra.mxu0 %v1074
    %1108 = vmatprep.subr.bf16.mxu0 0
    %1109 = vmatpush1.bf16.msra.mxu0 0
    %1110 = vmatprep.subr.bf16.mxu0 0
    %1111 = vmatpush1.bf16.msra.mxu0 0
    %1112 = vmatprep.subr.bf16.mxu0 0
    %1113 = vmatpush1.bf16.msra.mxu0 0
    %1114 = vmatprep.subr.bf16.mxu0 0
    %1115 = vmatpush1.bf16.msra.mxu0 0
    %1116 = vmatprep.subr.bf16.mxu0 0
    %1117 = vmatpush1.bf16.msra.mxu0 0
    %1118 = vmatprep.subr.bf16.mxu0 0
    %1119 = vmatpush1.bf16.msra.mxu0 0
    %1120 = vmatprep.subr.bf16.mxu0 0
    %1121 = vmatpush1.bf16.msra.mxu0 0
    %1122 = vmatprep.subr.bf16.mxu0 0
    %1123 = vmatpush1.bf16.msra.mxu0 0
    %1124 = vmatprep.mubr.bf16.mxu0 0
    %1125 = vmatmul.mubr.bf16.gmra.mrb[0].mxu0 %v968
    %v1126 = vpop.f32.mrb[0].mxu0
    %v1127 = vadd.f32 %v1005, %v1126
    %v1128 = vpop.f32.mrb[0].mxu0
    %v1129 = vadd.f32 %v1009, %v1128
    %v1130 = vpop.f32.mrb[0].mxu0
    %v1131 = vadd.f32 %v1005, %v1130
    %v1132 = vpop.f32.mrb[0].mxu0
    %v1133 = vadd.f32 %v1009, %v1132
    %1134 = vmatprep.mubr.bf16.mxu0 0
    %1135 = vmatmul.mubr.bf16.gmra.mrb[0].mxu0 %v969
    %v1136 = vpop.f32.mrb[0].mxu0
    %v1137 = vadd.f32 %v1005, %v1136
    %v1138 = vpop.f32.mrb[0].mxu0
    %v1139 = vadd.f32 %v1009, %v1138
    %v1140 = vpop.f32.mrb[0].mxu0
    %v1141 = vadd.f32 %v1005, %v1140
    %v1142 = vpop.f32.mrb[0].mxu0
    %v1143 = vadd.f32 %v1009, %v1142
    %1144 = vmatprep.mubr.bf16.mxu0 0
    %1145 = vmatmul.mubr.bf16.gmra.mrb[0].mxu0 %v970
    %v1146 = vpop.f32.mrb[0].mxu0
    %v1147 = vadd.f32 %v1005, %v1146
    %v1148 = vpop.f32.mrb[0].mxu0
    %v1149 = vadd.f32 %v1009, %v1148
    %v1150 = vpop.f32.mrb[0].mxu0
    %v1151 = vadd.f32 %v1005, %v1150
    %v1152 = vpop.f32.mrb[0].mxu0
    %v1153 = vadd.f32 %v1009, %v1152
    %1154 = vmatprep.mubr.bf16.mxu0 0
    %1155 = vmatmul.mubr.bf16.gmra.mrb[0].mxu0 %v971
    %v1156 = vpop.f32.mrb[0].mxu0
    %v1157 = vadd.f32 %v1005, %v1156
    %v1158 = vpop.f32.mrb[0].mxu0
    %v1159 = vadd.f32 %v1009, %v1158
    %v1160 = vpop.f32.mrb[0].mxu0
    %v1161 = vadd.f32 %v1005, %v1160
    %v1162 = vpop.f32.mrb[0].mxu0
    %v1163 = vadd.f32 %v1009, %v1162
    %1164 = vmatprep.mubr.bf16.mxu0 0
    %1165 = vmatmul.mubr.bf16.gmra.mrb[0].mxu0 %v972
    %v1166 = vpop.f32.mrb[0].mxu0
    %v1167 = vadd.f32 %v1005, %v1166
    %v1168 = vpop.f32.mrb[0].mxu0
    %v1169 = vadd.f32 %v1009, %v1168
    %v1170 = vpop.f32.mrb[0].mxu0
    %v1171 = vadd.f32 %v1005, %v1170
    %v1172 = vpop.f32.mrb[0].mxu0
    %v1173 = vadd.f32 %v1009, %v1172
    %1174 = vmatprep.mubr.bf16.mxu0 0
    %1175 = vmatmul.mubr.bf16.gmra.mrb[0].mxu0 %v973
    %v1176 = vpop.f32.mrb[0].mxu0
    %v1177 = vadd.f32 %v1005, %v1176
    %v1178 = vpop.f32.mrb[0].mxu0
    %v1179 = vadd.f32 %v1009, %v1178
    %v1180 = vpop.f32.mrb[0].mxu0
    %v1181 = vadd.f32 %v1005, %v1180
    %v1182 = vpop.f32.mrb[0].mxu0
    %v1183 = vadd.f32 %v1009, %v1182
    %1184 = vmatprep.mubr.bf16.mxu0 0
    %1185 = vmatmul.mubr.bf16.gmra.mrb[0].mxu0 %v974
    %v1186 = vpop.f32.mrb[0].mxu0
    %v1187 = vadd.f32 %v1005, %v1186
    %v1188 = vpop.f32.mrb[0].mxu0
    %v1189 = vadd.f32 %v1009, %v1188
    %v1190 = vpop.f32.mrb[0].mxu0
    %v1191 = vadd.f32 %v1005, %v1190
    %v1192 = vpop.f32.mrb[0].mxu0
    %v1193 = vadd.f32 %v1009, %v1192
    %1194 = vmatprep.mubr.bf16.mxu0 0
    %1195 = vmatmul.mubr.bf16.gmra.mrb[0].mxu0 %v975
    %v1196 = vpop.f32.mrb[0].mxu0
    %v1197 = vadd.f32 %v1005, %v1196
    %v1198 = vpop.f32.mrb[0].mxu0
    %v1199 = vadd.f32 %v1009, %v1198
    %v1200 = vpop.f32.mrb[0].mxu0
    %v1201 = vadd.f32 %v1005, %v1200
    %v1202 = vpop.f32.mrb[0].mxu0
    %v1203 = vadd.f32 %v1009, %v1202
    %1204 = vmatprep.mubr.bf16.mxu0 0
    %1205 = vmatmul.mubr.bf16.gmra.mrb[0].mxu0 %v976
    %v1206 = vpop.f32.mrb[0].mxu0
    %v1207 = vadd.f32 %v1005, %v1206
    %v1208 = vpop.f32.mrb[0].mxu0
    %v1209 = vadd.f32 %v1009, %v1208
    %v1210 = vpop.f32.mrb[0].mxu0
    %v1211 = vadd.f32 %v1005, %v1210
    %v1212 = vpop.f32.mrb[0].mxu0
    %v1213 = vadd.f32 %v1009, %v1212
    %1214 = vmatprep.mubr.bf16.mxu0 0
    %1215 = vmatmul.mubr.bf16.gmra.mrb[0].mxu0 %v977
    %v1216 = vpop.f32.mrb[0].mxu0
    %v1217 = vadd.f32 %v1005, %v1216
    %v1218 = vpop.f32.mrb[0].mxu0
    %v1219 = vadd.f32 %v1009, %v1218
    %v1220 = vpop.f32.mrb[0].mxu0
    %v1221 = vadd.f32 %v1005, %v1220
    %v1222 = vpop.f32.mrb[0].mxu0
    %v1223 = vadd.f32 %v1009, %v1222
    %1224 = vmatprep.mubr.bf16.mxu0 0
    %1225 = vmatmul.mubr.bf16.gmra.mrb[0].mxu0 %v978
    %v1226 = vpop.f32.mrb[0].mxu0
    %v1227 = vadd.f32 %v1005, %v1226
    %v1228 = vpop.f32.mrb[0].mxu0
    %v1229 = vadd.f32 %v1009, %v1228
    %v1230 = vpop.f32.mrb[0].mxu0
    %v1231 = vadd.f32 %v1005, %v1230
    %v1232 = vpop.f32.mrb[0].mxu0
    %v1233 = vadd.f32 %v1009, %v1232
    %1234 = vmatprep.mubr.bf16.mxu0 0
    %1235 = vmatmul.mubr.bf16.gmra.mrb[0].mxu0 %v979
    %v1236 = vpop.f32.mrb[0].mxu0
    %v1237 = vadd.f32 %v1005, %v1236
    %v1238 = vpop.f32.mrb[0].mxu0
    %v1239 = vadd.f32 %v1009, %v1238
    %v1240 = vpop.f32.mrb[0].mxu0
    %v1241 = vadd.f32 %v1005, %v1240
    %v1242 = vpop.f32.mrb[0].mxu0
    %v1243 = vadd.f32 %v1009, %v1242
    %1244 = vmatprep.mubr.bf16.mxu0 0
    %1245 = vmatmul.mubr.bf16.gmra.mrb[0].mxu0 %v980
    %v1246 = vpop.f32.mrb[0].mxu0
    %v1247 = vadd.f32 %v1005, %v1246
    %v1248 = vpop.f32.mrb[0].mxu0
    %v1249 = vadd.f32 %v1009, %v1248
    %v1250 = vpop.f32.mrb[0].mxu0
    %v1251 = vadd.f32 %v1005, %v1250
    %v1252 = vpop.f32.mrb[0].mxu0
    %v1253 = vadd.f32 %v1009, %v1252
    %1254 = vmatprep.mubr.bf16.mxu0 0
    %1255 = vmatmul.mubr.bf16.gmra.mrb[0].mxu0 %v981
    %v1256 = vpop.f32.mrb[0].mxu0
    %v1257 = vadd.f32 %v1005, %v1256
    %v1258 = vpop.f32.mrb[0].mxu0
    %v1259 = vadd.f32 %v1009, %v1258
    %v1260 = vpop.f32.mrb[0].mxu0
    %v1261 = vadd.f32 %v1005, %v1260
    %v1262 = vpop.f32.mrb[0].mxu0
    %v1263 = vadd.f32 %v1009, %v1262
    %1264 = vmatprep.mubr.bf16.mxu0 0
    %1265 = vmatmul.mubr.bf16.gmra.mrb[0].mxu0 %v982
    %v1266 = vpop.f32.mrb[0].mxu0
    %v1267 = vadd.f32 %v1005, %v1266
    %v1268 = vpop.f32.mrb[0].mxu0
    %v1269 = vadd.f32 %v1009, %v1268
    %v1270 = vpop.f32.mrb[0].mxu0
    %v1271 = vadd.f32 %v1005, %v1270
    %v1272 = vpop.f32.mrb[0].mxu0
    %v1273 = vadd.f32 %v1009, %v1272
    %1274 = vmatprep.mubr.bf16.mxu0 0
    %1275 = vmatmul.mubr.bf16.gmra.mrb[0].mxu0 %v983
    %v1276 = vpop.f32.mrb[0].mxu0
    %v1277 = vadd.f32 %v1005, %v1276
    %v1278 = vpop.f32.mrb[0].mxu0
    %v1279 = vadd.f32 %v1009, %v1278
    %v1280 = vpop.f32.mrb[0].mxu0
    %v1281 = vadd.f32 %v1005, %v1280
    %v1282 = vpop.f32.mrb[0].mxu0
    %v1283 = vadd.f32 %v1009, %v1282
    %1284 = vdwg.mxu0
    %v1285 = vmax.f32 %v1127, 0.0
    %v1286 = vmax.f32 %v1129, 0.0
    %v1287 = vmax.f32 %v1131, 0.0
    %v1288 = vmax.f32 %v1133, 0.0
    %v1289 = vmax.f32 %v1137, 0.0
    %v1290 = vmax.f32 %v1139, 0.0
    %v1291 = vmax.f32 %v1141, 0.0
    %v1292 = vmax.f32 %v1143, 0.0
    %v1293 = vmax.f32 %v1147, 0.0
    %v1294 = vmax.f32 %v1149, 0.0
    %v1295 = vmax.f32 %v1151, 0.0
    %v1296 = vmax.f32 %v1153, 0.0
    %v1297 = vmax.f32 %v1157, 0.0
    %v1298 = vmax.f32 %v1159, 0.0
    %v1299 = vmax.f32 %v1161, 0.0
    %v1300 = vmax.f32 %v1163, 0.0
    %v1301 = vmax.f32 %v1167, 0.0
    %v1302 = vmax.f32 %v1169, 0.0
    %v1303 = vmax.f32 %v1171, 0.0
    %v1304 = vmax.f32 %v1173, 0.0
    %v1305 = vmax.f32 %v1177, 0.0
    %v1306 = vmax.f32 %v1179, 0.0
    %v1307 = vmax.f32 %v1181, 0.0
    %v1308 = vmax.f32 %v1183, 0.0
    %v1309 = vmax.f32 %v1187, 0.0
    %v1310 = vmax.f32 %v1189, 0.0
    %v1311 = vmax.f32 %v1191, 0.0
    %v1312 = vmax.f32 %v1193, 0.0
    %v1313 = vmax.f32 %v1197, 0.0
    %v1314 = vmax.f32 %v1199, 0.0
    %v1315 = vmax.f32 %v1201, 0.0
    %v1316 = vmax.f32 %v1203, 0.0
    %v1317 = vmax.f32 %v1207, 0.0
    %v1318 = vmax.f32 %v1209, 0.0
    %v1319 = vmax.f32 %v1211, 0.0
    %v1320 = vmax.f32 %v1213, 0.0
    %v1321 = vmax.f32 %v1217, 0.0
    %v1322 = vmax.f32 %v1219, 0.0
    %v1323 = vmax.f32 %v1221, 0.0
    %v1324 = vmax.f32 %v1223, 0.0
    %v1325 = vmax.f32 %v1227, 0.0
    %v1326 = vmax.f32 %v1229, 0.0
    %v1327 = vmax.f32 %v1231, 0.0
    %v1328 = vmax.f32 %v1233, 0.0
    %v1329 = vmax.f32 %v1237, 0.0
    %v1330 = vmax.f32 %v1239, 0.0
    %v1331 = vmax.f32 %v1241, 0.0
    %v1332 = vmax.f32 %v1243, 0.0
    %v1333 = vmax.f32 %v1247, 0.0
    %v1334 = vmax.f32 %v1249, 0.0
    %v1335 = vmax.f32 %v1251, 0.0
    %v1336 = vmax.f32 %v1253, 0.0
    %v1337 = vmax.f32 %v1257, 0.0
    %v1338 = vmax.f32 %v1259, 0.0
    %v1339 = vmax.f32 %v1261, 0.0
    %v1340 = vmax.f32 %v1263, 0.0
    %v1341 = vmax.f32 %v1267, 0.0
    %v1342 = vmax.f32 %v1269, 0.0
    %v1343 = vmax.f32 %v1271, 0.0
    %v1344 = vmax.f32 %v1273, 0.0
    %v1345 = vmax.f32 %v1277, 0.0
    %v1346 = vmax.f32 %v1279, 0.0
    %v1347 = vmax.f32 %v1281, 0.0
    %v1348 = vmax.f32 %v1283, 0.0
    %v1349 = vpack.c.bf16 %v1287, %v1285
    %v1350 = vpack.c.bf16 %v1288, %v1286
    %v1351 = vpack.c.bf16 %v1291, %v1289
    %v1352 = vpack.c.bf16 %v1292, %v1290
    %v1353 = vpack.c.bf16 %v1295, %v1293
    %v1354 = vpack.c.bf16 %v1296, %v1294
    %v1355 = vpack.c.bf16 %v1299, %v1297
    %v1356 = vpack.c.bf16 %v1300, %v1298
    %v1357 = vpack.c.bf16 %v1303, %v1301
    %v1358 = vpack.c.bf16 %v1304, %v1302
    %v1359 = vpack.c.bf16 %v1307, %v1305
    %v1360 = vpack.c.bf16 %v1308, %v1306
    %v1361 = vpack.c.bf16 %v1311, %v1309
    %v1362 = vpack.c.bf16 %v1312, %v1310
    %v1363 = vpack.c.bf16 %v1315, %v1313
    %v1364 = vpack.c.bf16 %v1316, %v1314
    %v1365 = vpack.c.bf16 %v1319, %v1317
    %v1366 = vpack.c.bf16 %v1320, %v1318
    %v1367 = vpack.c.bf16 %v1323, %v1321
    %v1368 = vpack.c.bf16 %v1324, %v1322
    %v1369 = vpack.c.bf16 %v1327, %v1325
    %v1370 = vpack.c.bf16 %v1328, %v1326
    %v1371 = vpack.c.bf16 %v1331, %v1329
    %v1372 = vpack.c.bf16 %v1332, %v1330
    %v1373 = vpack.c.bf16 %v1335, %v1333
    %v1374 = vpack.c.bf16 %v1336, %v1334
    %v1375 = vpack.c.bf16 %v1339, %v1337
    %v1376 = vpack.c.bf16 %v1340, %v1338
    %v1377 = vpack.c.bf16 %v1343, %v1341
    %v1378 = vpack.c.bf16 %v1344, %v1342
    %v1379 = vpack.c.bf16 %v1347, %v1345
    %v1380 = vpack.c.bf16 %v1348, %v1346
    %v1381 = vld [vmem:[%s8] sm:$0xff]
    %v1382 = vld [vmem:[%s8 + $0x8] sm:$0xff]
    %v1383 = vld [vmem:[%s8 + $0x10] sm:$0xff]
    %v1384 = vld [vmem:[%s8 + $0x18] sm:$0xff]
    %v1385 = vld [vmem:[%s8 + $0x20] sm:$0xff]
    %v1386 = vld [vmem:[%s8 + $0x28] sm:$0xff]
    %v1387 = vld [vmem:[%s8 + $0x30] sm:$0xff]
    %v1388 = vld [vmem:[%s8 + $0x38] sm:$0xff]
    %v1389 = vld [vmem:[%s8 + $0x40] sm:$0xff]
    %v1390 = vld [vmem:[%s8 + $0x48] sm:$0xff]
    %v1391 = vld [vmem:[%s8 + $0x50] sm:$0xff]
    %v1392 = vld [vmem:[%s8 + $0x58] sm:$0xff]
    %v1393 = vld [vmem:[%s8 + $0x60] sm:$0xff]
    %v1394 = vld [vmem:[%s8 + $0x68] sm:$0xff]
    %v1395 = vld [vmem:[%s8 + $0x70] sm:$0xff]
    %v1396 = vld [vmem:[%s8 + $0x78] sm:$0xff]
    %v1397 = vld [vmem:[%s8 + $0x80] sm:$0xff]
    %v1398 = vld [vmem:[%s8 + $0x88] sm:$0xff]
    %v1399 = vld [vmem:[%s8 + $0x90] sm:$0xff]
    %v1400 = vld [vmem:[%s8 + $0x98] sm:$0xff]
    %v1401 = vld [vmem:[%s8 + $0xa0] sm:$0xff]
    %v1402 = vld [vmem:[%s8 + $0xa8] sm:$0xff]
    %v1403 = vld [vmem:[%s8 + $0xb0] sm:$0xff]
    %v1404 = vld [vmem:[%s8 + $0xb8] sm:$0xff]
    %v1405 = vld [vmem:[%s8 + $0xc0] sm:$0xff]
    %v1406 = vld [vmem:[%s8 + $0xc8] sm:$0xff]
    %v1407 = vld [vmem:[%s8 + $0xd0] sm:$0xff]
    %v1408 = vld [vmem:[%s8 + $0xd8] sm:$0xff]
    %v1409 = vld [vmem:[%s8 + $0xe0] sm:$0xff]
    %v1410 = vld [vmem:[%s8 + $0xe8] sm:$0xff]
    %v1411 = vld [vmem:[%s8 + $0xf0] sm:$0xff]
    %v1412 = vld [vmem:[%s8 + $0xf8] sm:$0xff]
    %v1413 = vld [vmem:[%s8 + $0x100] sm:$0xff]
    %v1414 = vld [vmem:[%s8 + $0x108] sm:$0xff]
    %v1415 = vld [vmem:[%s8 + $0x110] sm:$0xff]
    %v1416 = vld [vmem:[%s8 + $0x118] sm:$0xff]
    %v1417 = vld [vmem:[%s8 + $0x120] sm:$0xff]
    %v1418 = vld [vmem:[%s8 + $0x128] sm:$0xff]
    %v1419 = vld [vmem:[%s8 + $0x130] sm:$0xff]
    %v1420 = vld [vmem:[%s8 + $0x138] sm:$0xff]
    %v1421 = vld [vmem:[%s8 + $0x140] sm:$0xff]
    %v1422 = vld [vmem:[%s8 + $0x148] sm:$0xff]
    %v1423 = vld [vmem:[%s8 + $0x150] sm:$0xff]
    %v1424 = vld [vmem:[%s8 + $0x158] sm:$0xff]
    %v1425 = vld [vmem:[%s8 + $0x160] sm:$0xff]
    %v1426 = vld [vmem:[%s8 + $0x168] sm:$0xff]
    %v1427 = vld [vmem:[%s8 + $0x170] sm:$0xff]
    %v1428 = vld [vmem:[%s8 + $0x178] sm:$0xff]
    %v1429 = vld [vmem:[%s8 + $0x180] sm:$0xff]
    %v1430 = vld [vmem:[%s8 + $0x188] sm:$0xff]
    %v1431 = vld [vmem:[%s8 + $0x190] sm:$0xff]
    %v1432 = vld [vmem:[%s8 + $0x198] sm:$0xff]
    %v1433 = vld [vmem:[%s8 + $0x1a0] sm:$0xff]
    %v1434 = vld [vmem:[%s8 + $0x1a8] sm:$0xff]
    %v1435 = vld [vmem:[%s8 + $0x1b0] sm:$0xff]
    %v1436 = vld [vmem:[%s8 + $0x1b8] sm:$0xff]
    %v1437 = vld [vmem:[%s8 + $0x1c0] sm:$0xff]
    %v1438 = vld [vmem:[%s8 + $0x1c8] sm:$0xff]
    %v1439 = vld [vmem:[%s8 + $0x1d0] sm:$0xff]
    %v1440 = vld [vmem:[%s8 + $0x1d8] sm:$0xff]
    %v1441 = vld [vmem:[%s8 + $0x1e0] sm:$0xff]
    %v1442 = vld [vmem:[%s8 + $0x1e8] sm:$0xff]
    %v1443 = vld [vmem:[%s8 + $0x1f0] sm:$0xff]
    %v1444 = vld [vmem:[%s8 + $0x1f8] sm:$0xff]
    %v1509 = vunpack.c.l.b16 %v1381
    %v1510 = vunpack.c.h.b16 %v1381
    %v1511 = vunpack.c.l.b16 %v1382
    %v1512 = vunpack.c.h.b16 %v1382
    %v1513 = vunpack.c.l.b16 %v1383
    %v1514 = vunpack.c.h.b16 %v1383
    %v1515 = vunpack.c.l.b16 %v1384
    %v1516 = vunpack.c.h.b16 %v1384
    %v1517 = vunpack.c.l.b16 %v1385
    %v1518 = vunpack.c.h.b16 %v1385
    %v1519 = vunpack.c.l.b16 %v1386
    %v1520 = vunpack.c.h.b16 %v1386
    %v1521 = vunpack.c.l.b16 %v1387
    %v1522 = vunpack.c.h.b16 %v1387
    %v1523 = vunpack.c.l.b16 %v1388
    %v1524 = vunpack.c.h.b16 %v1388
    %v1525 = vunpack.c.l.b16 %v1389
    %v1526 = vunpack.c.h.b16 %v1389
    %v1527 = vunpack.c.l.b16 %v1390
    %v1528 = vunpack.c.h.b16 %v1390
    %v1529 = vunpack.c.l.b16 %v1391
    %v1530 = vunpack.c.h.b16 %v1391
    %v1531 = vunpack.c.l.b16 %v1392
    %v1532 = vunpack.c.h.b16 %v1392
    %v1533 = vunpack.c.l.b16 %v1393
    %v1534 = vunpack.c.h.b16 %v1393
    %v1535 = vunpack.c.l.b16 %v1394
    %v1536 = vunpack.c.h.b16 %v1394
    %v1537 = vunpack.c.l.b16 %v1395
    %v1538 = vunpack.c.h.b16 %v1395
    %v1539 = vunpack.c.l.b16 %v1396
    %v1540 = vunpack.c.h.b16 %v1396
    %v1541 = vunpack.c.l.b16 %v1397
    %v1542 = vunpack.c.h.b16 %v1397
    %v1543 = vunpack.c.l.b16 %v1398
    %v1544 = vunpack.c.h.b16 %v1398
    %v1545 = vunpack.c.l.b16 %v1399
    %v1546 = vunpack.c.h.b16 %v1399
    %v1547 = vunpack.c.l.b16 %v1400
    %v1548 = vunpack.c.h.b16 %v1400
    %v1549 = vunpack.c.l.b16 %v1401
    %v1550 = vunpack.c.h.b16 %v1401
    %v1551 = vunpack.c.l.b16 %v1402
    %v1552 = vunpack.c.h.b16 %v1402
    %v1553 = vunpack.c.l.b16 %v1403
    %v1554 = vunpack.c.h.b16 %v1403
    %v1555 = vunpack.c.l.b16 %v1404
    %v1556 = vunpack.c.h.b16 %v1404
    %v1557 = vunpack.c.l.b16 %v1405
    %v1558 = vunpack.c.h.b16 %v1405
    %v1559 = vunpack.c.l.b16 %v1406
    %v1560 = vunpack.c.h.b16 %v1406
    %v1561 = vunpack.c.l.b16 %v1407
    %v1562 = vunpack.c.h.b16 %v1407
    %v1563 = vunpack.c.l.b16 %v1408
    %v1564 = vunpack.c.h.b16 %v1408
    %v1565 = vunpack.c.l.b16 %v1409
    %v1566 = vunpack.c.h.b16 %v1409
    %v1567 = vunpack.c.l.b16 %v1410
    %v1568 = vunpack.c.h.b16 %v1410
    %v1569 = vunpack.c.l.b16 %v1411
    %v1570 = vunpack.c.h.b16 %v1411
    %v1571 = vunpack.c.l.b16 %v1412
    %v1572 = vunpack.c.h.b16 %v1412
    %v1573 = vunpack.c.l.b16 %v1413
    %v1574 = vunpack.c.h.b16 %v1413
    %v1575 = vunpack.c.l.b16 %v1414
    %v1576 = vunpack.c.h.b16 %v1414
    %v1577 = vunpack.c.l.b16 %v1415
    %v1578 = vunpack.c.h.b16 %v1415
    %v1579 = vunpack.c.l.b16 %v1416
    %v1580 = vunpack.c.h.b16 %v1416
    %v1581 = vunpack.c.l.b16 %v1417
    %v1582 = vunpack.c.h.b16 %v1417
    %v1583 = vunpack.c.l.b16 %v1418
    %v1584 = vunpack.c.h.b16 %v1418
    %v1585 = vunpack.c.l.b16 %v1419
    %v1586 = vunpack.c.h.b16 %v1419
    %v1587 = vunpack.c.l.b16 %v1420
    %v1588 = vunpack.c.h.b16 %v1420
    %v1589 = vunpack.c.l.b16 %v1421
    %v1590 = vunpack.c.h.b16 %v1421
    %v1591 = vunpack.c.l.b16 %v1422
    %v1592 = vunpack.c.h.b16 %v1422
    %v1593 = vunpack.c.l.b16 %v1423
    %v1594 = vunpack.c.h.b16 %v1423
    %v1595 = vunpack.c.l.b16 %v1424
    %v1596 = vunpack.c.h.b16 %v1424
    %v1597 = vunpack.c.l.b16 %v1425
    %v1598 = vunpack.c.h.b16 %v1425
    %v1599 = vunpack.c.l.b16 %v1426
    %v1600 = vunpack.c.h.b16 %v1426
    %v1601 = vunpack.c.l.b16 %v1427
    %v1602 = vunpack.c.h.b16 %v1427
    %v1603 = vunpack.c.l.b16 %v1428
    %v1604 = vunpack.c.h.b16 %v1428
    %v1605 = vunpack.c.l.b16 %v1429
    %v1606 = vunpack.c.h.b16 %v1429
    %v1607 = vunpack.c.l.b16 %v1430
    %v1608 = vunpack.c.h.b16 %v1430
    %v1609 = vunpack.c.l.b16 %v1431
    %v1610 = vunpack.c.h.b16 %v1431
    %v1611 = vunpack.c.l.b16 %v1432
    %v1612 = vunpack.c.h.b16 %v1432
    %v1613 = vunpack.c.l.b16 %v1433
    %v1614 = vunpack.c.h.b16 %v1433
    %v1615 = vunpack.c.l.b16 %v1434
    %v1616 = vunpack.c.h.b16 %v1434
    %v1617 = vunpack.c.l.b16 %v1435
    %v1618 = vunpack.c.h.b16 %v1435
    %v1619 = vunpack.c.l.b16 %v1436
    %v1620 = vunpack.c.h.b16 %v1436
    %v1621 = vunpack.c.l.b16 %v1437
    %v1622 = vunpack.c.h.b16 %v1437
    %v1623 = vunpack.c.l.b16 %v1438
    %v1624 = vunpack.c.h.b16 %v1438
    %v1625 = vunpack.c.l.b16 %v1439
    %v1626 = vunpack.c.h.b16 %v1439
    %v1627 = vunpack.c.l.b16 %v1440
    %v1628 = vunpack.c.h.b16 %v1440
    %v1629 = vunpack.c.l.b16 %v1441
    %v1630 = vunpack.c.h.b16 %v1441
    %v1631 = vunpack.c.l.b16 %v1442
    %v1632 = vunpack.c.h.b16 %v1442
    %v1633 = vunpack.c.l.b16 %v1443
    %v1634 = vunpack.c.h.b16 %v1443
    %v1635 = vunpack.c.l.b16 %v1444
    %v1636 = vunpack.c.h.b16 %v1444
    %v1637 = vpack.c.b16 %v1513, %v1509
    %v1638 = vpack.c.b16 %v1514, %v1510
    %v1639 = vpack.c.b16 %v1515, %v1511
    %v1640 = vpack.c.b16 %v1516, %v1512
    %v1641 = vpack.c.b16 %v1521, %v1517
    %v1642 = vpack.c.b16 %v1522, %v1518
    %v1643 = vpack.c.b16 %v1523, %v1519
    %v1644 = vpack.c.b16 %v1524, %v1520
    %v1645 = vpack.c.b16 %v1529, %v1525
    %v1646 = vpack.c.b16 %v1530, %v1526
    %v1647 = vpack.c.b16 %v1531, %v1527
    %v1648 = vpack.c.b16 %v1532, %v1528
    %v1649 = vpack.c.b16 %v1537, %v1533
    %v1650 = vpack.c.b16 %v1538, %v1534
    %v1651 = vpack.c.b16 %v1539, %v1535
    %v1652 = vpack.c.b16 %v1540, %v1536
    %v1653 = vpack.c.b16 %v1545, %v1541
    %v1654 = vpack.c.b16 %v1546, %v1542
    %v1655 = vpack.c.b16 %v1547, %v1543
    %v1656 = vpack.c.b16 %v1548, %v1544
    %v1657 = vpack.c.b16 %v1553, %v1549
    %v1658 = vpack.c.b16 %v1554, %v1550
    %v1659 = vpack.c.b16 %v1555, %v1551
    %v1660 = vpack.c.b16 %v1556, %v1552
    %v1661 = vpack.c.b16 %v1561, %v1557
    %v1662 = vpack.c.b16 %v1562, %v1558
    %v1663 = vpack.c.b16 %v1563, %v1559
    %v1664 = vpack.c.b16 %v1564, %v1560
    %v1665 = vpack.c.b16 %v1569, %v1565
    %v1666 = vpack.c.b16 %v1570, %v1566
    %v1667 = vpack.c.b16 %v1571, %v1567
    %v1668 = vpack.c.b16 %v1572, %v1568
    %v1669 = vpack.c.b16 %v1577, %v1573
    %v1670 = vpack.c.b16 %v1578, %v1574
    %v1671 = vpack.c.b16 %v1579, %v1575
    %v1672 = vpack.c.b16 %v1580, %v1576
    %v1673 = vpack.c.b16 %v1585, %v1581
    %v1674 = vpack.c.b16 %v1586, %v1582
    %v1675 = vpack.c.b16 %v1587, %v1583
    %v1676 = vpack.c.b16 %v1588, %v1584
    %v1677 = vpack.c.b16 %v1593, %v1589
    %v1678 = vpack.c.b16 %v1594, %v1590
    %v1679 = vpack.c.b16 %v1595, %v1591
    %v1680 = vpack.c.b16 %v1596, %v1592
    %v1681 = vpack.c.b16 %v1601, %v1597
    %v1682 = vpack.c.b16 %v1602, %v1598
    %v1683 = vpack.c.b16 %v1603, %v1599
    %v1684 = vpack.c.b16 %v1604, %v1600
    %v1685 = vpack.c.b16 %v1609, %v1605
    %v1686 = vpack.c.b16 %v1610, %v1606
    %v1687 = vpack.c.b16 %v1611, %v1607
    %v1688 = vpack.c.b16 %v1612, %v1608
    %v1689 = vpack.c.b16 %v1617, %v1613
    %v1690 = vpack.c.b16 %v1618, %v1614
    %v1691 = vpack.c.b16 %v1619, %v1615
    %v1692 = vpack.c.b16 %v1620, %v1616
    %v1693 = vpack.c.b16 %v1625, %v1621
    %v1694 = vpack.c.b16 %v1626, %v1622
    %v1695 = vpack.c.b16 %v1627, %v1623
    %v1696 = vpack.c.b16 %v1628, %v1624
    %v1697 = vpack.c.b16 %v1633, %v1629
    %v1698 = vpack.c.b16 %v1634, %v1630
    %v1699 = vpack.c.b16 %v1635, %v1631
    %v1700 = vpack.c.b16 %v1636, %v1632
    %1765 = vmatprep.subr.bf16.mxu0 %v1638
    %1766 = vmatpush1.bf16.msra.mxu0 %v1637
    %1767 = vmatprep.subr.bf16.mxu0 %v1642
    %1768 = vmatpush1.bf16.msra.mxu0 %v1641
    %1769 = vmatprep.subr.bf16.mxu0 %v1646
    %1770 = vmatpush1.bf16.msra.mxu0 %v1645
    %1771 = vmatprep.subr.bf16.mxu0 %v1650
    %1772 = vmatpush1.bf16.msra.mxu0 %v1649
    %1773 = vmatprep.subr.bf16.mxu0 %v1654
    %1774 = vmatpush1.bf16.msra.mxu0 %v1653
    %1775 = vmatprep.subr.bf16.mxu0 %v1658
    %1776 = vmatpush1.bf16.msra.mxu0 %v1657
    %1777 = vmatprep.subr.bf16.mxu0 %v1662
    %1778 = vmatpush1.bf16.msra.mxu0 %v1661
    %1779 = vmatprep.subr.bf16.mxu0 %v1666
    %1780 = vmatpush1.bf16.msra.mxu0 %v1665
    %1781 = vmatprep.subr.bf16.mxu0 %v1670
    %1782 = vmatpush1.bf16.msra.mxu0 %v1669
    %1783 = vmatprep.subr.bf16.mxu0 %v1674
    %1784 = vmatpush1.bf16.msra.mxu0 %v1673
    %1785 = vmatprep.subr.bf16.mxu0 %v1678
    %1786 = vmatpush1.bf16.msra.mxu0 %v1677
    %1787 = vmatprep.subr.bf16.mxu0 %v1682
    %1788 = vmatpush1.bf16.msra.mxu0 %v1681
    %1789 = vmatprep.subr.bf16.mxu0 %v1686
    %1790 = vmatpush1.bf16.msra.mxu0 %v1685
    %1791 = vmatprep.subr.bf16.mxu0 %v1690
    %1792 = vmatpush1.bf16.msra.mxu0 %v1689
    %1793 = vmatprep.subr.bf16.mxu0 %v1694
    %1794 = vmatpush1.bf16.msra.mxu0 %v1693
    %1795 = vmatprep.subr.bf16.mxu0 %v1698
    %1796 = vmatpush1.bf16.msra.mxu0 %v1697
    %1797 = vmatprep.mubr.bf16.mxu0 %v1350
    %1798 = vmatmul.mubr.bf16.gmra.mrb[0].mxu0 %v1349
    %v1799 = vpop.f32.mrb[0].mxu0
    %v1800 = vadd.f32 0.0, %v1799
    %v1801 = vpop.f32.mrb[0].mxu0
    %v1802 = vadd.f32 0.0, %v1801
    %v1803 = vpop.f32.mrb[0].mxu0
    %v1804 = vadd.f32 0.0, %v1803
    %v1805 = vpop.f32.mrb[0].mxu0
    %v1806 = vadd.f32 0.0, %v1805
    %1807 = vmatprep.mubr.bf16.mxu0 %v1352
    %1808 = vmatmul.mubr.bf16.gmra.mrb[0].mxu0 %v1351
    %v1809 = vpop.f32.mrb[0].mxu0
    %v1810 = vadd.f32 0.0, %v1809
    %v1811 = vpop.f32.mrb[0].mxu0
    %v1812 = vadd.f32 0.0, %v1811
    %v1813 = vpop.f32.mrb[0].mxu0
    %v1814 = vadd.f32 0.0, %v1813
    %v1815 = vpop.f32.mrb[0].mxu0
    %v1816 = vadd.f32 0.0, %v1815
    %1817 = vmatprep.mubr.bf16.mxu0 %v1354
    %1818 = vmatmul.mubr.bf16.gmra.mrb[0].mxu0 %v1353
    %v1819 = vpop.f32.mrb[0].mxu0
    %v1820 = vadd.f32 0.0, %v1819
    %v1821 = vpop.f32.mrb[0].mxu0
    %v1822 = vadd.f32 0.0, %v1821
    %v1823 = vpop.f32.mrb[0].mxu0
    %v1824 = vadd.f32 0.0, %v1823
    %v1825 = vpop.f32.mrb[0].mxu0
    %v1826 = vadd.f32 0.0, %v1825
    %1827 = vmatprep.mubr.bf16.mxu0 %v1356
    %1828 = vmatmul.mubr.bf16.gmra.mrb[0].mxu0 %v1355
    %v1829 = vpop.f32.mrb[0].mxu0
    %v1830 = vadd.f32 0.0, %v1829
    %v1831 = vpop.f32.mrb[0].mxu0
    %v1832 = vadd.f32 0.0, %v1831
    %v1833 = vpop.f32.mrb[0].mxu0
    %v1834 = vadd.f32 0.0, %v1833
    %v1835 = vpop.f32.mrb[0].mxu0
    %v1836 = vadd.f32 0.0, %v1835
    %1837 = vmatprep.mubr.bf16.mxu0 %v1358
    %1838 = vmatmul.mubr.bf16.gmra.mrb[0].mxu0 %v1357
    %v1839 = vpop.f32.mrb[0].mxu0
    %v1840 = vadd.f32 0.0, %v1839
    %v1841 = vpop.f32.mrb[0].mxu0
    %v1842 = vadd.f32 0.0, %v1841
    %v1843 = vpop.f32.mrb[0].mxu0
    %v1844 = vadd.f32 0.0, %v1843
    %v1845 = vpop.f32.mrb[0].mxu0
    %v1846 = vadd.f32 0.0, %v1845
    %1847 = vmatprep.mubr.bf16.mxu0 %v1360
    %1848 = vmatmul.mubr.bf16.gmra.mrb[0].mxu0 %v1359
    %v1849 = vpop.f32.mrb[0].mxu0
    %v1850 = vadd.f32 0.0, %v1849
    %v1851 = vpop.f32.mrb[0].mxu0
    %v1852 = vadd.f32 0.0, %v1851
    %v1853 = vpop.f32.mrb[0].mxu0
    %v1854 = vadd.f32 0.0, %v1853
    %v1855 = vpop.f32.mrb[0].mxu0
    %v1856 = vadd.f32 0.0, %v1855
    %1857 = vmatprep.mubr.bf16.mxu0 %v1362
    %1858 = vmatmul.mubr.bf16.gmra.mrb[0].mxu0 %v1361
    %v1859 = vpop.f32.mrb[0].mxu0
    %v1860 = vadd.f32 0.0, %v1859
    %v1861 = vpop.f32.mrb[0].mxu0
    %v1862 = vadd.f32 0.0, %v1861
    %v1863 = vpop.f32.mrb[0].mxu0
    %v1864 = vadd.f32 0.0, %v1863
    %v1865 = vpop.f32.mrb[0].mxu0
    %v1866 = vadd.f32 0.0, %v1865
    %1867 = vmatprep.mubr.bf16.mxu0 %v1364
    %1868 = vmatmul.mubr.bf16.gmra.mrb[0].mxu0 %v1363
    %v1869 = vpop.f32.mrb[0].mxu0
    %v1870 = vadd.f32 0.0, %v1869
    %v1871 = vpop.f32.mrb[0].mxu0
    %v1872 = vadd.f32 0.0, %v1871
    %v1873 = vpop.f32.mrb[0].mxu0
    %v1874 = vadd.f32 0.0, %v1873
    %v1875 = vpop.f32.mrb[0].mxu0
    %v1876 = vadd.f32 0.0, %v1875
    %1877 = vmatprep.mubr.bf16.mxu0 %v1366
    %1878 = vmatmul.mubr.bf16.gmra.mrb[0].mxu0 %v1365
    %v1879 = vpop.f32.mrb[0].mxu0
    %v1880 = vadd.f32 0.0, %v1879
    %v1881 = vpop.f32.mrb[0].mxu0
    %v1882 = vadd.f32 0.0, %v1881
    %v1883 = vpop.f32.mrb[0].mxu0
    %v1884 = vadd.f32 0.0, %v1883
    %v1885 = vpop.f32.mrb[0].mxu0
    %v1886 = vadd.f32 0.0, %v1885
    %1887 = vmatprep.mubr.bf16.mxu0 %v1368
    %1888 = vmatmul.mubr.bf16.gmra.mrb[0].mxu0 %v1367
    %v1889 = vpop.f32.mrb[0].mxu0
    %v1890 = vadd.f32 0.0, %v1889
    %v1891 = vpop.f32.mrb[0].mxu0
    %v1892 = vadd.f32 0.0, %v1891
    %v1893 = vpop.f32.mrb[0].mxu0
    %v1894 = vadd.f32 0.0, %v1893
    %v1895 = vpop.f32.mrb[0].mxu0
    %v1896 = vadd.f32 0.0, %v1895
    %1897 = vmatprep.mubr.bf16.mxu0 %v1370
    %1898 = vmatmul.mubr.bf16.gmra.mrb[0].mxu0 %v1369
    %v1899 = vpop.f32.mrb[0].mxu0
    %v1900 = vadd.f32 0.0, %v1899
    %v1901 = vpop.f32.mrb[0].mxu0
    %v1902 = vadd.f32 0.0, %v1901
    %v1903 = vpop.f32.mrb[0].mxu0
    %v1904 = vadd.f32 0.0, %v1903
    %v1905 = vpop.f32.mrb[0].mxu0
    %v1906 = vadd.f32 0.0, %v1905
    %1907 = vmatprep.mubr.bf16.mxu0 %v1372
    %1908 = vmatmul.mubr.bf16.gmra.mrb[0].mxu0 %v1371
    %v1909 = vpop.f32.mrb[0].mxu0
    %v1910 = vadd.f32 0.0, %v1909
    %v1911 = vpop.f32.mrb[0].mxu0
    %v1912 = vadd.f32 0.0, %v1911
    %v1913 = vpop.f32.mrb[0].mxu0
    %v1914 = vadd.f32 0.0, %v1913
    %v1915 = vpop.f32.mrb[0].mxu0
    %v1916 = vadd.f32 0.0, %v1915
    %1917 = vmatprep.mubr.bf16.mxu0 %v1374
    %1918 = vmatmul.mubr.bf16.gmra.mrb[0].mxu0 %v1373
    %v1919 = vpop.f32.mrb[0].mxu0
    %v1920 = vadd.f32 0.0, %v1919
    %v1921 = vpop.f32.mrb[0].mxu0
    %v1922 = vadd.f32 0.0, %v1921
    %v1923 = vpop.f32.mrb[0].mxu0
    %v1924 = vadd.f32 0.0, %v1923
    %v1925 = vpop.f32.mrb[0].mxu0
    %v1926 = vadd.f32 0.0, %v1925
    %1927 = vmatprep.mubr.bf16.mxu0 %v1376
    %1928 = vmatmul.mubr.bf16.gmra.mrb[0].mxu0 %v1375
    %v1929 = vpop.f32.mrb[0].mxu0
    %v1930 = vadd.f32 0.0, %v1929
    %v1931 = vpop.f32.mrb[0].mxu0
    %v1932 = vadd.f32 0.0, %v1931
    %v1933 = vpop.f32.mrb[0].mxu0
    %v1934 = vadd.f32 0.0, %v1933
    %v1935 = vpop.f32.mrb[0].mxu0
    %v1936 = vadd.f32 0.0, %v1935
    %1937 = vmatprep.mubr.bf16.mxu0 %v1378
    %1938 = vmatmul.mubr.bf16.gmra.mrb[0].mxu0 %v1377
    %v1939 = vpop.f32.mrb[0].mxu0
    %v1940 = vadd.f32 0.0, %v1939
    %v1941 = vpop.f32.mrb[0].mxu0
    %v1942 = vadd.f32 0.0, %v1941
    %v1943 = vpop.f32.mrb[0].mxu0
    %v1944 = vadd.f32 0.0, %v1943
    %v1945 = vpop.f32.mrb[0].mxu0
    %v1946 = vadd.f32 0.0, %v1945
    %1947 = vmatprep.mubr.bf16.mxu0 %v1380
    %1948 = vmatmul.mubr.bf16.gmra.mrb[0].mxu0 %v1379
    %v1949 = vpop.f32.mrb[0].mxu0
    %v1950 = vadd.f32 0.0, %v1949
    %v1951 = vpop.f32.mrb[0].mxu0
    %v1952 = vadd.f32 0.0, %v1951
    %v1953 = vpop.f32.mrb[0].mxu0
    %v1954 = vadd.f32 0.0, %v1953
    %v1955 = vpop.f32.mrb[0].mxu0
    %v1956 = vadd.f32 0.0, %v1955
    %1957 = vdwg.mxu0
    %1958 = vmatprep.subr.bf16.mxu0 %v1640
    %1959 = vmatpush1.bf16.msra.mxu0 %v1639
    %1960 = vmatprep.subr.bf16.mxu0 %v1644
    %1961 = vmatpush1.bf16.msra.mxu0 %v1643
    %1962 = vmatprep.subr.bf16.mxu0 %v1648
    %1963 = vmatpush1.bf16.msra.mxu0 %v1647
    %1964 = vmatprep.subr.bf16.mxu0 %v1652
    %1965 = vmatpush1.bf16.msra.mxu0 %v1651
    %1966 = vmatprep.subr.bf16.mxu0 %v1656
    %1967 = vmatpush1.bf16.msra.mxu0 %v1655
    %1968 = vmatprep.subr.bf16.mxu0 %v1660
    %1969 = vmatpush1.bf16.msra.mxu0 %v1659
    %1970 = vmatprep.subr.bf16.mxu0 %v1664
    %1971 = vmatpush1.bf16.msra.mxu0 %v1663
    %1972 = vmatprep.subr.bf16.mxu0 %v1668
    %1973 = vmatpush1.bf16.msra.mxu0 %v1667
    %1974 = vmatprep.subr.bf16.mxu0 %v1672
    %1975 = vmatpush1.bf16.msra.mxu0 %v1671
    %1976 = vmatprep.subr.bf16.mxu0 %v1676
    %1977 = vmatpush1.bf16.msra.mxu0 %v1675
    %1978 = vmatprep.subr.bf16.mxu0 %v1680
    %1979 = vmatpush1.bf16.msra.mxu0 %v1679
    %1980 = vmatprep.subr.bf16.mxu0 %v1684
    %1981 = vmatpush1.bf16.msra.mxu0 %v1683
    %1982 = vmatprep.subr.bf16.mxu0 %v1688
    %1983 = vmatpush1.bf16.msra.mxu0 %v1687
    %1984 = vmatprep.subr.bf16.mxu0 %v1692
    %1985 = vmatpush1.bf16.msra.mxu0 %v1691
    %1986 = vmatprep.subr.bf16.mxu0 %v1696
    %1987 = vmatpush1.bf16.msra.mxu0 %v1695
    %1988 = vmatprep.subr.bf16.mxu0 %v1700
    %1989 = vmatpush1.bf16.msra.mxu0 %v1699
    %1990 = vmatprep.mubr.bf16.mxu0 %v1350
    %1991 = vmatmul.mubr.bf16.gmra.mrb[0].mxu0 %v1349
    %v1992 = vpop.f32.mrb[0].mxu0
    %v1993 = vadd.f32 0.0, %v1992
    %v1994 = vpop.f32.mrb[0].mxu0
    %v1995 = vadd.f32 0.0, %v1994
    %v1996 = vpop.f32.mrb[0].mxu0
    %v1997 = vadd.f32 0.0, %v1996
    %v1998 = vpop.f32.mrb[0].mxu0
    %v1999 = vadd.f32 0.0, %v1998
    %2000 = vmatprep.mubr.bf16.mxu0 %v1352
    %2001 = vmatmul.mubr.bf16.gmra.mrb[0].mxu0 %v1351
    %v2002 = vpop.f32.mrb[0].mxu0
    %v2003 = vadd.f32 0.0, %v2002
    %v2004 = vpop.f32.mrb[0].mxu0
    %v2005 = vadd.f32 0.0, %v2004
    %v2006 = vpop.f32.mrb[0].mxu0
    %v2007 = vadd.f32 0.0, %v2006
    %v2008 = vpop.f32.mrb[0].mxu0
    %v2009 = vadd.f32 0.0, %v2008
    %2010 = vmatprep.mubr.bf16.mxu0 %v1354
    %2011 = vmatmul.mubr.bf16.gmra.mrb[0].mxu0 %v1353
    %v2012 = vpop.f32.mrb[0].mxu0
    %v2013 = vadd.f32 0.0, %v2012
    %v2014 = vpop.f32.mrb[0].mxu0
    %v2015 = vadd.f32 0.0, %v2014
    %v2016 = vpop.f32.mrb[0].mxu0
    %v2017 = vadd.f32 0.0, %v2016
    %v2018 = vpop.f32.mrb[0].mxu0
    %v2019 = vadd.f32 0.0, %v2018
    %2020 = vmatprep.mubr.bf16.mxu0 %v1356
    %2021 = vmatmul.mubr.bf16.gmra.mrb[0].mxu0 %v1355
    %v2022 = vpop.f32.mrb[0].mxu0
    %v2023 = vadd.f32 0.0, %v2022
    %v2024 = vpop.f32.mrb[0].mxu0
    %v2025 = vadd.f32 0.0, %v2024
    %v2026 = vpop.f32.mrb[0].mxu0
    %v2027 = vadd.f32 0.0, %v2026
    %v2028 = vpop.f32.mrb[0].mxu0
    %v2029 = vadd.f32 0.0, %v2028
    %2030 = vmatprep.mubr.bf16.mxu0 %v1358
    %2031 = vmatmul.mubr.bf16.gmra.mrb[0].mxu0 %v1357
    %v2032 = vpop.f32.mrb[0].mxu0
    %v2033 = vadd.f32 0.0, %v2032
    %v2034 = vpop.f32.mrb[0].mxu0
    %v2035 = vadd.f32 0.0, %v2034
    %v2036 = vpop.f32.mrb[0].mxu0
    %v2037 = vadd.f32 0.0, %v2036
    %v2038 = vpop.f32.mrb[0].mxu0
    %v2039 = vadd.f32 0.0, %v2038
    %2040 = vmatprep.mubr.bf16.mxu0 %v1360
    %2041 = vmatmul.mubr.bf16.gmra.mrb[0].mxu0 %v1359
    %v2042 = vpop.f32.mrb[0].mxu0
    %v2043 = vadd.f32 0.0, %v2042
    %v2044 = vpop.f32.mrb[0].mxu0
    %v2045 = vadd.f32 0.0, %v2044
    %v2046 = vpop.f32.mrb[0].mxu0
    %v2047 = vadd.f32 0.0, %v2046
    %v2048 = vpop.f32.mrb[0].mxu0
    %v2049 = vadd.f32 0.0, %v2048
    %2050 = vmatprep.mubr.bf16.mxu0 %v1362
    %2051 = vmatmul.mubr.bf16.gmra.mrb[0].mxu0 %v1361
    %v2052 = vpop.f32.mrb[0].mxu0
    %v2053 = vadd.f32 0.0, %v2052
    %v2054 = vpop.f32.mrb[0].mxu0
    %v2055 = vadd.f32 0.0, %v2054
    %v2056 = vpop.f32.mrb[0].mxu0
    %v2057 = vadd.f32 0.0, %v2056
    %v2058 = vpop.f32.mrb[0].mxu0
    %v2059 = vadd.f32 0.0, %v2058
    %2060 = vmatprep.mubr.bf16.mxu0 %v1364
    %2061 = vmatmul.mubr.bf16.gmra.mrb[0].mxu0 %v1363
    %v2062 = vpop.f32.mrb[0].mxu0
    %v2063 = vadd.f32 0.0, %v2062
    %v2064 = vpop.f32.mrb[0].mxu0
    %v2065 = vadd.f32 0.0, %v2064
    %v2066 = vpop.f32.mrb[0].mxu0
    %v2067 = vadd.f32 0.0, %v2066
    %v2068 = vpop.f32.mrb[0].mxu0
    %v2069 = vadd.f32 0.0, %v2068
    %2070 = vmatprep.mubr.bf16.mxu0 %v1366
    %2071 = vmatmul.mubr.bf16.gmra.mrb[0].mxu0 %v1365
    %v2072 = vpop.f32.mrb[0].mxu0
    %v2073 = vadd.f32 0.0, %v2072
    %v2074 = vpop.f32.mrb[0].mxu0
    %v2075 = vadd.f32 0.0, %v2074
    %v2076 = vpop.f32.mrb[0].mxu0
    %v2077 = vadd.f32 0.0, %v2076
    %v2078 = vpop.f32.mrb[0].mxu0
    %v2079 = vadd.f32 0.0, %v2078
    %2080 = vmatprep.mubr.bf16.mxu0 %v1368
    %2081 = vmatmul.mubr.bf16.gmra.mrb[0].mxu0 %v1367
    %v2082 = vpop.f32.mrb[0].mxu0
    %v2083 = vadd.f32 0.0, %v2082
    %v2084 = vpop.f32.mrb[0].mxu0
    %v2085 = vadd.f32 0.0, %v2084
    %v2086 = vpop.f32.mrb[0].mxu0
    %v2087 = vadd.f32 0.0, %v2086
    %v2088 = vpop.f32.mrb[0].mxu0
    %v2089 = vadd.f32 0.0, %v2088
    %2090 = vmatprep.mubr.bf16.mxu0 %v1370
    %2091 = vmatmul.mubr.bf16.gmra.mrb[0].mxu0 %v1369
    %v2092 = vpop.f32.mrb[0].mxu0
    %v2093 = vadd.f32 0.0, %v2092
    %v2094 = vpop.f32.mrb[0].mxu0
    %v2095 = vadd.f32 0.0, %v2094
    %v2096 = vpop.f32.mrb[0].mxu0
    %v2097 = vadd.f32 0.0, %v2096
    %v2098 = vpop.f32.mrb[0].mxu0
    %v2099 = vadd.f32 0.0, %v2098
    %2100 = vmatprep.mubr.bf16.mxu0 %v1372
    %2101 = vmatmul.mubr.bf16.gmra.mrb[0].mxu0 %v1371
    %v2102 = vpop.f32.mrb[0].mxu0
    %v2103 = vadd.f32 0.0, %v2102
    %v2104 = vpop.f32.mrb[0].mxu0
    %v2105 = vadd.f32 0.0, %v2104
    %v2106 = vpop.f32.mrb[0].mxu0
    %v2107 = vadd.f32 0.0, %v2106
    %v2108 = vpop.f32.mrb[0].mxu0
    %v2109 = vadd.f32 0.0, %v2108
    %2110 = vmatprep.mubr.bf16.mxu0 %v1374
    %2111 = vmatmul.mubr.bf16.gmra.mrb[0].mxu0 %v1373
    %v2112 = vpop.f32.mrb[0].mxu0
    %v2113 = vadd.f32 0.0, %v2112
    %v2114 = vpop.f32.mrb[0].mxu0
    %v2115 = vadd.f32 0.0, %v2114
    %v2116 = vpop.f32.mrb[0].mxu0
    %v2117 = vadd.f32 0.0, %v2116
    %v2118 = vpop.f32.mrb[0].mxu0
    %v2119 = vadd.f32 0.0, %v2118
    %2120 = vmatprep.mubr.bf16.mxu0 %v1376
    %2121 = vmatmul.mubr.bf16.gmra.mrb[0].mxu0 %v1375
    %v2122 = vpop.f32.mrb[0].mxu0
    %v2123 = vadd.f32 0.0, %v2122
    %v2124 = vpop.f32.mrb[0].mxu0
    %v2125 = vadd.f32 0.0, %v2124
    %v2126 = vpop.f32.mrb[0].mxu0
    %v2127 = vadd.f32 0.0, %v2126
    %v2128 = vpop.f32.mrb[0].mxu0
    %v2129 = vadd.f32 0.0, %v2128
    %2130 = vmatprep.mubr.bf16.mxu0 %v1378
    %2131 = vmatmul.mubr.bf16.gmra.mrb[0].mxu0 %v1377
    %v2132 = vpop.f32.mrb[0].mxu0
    %v2133 = vadd.f32 0.0, %v2132
    %v2134 = vpop.f32.mrb[0].mxu0
    %v2135 = vadd.f32 0.0, %v2134
    %v2136 = vpop.f32.mrb[0].mxu0
    %v2137 = vadd.f32 0.0, %v2136
    %v2138 = vpop.f32.mrb[0].mxu0
    %v2139 = vadd.f32 0.0, %v2138
    %2140 = vmatprep.mubr.bf16.mxu0 %v1380
    %2141 = vmatmul.mubr.bf16.gmra.mrb[0].mxu0 %v1379
    %v2142 = vpop.f32.mrb[0].mxu0
    %v2143 = vadd.f32 0.0, %v2142
    %v2144 = vpop.f32.mrb[0].mxu0
    %v2145 = vadd.f32 0.0, %v2144
    %v2146 = vpop.f32.mrb[0].mxu0
    %v2147 = vadd.f32 0.0, %v2146
    %v2148 = vpop.f32.mrb[0].mxu0
    %v2149 = vadd.f32 0.0, %v2148
    %2150 = vdwg.mxu0
    %v2151 = vpack.c.bf16 %v1804, %v1800
    %v2152 = vpack.c.bf16 %v1806, %v1802
    %v2153 = vpack.c.bf16 %v1997, %v1993
    %v2154 = vpack.c.bf16 %v1999, %v1995
    %v2155 = vpack.c.bf16 %v1814, %v1810
    %v2156 = vpack.c.bf16 %v1816, %v1812
    %v2157 = vpack.c.bf16 %v2007, %v2003
    %v2158 = vpack.c.bf16 %v2009, %v2005
    %v2159 = vpack.c.bf16 %v1824, %v1820
    %v2160 = vpack.c.bf16 %v1826, %v1822
    %v2161 = vpack.c.bf16 %v2017, %v2013
    %v2162 = vpack.c.bf16 %v2019, %v2015
    %v2163 = vpack.c.bf16 %v1834, %v1830
    %v2164 = vpack.c.bf16 %v1836, %v1832
    %v2165 = vpack.c.bf16 %v2027, %v2023
    %v2166 = vpack.c.bf16 %v2029, %v2025
    %v2167 = vpack.c.bf16 %v1844, %v1840
    %v2168 = vpack.c.bf16 %v1846, %v1842
    %v2169 = vpack.c.bf16 %v2037, %v2033
    %v2170 = vpack.c.bf16 %v2039, %v2035
    %v2171 = vpack.c.bf16 %v1854, %v1850
    %v2172 = vpack.c.bf16 %v1856, %v1852
    %v2173 = vpack.c.bf16 %v2047, %v2043
    %v2174 = vpack.c.bf16 %v2049, %v2045
    %v2175 = vpack.c.bf16 %v1864, %v1860
    %v2176 = vpack.c.bf16 %v1866, %v1862
    %v2177 = vpack.c.bf16 %v2057, %v2053
    %v2178 = vpack.c.bf16 %v2059, %v2055
    %v2179 = vpack.c.bf16 %v1874, %v1870
    %v2180 = vpack.c.bf16 %v1876, %v1872
    %v2181 = vpack.c.bf16 %v2067, %v2063
    %v2182 = vpack.c.bf16 %v2069, %v2065
    %v2183 = vpack.c.bf16 %v1884, %v1880
    %v2184 = vpack.c.bf16 %v1886, %v1882
    %v2185 = vpack.c.bf16 %v2077, %v2073
    %v2186 = vpack.c.bf16 %v2079, %v2075
    %v2187 = vpack.c.bf16 %v1894, %v1890
    %v2188 = vpack.c.bf16 %v1896, %v1892
    %v2189 = vpack.c.bf16 %v2087, %v2083
    %v2190 = vpack.c.bf16 %v2089, %v2085
    %v2191 = vpack.c.bf16 %v1904, %v1900
    %v2192 = vpack.c.bf16 %v1906, %v1902
    %v2193 = vpack.c.bf16 %v2097, %v2093
    %v2194 = vpack.c.bf16 %v2099, %v2095
    %v2195 = vpack.c.bf16 %v1914, %v1910
    %v2196 = vpack.c.bf16 %v1916, %v1912
    %v2197 = vpack.c.bf16 %v2107, %v2103
    %v2198 = vpack.c.bf16 %v2109, %v2105
    %v2199 = vpack.c.bf16 %v1924, %v1920
    %v2200 = vpack.c.bf16 %v1926, %v1922
    %v2201 = vpack.c.bf16 %v2117, %v2113
    %v2202 = vpack.c.bf16 %v2119, %v2115
    %v2203 = vpack.c.bf16 %v1934, %v1930
    %v2204 = vpack.c.bf16 %v1936, %v1932
    %v2205 = vpack.c.bf16 %v2127, %v2123
    %v2206 = vpack.c.bf16 %v2129, %v2125
    %v2207 = vpack.c.bf16 %v1944, %v1940
    %v2208 = vpack.c.bf16 %v1946, %v1942
    %v2209 = vpack.c.bf16 %v2137, %v2133
    %v2210 = vpack.c.bf16 %v2139, %v2135
    %v2211 = vpack.c.bf16 %v1954, %v1950
    %v2212 = vpack.c.bf16 %v1956, %v1952
    %v2213 = vpack.c.bf16 %v2147, %v2143
    %v2214 = vpack.c.bf16 %v2149, %v2145
    %v2215 = vmax.bf16 %v2151, %v2155
    %v2216 = vmax.bf16 %v2215, %v2159
    %v2217 = vmax.bf16 %v2216, %v2163
    %v2218 = vmax.bf16 %v2217, %v2167
    %v2219 = vmax.bf16 %v2218, %v2171
    %v2220 = vmax.bf16 %v2219, %v2175
    %v2221 = vmax.bf16 %v2220, %v2179
    %v2222 = vunpack.i.l.bf16 %v2221
    %v2223 = vunpack.i.h.bf16 %v2221
    %v2224 = vmax.f32 %v2222, %v2223
    %v2225 = vrot.slane %v2224, 4
    %v2226 = vmax.f32 %v2224, %v2225
    %v2227 = vrot.slane %v2226, 2
    %v2228 = vmax.f32 %v2226, %v2227
    %v2229 = vrot.slane %v2228, 1
    %v2230 = vmax.f32 %v2228, %v2229
    %v2231 = vpack.i.bf16 %v2230, %v2230
    %v2232 = vmax.bf16 %v2152, %v2156
    %v2233 = vmax.bf16 %v2232, %v2160
    %v2234 = vmax.bf16 %v2233, %v2164
    %v2235 = vmax.bf16 %v2234, %v2168
    %v2236 = vmax.bf16 %v2235, %v2172
    %v2237 = vmax.bf16 %v2236, %v2176
    %v2238 = vmax.bf16 %v2237, %v2180
    %v2239 = vunpack.i.l.bf16 %v2238
    %v2240 = vunpack.i.h.bf16 %v2238
    %v2241 = vmax.f32 %v2239, %v2240
    %v2242 = vrot.slane %v2241, 4
    %v2243 = vmax.f32 %v2241, %v2242
    %v2244 = vrot.slane %v2243, 2
    %v2245 = vmax.f32 %v2243, %v2244
    %v2246 = vrot.slane %v2245, 1
    %v2247 = vmax.f32 %v2245, %v2246
    %v2248 = vpack.i.bf16 %v2247, %v2247
    %v2249 = vmax.bf16 %v2153, %v2157
    %v2250 = vmax.bf16 %v2249, %v2161
    %v2251 = vmax.bf16 %v2250, %v2165
    %v2252 = vmax.bf16 %v2251, %v2169
    %v2253 = vmax.bf16 %v2252, %v2173
    %v2254 = vmax.bf16 %v2253, %v2177
    %v2255 = vmax.bf16 %v2254, %v2181
    %v2256 = vunpack.i.l.bf16 %v2255
    %v2257 = vunpack.i.h.bf16 %v2255
    %v2258 = vmax.f32 %v2256, %v2257
    %v2259 = vrot.slane %v2258, 4
    %v2260 = vmax.f32 %v2258, %v2259
    %v2261 = vrot.slane %v2260, 2
    %v2262 = vmax.f32 %v2260, %v2261
    %v2263 = vrot.slane %v2262, 1
    %v2264 = vmax.f32 %v2262, %v2263
    %v2265 = vpack.i.bf16 %v2264, %v2264
    %v2266 = vmax.bf16 %v2154, %v2158
    %v2267 = vmax.bf16 %v2266, %v2162
    %v2268 = vmax.bf16 %v2267, %v2166
    %v2269 = vmax.bf16 %v2268, %v2170
    %v2270 = vmax.bf16 %v2269, %v2174
    %v2271 = vmax.bf16 %v2270, %v2178
    %v2272 = vmax.bf16 %v2271, %v2182
    %v2273 = vunpack.i.l.bf16 %v2272
    %v2274 = vunpack.i.h.bf16 %v2272
    %v2275 = vmax.f32 %v2273, %v2274
    %v2276 = vrot.slane %v2275, 4
    %v2277 = vmax.f32 %v2275, %v2276
    %v2278 = vrot.slane %v2277, 2
    %v2279 = vmax.f32 %v2277, %v2278
    %v2280 = vrot.slane %v2279, 1
    %v2281 = vmax.f32 %v2279, %v2280
    %v2282 = vpack.i.bf16 %v2281, %v2281
    %v2283 = vmax.bf16 %v2183, %v2187
    %v2284 = vmax.bf16 %v2283, %v2191
    %v2285 = vmax.bf16 %v2284, %v2195
    %v2286 = vmax.bf16 %v2285, %v2199
    %v2287 = vmax.bf16 %v2286, %v2203
    %v2288 = vmax.bf16 %v2287, %v2207
    %v2289 = vmax.bf16 %v2288, %v2211
    %v2290 = vunpack.i.l.bf16 %v2289
    %v2291 = vunpack.i.h.bf16 %v2289
    %v2292 = vmax.f32 %v2290, %v2291
    %v2293 = vrot.slane %v2292, 4
    %v2294 = vmax.f32 %v2292, %v2293
    %v2295 = vrot.slane %v2294, 2
    %v2296 = vmax.f32 %v2294, %v2295
    %v2297 = vrot.slane %v2296, 1
    %v2298 = vmax.f32 %v2296, %v2297
    %v2299 = vpack.i.bf16 %v2298, %v2298
    %v2300 = vmax.bf16 %v2184, %v2188
    %v2301 = vmax.bf16 %v2300, %v2192
    %v2302 = vmax.bf16 %v2301, %v2196
    %v2303 = vmax.bf16 %v2302, %v2200
    %v2304 = vmax.bf16 %v2303, %v2204
    %v2305 = vmax.bf16 %v2304, %v2208
    %v2306 = vmax.bf16 %v2305, %v2212
    %v2307 = vunpack.i.l.bf16 %v2306
    %v2308 = vunpack.i.h.bf16 %v2306
    %v2309 = vmax.f32 %v2307, %v2308
    %v2310 = vrot.slane %v2309, 4
    %v2311 = vmax.f32 %v2309, %v2310
    %v2312 = vrot.slane %v2311, 2
    %v2313 = vmax.f32 %v2311, %v2312
    %v2314 = vrot.slane %v2313, 1
    %v2315 = vmax.f32 %v2313, %v2314
    %v2316 = vpack.i.bf16 %v2315, %v2315
    %v2317 = vmax.bf16 %v2185, %v2189
    %v2318 = vmax.bf16 %v2317, %v2193
    %v2319 = vmax.bf16 %v2318, %v2197
    %v2320 = vmax.bf16 %v2319, %v2201
    %v2321 = vmax.bf16 %v2320, %v2205
    %v2322 = vmax.bf16 %v2321, %v2209
    %v2323 = vmax.bf16 %v2322, %v2213
    %v2324 = vunpack.i.l.bf16 %v2323
    %v2325 = vunpack.i.h.bf16 %v2323
    %v2326 = vmax.f32 %v2324, %v2325
    %v2327 = vrot.slane %v2326, 4
    %v2328 = vmax.f32 %v2326, %v2327
    %v2329 = vrot.slane %v2328, 2
    %v2330 = vmax.f32 %v2328, %v2329
    %v2331 = vrot.slane %v2330, 1
    %v2332 = vmax.f32 %v2330, %v2331
    %v2333 = vpack.i.bf16 %v2332, %v2332
    %v2334 = vmax.bf16 %v2186, %v2190
    %v2335 = vmax.bf16 %v2334, %v2194
    %v2336 = vmax.bf16 %v2335, %v2198
    %v2337 = vmax.bf16 %v2336, %v2202
    %v2338 = vmax.bf16 %v2337, %v2206
    %v2339 = vmax.bf16 %v2338, %v2210
    %v2340 = vmax.bf16 %v2339, %v2214
    %v2341 = vunpack.i.l.bf16 %v2340
    %v2342 = vunpack.i.h.bf16 %v2340
    %v2343 = vmax.f32 %v2341, %v2342
    %v2344 = vrot.slane %v2343, 4
    %v2345 = vmax.f32 %v2343, %v2344
    %v2346 = vrot.slane %v2345, 2
    %v2347 = vmax.f32 %v2345, %v2346
    %v2348 = vrot.slane %v2347, 1
    %v2349 = vmax.f32 %v2347, %v2348
    %v2350 = vpack.i.bf16 %v2349, %v2349
    %v2351 = vld [vmem:[#allocation2] sm:$0xff]
    %v2352 = vunpack.c.l.bf16 %v2231
    %v2353 = vunpack.c.l.bf16 %v2248
    %v2354 = vunpack.c.l.bf16 %v2265
    %v2355 = vunpack.c.l.bf16 %v2282
    %v2356 = vunpack.c.l.bf16 %v2299
    %v2357 = vunpack.c.l.bf16 %v2316
    %v2358 = vunpack.c.l.bf16 %v2333
    %v2359 = vunpack.c.l.bf16 %v2350
    %v2368 = vcombine.low %v2352, %v2353
    %v2369 = vcombine.low %v2354, %v2355
    %v2371 = vunpack.c.l.s4 1983009808
    %v2372 = vunpack.c.0.s8 %v2371
    %v2373 = vlaneseq
    %v2374 = vshrl.u32 %v2373, 7
    %v2375 = vsub.s32 %v2372, %v2374
    %v2376 = vrot.slane %v2368, %v2375
    %v2378 = vunpack.c.l.s4 1983009808
    %v2379 = vunpack.c.0.s8 %v2378
    %v2380 = vlaneseq
    %v2381 = vshrl.u32 %v2380, 7
    %v2382 = vsub.s32 %v2379, %v2381
    %v2383 = vrot.slane %v2369, %v2382
    %v2384 = vcombine.low %v2376, %v2383
    %v2385 = vcombine.low %v2356, %v2357
    %v2386 = vcombine.low %v2358, %v2359
    %v2388 = vunpack.c.l.s4 1983009808
    %v2389 = vunpack.c.0.s8 %v2388
    %v2390 = vlaneseq
    %v2391 = vshrl.u32 %v2390, 7
    %v2392 = vsub.s32 %v2389, %v2391
    %v2393 = vrot.slane %v2385, %v2392
    %v2395 = vunpack.c.l.s4 1983009808
    %v2396 = vunpack.c.0.s8 %v2395
    %v2397 = vlaneseq
    %v2398 = vshrl.u32 %v2397, 7
    %v2399 = vsub.s32 %v2396, %v2398
    %v2400 = vrot.slane %v2386, %v2399
    %v2401 = vcombine.low %v2393, %v2400
    %vm2402 = vcmask 1044484
    %v2403 = vsel %vm2402, %v2384, %v2384
    %vm2404 = vcmask 1046534
    %v2405 = vsel %vm2404, %v2384, %v2403
    %v2406 = vrot.slane %v2401, 7
    %vm2407 = vcmask 1041409
    %v2408 = vsel %vm2407, %v2406, %v2405
    %vm2409 = vcmask 1043459
    %v2410 = vsel %vm2409, %v2406, %v2408
    %vm2411 = vcmask 1045509
    %v2412 = vsel %vm2411, %v2406, %v2410
    %vm2413 = vcmask 1047559
    %v2414 = vsel %vm2413, %v2406, %v2412
    %v2416 = vmax.f32 %v2351, %v2414
    %2417 = vst [vmem:[#allocation2] sm:$0xff] %v2416
    // Predicated region
    $region94: #{rot_encoder_forward.3} parent=1 // pred_check
      %p2418 = pneg %p76
    $region95: #{rot_encoder_forward.3} parent=1 // pred_check_branch
      %2420 = sbr.rel (%p2418) target = $region97
    $region96: #{rot_encoder_forward.3} parent=1 // pred_region
      %v2421 = vld [vmem:[#allocation2] sm:$0xff]
      %v2422 = vld [vmem:[%s9] sm:$0xf]
      %v2424 = vlaneseq
      %v2425 = vshrl.u32 %v2424, 7
      %v2426 = vsub.s32 0, %v2425
      %v2427 = vrot.slane %v2422, %v2426
      %v2428 = vlaneseq
      %v2429 = vshrl.u32 %v2428, 7
      %v2430 = vsub.s32 1, %v2429
      %v2431 = vrot.slane %v2422, %v2430
      %v2432 = vlaneseq
      %v2433 = vshrl.u32 %v2432, 7
      %v2434 = vsub.s32 2, %v2433
      %v2435 = vrot.slane %v2422, %v2434
      %v2436 = vlaneseq
      %v2437 = vshrl.u32 %v2436, 7
      %v2438 = vsub.s32 3, %v2437
      %v2439 = vrot.slane %v2422, %v2438
      %v2440 = vcombine.low %v2427, %v2431
      %v2441 = vcombine.low %v2435, %v2439
      %v2443 = vunpack.c.l.s4 1983009808
      %v2444 = vunpack.c.0.s8 %v2443
      %v2445 = vlaneseq
      %v2446 = vshrl.u32 %v2445, 7
      %v2447 = vsub.s32 %v2444, %v2446
      %v2448 = vrot.slane %v2440, %v2447
      %v2450 = vunpack.c.l.s4 1983009808
      %v2451 = vunpack.c.0.s8 %v2450
      %v2452 = vlaneseq
      %v2453 = vshrl.u32 %v2452, 7
      %v2454 = vsub.s32 %v2451, %v2453
      %v2455 = vrot.slane %v2441, %v2454
      %v2456 = vcombine.low %v2448, %v2455
      %v2458 = vadd.f32 %v2421, %v2456
      %v2460 = vcombine.high %v2458, %v2458
      %v2462 = vunpack.c.l.s4 1983009808
      %v2463 = vunpack.c.0.s8 %v2462
      %v2464 = vlaneseq
      %v2465 = vshrl.u32 %v2464, 7
      %v2466 = vsub.s32 %v2463, %v2465
      %v2467 = vrot.slane %v2458, %v2466
      %v2469 = vunpack.c.l.s4 1983009808
      %v2470 = vunpack.c.0.s8 %v2469
      %v2471 = vlaneseq
      %v2472 = vshrl.u32 %v2471, 7
      %v2473 = vsub.s32 %v2470, %v2472
      %v2474 = vrot.slane %v2460, %v2473
      %v2475 = vcombine.high %v2467, %v2467
      %v2476 = vcombine.high %v2474, %v2474
      %v2481 = vpack.c.bf16 %v2467, %v2467
      %v2482 = vpack.c.bf16 %v2475, %v2475
      %v2483 = vpack.c.bf16 %v2474, %v2474
      %v2484 = vpack.c.bf16 %v2476, %v2476
      %v2485 = vld [vmem:[%s10] sm:$0xff]
      %v2486 = vld [vmem:[%s10 + $0x8] sm:$0xff]
      %v2487 = vld [vmem:[%s10 + $0x10] sm:$0xff]
      %v2488 = vld [vmem:[%s10 + $0x18] sm:$0xff]
      %v2489 = vld [vmem:[%s10 + $0x20] sm:$0xff]
      %v2490 = vld [vmem:[%s10 + $0x28] sm:$0xff]
      %v2491 = vld [vmem:[%s10 + $0x30] sm:$0xff]
      %v2492 = vld [vmem:[%s10 + $0x38] sm:$0xff]
      %v2493 = vld [vmem:[%s10 + $0x40] sm:$0xff]
      %v2494 = vld [vmem:[%s10 + $0x48] sm:$0xff]
      %v2495 = vld [vmem:[%s10 + $0x50] sm:$0xff]
      %v2496 = vld [vmem:[%s10 + $0x58] sm:$0xff]
      %v2497 = vld [vmem:[%s10 + $0x60] sm:$0xff]
      %v2498 = vld [vmem:[%s10 + $0x68] sm:$0xff]
      %v2499 = vld [vmem:[%s10 + $0x70] sm:$0xff]
      %v2500 = vld [vmem:[%s10 + $0x78] sm:$0xff]
      %v2501 = vld [vmem:[%s10 + $0x80] sm:$0xff]
      %v2502 = vld [vmem:[%s10 + $0x88] sm:$0xff]
      %v2503 = vld [vmem:[%s10 + $0x90] sm:$0xff]
      %v2504 = vld [vmem:[%s10 + $0x98] sm:$0xff]
      %v2505 = vld [vmem:[%s10 + $0xa0] sm:$0xff]
      %v2506 = vld [vmem:[%s10 + $0xa8] sm:$0xff]
      %v2507 = vld [vmem:[%s10 + $0xb0] sm:$0xff]
      %v2508 = vld [vmem:[%s10 + $0xb8] sm:$0xff]
      %v2509 = vld [vmem:[%s10 + $0xc0] sm:$0xff]
      %v2510 = vld [vmem:[%s10 + $0xc8] sm:$0xff]
      %v2511 = vld [vmem:[%s10 + $0xd0] sm:$0xff]
      %v2512 = vld [vmem:[%s10 + $0xd8] sm:$0xff]
      %v2513 = vld [vmem:[%s10 + $0xe0] sm:$0xff]
      %v2514 = vld [vmem:[%s10 + $0xe8] sm:$0xff]
      %v2515 = vld [vmem:[%s10 + $0xf0] sm:$0xff]
      %v2516 = vld [vmem:[%s10 + $0xf8] sm:$0xff]
      %v2517 = vld [vmem:[%s10 + $0x100] sm:$0xff]
      %v2518 = vld [vmem:[%s10 + $0x108] sm:$0xff]
      %v2519 = vld [vmem:[%s10 + $0x110] sm:$0xff]
      %v2520 = vld [vmem:[%s10 + $0x118] sm:$0xff]
      %v2521 = vld [vmem:[%s10 + $0x120] sm:$0xff]
      %v2522 = vld [vmem:[%s10 + $0x128] sm:$0xff]
      %v2523 = vld [vmem:[%s10 + $0x130] sm:$0xff]
      %v2524 = vld [vmem:[%s10 + $0x138] sm:$0xff]
      %v2525 = vld [vmem:[%s10 + $0x140] sm:$0xff]
      %v2526 = vld [vmem:[%s10 + $0x148] sm:$0xff]
      %v2527 = vld [vmem:[%s10 + $0x150] sm:$0xff]
      %v2528 = vld [vmem:[%s10 + $0x158] sm:$0xff]
      %v2529 = vld [vmem:[%s10 + $0x160] sm:$0xff]
      %v2530 = vld [vmem:[%s10 + $0x168] sm:$0xff]
      %v2531 = vld [vmem:[%s10 + $0x170] sm:$0xff]
      %v2532 = vld [vmem:[%s10 + $0x178] sm:$0xff]
      %v2533 = vld [vmem:[%s10 + $0x180] sm:$0xff]
      %v2534 = vld [vmem:[%s10 + $0x188] sm:$0xff]
      %v2535 = vld [vmem:[%s10 + $0x190] sm:$0xff]
      %v2536 = vld [vmem:[%s10 + $0x198] sm:$0xff]
      %v2537 = vld [vmem:[%s10 + $0x1a0] sm:$0xff]
      %v2538 = vld [vmem:[%s10 + $0x1a8] sm:$0xff]
      %v2539 = vld [vmem:[%s10 + $0x1b0] sm:$0xff]
      %v2540 = vld [vmem:[%s10 + $0x1b8] sm:$0xff]
      %v2541 = vld [vmem:[%s10 + $0x1c0] sm:$0xff]
      %v2542 = vld [vmem:[%s10 + $0x1c8] sm:$0xff]
      %v2543 = vld [vmem:[%s10 + $0x1d0] sm:$0xff]
      %v2544 = vld [vmem:[%s10 + $0x1d8] sm:$0xff]
      %v2545 = vld [vmem:[%s10 + $0x1e0] sm:$0xff]
      %v2546 = vld [vmem:[%s10 + $0x1e8] sm:$0xff]
      %v2547 = vld [vmem:[%s10 + $0x1f0] sm:$0xff]
      %v2548 = vld [vmem:[%s10 + $0x1f8] sm:$0xff]
      %v2549 = vld [vmem:[%s11] sm:$0x3]
      %v2551 = vlaneseq
      %v2552 = vshrl.u32 %v2551, 7
      %v2553 = vsub.s32 0, %v2552
      %v2554 = vrot.slane %v2549, %v2553
      %v2555 = vlaneseq
      %v2556 = vshrl.u32 %v2555, 7
      %v2557 = vsub.s32 1, %v2556
      %v2558 = vrot.slane %v2549, %v2557
      %v2625 = vunpack.c.l.b16 %v2485
      %v2626 = vunpack.c.h.b16 %v2485
      %v2627 = vunpack.c.l.b16 %v2486
      %v2628 = vunpack.c.h.b16 %v2486
      %v2629 = vunpack.c.l.b16 %v2487
      %v2630 = vunpack.c.h.b16 %v2487
      %v2631 = vunpack.c.l.b16 %v2488
      %v2632 = vunpack.c.h.b16 %v2488
      %v2633 = vunpack.c.l.b16 %v2489
      %v2634 = vunpack.c.h.b16 %v2489
      %v2635 = vunpack.c.l.b16 %v2490
      %v2636 = vunpack.c.h.b16 %v2490
      %v2637 = vunpack.c.l.b16 %v2491
      %v2638 = vunpack.c.h.b16 %v2491
      %v2639 = vunpack.c.l.b16 %v2492
      %v2640 = vunpack.c.h.b16 %v2492
      %v2641 = vunpack.c.l.b16 %v2493
      %v2642 = vunpack.c.h.b16 %v2493
      %v2643 = vunpack.c.l.b16 %v2494
      %v2644 = vunpack.c.h.b16 %v2494
      %v2645 = vunpack.c.l.b16 %v2495
      %v2646 = vunpack.c.h.b16 %v2495
      %v2647 = vunpack.c.l.b16 %v2496
      %v2648 = vunpack.c.h.b16 %v2496
      %v2649 = vunpack.c.l.b16 %v2497
      %v2650 = vunpack.c.h.b16 %v2497
      %v2651 = vunpack.c.l.b16 %v2498
      %v2652 = vunpack.c.h.b16 %v2498
      %v2653 = vunpack.c.l.b16 %v2499
      %v2654 = vunpack.c.h.b16 %v2499
      %v2655 = vunpack.c.l.b16 %v2500
      %v2656 = vunpack.c.h.b16 %v2500
      %v2657 = vunpack.c.l.b16 %v2501
      %v2658 = vunpack.c.h.b16 %v2501
      %v2659 = vunpack.c.l.b16 %v2502
      %v2660 = vunpack.c.h.b16 %v2502
      %v2661 = vunpack.c.l.b16 %v2503
      %v2662 = vunpack.c.h.b16 %v2503
      %v2663 = vunpack.c.l.b16 %v2504
      %v2664 = vunpack.c.h.b16 %v2504
      %v2665 = vunpack.c.l.b16 %v2505
      %v2666 = vunpack.c.h.b16 %v2505
      %v2667 = vunpack.c.l.b16 %v2506
      %v2668 = vunpack.c.h.b16 %v2506
      %v2669 = vunpack.c.l.b16 %v2507
      %v2670 = vunpack.c.h.b16 %v2507
      %v2671 = vunpack.c.l.b16 %v2508
      %v2672 = vunpack.c.h.b16 %v2508
      %v2673 = vunpack.c.l.b16 %v2509
      %v2674 = vunpack.c.h.b16 %v2509
      %v2675 = vunpack.c.l.b16 %v2510
      %v2676 = vunpack.c.h.b16 %v2510
      %v2677 = vunpack.c.l.b16 %v2511
      %v2678 = vunpack.c.h.b16 %v2511
      %v2679 = vunpack.c.l.b16 %v2512
      %v2680 = vunpack.c.h.b16 %v2512
      %v2681 = vunpack.c.l.b16 %v2513
      %v2682 = vunpack.c.h.b16 %v2513
      %v2683 = vunpack.c.l.b16 %v2514
      %v2684 = vunpack.c.h.b16 %v2514
      %v2685 = vunpack.c.l.b16 %v2515
      %v2686 = vunpack.c.h.b16 %v2515
      %v2687 = vunpack.c.l.b16 %v2516
      %v2688 = vunpack.c.h.b16 %v2516
      %v2689 = vunpack.c.l.b16 %v2517
      %v2690 = vunpack.c.h.b16 %v2517
      %v2691 = vunpack.c.l.b16 %v2518
      %v2692 = vunpack.c.h.b16 %v2518
      %v2693 = vunpack.c.l.b16 %v2519
      %v2694 = vunpack.c.h.b16 %v2519
      %v2695 = vunpack.c.l.b16 %v2520
      %v2696 = vunpack.c.h.b16 %v2520
      %v2697 = vunpack.c.l.b16 %v2521
      %v2698 = vunpack.c.h.b16 %v2521
      %v2699 = vunpack.c.l.b16 %v2522
      %v2700 = vunpack.c.h.b16 %v2522
      %v2701 = vunpack.c.l.b16 %v2523
      %v2702 = vunpack.c.h.b16 %v2523
      %v2703 = vunpack.c.l.b16 %v2524
      %v2704 = vunpack.c.h.b16 %v2524
      %v2705 = vunpack.c.l.b16 %v2525
      %v2706 = vunpack.c.h.b16 %v2525
      %v2707 = vunpack.c.l.b16 %v2526
      %v2708 = vunpack.c.h.b16 %v2526
      %v2709 = vunpack.c.l.b16 %v2527
      %v2710 = vunpack.c.h.b16 %v2527
      %v2711 = vunpack.c.l.b16 %v2528
      %v2712 = vunpack.c.h.b16 %v2528
      %v2713 = vunpack.c.l.b16 %v2529
      %v2714 = vunpack.c.h.b16 %v2529
      %v2715 = vunpack.c.l.b16 %v2530
      %v2716 = vunpack.c.h.b16 %v2530
      %v2717 = vunpack.c.l.b16 %v2531
      %v2718 = vunpack.c.h.b16 %v2531
      %v2719 = vunpack.c.l.b16 %v2532
      %v2720 = vunpack.c.h.b16 %v2532
      %v2721 = vunpack.c.l.b16 %v2533
      %v2722 = vunpack.c.h.b16 %v2533
      %v2723 = vunpack.c.l.b16 %v2534
      %v2724 = vunpack.c.h.b16 %v2534
      %v2725 = vunpack.c.l.b16 %v2535
      %v2726 = vunpack.c.h.b16 %v2535
      %v2727 = vunpack.c.l.b16 %v2536
      %v2728 = vunpack.c.h.b16 %v2536
      %v2729 = vunpack.c.l.b16 %v2537
      %v2730 = vunpack.c.h.b16 %v2537
      %v2731 = vunpack.c.l.b16 %v2538
      %v2732 = vunpack.c.h.b16 %v2538
      %v2733 = vunpack.c.l.b16 %v2539
      %v2734 = vunpack.c.h.b16 %v2539
      %v2735 = vunpack.c.l.b16 %v2540
      %v2736 = vunpack.c.h.b16 %v2540
      %v2737 = vunpack.c.l.b16 %v2541
      %v2738 = vunpack.c.h.b16 %v2541
      %v2739 = vunpack.c.l.b16 %v2542
      %v2740 = vunpack.c.h.b16 %v2542
      %v2741 = vunpack.c.l.b16 %v2543
      %v2742 = vunpack.c.h.b16 %v2543
      %v2743 = vunpack.c.l.b16 %v2544
      %v2744 = vunpack.c.h.b16 %v2544
      %v2745 = vunpack.c.l.b16 %v2545
      %v2746 = vunpack.c.h.b16 %v2545
      %v2747 = vunpack.c.l.b16 %v2546
      %v2748 = vunpack.c.h.b16 %v2546
      %v2749 = vunpack.c.l.b16 %v2547
      %v2750 = vunpack.c.h.b16 %v2547
      %v2751 = vunpack.c.l.b16 %v2548
      %v2752 = vunpack.c.h.b16 %v2548
      %v2753 = vpack.c.b16 %v2627, %v2625
      %v2754 = vpack.c.b16 %v2628, %v2626
      %v2755 = vpack.c.b16 %v2631, %v2629
      %v2756 = vpack.c.b16 %v2632, %v2630
      %v2757 = vpack.c.b16 %v2635, %v2633
      %v2758 = vpack.c.b16 %v2636, %v2634
      %v2759 = vpack.c.b16 %v2639, %v2637
      %v2760 = vpack.c.b16 %v2640, %v2638
      %v2761 = vpack.c.b16 %v2643, %v2641
      %v2762 = vpack.c.b16 %v2644, %v2642
      %v2763 = vpack.c.b16 %v2647, %v2645
      %v2764 = vpack.c.b16 %v2648, %v2646
      %v2765 = vpack.c.b16 %v2651, %v2649
      %v2766 = vpack.c.b16 %v2652, %v2650
      %v2767 = vpack.c.b16 %v2655, %v2653
      %v2768 = vpack.c.b16 %v2656, %v2654
      %v2769 = vpack.c.b16 %v2659, %v2657
      %v2770 = vpack.c.b16 %v2660, %v2658
      %v2771 = vpack.c.b16 %v2663, %v2661
      %v2772 = vpack.c.b16 %v2664, %v2662
      %v2773 = vpack.c.b16 %v2667, %v2665
      %v2774 = vpack.c.b16 %v2668, %v2666
      %v2775 = vpack.c.b16 %v2671, %v2669
      %v2776 = vpack.c.b16 %v2672, %v2670
      %v2777 = vpack.c.b16 %v2675, %v2673
      %v2778 = vpack.c.b16 %v2676, %v2674
      %v2779 = vpack.c.b16 %v2679, %v2677
      %v2780 = vpack.c.b16 %v2680, %v2678
      %v2781 = vpack.c.b16 %v2683, %v2681
      %v2782 = vpack.c.b16 %v2684, %v2682
      %v2783 = vpack.c.b16 %v2687, %v2685
      %v2784 = vpack.c.b16 %v2688, %v2686
      %v2785 = vpack.c.b16 %v2691, %v2689
      %v2786 = vpack.c.b16 %v2692, %v2690
      %v2787 = vpack.c.b16 %v2695, %v2693
      %v2788 = vpack.c.b16 %v2696, %v2694
      %v2789 = vpack.c.b16 %v2699, %v2697
      %v2790 = vpack.c.b16 %v2700, %v2698
      %v2791 = vpack.c.b16 %v2703, %v2701
      %v2792 = vpack.c.b16 %v2704, %v2702
      %v2793 = vpack.c.b16 %v2707, %v2705
      %v2794 = vpack.c.b16 %v2708, %v2706
      %v2795 = vpack.c.b16 %v2711, %v2709
      %v2796 = vpack.c.b16 %v2712, %v2710
      %v2797 = vpack.c.b16 %v2715, %v2713
      %v2798 = vpack.c.b16 %v2716, %v2714
      %v2799 = vpack.c.b16 %v2719, %v2717
      %v2800 = vpack.c.b16 %v2720, %v2718
      %v2801 = vpack.c.b16 %v2723, %v2721
      %v2802 = vpack.c.b16 %v2724, %v2722
      %v2803 = vpack.c.b16 %v2727, %v2725
      %v2804 = vpack.c.b16 %v2728, %v2726
      %v2805 = vpack.c.b16 %v2731, %v2729
      %v2806 = vpack.c.b16 %v2732, %v2730
      %v2807 = vpack.c.b16 %v2735, %v2733
      %v2808 = vpack.c.b16 %v2736, %v2734
      %v2809 = vpack.c.b16 %v2739, %v2737
      %v2810 = vpack.c.b16 %v2740, %v2738
      %v2811 = vpack.c.b16 %v2743, %v2741
      %v2812 = vpack.c.b16 %v2744, %v2742
      %v2813 = vpack.c.b16 %v2747, %v2745
      %v2814 = vpack.c.b16 %v2748, %v2746
      %v2815 = vpack.c.b16 %v2751, %v2749
      %v2816 = vpack.c.b16 %v2752, %v2750
      %2881 = vmatprep.subr.bf16.mxu0 %v2754
      %2882 = vmatpush1.bf16.msra.mxu0 %v2753
      %2883 = vmatprep.subr.bf16.mxu0 %v2756
      %2884 = vmatpush1.bf16.msra.mxu0 %v2755
      %2885 = vmatprep.subr.bf16.mxu0 %v2758
      %2886 = vmatpush1.bf16.msra.mxu0 %v2757
      %2887 = vmatprep.subr.bf16.mxu0 %v2760
      %2888 = vmatpush1.bf16.msra.mxu0 %v2759
      %2889 = vmatprep.subr.bf16.mxu0 %v2762
      %2890 = vmatpush1.bf16.msra.mxu0 %v2761
      %2891 = vmatprep.subr.bf16.mxu0 %v2764
      %2892 = vmatpush1.bf16.msra.mxu0 %v2763
      %2893 = vmatprep.subr.bf16.mxu0 %v2766
      %2894 = vmatpush1.bf16.msra.mxu0 %v2765
      %2895 = vmatprep.subr.bf16.mxu0 %v2768
      %2896 = vmatpush1.bf16.msra.mxu0 %v2767
      %2897 = vmatprep.subr.bf16.mxu0 %v2770
      %2898 = vmatpush1.bf16.msra.mxu0 %v2769
      %2899 = vmatprep.subr.bf16.mxu0 %v2772
      %2900 = vmatpush1.bf16.msra.mxu0 %v2771
      %2901 = vmatprep.subr.bf16.mxu0 %v2774
      %2902 = vmatpush1.bf16.msra.mxu0 %v2773
      %2903 = vmatprep.subr.bf16.mxu0 %v2776
      %2904 = vmatpush1.bf16.msra.mxu0 %v2775
      %2905 = vmatprep.subr.bf16.mxu0 %v2778
      %2906 = vmatpush1.bf16.msra.mxu0 %v2777
      %2907 = vmatprep.subr.bf16.mxu0 %v2780
      %2908 = vmatpush1.bf16.msra.mxu0 %v2779
      %2909 = vmatprep.subr.bf16.mxu0 %v2782
      %2910 = vmatpush1.bf16.msra.mxu0 %v2781
      %2911 = vmatprep.subr.bf16.mxu0 %v2784
      %2912 = vmatpush1.bf16.msra.mxu0 %v2783
      %2913 = vmatprep.mubr.bf16.mxu0 %v2482
      %2914 = vmatmul.mubr.bf16.gmra.mrb[0].mxu0 %v2481
      %v2915 = vpop.f32.mrb[0].mxu0
      %v2916 = vadd.f32 %v2554, %v2915
      %v2917 = vpop.f32.mrb[0].mxu0
      %v2918 = vadd.f32 %v2558, %v2917
      %v2919 = vpop.f32.mrb[0].mxu0
      %v2920 = vpop.f32.mrb[0].mxu0
      %2921 = vdwg.mxu0
      %2922 = vmatprep.subr.bf16.mxu0 %v2786
      %2923 = vmatpush1.bf16.msra.mxu0 %v2785
      %2924 = vmatprep.subr.bf16.mxu0 %v2788
      %2925 = vmatpush1.bf16.msra.mxu0 %v2787
      %2926 = vmatprep.subr.bf16.mxu0 %v2790
      %2927 = vmatpush1.bf16.msra.mxu0 %v2789
      %2928 = vmatprep.subr.bf16.mxu0 %v2792
      %2929 = vmatpush1.bf16.msra.mxu0 %v2791
      %2930 = vmatprep.subr.bf16.mxu0 %v2794
      %2931 = vmatpush1.bf16.msra.mxu0 %v2793
      %2932 = vmatprep.subr.bf16.mxu0 %v2796
      %2933 = vmatpush1.bf16.msra.mxu0 %v2795
      %2934 = vmatprep.subr.bf16.mxu0 %v2798
      %2935 = vmatpush1.bf16.msra.mxu0 %v2797
      %2936 = vmatprep.subr.bf16.mxu0 %v2800
      %2937 = vmatpush1.bf16.msra.mxu0 %v2799
      %2938 = vmatprep.subr.bf16.mxu0 %v2802
      %2939 = vmatpush1.bf16.msra.mxu0 %v2801
      %2940 = vmatprep.subr.bf16.mxu0 %v2804
      %2941 = vmatpush1.bf16.msra.mxu0 %v2803
      %2942 = vmatprep.subr.bf16.mxu0 %v2806
      %2943 = vmatpush1.bf16.msra.mxu0 %v2805
      %2944 = vmatprep.subr.bf16.mxu0 %v2808
      %2945 = vmatpush1.bf16.msra.mxu0 %v2807
      %2946 = vmatprep.subr.bf16.mxu0 %v2810
      %2947 = vmatpush1.bf16.msra.mxu0 %v2809
      %2948 = vmatprep.subr.bf16.mxu0 %v2812
      %2949 = vmatpush1.bf16.msra.mxu0 %v2811
      %2950 = vmatprep.subr.bf16.mxu0 %v2814
      %2951 = vmatpush1.bf16.msra.mxu0 %v2813
      %2952 = vmatprep.subr.bf16.mxu0 %v2816
      %2953 = vmatpush1.bf16.msra.mxu0 %v2815
      %2954 = vmatprep.mubr.bf16.mxu0 %v2484
      %2955 = vmatmul.mubr.bf16.gmra.mrb[0].mxu0 %v2483
      %v2956 = vpop.f32.mrb[0].mxu0
      %v2957 = vadd.f32 %v2916, %v2956
      %v2958 = vpop.f32.mrb[0].mxu0
      %v2959 = vadd.f32 %v2918, %v2958
      %v2960 = vpop.f32.mrb[0].mxu0
      %v2961 = vpop.f32.mrb[0].mxu0
      %2962 = vdwg.mxu0
      %v2963 = vmax.f32 %v2957, 0.0
      %v2964 = vmax.f32 %v2959, 0.0
      %v2965 = vpack.c.bf16 %v2963, %v2963
      %v2966 = vpack.c.bf16 %v2964, %v2964
      %v2967 = vld [vmem:[%s12] sm:$0xf]
      %v2968 = vld [vmem:[%s12 + $0x4] sm:$0xf]
      %v2969 = vld [vmem:[%s12 + $0x8] sm:$0xf]
      %v2970 = vld [vmem:[%s12 + $0xc] sm:$0xf]
      %v2971 = vld [vmem:[%s12 + $0x10] sm:$0xf]
      %v2972 = vld [vmem:[%s12 + $0x14] sm:$0xf]
      %v2973 = vld [vmem:[%s12 + $0x18] sm:$0xf]
      %v2974 = vld [vmem:[%s12 + $0x1c] sm:$0xf]
      %v2975 = vld [vmem:[%s12 + $0x20] sm:$0xf]
      %v2976 = vld [vmem:[%s12 + $0x24] sm:$0xf]
      %v2977 = vld [vmem:[%s12 + $0x28] sm:$0xf]
      %v2978 = vld [vmem:[%s12 + $0x2c] sm:$0xf]
      %v2979 = vld [vmem:[%s12 + $0x30] sm:$0xf]
      %v2980 = vld [vmem:[%s12 + $0x34] sm:$0xf]
      %v2981 = vld [vmem:[%s12 + $0x38] sm:$0xf]
      %v2982 = vld [vmem:[%s12 + $0x3c] sm:$0xf]
      %v2983 = vld [vmem:[%s12 + $0x40] sm:$0xf]
      %v2984 = vld [vmem:[%s12 + $0x44] sm:$0xf]
      %v2985 = vld [vmem:[%s12 + $0x48] sm:$0xf]
      %v2986 = vld [vmem:[%s12 + $0x4c] sm:$0xf]
      %v2987 = vld [vmem:[%s12 + $0x50] sm:$0xf]
      %v2988 = vld [vmem:[%s12 + $0x54] sm:$0xf]
      %v2989 = vld [vmem:[%s12 + $0x58] sm:$0xf]
      %v2990 = vld [vmem:[%s12 + $0x5c] sm:$0xf]
      %v2991 = vld [vmem:[%s12 + $0x60] sm:$0xf]
      %v2992 = vld [vmem:[%s12 + $0x64] sm:$0xf]
      %v2993 = vld [vmem:[%s12 + $0x68] sm:$0xf]
      %v2994 = vld [vmem:[%s12 + $0x6c] sm:$0xf]
      %v2995 = vld [vmem:[%s12 + $0x70] sm:$0xf]
      %v2996 = vld [vmem:[%s12 + $0x74] sm:$0xf]
      %v2997 = vld [vmem:[%s12 + $0x78] sm:$0xf]
      %v2998 = vld [vmem:[%s12 + $0x7c] sm:$0xf]
      %v2999 = vld [vmem:[%s13] sm:$0x1]
      %v3001 = vlaneseq
      %v3002 = vshrl.u32 %v3001, 7
      %v3003 = vsub.s32 0, %v3002
      %v3004 = vrot.slane %v2999, %v3003
      %v3038 = vunpack.c.l.b16 %v2967
      %v3039 = vunpack.c.l.b16 %v2968
      %v3040 = vunpack.c.l.b16 %v2969
      %v3041 = vunpack.c.l.b16 %v2970
      %v3042 = vunpack.c.l.b16 %v2971
      %v3043 = vunpack.c.l.b16 %v2972
      %v3044 = vunpack.c.l.b16 %v2973
      %v3045 = vunpack.c.l.b16 %v2974
      %v3046 = vunpack.c.l.b16 %v2975
      %v3047 = vunpack.c.l.b16 %v2976
      %v3048 = vunpack.c.l.b16 %v2977
      %v3049 = vunpack.c.l.b16 %v2978
      %v3050 = vunpack.c.l.b16 %v2979
      %v3051 = vunpack.c.l.b16 %v2980
      %v3052 = vunpack.c.l.b16 %v2981
      %v3053 = vunpack.c.l.b16 %v2982
      %v3054 = vunpack.c.l.b16 %v2983
      %v3055 = vunpack.c.l.b16 %v2984
      %v3056 = vunpack.c.l.b16 %v2985
      %v3057 = vunpack.c.l.b16 %v2986
      %v3058 = vunpack.c.l.b16 %v2987
      %v3059 = vunpack.c.l.b16 %v2988
      %v3060 = vunpack.c.l.b16 %v2989
      %v3061 = vunpack.c.l.b16 %v2990
      %v3062 = vunpack.c.l.b16 %v2991
      %v3063 = vunpack.c.l.b16 %v2992
      %v3064 = vunpack.c.l.b16 %v2993
      %v3065 = vunpack.c.l.b16 %v2994
      %v3066 = vunpack.c.l.b16 %v2995
      %v3067 = vunpack.c.l.b16 %v2996
      %v3068 = vunpack.c.l.b16 %v2997
      %v3069 = vunpack.c.l.b16 %v2998
      %v3070 = vpack.c.b16 %v3039, %v3038
      %v3071 = vpack.c.b16 %v3041, %v3040
      %v3072 = vpack.c.b16 %v3043, %v3042
      %v3073 = vpack.c.b16 %v3045, %v3044
      %v3074 = vpack.c.b16 %v3047, %v3046
      %v3075 = vpack.c.b16 %v3049, %v3048
      %v3076 = vpack.c.b16 %v3051, %v3050
      %v3077 = vpack.c.b16 %v3053, %v3052
      %v3078 = vpack.c.b16 %v3055, %v3054
      %v3079 = vpack.c.b16 %v3057, %v3056
      %v3080 = vpack.c.b16 %v3059, %v3058
      %v3081 = vpack.c.b16 %v3061, %v3060
      %v3082 = vpack.c.b16 %v3063, %v3062
      %v3083 = vpack.c.b16 %v3065, %v3064
      %v3084 = vpack.c.b16 %v3067, %v3066
      %v3085 = vpack.c.b16 %v3069, %v3068
      %3102 = vmatprep.subr.bf16.mxu0 0
      %3103 = vmatpush1.bf16.msra.mxu0 %v3070
      %3104 = vmatprep.subr.bf16.mxu0 0
      %3105 = vmatpush1.bf16.msra.mxu0 %v3071
      %3106 = vmatprep.subr.bf16.mxu0 0
      %3107 = vmatpush1.bf16.msra.mxu0 %v3072
      %3108 = vmatprep.subr.bf16.mxu0 0
      %3109 = vmatpush1.bf16.msra.mxu0 %v3073
      %3110 = vmatprep.subr.bf16.mxu0 0
      %3111 = vmatpush1.bf16.msra.mxu0 %v3074
      %3112 = vmatprep.subr.bf16.mxu0 0
      %3113 = vmatpush1.bf16.msra.mxu0 %v3075
      %3114 = vmatprep.subr.bf16.mxu0 0
      %3115 = vmatpush1.bf16.msra.mxu0 %v3076
      %3116 = vmatprep.subr.bf16.mxu0 0
      %3117 = vmatpush1.bf16.msra.mxu0 %v3077
      %3118 = vmatprep.subr.bf16.mxu0 0
      %3119 = vmatpush1.bf16.msra.mxu0 %v3078
      %3120 = vmatprep.subr.bf16.mxu0 0
      %3121 = vmatpush1.bf16.msra.mxu0 %v3079
      %3122 = vmatprep.subr.bf16.mxu0 0
      %3123 = vmatpush1.bf16.msra.mxu0 %v3080
      %3124 = vmatprep.subr.bf16.mxu0 0
      %3125 = vmatpush1.bf16.msra.mxu0 %v3081
      %3126 = vmatprep.subr.bf16.mxu0 0
      %3127 = vmatpush1.bf16.msra.mxu0 %v3082
      %3128 = vmatprep.subr.bf16.mxu0 0
      %3129 = vmatpush1.bf16.msra.mxu0 %v3083
      %3130 = vmatprep.subr.bf16.mxu0 0
      %3131 = vmatpush1.bf16.msra.mxu0 %v3084
      %3132 = vmatprep.subr.bf16.mxu0 0
      %3133 = vmatpush1.bf16.msra.mxu0 %v3085
      %3134 = vmatprep.mubr.bf16.mxu0 %v2966
      %3135 = vmatmul.mubr.bf16.gmra.mrb[0].mxu0 %v2965
      %v3136 = vpop.f32.mrb[0].mxu0
      %v3137 = vadd.f32 %v3004, %v3136
      %v3138 = vpop.f32.mrb[0].mxu0
      %v3139 = vpop.f32.mrb[0].mxu0
      %v3140 = vpop.f32.mrb[0].mxu0
      %3141 = vdwg.mxu0
      %v3142 = vmax.f32 %v3137, 0.0
      %v3143 = vpack.c.bf16 %v3142, %v3142
      %v3144 = vld [vmem:[%s14] sm:$0xf]
      %v3145 = vld [vmem:[%s14 + $0x4] sm:$0xf]
      %v3146 = vld [vmem:[%s14 + $0x8] sm:$0xf]
      %v3147 = vld [vmem:[%s14 + $0xc] sm:$0xf]
      %v3148 = vld [vmem:[%s14 + $0x10] sm:$0xf]
      %v3149 = vld [vmem:[%s14 + $0x14] sm:$0xf]
      %v3150 = vld [vmem:[%s14 + $0x18] sm:$0xf]
      %v3151 = vld [vmem:[%s14 + $0x1c] sm:$0xf]
      %v3152 = vld [vmem:[%s14 + $0x20] sm:$0xf]
      %v3153 = vld [vmem:[%s14 + $0x24] sm:$0xf]
      %v3154 = vld [vmem:[%s14 + $0x28] sm:$0xf]
      %v3155 = vld [vmem:[%s14 + $0x2c] sm:$0xf]
      %v3156 = vld [vmem:[%s14 + $0x30] sm:$0xf]
      %v3157 = vld [vmem:[%s14 + $0x34] sm:$0xf]
      %v3158 = vld [vmem:[%s14 + $0x38] sm:$0xf]
      %v3159 = vld [vmem:[%s14 + $0x3c] sm:$0xf]
      %v3160 = vld [vmem:[%s15] sm:$0x1]
      %v3162 = vlaneseq
      %v3163 = vshrl.u32 %v3162, 7
      %v3164 = vsub.s32 0, %v3163
      %v3165 = vrot.slane %v3160, %v3164
      %v3183 = vunpack.c.l.b16 %v3144
      %v3184 = vunpack.c.l.b16 %v3145
      %v3185 = vunpack.c.l.b16 %v3146
      %v3186 = vunpack.c.l.b16 %v3147
      %v3187 = vunpack.c.l.b16 %v3148
      %v3188 = vunpack.c.l.b16 %v3149
      %v3189 = vunpack.c.l.b16 %v3150
      %v3190 = vunpack.c.l.b16 %v3151
      %v3191 = vunpack.c.l.b16 %v3152
      %v3192 = vunpack.c.l.b16 %v3153
      %v3193 = vunpack.c.l.b16 %v3154
      %v3194 = vunpack.c.l.b16 %v3155
      %v3195 = vunpack.c.l.b16 %v3156
      %v3196 = vunpack.c.l.b16 %v3157
      %v3197 = vunpack.c.l.b16 %v3158
      %v3198 = vunpack.c.l.b16 %v3159
      %v3199 = vpack.c.b16 %v3184, %v3183
      %v3200 = vpack.c.b16 %v3186, %v3185
      %v3201 = vpack.c.b16 %v3188, %v3187
      %v3202 = vpack.c.b16 %v3190, %v3189
      %v3203 = vpack.c.b16 %v3192, %v3191
      %v3204 = vpack.c.b16 %v3194, %v3193
      %v3205 = vpack.c.b16 %v3196, %v3195
      %v3206 = vpack.c.b16 %v3198, %v3197
      %3215 = vmatprep.subr.bf16.mxu0 0
      %3216 = vmatpush1.bf16.msra.mxu0 %v3199
      %3217 = vmatprep.subr.bf16.mxu0 0
      %3218 = vmatpush1.bf16.msra.mxu0 %v3200
      %3219 = vmatprep.subr.bf16.mxu0 0
      %3220 = vmatpush1.bf16.msra.mxu0 %v3201
      %3221 = vmatprep.subr.bf16.mxu0 0
      %3222 = vmatpush1.bf16.msra.mxu0 %v3202
      %3223 = vmatprep.subr.bf16.mxu0 0
      %3224 = vmatpush1.bf16.msra.mxu0 %v3203
      %3225 = vmatprep.subr.bf16.mxu0 0
      %3226 = vmatpush1.bf16.msra.mxu0 %v3204
      %3227 = vmatprep.subr.bf16.mxu0 0
      %3228 = vmatpush1.bf16.msra.mxu0 %v3205
      %3229 = vmatprep.subr.bf16.mxu0 0
      %3230 = vmatpush1.bf16.msra.mxu0 %v3206
      %3231 = vmatprep.subr.bf16.mxu0 0
      %3232 = vmatpush1.bf16.msra.mxu0 0
      %3233 = vmatprep.subr.bf16.mxu0 0
      %3234 = vmatpush1.bf16.msra.mxu0 0
      %3235 = vmatprep.subr.bf16.mxu0 0
      %3236 = vmatpush1.bf16.msra.mxu0 0
      %3237 = vmatprep.subr.bf16.mxu0 0
      %3238 = vmatpush1.bf16.msra.mxu0 0
      %3239 = vmatprep.subr.bf16.mxu0 0
      %3240 = vmatpush1.bf16.msra.mxu0 0
      %3241 = vmatprep.subr.bf16.mxu0 0
      %3242 = vmatpush1.bf16.msra.mxu0 0
      %3243 = vmatprep.subr.bf16.mxu0 0
      %3244 = vmatpush1.bf16.msra.mxu0 0
      %3245 = vmatprep.subr.bf16.mxu0 0
      %3246 = vmatpush1.bf16.msra.mxu0 0
      %3247 = vmatprep.mubr.bf16.mxu0 0
      %3248 = vmatmul.mubr.bf16.gmra.mrb[0].mxu0 %v3143
      %v3249 = vpop.f32.mrb[0].mxu0
      %v3250 = vadd.f32 %v3165, %v3249
      %v3251 = vpop.f32.mrb[0].mxu0
      %v3252 = vpop.f32.mrb[0].mxu0
      %v3253 = vpop.f32.mrb[0].mxu0
      %3254 = vdwg.mxu0
      %vm3255 = vcmask 123904
      %3256 = vst.msk [vmem:[#allocation3] sm:$0x3] %vm3255, %v3250
      %v3257 = vld [vmem:[%s16] sm:$0xff]
      %v3258 = vld [vmem:[%s16 + $0x8] sm:$0xff]
      %v3259 = vld [vmem:[%s16 + $0x10] sm:$0xff]
      %v3260 = vld [vmem:[%s16 + $0x18] sm:$0xff]
      %v3261 = vld [vmem:[%s16 + $0x20] sm:$0xff]
      %v3262 = vld [vmem:[%s16 + $0x28] sm:$0xff]
      %v3263 = vld [vmem:[%s16 + $0x30] sm:$0xff]
      %v3264 = vld [vmem:[%s16 + $0x38] sm:$0xff]
      %v3265 = vld [vmem:[%s16 + $0x40] sm:$0xff]
      %v3266 = vld [vmem:[%s16 + $0x48] sm:$0xff]
      %v3267 = vld [vmem:[%s16 + $0x50] sm:$0xff]
      %v3268 = vld [vmem:[%s16 + $0x58] sm:$0xff]
      %v3269 = vld [vmem:[%s16 + $0x60] sm:$0xff]
      %v3270 = vld [vmem:[%s16 + $0x68] sm:$0xff]
      %v3271 = vld [vmem:[%s16 + $0x70] sm:$0xff]
      %v3272 = vld [vmem:[%s16 + $0x78] sm:$0xff]
      %v3273 = vld [vmem:[%s16 + $0x80] sm:$0xff]
      %v3274 = vld [vmem:[%s16 + $0x88] sm:$0xff]
      %v3275 = vld [vmem:[%s16 + $0x90] sm:$0xff]
      %v3276 = vld [vmem:[%s16 + $0x98] sm:$0xff]
      %v3277 = vld [vmem:[%s16 + $0xa0] sm:$0xff]
      %v3278 = vld [vmem:[%s16 + $0xa8] sm:$0xff]
      %v3279 = vld [vmem:[%s16 + $0xb0] sm:$0xff]
      %v3280 = vld [vmem:[%s16 + $0xb8] sm:$0xff]
      %v3281 = vld [vmem:[%s16 + $0xc0] sm:$0xff]
      %v3282 = vld [vmem:[%s16 + $0xc8] sm:$0xff]
      %v3283 = vld [vmem:[%s16 + $0xd0] sm:$0xff]
      %v3284 = vld [vmem:[%s16 + $0xd8] sm:$0xff]
      %v3285 = vld [vmem:[%s16 + $0xe0] sm:$0xff]
      %v3286 = vld [vmem:[%s16 + $0xe8] sm:$0xff]
      %v3287 = vld [vmem:[%s16 + $0xf0] sm:$0xff]
      %v3288 = vld [vmem:[%s16 + $0xf8] sm:$0xff]
      %v3289 = vld [vmem:[%s16 + $0x100] sm:$0xff]
      %v3290 = vld [vmem:[%s16 + $0x108] sm:$0xff]
      %v3291 = vld [vmem:[%s16 + $0x110] sm:$0xff]
      %v3292 = vld [vmem:[%s16 + $0x118] sm:$0xff]
      %v3293 = vld [vmem:[%s16 + $0x120] sm:$0xff]
      %v3294 = vld [vmem:[%s16 + $0x128] sm:$0xff]
      %v3295 = vld [vmem:[%s16 + $0x130] sm:$0xff]
      %v3296 = vld [vmem:[%s16 + $0x138] sm:$0xff]
      %v3297 = vld [vmem:[%s16 + $0x140] sm:$0xff]
      %v3298 = vld [vmem:[%s16 + $0x148] sm:$0xff]
      %v3299 = vld [vmem:[%s16 + $0x150] sm:$0xff]
      %v3300 = vld [vmem:[%s16 + $0x158] sm:$0xff]
      %v3301 = vld [vmem:[%s16 + $0x160] sm:$0xff]
      %v3302 = vld [vmem:[%s16 + $0x168] sm:$0xff]
      %v3303 = vld [vmem:[%s16 + $0x170] sm:$0xff]
      %v3304 = vld [vmem:[%s16 + $0x178] sm:$0xff]
      %v3305 = vld [vmem:[%s16 + $0x180] sm:$0xff]
      %v3306 = vld [vmem:[%s16 + $0x188] sm:$0xff]
      %v3307 = vld [vmem:[%s16 + $0x190] sm:$0xff]
      %v3308 = vld [vmem:[%s16 + $0x198] sm:$0xff]
      %v3309 = vld [vmem:[%s16 + $0x1a0] sm:$0xff]
      %v3310 = vld [vmem:[%s16 + $0x1a8] sm:$0xff]
      %v3311 = vld [vmem:[%s16 + $0x1b0] sm:$0xff]
      %v3312 = vld [vmem:[%s16 + $0x1b8] sm:$0xff]
      %v3313 = vld [vmem:[%s16 + $0x1c0] sm:$0xff]
      %v3314 = vld [vmem:[%s16 + $0x1c8] sm:$0xff]
      %v3315 = vld [vmem:[%s16 + $0x1d0] sm:$0xff]
      %v3316 = vld [vmem:[%s16 + $0x1d8] sm:$0xff]
      %v3317 = vld [vmem:[%s16 + $0x1e0] sm:$0xff]
      %v3318 = vld [vmem:[%s16 + $0x1e8] sm:$0xff]
      %v3319 = vld [vmem:[%s16 + $0x1f0] sm:$0xff]
      %v3320 = vld [vmem:[%s16 + $0x1f8] sm:$0xff]
      %v3321 = vld [vmem:[%s17] sm:$0x3]
      %v3323 = vlaneseq
      %v3324 = vshrl.u32 %v3323, 7
      %v3325 = vsub.s32 0, %v3324
      %v3326 = vrot.slane %v3321, %v3325
      %v3327 = vlaneseq
      %v3328 = vshrl.u32 %v3327, 7
      %v3329 = vsub.s32 1, %v3328
      %v3330 = vrot.slane %v3321, %v3329
      %v3397 = vunpack.c.l.b16 %v3257
      %v3398 = vunpack.c.h.b16 %v3257
      %v3399 = vunpack.c.l.b16 %v3258
      %v3400 = vunpack.c.h.b16 %v3258
      %v3401 = vunpack.c.l.b16 %v3259
      %v3402 = vunpack.c.h.b16 %v3259
      %v3403 = vunpack.c.l.b16 %v3260
      %v3404 = vunpack.c.h.b16 %v3260
      %v3405 = vunpack.c.l.b16 %v3261
      %v3406 = vunpack.c.h.b16 %v3261
      %v3407 = vunpack.c.l.b16 %v3262
      %v3408 = vunpack.c.h.b16 %v3262
      %v3409 = vunpack.c.l.b16 %v3263
      %v3410 = vunpack.c.h.b16 %v3263
      %v3411 = vunpack.c.l.b16 %v3264
      %v3412 = vunpack.c.h.b16 %v3264
      %v3413 = vunpack.c.l.b16 %v3265
      %v3414 = vunpack.c.h.b16 %v3265
      %v3415 = vunpack.c.l.b16 %v3266
      %v3416 = vunpack.c.h.b16 %v3266
      %v3417 = vunpack.c.l.b16 %v3267
      %v3418 = vunpack.c.h.b16 %v3267
      %v3419 = vunpack.c.l.b16 %v3268
      %v3420 = vunpack.c.h.b16 %v3268
      %v3421 = vunpack.c.l.b16 %v3269
      %v3422 = vunpack.c.h.b16 %v3269
      %v3423 = vunpack.c.l.b16 %v3270
      %v3424 = vunpack.c.h.b16 %v3270
      %v3425 = vunpack.c.l.b16 %v3271
      %v3426 = vunpack.c.h.b16 %v3271
      %v3427 = vunpack.c.l.b16 %v3272
      %v3428 = vunpack.c.h.b16 %v3272
      %v3429 = vunpack.c.l.b16 %v3273
      %v3430 = vunpack.c.h.b16 %v3273
      %v3431 = vunpack.c.l.b16 %v3274
      %v3432 = vunpack.c.h.b16 %v3274
      %v3433 = vunpack.c.l.b16 %v3275
      %v3434 = vunpack.c.h.b16 %v3275
      %v3435 = vunpack.c.l.b16 %v3276
      %v3436 = vunpack.c.h.b16 %v3276
      %v3437 = vunpack.c.l.b16 %v3277
      %v3438 = vunpack.c.h.b16 %v3277
      %v3439 = vunpack.c.l.b16 %v3278
      %v3440 = vunpack.c.h.b16 %v3278
      %v3441 = vunpack.c.l.b16 %v3279
      %v3442 = vunpack.c.h.b16 %v3279
      %v3443 = vunpack.c.l.b16 %v3280
      %v3444 = vunpack.c.h.b16 %v3280
      %v3445 = vunpack.c.l.b16 %v3281
      %v3446 = vunpack.c.h.b16 %v3281
      %v3447 = vunpack.c.l.b16 %v3282
      %v3448 = vunpack.c.h.b16 %v3282
      %v3449 = vunpack.c.l.b16 %v3283
      %v3450 = vunpack.c.h.b16 %v3283
      %v3451 = vunpack.c.l.b16 %v3284
      %v3452 = vunpack.c.h.b16 %v3284
      %v3453 = vunpack.c.l.b16 %v3285
      %v3454 = vunpack.c.h.b16 %v3285
      %v3455 = vunpack.c.l.b16 %v3286
      %v3456 = vunpack.c.h.b16 %v3286
      %v3457 = vunpack.c.l.b16 %v3287
      %v3458 = vunpack.c.h.b16 %v3287
      %v3459 = vunpack.c.l.b16 %v3288
      %v3460 = vunpack.c.h.b16 %v3288
      %v3461 = vunpack.c.l.b16 %v3289
      %v3462 = vunpack.c.h.b16 %v3289
      %v3463 = vunpack.c.l.b16 %v3290
      %v3464 = vunpack.c.h.b16 %v3290
      %v3465 = vunpack.c.l.b16 %v3291
      %v3466 = vunpack.c.h.b16 %v3291
      %v3467 = vunpack.c.l.b16 %v3292
      %v3468 = vunpack.c.h.b16 %v3292
      %v3469 = vunpack.c.l.b16 %v3293
      %v3470 = vunpack.c.h.b16 %v3293
      %v3471 = vunpack.c.l.b16 %v3294
      %v3472 = vunpack.c.h.b16 %v3294
      %v3473 = vunpack.c.l.b16 %v3295
      %v3474 = vunpack.c.h.b16 %v3295
      %v3475 = vunpack.c.l.b16 %v3296
      %v3476 = vunpack.c.h.b16 %v3296
      %v3477 = vunpack.c.l.b16 %v3297
      %v3478 = vunpack.c.h.b16 %v3297
      %v3479 = vunpack.c.l.b16 %v3298
      %v3480 = vunpack.c.h.b16 %v3298
      %v3481 = vunpack.c.l.b16 %v3299
      %v3482 = vunpack.c.h.b16 %v3299
      %v3483 = vunpack.c.l.b16 %v3300
      %v3484 = vunpack.c.h.b16 %v3300
      %v3485 = vunpack.c.l.b16 %v3301
      %v3486 = vunpack.c.h.b16 %v3301
      %v3487 = vunpack.c.l.b16 %v3302
      %v3488 = vunpack.c.h.b16 %v3302
      %v3489 = vunpack.c.l.b16 %v3303
      %v3490 = vunpack.c.h.b16 %v3303
      %v3491 = vunpack.c.l.b16 %v3304
      %v3492 = vunpack.c.h.b16 %v3304
      %v3493 = vunpack.c.l.b16 %v3305
      %v3494 = vunpack.c.h.b16 %v3305
      %v3495 = vunpack.c.l.b16 %v3306
      %v3496 = vunpack.c.h.b16 %v3306
      %v3497 = vunpack.c.l.b16 %v3307
      %v3498 = vunpack.c.h.b16 %v3307
      %v3499 = vunpack.c.l.b16 %v3308
      %v3500 = vunpack.c.h.b16 %v3308
      %v3501 = vunpack.c.l.b16 %v3309
      %v3502 = vunpack.c.h.b16 %v3309
      %v3503 = vunpack.c.l.b16 %v3310
      %v3504 = vunpack.c.h.b16 %v3310
      %v3505 = vunpack.c.l.b16 %v3311
      %v3506 = vunpack.c.h.b16 %v3311
      %v3507 = vunpack.c.l.b16 %v3312
      %v3508 = vunpack.c.h.b16 %v3312
      %v3509 = vunpack.c.l.b16 %v3313
      %v3510 = vunpack.c.h.b16 %v3313
      %v3511 = vunpack.c.l.b16 %v3314
      %v3512 = vunpack.c.h.b16 %v3314
      %v3513 = vunpack.c.l.b16 %v3315
      %v3514 = vunpack.c.h.b16 %v3315
      %v3515 = vunpack.c.l.b16 %v3316
      %v3516 = vunpack.c.h.b16 %v3316
      %v3517 = vunpack.c.l.b16 %v3317
      %v3518 = vunpack.c.h.b16 %v3317
      %v3519 = vunpack.c.l.b16 %v3318
      %v3520 = vunpack.c.h.b16 %v3318
      %v3521 = vunpack.c.l.b16 %v3319
      %v3522 = vunpack.c.h.b16 %v3319
      %v3523 = vunpack.c.l.b16 %v3320
      %v3524 = vunpack.c.h.b16 %v3320
      %v3525 = vpack.c.b16 %v3399, %v3397
      %v3526 = vpack.c.b16 %v3400, %v3398
      %v3527 = vpack.c.b16 %v3403, %v3401
      %v3528 = vpack.c.b16 %v3404, %v3402
      %v3529 = vpack.c.b16 %v3407, %v3405
      %v3530 = vpack.c.b16 %v3408, %v3406
      %v3531 = vpack.c.b16 %v3411, %v3409
      %v3532 = vpack.c.b16 %v3412, %v3410
      %v3533 = vpack.c.b16 %v3415, %v3413
      %v3534 = vpack.c.b16 %v3416, %v3414
      %v3535 = vpack.c.b16 %v3419, %v3417
      %v3536 = vpack.c.b16 %v3420, %v3418
      %v3537 = vpack.c.b16 %v3423, %v3421
      %v3538 = vpack.c.b16 %v3424, %v3422
      %v3539 = vpack.c.b16 %v3427, %v3425
      %v3540 = vpack.c.b16 %v3428, %v3426
      %v3541 = vpack.c.b16 %v3431, %v3429
      %v3542 = vpack.c.b16 %v3432, %v3430
      %v3543 = vpack.c.b16 %v3435, %v3433
      %v3544 = vpack.c.b16 %v3436, %v3434
      %v3545 = vpack.c.b16 %v3439, %v3437
      %v3546 = vpack.c.b16 %v3440, %v3438
      %v3547 = vpack.c.b16 %v3443, %v3441
      %v3548 = vpack.c.b16 %v3444, %v3442
      %v3549 = vpack.c.b16 %v3447, %v3445
      %v3550 = vpack.c.b16 %v3448, %v3446
      %v3551 = vpack.c.b16 %v3451, %v3449
      %v3552 = vpack.c.b16 %v3452, %v3450
      %v3553 = vpack.c.b16 %v3455, %v3453
      %v3554 = vpack.c.b16 %v3456, %v3454
      %v3555 = vpack.c.b16 %v3459, %v3457
      %v3556 = vpack.c.b16 %v3460, %v3458
      %v3557 = vpack.c.b16 %v3463, %v3461
      %v3558 = vpack.c.b16 %v3464, %v3462
      %v3559 = vpack.c.b16 %v3467, %v3465
      %v3560 = vpack.c.b16 %v3468, %v3466
      %v3561 = vpack.c.b16 %v3471, %v3469
      %v3562 = vpack.c.b16 %v3472, %v3470
      %v3563 = vpack.c.b16 %v3475, %v3473
      %v3564 = vpack.c.b16 %v3476, %v3474
      %v3565 = vpack.c.b16 %v3479, %v3477
      %v3566 = vpack.c.b16 %v3480, %v3478
      %v3567 = vpack.c.b16 %v3483, %v3481
      %v3568 = vpack.c.b16 %v3484, %v3482
      %v3569 = vpack.c.b16 %v3487, %v3485
      %v3570 = vpack.c.b16 %v3488, %v3486
      %v3571 = vpack.c.b16 %v3491, %v3489
      %v3572 = vpack.c.b16 %v3492, %v3490
      %v3573 = vpack.c.b16 %v3495, %v3493
      %v3574 = vpack.c.b16 %v3496, %v3494
      %v3575 = vpack.c.b16 %v3499, %v3497
      %v3576 = vpack.c.b16 %v3500, %v3498
      %v3577 = vpack.c.b16 %v3503, %v3501
      %v3578 = vpack.c.b16 %v3504, %v3502
      %v3579 = vpack.c.b16 %v3507, %v3505
      %v3580 = vpack.c.b16 %v3508, %v3506
      %v3581 = vpack.c.b16 %v3511, %v3509
      %v3582 = vpack.c.b16 %v3512, %v3510
      %v3583 = vpack.c.b16 %v3515, %v3513
      %v3584 = vpack.c.b16 %v3516, %v3514
      %v3585 = vpack.c.b16 %v3519, %v3517
      %v3586 = vpack.c.b16 %v3520, %v3518
      %v3587 = vpack.c.b16 %v3523, %v3521
      %v3588 = vpack.c.b16 %v3524, %v3522
      %3653 = vmatprep.subr.bf16.mxu0 %v3526
      %3654 = vmatpush1.bf16.msra.mxu0 %v3525
      %3655 = vmatprep.subr.bf16.mxu0 %v3528
      %3656 = vmatpush1.bf16.msra.mxu0 %v3527
      %3657 = vmatprep.subr.bf16.mxu0 %v3530
      %3658 = vmatpush1.bf16.msra.mxu0 %v3529
      %3659 = vmatprep.subr.bf16.mxu0 %v3532
      %3660 = vmatpush1.bf16.msra.mxu0 %v3531
      %3661 = vmatprep.subr.bf16.mxu0 %v3534
      %3662 = vmatpush1.bf16.msra.mxu0 %v3533
      %3663 = vmatprep.subr.bf16.mxu0 %v3536
      %3664 = vmatpush1.bf16.msra.mxu0 %v3535
      %3665 = vmatprep.subr.bf16.mxu0 %v3538
      %3666 = vmatpush1.bf16.msra.mxu0 %v3537
      %3667 = vmatprep.subr.bf16.mxu0 %v3540
      %3668 = vmatpush1.bf16.msra.mxu0 %v3539
      %3669 = vmatprep.subr.bf16.mxu0 %v3542
      %3670 = vmatpush1.bf16.msra.mxu0 %v3541
      %3671 = vmatprep.subr.bf16.mxu0 %v3544
      %3672 = vmatpush1.bf16.msra.mxu0 %v3543
      %3673 = vmatprep.subr.bf16.mxu0 %v3546
      %3674 = vmatpush1.bf16.msra.mxu0 %v3545
      %3675 = vmatprep.subr.bf16.mxu0 %v3548
      %3676 = vmatpush1.bf16.msra.mxu0 %v3547
      %3677 = vmatprep.subr.bf16.mxu0 %v3550
      %3678 = vmatpush1.bf16.msra.mxu0 %v3549
      %3679 = vmatprep.subr.bf16.mxu0 %v3552
      %3680 = vmatpush1.bf16.msra.mxu0 %v3551
      %3681 = vmatprep.subr.bf16.mxu0 %v3554
      %3682 = vmatpush1.bf16.msra.mxu0 %v3553
      %3683 = vmatprep.subr.bf16.mxu0 %v3556
      %3684 = vmatpush1.bf16.msra.mxu0 %v3555
      %3685 = vmatprep.mubr.bf16.mxu0 %v2482
      %3686 = vmatmul.mubr.bf16.gmra.mrb[0].mxu0 %v2481
      %v3687 = vpop.f32.mrb[0].mxu0
      %v3688 = vadd.f32 %v3326, %v3687
      %v3689 = vpop.f32.mrb[0].mxu0
      %v3690 = vadd.f32 %v3330, %v3689
      %v3691 = vpop.f32.mrb[0].mxu0
      %v3692 = vpop.f32.mrb[0].mxu0
      %3693 = vdwg.mxu0
      %3694 = vmatprep.subr.bf16.mxu0 %v3558
      %3695 = vmatpush1.bf16.msra.mxu0 %v3557
      %3696 = vmatprep.subr.bf16.mxu0 %v3560
      %3697 = vmatpush1.bf16.msra.mxu0 %v3559
      %3698 = vmatprep.subr.bf16.mxu0 %v3562
      %3699 = vmatpush1.bf16.msra.mxu0 %v3561
      %3700 = vmatprep.subr.bf16.mxu0 %v3564
      %3701 = vmatpush1.bf16.msra.mxu0 %v3563
      %3702 = vmatprep.subr.bf16.mxu0 %v3566
      %3703 = vmatpush1.bf16.msra.mxu0 %v3565
      %3704 = vmatprep.subr.bf16.mxu0 %v3568
      %3705 = vmatpush1.bf16.msra.mxu0 %v3567
      %3706 = vmatprep.subr.bf16.mxu0 %v3570
      %3707 = vmatpush1.bf16.msra.mxu0 %v3569
      %3708 = vmatprep.subr.bf16.mxu0 %v3572
      %3709 = vmatpush1.bf16.msra.mxu0 %v3571
      %3710 = vmatprep.subr.bf16.mxu0 %v3574
      %3711 = vmatpush1.bf16.msra.mxu0 %v3573
      %3712 = vmatprep.subr.bf16.mxu0 %v3576
      %3713 = vmatpush1.bf16.msra.mxu0 %v3575
      %3714 = vmatprep.subr.bf16.mxu0 %v3578
      %3715 = vmatpush1.bf16.msra.mxu0 %v3577
      %3716 = vmatprep.subr.bf16.mxu0 %v3580
      %3717 = vmatpush1.bf16.msra.mxu0 %v3579
      %3718 = vmatprep.subr.bf16.mxu0 %v3582
      %3719 = vmatpush1.bf16.msra.mxu0 %v3581
      %3720 = vmatprep.subr.bf16.mxu0 %v3584
      %3721 = vmatpush1.bf16.msra.mxu0 %v3583
      %3722 = vmatprep.subr.bf16.mxu0 %v3586
      %3723 = vmatpush1.bf16.msra.mxu0 %v3585
      %3724 = vmatprep.subr.bf16.mxu0 %v3588
      %3725 = vmatpush1.bf16.msra.mxu0 %v3587
      %3726 = vmatprep.mubr.bf16.mxu0 %v2484
      %3727 = vmatmul.mubr.bf16.gmra.mrb[0].mxu0 %v2483
      %v3728 = vpop.f32.mrb[0].mxu0
      %v3729 = vadd.f32 %v3688, %v3728
      %v3730 = vpop.f32.mrb[0].mxu0
      %v3731 = vadd.f32 %v3690, %v3730
      %v3732 = vpop.f32.mrb[0].mxu0
      %v3733 = vpop.f32.mrb[0].mxu0
      %3734 = vdwg.mxu0
      %v3735 = vmax.f32 %v3729, 0.0
      %v3736 = vmax.f32 %v3731, 0.0
      %v3737 = vpack.c.bf16 %v3735, %v3735
      %v3738 = vpack.c.bf16 %v3736, %v3736
      %v3739 = vld [vmem:[%s18] sm:$0xf]
      %v3740 = vld [vmem:[%s18 + $0x4] sm:$0xf]
      %v3741 = vld [vmem:[%s18 + $0x8] sm:$0xf]
      %v3742 = vld [vmem:[%s18 + $0xc] sm:$0xf]
      %v3743 = vld [vmem:[%s18 + $0x10] sm:$0xf]
      %v3744 = vld [vmem:[%s18 + $0x14] sm:$0xf]
      %v3745 = vld [vmem:[%s18 + $0x18] sm:$0xf]
      %v3746 = vld [vmem:[%s18 + $0x1c] sm:$0xf]
      %v3747 = vld [vmem:[%s18 + $0x20] sm:$0xf]
      %v3748 = vld [vmem:[%s18 + $0x24] sm:$0xf]
      %v3749 = vld [vmem:[%s18 + $0x28] sm:$0xf]
      %v3750 = vld [vmem:[%s18 + $0x2c] sm:$0xf]
      %v3751 = vld [vmem:[%s18 + $0x30] sm:$0xf]
      %v3752 = vld [vmem:[%s18 + $0x34] sm:$0xf]
      %v3753 = vld [vmem:[%s18 + $0x38] sm:$0xf]
      %v3754 = vld [vmem:[%s18 + $0x3c] sm:$0xf]
      %v3755 = vld [vmem:[%s18 + $0x40] sm:$0xf]
      %v3756 = vld [vmem:[%s18 + $0x44] sm:$0xf]
      %v3757 = vld [vmem:[%s18 + $0x48] sm:$0xf]
      %v3758 = vld [vmem:[%s18 + $0x4c] sm:$0xf]
      %v3759 = vld [vmem:[%s18 + $0x50] sm:$0xf]
      %v3760 = vld [vmem:[%s18 + $0x54] sm:$0xf]
      %v3761 = vld [vmem:[%s18 + $0x58] sm:$0xf]
      %v3762 = vld [vmem:[%s18 + $0x5c] sm:$0xf]
      %v3763 = vld [vmem:[%s18 + $0x60] sm:$0xf]
      %v3764 = vld [vmem:[%s18 + $0x64] sm:$0xf]
      %v3765 = vld [vmem:[%s18 + $0x68] sm:$0xf]
      %v3766 = vld [vmem:[%s18 + $0x6c] sm:$0xf]
      %v3767 = vld [vmem:[%s18 + $0x70] sm:$0xf]
      %v3768 = vld [vmem:[%s18 + $0x74] sm:$0xf]
      %v3769 = vld [vmem:[%s18 + $0x78] sm:$0xf]
      %v3770 = vld [vmem:[%s18 + $0x7c] sm:$0xf]
      %v3771 = vld [vmem:[%s19] sm:$0x1]
      %v3773 = vlaneseq
      %v3774 = vshrl.u32 %v3773, 7
      %v3775 = vsub.s32 0, %v3774
      %v3776 = vrot.slane %v3771, %v3775
      %v3810 = vunpack.c.l.b16 %v3739
      %v3811 = vunpack.c.l.b16 %v3740
      %v3812 = vunpack.c.l.b16 %v3741
      %v3813 = vunpack.c.l.b16 %v3742
      %v3814 = vunpack.c.l.b16 %v3743
      %v3815 = vunpack.c.l.b16 %v3744
      %v3816 = vunpack.c.l.b16 %v3745
      %v3817 = vunpack.c.l.b16 %v3746
      %v3818 = vunpack.c.l.b16 %v3747
      %v3819 = vunpack.c.l.b16 %v3748
      %v3820 = vunpack.c.l.b16 %v3749
      %v3821 = vunpack.c.l.b16 %v3750
      %v3822 = vunpack.c.l.b16 %v3751
      %v3823 = vunpack.c.l.b16 %v3752
      %v3824 = vunpack.c.l.b16 %v3753
      %v3825 = vunpack.c.l.b16 %v3754
      %v3826 = vunpack.c.l.b16 %v3755
      %v3827 = vunpack.c.l.b16 %v3756
      %v3828 = vunpack.c.l.b16 %v3757
      %v3829 = vunpack.c.l.b16 %v3758
      %v3830 = vunpack.c.l.b16 %v3759
      %v3831 = vunpack.c.l.b16 %v3760
      %v3832 = vunpack.c.l.b16 %v3761
      %v3833 = vunpack.c.l.b16 %v3762
      %v3834 = vunpack.c.l.b16 %v3763
      %v3835 = vunpack.c.l.b16 %v3764
      %v3836 = vunpack.c.l.b16 %v3765
      %v3837 = vunpack.c.l.b16 %v3766
      %v3838 = vunpack.c.l.b16 %v3767
      %v3839 = vunpack.c.l.b16 %v3768
      %v3840 = vunpack.c.l.b16 %v3769
      %v3841 = vunpack.c.l.b16 %v3770
      %v3842 = vpack.c.b16 %v3811, %v3810
      %v3843 = vpack.c.b16 %v3813, %v3812
      %v3844 = vpack.c.b16 %v3815, %v3814
      %v3845 = vpack.c.b16 %v3817, %v3816
      %v3846 = vpack.c.b16 %v3819, %v3818
      %v3847 = vpack.c.b16 %v3821, %v3820
      %v3848 = vpack.c.b16 %v3823, %v3822
      %v3849 = vpack.c.b16 %v3825, %v3824
      %v3850 = vpack.c.b16 %v3827, %v3826
      %v3851 = vpack.c.b16 %v3829, %v3828
      %v3852 = vpack.c.b16 %v3831, %v3830
      %v3853 = vpack.c.b16 %v3833, %v3832
      %v3854 = vpack.c.b16 %v3835, %v3834
      %v3855 = vpack.c.b16 %v3837, %v3836
      %v3856 = vpack.c.b16 %v3839, %v3838
      %v3857 = vpack.c.b16 %v3841, %v3840
      %3874 = vmatprep.subr.bf16.mxu0 0
      %3875 = vmatpush1.bf16.msra.mxu0 %v3842
      %3876 = vmatprep.subr.bf16.mxu0 0
      %3877 = vmatpush1.bf16.msra.mxu0 %v3843
      %3878 = vmatprep.subr.bf16.mxu0 0
      %3879 = vmatpush1.bf16.msra.mxu0 %v3844
      %3880 = vmatprep.subr.bf16.mxu0 0
      %3881 = vmatpush1.bf16.msra.mxu0 %v3845
      %3882 = vmatprep.subr.bf16.mxu0 0
      %3883 = vmatpush1.bf16.msra.mxu0 %v3846
      %3884 = vmatprep.subr.bf16.mxu0 0
      %3885 = vmatpush1.bf16.msra.mxu0 %v3847
      %3886 = vmatprep.subr.bf16.mxu0 0
      %3887 = vmatpush1.bf16.msra.mxu0 %v3848
      %3888 = vmatprep.subr.bf16.mxu0 0
      %3889 = vmatpush1.bf16.msra.mxu0 %v3849
      %3890 = vmatprep.subr.bf16.mxu0 0
      %3891 = vmatpush1.bf16.msra.mxu0 %v3850
      %3892 = vmatprep.subr.bf16.mxu0 0
      %3893 = vmatpush1.bf16.msra.mxu0 %v3851
      %3894 = vmatprep.subr.bf16.mxu0 0
      %3895 = vmatpush1.bf16.msra.mxu0 %v3852
      %3896 = vmatprep.subr.bf16.mxu0 0
      %3897 = vmatpush1.bf16.msra.mxu0 %v3853
      %3898 = vmatprep.subr.bf16.mxu0 0
      %3899 = vmatpush1.bf16.msra.mxu0 %v3854
      %3900 = vmatprep.subr.bf16.mxu0 0
      %3901 = vmatpush1.bf16.msra.mxu0 %v3855
      %3902 = vmatprep.subr.bf16.mxu0 0
      %3903 = vmatpush1.bf16.msra.mxu0 %v3856
      %3904 = vmatprep.subr.bf16.mxu0 0
      %3905 = vmatpush1.bf16.msra.mxu0 %v3857
      %3906 = vmatprep.mubr.bf16.mxu0 %v3738
      %3907 = vmatmul.mubr.bf16.gmra.mrb[0].mxu0 %v3737
      %v3908 = vpop.f32.mrb[0].mxu0
      %v3909 = vadd.f32 %v3776, %v3908
      %v3910 = vpop.f32.mrb[0].mxu0
      %v3911 = vpop.f32.mrb[0].mxu0
      %v3912 = vpop.f32.mrb[0].mxu0
      %3913 = vdwg.mxu0
      %v3914 = vmax.f32 %v3909, 0.0
      %v3915 = vpack.c.bf16 %v3914, %v3914
      %v3916 = vld [vmem:[%s20] sm:$0xf]
      %v3917 = vld [vmem:[%s20 + $0x4] sm:$0xf]
      %v3918 = vld [vmem:[%s20 + $0x8] sm:$0xf]
      %v3919 = vld [vmem:[%s20 + $0xc] sm:$0xf]
      %v3920 = vld [vmem:[%s20 + $0x10] sm:$0xf]
      %v3921 = vld [vmem:[%s20 + $0x14] sm:$0xf]
      %v3922 = vld [vmem:[%s20 + $0x18] sm:$0xf]
      %v3923 = vld [vmem:[%s20 + $0x1c] sm:$0xf]
      %v3924 = vld [vmem:[%s20 + $0x20] sm:$0xf]
      %v3925 = vld [vmem:[%s20 + $0x24] sm:$0xf]
      %v3926 = vld [vmem:[%s20 + $0x28] sm:$0xf]
      %v3927 = vld [vmem:[%s20 + $0x2c] sm:$0xf]
      %v3928 = vld [vmem:[%s20 + $0x30] sm:$0xf]
      %v3929 = vld [vmem:[%s20 + $0x34] sm:$0xf]
      %v3930 = vld [vmem:[%s20 + $0x38] sm:$0xf]
      %v3931 = vld [vmem:[%s20 + $0x3c] sm:$0xf]
      %v3932 = vld [vmem:[%s21] sm:$0x1]
      %v3934 = vlaneseq
      %v3935 = vshrl.u32 %v3934, 7
      %v3936 = vsub.s32 0, %v3935
      %v3937 = vrot.slane %v3932, %v3936
      %v3955 = vunpack.c.l.b16 %v3916
      %v3956 = vunpack.c.l.b16 %v3917
      %v3957 = vunpack.c.l.b16 %v3918
      %v3958 = vunpack.c.l.b16 %v3919
      %v3959 = vunpack.c.l.b16 %v3920
      %v3960 = vunpack.c.l.b16 %v3921
      %v3961 = vunpack.c.l.b16 %v3922
      %v3962 = vunpack.c.l.b16 %v3923
      %v3963 = vunpack.c.l.b16 %v3924
      %v3964 = vunpack.c.l.b16 %v3925
      %v3965 = vunpack.c.l.b16 %v3926
      %v3966 = vunpack.c.l.b16 %v3927
      %v3967 = vunpack.c.l.b16 %v3928
      %v3968 = vunpack.c.l.b16 %v3929
      %v3969 = vunpack.c.l.b16 %v3930
      %v3970 = vunpack.c.l.b16 %v3931
      %v3971 = vpack.c.b16 %v3956, %v3955
      %v3972 = vpack.c.b16 %v3958, %v3957
      %v3973 = vpack.c.b16 %v3960, %v3959
      %v3974 = vpack.c.b16 %v3962, %v3961
      %v3975 = vpack.c.b16 %v3964, %v3963
      %v3976 = vpack.c.b16 %v3966, %v3965
      %v3977 = vpack.c.b16 %v3968, %v3967
      %v3978 = vpack.c.b16 %v3970, %v3969
      %3987 = vmatprep.subr.bf16.mxu0 0
      %3988 = vmatpush1.bf16.msra.mxu0 %v3971
      %3989 = vmatprep.subr.bf16.mxu0 0
      %3990 = vmatpush1.bf16.msra.mxu0 %v3972
      %3991 = vmatprep.subr.bf16.mxu0 0
      %3992 = vmatpush1.bf16.msra.mxu0 %v3973
      %3993 = vmatprep.subr.bf16.mxu0 0
      %3994 = vmatpush1.bf16.msra.mxu0 %v3974
      %3995 = vmatprep.subr.bf16.mxu0 0
      %3996 = vmatpush1.bf16.msra.mxu0 %v3975
      %3997 = vmatprep.subr.bf16.mxu0 0
      %3998 = vmatpush1.bf16.msra.mxu0 %v3976
      %3999 = vmatprep.subr.bf16.mxu0 0
      %4000 = vmatpush1.bf16.msra.mxu0 %v3977
      %4001 = vmatprep.subr.bf16.mxu0 0
      %4002 = vmatpush1.bf16.msra.mxu0 %v3978
      %4003 = vmatprep.subr.bf16.mxu0 0
      %4004 = vmatpush1.bf16.msra.mxu0 0
      %4005 = vmatprep.subr.bf16.mxu0 0
      %4006 = vmatpush1.bf16.msra.mxu0 0
      %4007 = vmatprep.subr.bf16.mxu0 0
      %4008 = vmatpush1.bf16.msra.mxu0 0
      %4009 = vmatprep.subr.bf16.mxu0 0
      %4010 = vmatpush1.bf16.msra.mxu0 0
      %4011 = vmatprep.subr.bf16.mxu0 0
      %4012 = vmatpush1.bf16.msra.mxu0 0
      %4013 = vmatprep.subr.bf16.mxu0 0
      %4014 = vmatpush1.bf16.msra.mxu0 0
      %4015 = vmatprep.subr.bf16.mxu0 0
      %4016 = vmatpush1.bf16.msra.mxu0 0
      %4017 = vmatprep.subr.bf16.mxu0 0
      %4018 = vmatpush1.bf16.msra.mxu0 0
      %4019 = vmatprep.mubr.bf16.mxu0 0
      %4020 = vmatmul.mubr.bf16.gmra.mrb[0].mxu0 %v3915
      %v4021 = vpop.f32.mrb[0].mxu0
      %v4022 = vadd.f32 %v3937, %v4021
      %v4023 = vpop.f32.mrb[0].mxu0
      %v4024 = vpop.f32.mrb[0].mxu0
      %v4025 = vpop.f32.mrb[0].mxu0
      %4026 = vdwg.mxu0
      %4027 = vst.msk [vmem:[#allocation5] sm:$0x3] %vm3255, %v4022
    $region97: #{rot_encoder_forward.3} parent=1 // pred_fallthru
      _
    // Predicated region
    $region98: #{rot_encoder_forward.3} parent=1 // pred_check
      _
    $region99: #{rot_encoder_forward.3} parent=1 // pred_check_branch
      %4029 = sbr.rel (0) target = $region101
    $region100: #{rot_encoder_forward.3} parent=1 // pred_region
      %s4031 = ssub.s32 32, 32
      %4032 = vsyncadd [#allocation4], %s4031
      %s4034 = sshll.u32 [#allocation3], 4
      %s4035 = int_to_ptr.vmem [resolvable:$true] %s4034
      %4037 = dma.vmem_to_hbm [thread:$0]  %s4035, 32, %s22, [#allocation4]
    $region101: #{rot_encoder_forward.3} parent=1 // pred_fallthru
      _
    // Predicated region
    $region102: #{rot_encoder_forward.3} parent=1 // pred_check
      _
    $region103: #{rot_encoder_forward.3} parent=1 // pred_check_branch
      %4039 = sbr.rel (0) target = $region105
    $region104: #{rot_encoder_forward.3} parent=1 // pred_region
      %s4041 = ssub.s32 32, 32
      %4042 = vsyncadd [#allocation6], %s4041
      %s4044 = sshll.u32 [#allocation5], 4
      %s4045 = int_to_ptr.vmem [resolvable:$true] %s4044
      %4047 = dma.vmem_to_hbm [thread:$0]  %s4045, 32, %s23, [#allocation6]
    $region105: #{rot_encoder_forward.3} parent=1 // pred_fallthru
      _
    // Predicated region
    $region106: #{rot_encoder_forward.3} parent=1 // pred_check
      _
    $region107: #{rot_encoder_forward.3} parent=1 // pred_check_branch
      %4049 = sbr.rel (0) target = $region109
    $region108: #{rot_encoder_forward.3} parent=1 // pred_region
      %4050 = dma.done [#allocation4], 32
    $region109: #{rot_encoder_forward.3} parent=1 // pred_fallthru
      _
    // Predicated region
    $region110: #{rot_encoder_forward.3} parent=1 // pred_check
      _
    $region111: #{rot_encoder_forward.3} parent=1 // pred_check_branch
      %4052 = sbr.rel (0) target = $region113
    $region112: #{rot_encoder_forward.3} parent=1 // pred_region
      %4053 = dma.done [#allocation6], 32
    $region113: #{rot_encoder_forward.3} parent=1 // pred_fallthru
      _
    %4054 = vsyncpa [#allocation4], 1
    %4055 = vsyncpa [#allocation6], 1

// kernel: rot_encoder_forward.2
$region0: #{rot_encoder_forward.2}
  #allocation0 [shape = 'u32[]', space=smem, size = 0x4, offset = 0x4, fixed_abs, tag = 'smem constant byte address 0x4 - core index']
  #allocation1 [shape = 'u32[144,128]{1,0:T(1,128)}', space=vmem, size = 0x12000, scoped, tag = 'internal scratch']
  #allocation2 [shape = 'f32[2,1024]{1,0:T(2,128)}', space=vmem, size = 0x2000, scoped, tag = 'scratch operand']
  %s0 = inlined_call_operand.vmem [shape: f32[2,3,128], index: 0, kind: input, shape index: {}]
  %s1 = inlined_call_operand.vmem [shape: bf16[3,64], index: 1, kind: input, shape index: {}]
  %s2 = inlined_call_operand.vmem [shape: f32[1,64], index: 2, kind: input, shape index: {}]
  %s3 = inlined_call_operand.vmem [shape: bf16[64,128], index: 3, kind: input, shape index: {}]
  %s4 = inlined_call_operand.vmem [shape: f32[1,128], index: 4, kind: input, shape index: {}]
  %s5 = inlined_call_operand.hbm [shape: bf16[128,1024], index: 5, kind: input, shape index: {}]
  %s6 = inlined_call_operand.vmem [shape: f32[1,1024], index: 6, kind: input, shape index: {}]
  %s7 = inlined_call_operand.hbm [shape: bf16[1024,512], index: 7, kind: input, shape index: {}]
  %s8 = inlined_call_operand.vmem [shape: f32[1,512], index: 8, kind: input, shape index: {}]
  %s9 = inlined_call_operand.hbm [shape: bf16[512,256], index: 9, kind: input, shape index: {}]
  %s10 = inlined_call_operand.vmem [shape: f32[1,256], index: 10, kind: input, shape index: {}]
  %s11 = inlined_call_operand.vmem [shape: bf16[256,9], index: 11, kind: input, shape index: {}]
  %s12 = inlined_call_operand.vmem [shape: f32[1,9], index: 12, kind: input, shape index: {}]
  %s13 = inlined_call_operand.vmem [shape: f32[2,9], index: 13, kind: output, shape index: {}]
  %s14 = sld [smem:[#allocation0]]
  $region82: #{rot_encoder_forward.2} parent=0
    _
  %s16 = ssub.s32 1, %s14
  %s17 = scalar_select 0, %s16, %s14
  $region1: #{rot_encoder_forward.2} parent=0
    #allocation3 [shape = 'u8[262144]{0}', space=vmem, size = 0x40000, scoped, tag = 'input window, operand 5, single buffered']
    #allocation4 [shape = 's32[1]{0}', space=sflag, size = 0x4, scoped, tag = 'scoped memory for rot_encoder_forward.2']
    #allocation5 [shape = 'u8[1048576]{0}', space=vmem, size = 0x100000, scoped, tag = 'input window, operand 7, single buffered']
    #allocation6 [shape = 's32[1]{0}', space=sflag, size = 0x4, scoped, tag = 'scoped memory for rot_encoder_forward.2']
    #allocation7 [shape = 'u8[262144]{0}', space=vmem, size = 0x40000, scoped, tag = 'input window, operand 9, single buffered']
    %18 = vsyncpa [#allocation4], 0
    %19 = vsyncpa [#allocation6], 0
    // Predicated region
    $region2: #{rot_encoder_forward.2} parent=1 // pred_check
      _
    $region3: #{rot_encoder_forward.2} parent=1 // pred_check_branch
      %21 = sbr.rel (0) target = $region5
    $region4: #{rot_encoder_forward.2} parent=1 // pred_region
      _
    $region5: #{rot_encoder_forward.2} parent=1 // pred_fallthru
      _
    // Predicated region
    $region6: #{rot_encoder_forward.2} parent=1 // pred_check
      _
    $region7: #{rot_encoder_forward.2} parent=1 // pred_check_branch
      %23 = sbr.rel (0) target = $region9
    $region8: #{rot_encoder_forward.2} parent=1 // pred_region
      _
    $region9: #{rot_encoder_forward.2} parent=1 // pred_fallthru
      _
    // Predicated region
    $region10: #{rot_encoder_forward.2} parent=1 // pred_check
      _
    $region11: #{rot_encoder_forward.2} parent=1 // pred_check_branch
      %25 = sbr.rel (0) target = $region13
    $region12: #{rot_encoder_forward.2} parent=1 // pred_region
      _
    $region13: #{rot_encoder_forward.2} parent=1 // pred_fallthru
      _
    // Predicated region
    $region14: #{rot_encoder_forward.2} parent=1 // pred_check
      _
    $region15: #{rot_encoder_forward.2} parent=1 // pred_check_branch
      %27 = sbr.rel (0) target = $region17
    $region16: #{rot_encoder_forward.2} parent=1 // pred_region
      _
    $region17: #{rot_encoder_forward.2} parent=1 // pred_fallthru
      _
    // Predicated region
    $region18: #{rot_encoder_forward.2} parent=1 // pred_check
      _
    $region19: #{rot_encoder_forward.2} parent=1 // pred_check_branch
      %29 = sbr.rel (0) target = $region21
    $region20: #{rot_encoder_forward.2} parent=1 // pred_region
      _
    $region21: #{rot_encoder_forward.2} parent=1 // pred_fallthru
      _
    // Predicated region
    $region22: #{rot_encoder_forward.2} parent=1 // pred_check
      _
    $region23: #{rot_encoder_forward.2} parent=1 // pred_check_branch
      %31 = sbr.rel (0) target = $region25
    $region24: #{rot_encoder_forward.2} parent=1 // pred_region
      %s33 = ssub.s32 8192, 8192
      %34 = vsyncadd [#allocation4], %s33
      %s35 = sshll.u32 [#allocation3], 4
      %s36 = int_to_ptr.vmem [resolvable:$true] %s35
      %41 = dma.hbm_to_vmem [thread:$0]  %s5, 8192, %s36, [#allocation4], 512, 512, 32
    $region25: #{rot_encoder_forward.2} parent=1 // pred_fallthru
      _
    // Predicated region
    $region26: #{rot_encoder_forward.2} parent=1 // pred_check
      _
    $region27: #{rot_encoder_forward.2} parent=1 // pred_check_branch
      %43 = sbr.rel (0) target = $region29
    $region28: #{rot_encoder_forward.2} parent=1 // pred_region
      _
    $region29: #{rot_encoder_forward.2} parent=1 // pred_fallthru
      _
    // Predicated region
    $region30: #{rot_encoder_forward.2} parent=1 // pred_check
      _
    $region31: #{rot_encoder_forward.2} parent=1 // pred_check_branch
      %45 = sbr.rel (0) target = $region33
    $region32: #{rot_encoder_forward.2} parent=1 // pred_region
      %s47 = ssub.s32 32768, 32768
      %48 = vsyncadd [#allocation6], %s47
      %s49 = sshll.u32 [#allocation5], 4
      %s50 = int_to_ptr.vmem [resolvable:$true] %s49
      %55 = dma.hbm_to_vmem [thread:$0]  %s7, 32768, %s50, [#allocation6], 256, 256, 16
    $region33: #{rot_encoder_forward.2} parent=1 // pred_fallthru
      _
    // Predicated region
    $region34: #{rot_encoder_forward.2} parent=1 // pred_check
      _
    $region35: #{rot_encoder_forward.2} parent=1 // pred_check_branch
      %57 = sbr.rel (0) target = $region37
    $region36: #{rot_encoder_forward.2} parent=1 // pred_region
      _
    $region37: #{rot_encoder_forward.2} parent=1 // pred_fallthru
      _
    // Predicated region
    $region38: #{rot_encoder_forward.2} parent=1 // pred_check
      _
    $region39: #{rot_encoder_forward.2} parent=1 // pred_check_branch
      %59 = sbr.rel (0) target = $region41
    $region40: #{rot_encoder_forward.2} parent=1 // pred_region
      %s61 = ssub.s32 8192, 8192
      %62 = vsyncadd [#allocation6], %s61
      %s63 = sshll.u32 [#allocation7], 4
      %s64 = int_to_ptr.vmem [resolvable:$true] %s63
      %69 = dma.hbm_to_vmem [thread:$0]  %s9, 8192, %s64, [#allocation6], 128, 128, 8
    $region41: #{rot_encoder_forward.2} parent=1 // pred_fallthru
      _
    // Predicated region
    $region42: #{rot_encoder_forward.2} parent=1 // pred_check
      _
    $region43: #{rot_encoder_forward.2} parent=1 // pred_check_branch
      %71 = sbr.rel (0) target = $region45
    $region44: #{rot_encoder_forward.2} parent=1 // pred_region
      _
    $region45: #{rot_encoder_forward.2} parent=1 // pred_fallthru
      _
    // Predicated region
    $region46: #{rot_encoder_forward.2} parent=1 // pred_check
      _
    $region47: #{rot_encoder_forward.2} parent=1 // pred_check_branch
      %73 = sbr.rel (0) target = $region49
    $region48: #{rot_encoder_forward.2} parent=1 // pred_region
      _
    $region49: #{rot_encoder_forward.2} parent=1 // pred_fallthru
      _
    // Predicated region
    $region50: #{rot_encoder_forward.2} parent=1 // pred_check
      _
    $region51: #{rot_encoder_forward.2} parent=1 // pred_check_branch
      %75 = sbr.rel (0) target = $region53
    $region52: #{rot_encoder_forward.2} parent=1 // pred_region
      _
    $region53: #{rot_encoder_forward.2} parent=1 // pred_fallthru
      _
    // Predicated region
    $region54: #{rot_encoder_forward.2} parent=1 // pred_check
      _
    $region55: #{rot_encoder_forward.2} parent=1 // pred_check_branch
      %77 = sbr.rel (0) target = $region57
    $region56: #{rot_encoder_forward.2} parent=1 // pred_region
      %78 = dma.done [#allocation4], 8192
    $region57: #{rot_encoder_forward.2} parent=1 // pred_fallthru
      _
    // Predicated region
    $region58: #{rot_encoder_forward.2} parent=1 // pred_check
      _
    $region59: #{rot_encoder_forward.2} parent=1 // pred_check_branch
      %80 = sbr.rel (0) target = $region61
    $region60: #{rot_encoder_forward.2} parent=1 // pred_region
      %81 = dma.done [#allocation6], 32768
    $region61: #{rot_encoder_forward.2} parent=1 // pred_fallthru
      _
    // Predicated region
    $region62: #{rot_encoder_forward.2} parent=1 // pred_check
      _
    $region63: #{rot_encoder_forward.2} parent=1 // pred_check_branch
      %83 = sbr.rel (0) target = $region65
    $region64: #{rot_encoder_forward.2} parent=1 // pred_region
      %84 = dma.done [#allocation6], 8192
    $region65: #{rot_encoder_forward.2} parent=1 // pred_fallthru
      _
    %p86 = scmp.eq.s32.totalorder 0, 0
    // Predicated region
    $region66: #{rot_encoder_forward.2} parent=1 // pred_check
      %p87 = pneg %p86
    $region67: #{rot_encoder_forward.2} parent=1 // pred_check_branch
      %89 = sbr.rel (%p87) target = $region69
    $region68: #{rot_encoder_forward.2} parent=1 // pred_region
      %90 = vst [vmem:[#allocation2] sm:$0xff] -inf
      %91 = vst [vmem:[#allocation2 + $0x8] sm:$0xff] -inf
    $region69: #{rot_encoder_forward.2} parent=1 // pred_fallthru
      _
    %v92 = vld [vmem:[%s0] sm:$0x7]
    %v93 = vld [vmem:[%s0 + $0x4] sm:$0x7]
    %94 = vxpose.xlu0.b32.start [1/16] %v92, 128
    %95 = vxpose.xlu0.b32.cont [2/16] 0.0, 128
    %96 = vxpose.xlu0.b32.cont [3/16] 0.0, 128
    %97 = vxpose.xlu0.b32.cont [4/16] 0.0, 128
    %98 = vxpose.xlu0.b32.cont [5/16] 0.0, 128
    %99 = vxpose.xlu0.b32.cont [6/16] 0.0, 128
    %100 = vxpose.xlu0.b32.cont [7/16] 0.0, 128
    %101 = vxpose.xlu0.b32.cont [8/16] 0.0, 128
    %102 = vxpose.xlu0.b32.cont [9/16] 0.0, 128
    %103 = vxpose.xlu0.b32.cont [10/16] 0.0, 128
    %104 = vxpose.xlu0.b32.cont [11/16] 0.0, 128
    %105 = vxpose.xlu0.b32.cont [12/16] 0.0, 128
    %106 = vxpose.xlu0.b32.cont [13/16] 0.0, 128
    %107 = vxpose.xlu0.b32.cont [14/16] 0.0, 128
    %108 = vxpose.xlu0.b32.cont [15/16] 0.0, 128
    %109 = vxpose.xlu0.b32.end [16/16] 0.0, 128
    %v110 = vpop.trf.xlu0
    %v111 = vpop.trf.xlu0
    %v112 = vpop.trf.xlu0
    %v113 = vpop.trf.xlu0
    %v114 = vpop.trf.xlu0
    %v115 = vpop.trf.xlu0
    %v116 = vpop.trf.xlu0
    %v117 = vpop.trf.xlu0
    %v118 = vpop.trf.xlu0
    %v119 = vpop.trf.xlu0
    %v120 = vpop.trf.xlu0
    %v121 = vpop.trf.xlu0
    %v122 = vpop.trf.xlu0
    %v123 = vpop.trf.xlu0
    %v124 = vpop.trf.xlu0
    %v125 = vpop.trf.xlu0
    %126 = vxpose.xlu0.b32.start [1/16] %v93, 128
    %127 = vxpose.xlu0.b32.cont [2/16] 0.0, 128
    %128 = vxpose.xlu0.b32.cont [3/16] 0.0, 128
    %129 = vxpose.xlu0.b32.cont [4/16] 0.0, 128
    %130 = vxpose.xlu0.b32.cont [5/16] 0.0, 128
    %131 = vxpose.xlu0.b32.cont [6/16] 0.0, 128
    %132 = vxpose.xlu0.b32.cont [7/16] 0.0, 128
    %133 = vxpose.xlu0.b32.cont [8/16] 0.0, 128
    %134 = vxpose.xlu0.b32.cont [9/16] 0.0, 128
    %135 = vxpose.xlu0.b32.cont [10/16] 0.0, 128
    %136 = vxpose.xlu0.b32.cont [11/16] 0.0, 128
    %137 = vxpose.xlu0.b32.cont [12/16] 0.0, 128
    %138 = vxpose.xlu0.b32.cont [13/16] 0.0, 128
    %139 = vxpose.xlu0.b32.cont [14/16] 0.0, 128
    %140 = vxpose.xlu0.b32.cont [15/16] 0.0, 128
    %141 = vxpose.xlu0.b32.end [16/16] 0.0, 128
    %v142 = vpop.trf.xlu0
    %v143 = vpop.trf.xlu0
    %v144 = vpop.trf.xlu0
    %v145 = vpop.trf.xlu0
    %v146 = vpop.trf.xlu0
    %v147 = vpop.trf.xlu0
    %v148 = vpop.trf.xlu0
    %v149 = vpop.trf.xlu0
    %v150 = vpop.trf.xlu0
    %v151 = vpop.trf.xlu0
    %v152 = vpop.trf.xlu0
    %v153 = vpop.trf.xlu0
    %v154 = vpop.trf.xlu0
    %v155 = vpop.trf.xlu0
    %v156 = vpop.trf.xlu0
    %v157 = vpop.trf.xlu0
    %v158 = vpack.c.bf16 %v111, %v110
    %v159 = vpack.c.bf16 %v113, %v112
    %v160 = vpack.c.bf16 %v115, %v114
    %v161 = vpack.c.bf16 %v117, %v116
    %v162 = vpack.c.bf16 %v119, %v118
    %v163 = vpack.c.bf16 %v121, %v120
    %v164 = vpack.c.bf16 %v123, %v122
    %v165 = vpack.c.bf16 %v125, %v124
    %v166 = vpack.c.bf16 %v143, %v142
    %v167 = vpack.c.bf16 %v145, %v144
    %v168 = vpack.c.bf16 %v147, %v146
    %v169 = vpack.c.bf16 %v149, %v148
    %v170 = vpack.c.bf16 %v151, %v150
    %v171 = vpack.c.bf16 %v153, %v152
    %v172 = vpack.c.bf16 %v155, %v154
    %v173 = vpack.c.bf16 %v157, %v156
    %v174 = vld [vmem:[%s1] sm:$0x3]
    %v175 = vld [vmem:[%s2] sm:$0x1]
    %v177 = vlaneseq
    %v178 = vshrl.u32 %v177, 7
    %v179 = vsub.s32 0, %v178
    %v180 = vrot.slane %v175, %v179
    %vm182 = vcmask 23552
    %v184 = vsel %vm182, %v158, 0
    %v187 = vsel %vm182, %v159, 0
    %v190 = vsel %vm182, %v160, 0
    %v193 = vsel %vm182, %v161, 0
    %v196 = vsel %vm182, %v162, 0
    %v199 = vsel %vm182, %v163, 0
    %v202 = vsel %vm182, %v164, 0
    %v205 = vsel %vm182, %v165, 0
    %v208 = vsel %vm182, %v166, 0
    %v211 = vsel %vm182, %v167, 0
    %v214 = vsel %vm182, %v168, 0
    %v217 = vsel %vm182, %v169, 0
    %v220 = vsel %vm182, %v170, 0
    %v223 = vsel %vm182, %v171, 0
    %v226 = vsel %vm182, %v172, 0
    %v229 = vsel %vm182, %v173, 0
    %vm231 = vcmask 1040384
    %vm232 = vcmask 1041408
    %v233 = vsel %vm231, 4294967295, 65535
    %v234 = vsel %vm232, %v233, 0
    %v236 = vand.u32 %v174, %v234
    %238 = vmatprep.subr.bf16.mxu0 0
    %239 = vmatpush1.bf16.msra.mxu0 %v236
    %240 = vmatprep.subr.bf16.mxu0 0
    %241 = vmatpush1.bf16.msra.mxu0 0
    %242 = vmatprep.subr.bf16.mxu0 0
    %243 = vmatpush1.bf16.msra.mxu0 0
    %244 = vmatprep.subr.bf16.mxu0 0
    %245 = vmatpush1.bf16.msra.mxu0 0
    %246 = vmatprep.subr.bf16.mxu0 0
    %247 = vmatpush1.bf16.msra.mxu0 0
    %248 = vmatprep.subr.bf16.mxu0 0
    %249 = vmatpush1.bf16.msra.mxu0 0
    %250 = vmatprep.subr.bf16.mxu0 0
    %251 = vmatpush1.bf16.msra.mxu0 0
    %252 = vmatprep.subr.bf16.mxu0 0
    %253 = vmatpush1.bf16.msra.mxu0 0
    %254 = vmatprep.subr.bf16.mxu0 0
    %255 = vmatpush1.bf16.msra.mxu0 0
    %256 = vmatprep.subr.bf16.mxu0 0
    %257 = vmatpush1.bf16.msra.mxu0 0
    %258 = vmatprep.subr.bf16.mxu0 0
    %259 = vmatpush1.bf16.msra.mxu0 0
    %260 = vmatprep.subr.bf16.mxu0 0
    %261 = vmatpush1.bf16.msra.mxu0 0
    %262 = vmatprep.subr.bf16.mxu0 0
    %263 = vmatpush1.bf16.msra.mxu0 0
    %264 = vmatprep.subr.bf16.mxu0 0
    %265 = vmatpush1.bf16.msra.mxu0 0
    %266 = vmatprep.subr.bf16.mxu0 0
    %267 = vmatpush1.bf16.msra.mxu0 0
    %268 = vmatprep.subr.bf16.mxu0 0
    %269 = vmatpush1.bf16.msra.mxu0 0
    %270 = vmatprep.mubr.bf16.mxu0 0
    %271 = vmatmul.mubr.bf16.gmra.mrb[0].mxu0 %v184
    %v272 = vpop.f32.mrb[0].mxu0
    %v273 = vadd.f32 %v180, %v272
    %v274 = vpop.f32.mrb[0].mxu0
    %v275 = vpop.f32.mrb[0].mxu0
    %v276 = vadd.f32 %v180, %v275
    %v277 = vpop.f32.mrb[0].mxu0
    %278 = vmatprep.mubr.bf16.mxu0 0
    %279 = vmatmul.mubr.bf16.gmra.mrb[0].mxu0 %v187
    %v280 = vpop.f32.mrb[0].mxu0
    %v281 = vadd.f32 %v180, %v280
    %v282 = vpop.f32.mrb[0].mxu0
    %v283 = vpop.f32.mrb[0].mxu0
    %v284 = vadd.f32 %v180, %v283
    %v285 = vpop.f32.mrb[0].mxu0
    %286 = vmatprep.mubr.bf16.mxu0 0
    %287 = vmatmul.mubr.bf16.gmra.mrb[0].mxu0 %v190
    %v288 = vpop.f32.mrb[0].mxu0
    %v289 = vadd.f32 %v180, %v288
    %v290 = vpop.f32.mrb[0].mxu0
    %v291 = vpop.f32.mrb[0].mxu0
    %v292 = vadd.f32 %v180, %v291
    %v293 = vpop.f32.mrb[0].mxu0
    %294 = vmatprep.mubr.bf16.mxu0 0
    %295 = vmatmul.mubr.bf16.gmra.mrb[0].mxu0 %v193
    %v296 = vpop.f32.mrb[0].mxu0
    %v297 = vadd.f32 %v180, %v296
    %v298 = vpop.f32.mrb[0].mxu0
    %v299 = vpop.f32.mrb[0].mxu0
    %v300 = vadd.f32 %v180, %v299
    %v301 = vpop.f32.mrb[0].mxu0
    %302 = vmatprep.mubr.bf16.mxu0 0
    %303 = vmatmul.mubr.bf16.gmra.mrb[0].mxu0 %v196
    %v304 = vpop.f32.mrb[0].mxu0
    %v305 = vadd.f32 %v180, %v304
    %v306 = vpop.f32.mrb[0].mxu0
    %v307 = vpop.f32.mrb[0].mxu0
    %v308 = vadd.f32 %v180, %v307
    %v309 = vpop.f32.mrb[0].mxu0
    %310 = vmatprep.mubr.bf16.mxu0 0
    %311 = vmatmul.mubr.bf16.gmra.mrb[0].mxu0 %v199
    %v312 = vpop.f32.mrb[0].mxu0
    %v313 = vadd.f32 %v180, %v312
    %v314 = vpop.f32.mrb[0].mxu0
    %v315 = vpop.f32.mrb[0].mxu0
    %v316 = vadd.f32 %v180, %v315
    %v317 = vpop.f32.mrb[0].mxu0
    %318 = vmatprep.mubr.bf16.mxu0 0
    %319 = vmatmul.mubr.bf16.gmra.mrb[0].mxu0 %v202
    %v320 = vpop.f32.mrb[0].mxu0
    %v321 = vadd.f32 %v180, %v320
    %v322 = vpop.f32.mrb[0].mxu0
    %v323 = vpop.f32.mrb[0].mxu0
    %v324 = vadd.f32 %v180, %v323
    %v325 = vpop.f32.mrb[0].mxu0
    %326 = vmatprep.mubr.bf16.mxu0 0
    %327 = vmatmul.mubr.bf16.gmra.mrb[0].mxu0 %v205
    %v328 = vpop.f32.mrb[0].mxu0
    %v329 = vadd.f32 %v180, %v328
    %v330 = vpop.f32.mrb[0].mxu0
    %v331 = vpop.f32.mrb[0].mxu0
    %v332 = vadd.f32 %v180, %v331
    %v333 = vpop.f32.mrb[0].mxu0
    %334 = vmatprep.mubr.bf16.mxu0 0
    %335 = vmatmul.mubr.bf16.gmra.mrb[0].mxu0 %v208
    %v336 = vpop.f32.mrb[0].mxu0
    %v337 = vadd.f32 %v180, %v336
    %v338 = vpop.f32.mrb[0].mxu0
    %v339 = vpop.f32.mrb[0].mxu0
    %v340 = vadd.f32 %v180, %v339
    %v341 = vpop.f32.mrb[0].mxu0
    %342 = vmatprep.mubr.bf16.mxu0 0
    %343 = vmatmul.mubr.bf16.gmra.mrb[0].mxu0 %v211
    %v344 = vpop.f32.mrb[0].mxu0
    %v345 = vadd.f32 %v180, %v344
    %v346 = vpop.f32.mrb[0].mxu0
    %v347 = vpop.f32.mrb[0].mxu0
    %v348 = vadd.f32 %v180, %v347
    %v349 = vpop.f32.mrb[0].mxu0
    %350 = vmatprep.mubr.bf16.mxu0 0
    %351 = vmatmul.mubr.bf16.gmra.mrb[0].mxu0 %v214
    %v352 = vpop.f32.mrb[0].mxu0
    %v353 = vadd.f32 %v180, %v352
    %v354 = vpop.f32.mrb[0].mxu0
    %v355 = vpop.f32.mrb[0].mxu0
    %v356 = vadd.f32 %v180, %v355
    %v357 = vpop.f32.mrb[0].mxu0
    %358 = vmatprep.mubr.bf16.mxu0 0
    %359 = vmatmul.mubr.bf16.gmra.mrb[0].mxu0 %v217
    %v360 = vpop.f32.mrb[0].mxu0
    %v361 = vadd.f32 %v180, %v360
    %v362 = vpop.f32.mrb[0].mxu0
    %v363 = vpop.f32.mrb[0].mxu0
    %v364 = vadd.f32 %v180, %v363
    %v365 = vpop.f32.mrb[0].mxu0
    %366 = vmatprep.mubr.bf16.mxu0 0
    %367 = vmatmul.mubr.bf16.gmra.mrb[0].mxu0 %v220
    %v368 = vpop.f32.mrb[0].mxu0
    %v369 = vadd.f32 %v180, %v368
    %v370 = vpop.f32.mrb[0].mxu0
    %v371 = vpop.f32.mrb[0].mxu0
    %v372 = vadd.f32 %v180, %v371
    %v373 = vpop.f32.mrb[0].mxu0
    %374 = vmatprep.mubr.bf16.mxu0 0
    %375 = vmatmul.mubr.bf16.gmra.mrb[0].mxu0 %v223
    %v376 = vpop.f32.mrb[0].mxu0
    %v377 = vadd.f32 %v180, %v376
    %v378 = vpop.f32.mrb[0].mxu0
    %v379 = vpop.f32.mrb[0].mxu0
    %v380 = vadd.f32 %v180, %v379
    %v381 = vpop.f32.mrb[0].mxu0
    %382 = vmatprep.mubr.bf16.mxu0 0
    %383 = vmatmul.mubr.bf16.gmra.mrb[0].mxu0 %v226
    %v384 = vpop.f32.mrb[0].mxu0
    %v385 = vadd.f32 %v180, %v384
    %v386 = vpop.f32.mrb[0].mxu0
    %v387 = vpop.f32.mrb[0].mxu0
    %v388 = vadd.f32 %v180, %v387
    %v389 = vpop.f32.mrb[0].mxu0
    %390 = vmatprep.mubr.bf16.mxu0 0
    %391 = vmatmul.mubr.bf16.gmra.mrb[0].mxu0 %v229
    %v392 = vpop.f32.mrb[0].mxu0
    %v393 = vadd.f32 %v180, %v392
    %v394 = vpop.f32.mrb[0].mxu0
    %v395 = vpop.f32.mrb[0].mxu0
    %v396 = vadd.f32 %v180, %v395
    %v397 = vpop.f32.mrb[0].mxu0
    %398 = vdwg.mxu0
    %v399 = vmax.f32 %v273, 0.0
    %v400 = vmax.f32 %v276, 0.0
    %v401 = vmax.f32 %v281, 0.0
    %v402 = vmax.f32 %v284, 0.0
    %v403 = vmax.f32 %v289, 0.0
    %v404 = vmax.f32 %v292, 0.0
    %v405 = vmax.f32 %v297, 0.0
    %v406 = vmax.f32 %v300, 0.0
    %v407 = vmax.f32 %v305, 0.0
    %v408 = vmax.f32 %v308, 0.0
    %v409 = vmax.f32 %v313, 0.0
    %v410 = vmax.f32 %v316, 0.0
    %v411 = vmax.f32 %v321, 0.0
    %v412 = vmax.f32 %v324, 0.0
    %v413 = vmax.f32 %v329, 0.0
    %v414 = vmax.f32 %v332, 0.0
    %v415 = vmax.f32 %v337, 0.0
    %v416 = vmax.f32 %v340, 0.0
    %v417 = vmax.f32 %v345, 0.0
    %v418 = vmax.f32 %v348, 0.0
    %v419 = vmax.f32 %v353, 0.0
    %v420 = vmax.f32 %v356, 0.0
    %v421 = vmax.f32 %v361, 0.0
    %v422 = vmax.f32 %v364, 0.0
    %v423 = vmax.f32 %v369, 0.0
    %v424 = vmax.f32 %v372, 0.0
    %v425 = vmax.f32 %v377, 0.0
    %v426 = vmax.f32 %v380, 0.0
    %v427 = vmax.f32 %v385, 0.0
    %v428 = vmax.f32 %v388, 0.0
    %v429 = vmax.f32 %v393, 0.0
    %v430 = vmax.f32 %v396, 0.0
    %v431 = vpack.c.bf16 %v400, %v399
    %v432 = vpack.c.bf16 %v402, %v401
    %v433 = vpack.c.bf16 %v404, %v403
    %v434 = vpack.c.bf16 %v406, %v405
    %v435 = vpack.c.bf16 %v408, %v407
    %v436 = vpack.c.bf16 %v410, %v409
    %v437 = vpack.c.bf16 %v412, %v411
    %v438 = vpack.c.bf16 %v414, %v413
    %v439 = vpack.c.bf16 %v416, %v415
    %v440 = vpack.c.bf16 %v418, %v417
    %v441 = vpack.c.bf16 %v420, %v419
    %v442 = vpack.c.bf16 %v422, %v421
    %v443 = vpack.c.bf16 %v424, %v423
    %v444 = vpack.c.bf16 %v426, %v425
    %v445 = vpack.c.bf16 %v428, %v427
    %v446 = vpack.c.bf16 %v430, %v429
    %v447 = vld [vmem:[%s3] sm:$0xf]
    %v448 = vld [vmem:[%s3 + $0x4] sm:$0xf]
    %v449 = vld [vmem:[%s3 + $0x8] sm:$0xf]
    %v450 = vld [vmem:[%s3 + $0xc] sm:$0xf]
    %v451 = vld [vmem:[%s3 + $0x10] sm:$0xf]
    %v452 = vld [vmem:[%s3 + $0x14] sm:$0xf]
    %v453 = vld [vmem:[%s3 + $0x18] sm:$0xf]
    %v454 = vld [vmem:[%s3 + $0x1c] sm:$0xf]
    %v455 = vld [vmem:[%s4] sm:$0x1]
    %v457 = vlaneseq
    %v458 = vshrl.u32 %v457, 7
    %v459 = vsub.s32 0, %v458
    %v460 = vrot.slane %v455, %v459
    %v470 = vunpack.c.l.b16 %v447
    %v471 = vunpack.c.l.b16 %v448
    %v472 = vunpack.c.l.b16 %v449
    %v473 = vunpack.c.l.b16 %v450
    %v474 = vunpack.c.l.b16 %v451
    %v475 = vunpack.c.l.b16 %v452
    %v476 = vunpack.c.l.b16 %v453
    %v477 = vunpack.c.l.b16 %v454
    %v478 = vpack.c.b16 %v471, %v470
    %v479 = vpack.c.b16 %v473, %v472
    %v480 = vpack.c.b16 %v475, %v474
    %v481 = vpack.c.b16 %v477, %v476
    %vm486 = vcmask 523264
    %v488 = vsel %vm486, %v431, 0
    %v491 = vsel %vm486, %v432, 0
    %v494 = vsel %vm486, %v433, 0
    %v497 = vsel %vm486, %v434, 0
    %v500 = vsel %vm486, %v435, 0
    %v503 = vsel %vm486, %v436, 0
    %v506 = vsel %vm486, %v437, 0
    %v509 = vsel %vm486, %v438, 0
    %v512 = vsel %vm486, %v439, 0
    %v515 = vsel %vm486, %v440, 0
    %v518 = vsel %vm486, %v441, 0
    %v521 = vsel %vm486, %v442, 0
    %v524 = vsel %vm486, %v443, 0
    %v527 = vsel %vm486, %v444, 0
    %v530 = vsel %vm486, %v445, 0
    %v533 = vsel %vm486, %v446, 0
    %535 = vmatprep.subr.bf16.mxu0 0
    %536 = vmatpush1.bf16.msra.mxu0 %v478
    %537 = vmatprep.subr.bf16.mxu0 0
    %538 = vmatpush1.bf16.msra.mxu0 %v479
    %539 = vmatprep.subr.bf16.mxu0 0
    %540 = vmatpush1.bf16.msra.mxu0 %v480
    %541 = vmatprep.subr.bf16.mxu0 0
    %542 = vmatpush1.bf16.msra.mxu0 %v481
    %543 = vmatprep.subr.bf16.mxu0 0
    %544 = vmatpush1.bf16.msra.mxu0 0
    %545 = vmatprep.subr.bf16.mxu0 0
    %546 = vmatpush1.bf16.msra.mxu0 0
    %547 = vmatprep.subr.bf16.mxu0 0
    %548 = vmatpush1.bf16.msra.mxu0 0
    %549 = vmatprep.subr.bf16.mxu0 0
    %550 = vmatpush1.bf16.msra.mxu0 0
    %551 = vmatprep.subr.bf16.mxu0 0
    %552 = vmatpush1.bf16.msra.mxu0 0
    %553 = vmatprep.subr.bf16.mxu0 0
    %554 = vmatpush1.bf16.msra.mxu0 0
    %555 = vmatprep.subr.bf16.mxu0 0
    %556 = vmatpush1.bf16.msra.mxu0 0
    %557 = vmatprep.subr.bf16.mxu0 0
    %558 = vmatpush1.bf16.msra.mxu0 0
    %559 = vmatprep.subr.bf16.mxu0 0
    %560 = vmatpush1.bf16.msra.mxu0 0
    %561 = vmatprep.subr.bf16.mxu0 0
    %562 = vmatpush1.bf16.msra.mxu0 0
    %563 = vmatprep.subr.bf16.mxu0 0
    %564 = vmatpush1.bf16.msra.mxu0 0
    %565 = vmatprep.subr.bf16.mxu0 0
    %566 = vmatpush1.bf16.msra.mxu0 0
    %567 = vmatprep.mubr.bf16.mxu0 0
    %568 = vmatmul.mubr.bf16.gmra.mrb[0].mxu0 %v488
    %v569 = vpop.f32.mrb[0].mxu0
    %v570 = vadd.f32 %v460, %v569
    %v571 = vpop.f32.mrb[0].mxu0
    %v572 = vpop.f32.mrb[0].mxu0
    %v573 = vadd.f32 %v460, %v572
    %v574 = vpop.f32.mrb[0].mxu0
    %575 = vmatprep.mubr.bf16.mxu0 0
    %576 = vmatmul.mubr.bf16.gmra.mrb[0].mxu0 %v491
    %v577 = vpop.f32.mrb[0].mxu0
    %v578 = vadd.f32 %v460, %v577
    %v579 = vpop.f32.mrb[0].mxu0
    %v580 = vpop.f32.mrb[0].mxu0
    %v581 = vadd.f32 %v460, %v580
    %v582 = vpop.f32.mrb[0].mxu0
    %583 = vmatprep.mubr.bf16.mxu0 0
    %584 = vmatmul.mubr.bf16.gmra.mrb[0].mxu0 %v494
    %v585 = vpop.f32.mrb[0].mxu0
    %v586 = vadd.f32 %v460, %v585
    %v587 = vpop.f32.mrb[0].mxu0
    %v588 = vpop.f32.mrb[0].mxu0
    %v589 = vadd.f32 %v460, %v588
    %v590 = vpop.f32.mrb[0].mxu0
    %591 = vmatprep.mubr.bf16.mxu0 0
    %592 = vmatmul.mubr.bf16.gmra.mrb[0].mxu0 %v497
    %v593 = vpop.f32.mrb[0].mxu0
    %v594 = vadd.f32 %v460, %v593
    %v595 = vpop.f32.mrb[0].mxu0
    %v596 = vpop.f32.mrb[0].mxu0
    %v597 = vadd.f32 %v460, %v596
    %v598 = vpop.f32.mrb[0].mxu0
    %599 = vmatprep.mubr.bf16.mxu0 0
    %600 = vmatmul.mubr.bf16.gmra.mrb[0].mxu0 %v500
    %v601 = vpop.f32.mrb[0].mxu0
    %v602 = vadd.f32 %v460, %v601
    %v603 = vpop.f32.mrb[0].mxu0
    %v604 = vpop.f32.mrb[0].mxu0
    %v605 = vadd.f32 %v460, %v604
    %v606 = vpop.f32.mrb[0].mxu0
    %607 = vmatprep.mubr.bf16.mxu0 0
    %608 = vmatmul.mubr.bf16.gmra.mrb[0].mxu0 %v503
    %v609 = vpop.f32.mrb[0].mxu0
    %v610 = vadd.f32 %v460, %v609
    %v611 = vpop.f32.mrb[0].mxu0
    %v612 = vpop.f32.mrb[0].mxu0
    %v613 = vadd.f32 %v460, %v612
    %v614 = vpop.f32.mrb[0].mxu0
    %615 = vmatprep.mubr.bf16.mxu0 0
    %616 = vmatmul.mubr.bf16.gmra.mrb[0].mxu0 %v506
    %v617 = vpop.f32.mrb[0].mxu0
    %v618 = vadd.f32 %v460, %v617
    %v619 = vpop.f32.mrb[0].mxu0
    %v620 = vpop.f32.mrb[0].mxu0
    %v621 = vadd.f32 %v460, %v620
    %v622 = vpop.f32.mrb[0].mxu0
    %623 = vmatprep.mubr.bf16.mxu0 0
    %624 = vmatmul.mubr.bf16.gmra.mrb[0].mxu0 %v509
    %v625 = vpop.f32.mrb[0].mxu0
    %v626 = vadd.f32 %v460, %v625
    %v627 = vpop.f32.mrb[0].mxu0
    %v628 = vpop.f32.mrb[0].mxu0
    %v629 = vadd.f32 %v460, %v628
    %v630 = vpop.f32.mrb[0].mxu0
    %631 = vmatprep.mubr.bf16.mxu0 0
    %632 = vmatmul.mubr.bf16.gmra.mrb[0].mxu0 %v512
    %v633 = vpop.f32.mrb[0].mxu0
    %v634 = vadd.f32 %v460, %v633
    %v635 = vpop.f32.mrb[0].mxu0
    %v636 = vpop.f32.mrb[0].mxu0
    %v637 = vadd.f32 %v460, %v636
    %v638 = vpop.f32.mrb[0].mxu0
    %639 = vmatprep.mubr.bf16.mxu0 0
    %640 = vmatmul.mubr.bf16.gmra.mrb[0].mxu0 %v515
    %v641 = vpop.f32.mrb[0].mxu0
    %v642 = vadd.f32 %v460, %v641
    %v643 = vpop.f32.mrb[0].mxu0
    %v644 = vpop.f32.mrb[0].mxu0
    %v645 = vadd.f32 %v460, %v644
    %v646 = vpop.f32.mrb[0].mxu0
    %647 = vmatprep.mubr.bf16.mxu0 0
    %648 = vmatmul.mubr.bf16.gmra.mrb[0].mxu0 %v518
    %v649 = vpop.f32.mrb[0].mxu0
    %v650 = vadd.f32 %v460, %v649
    %v651 = vpop.f32.mrb[0].mxu0
    %v652 = vpop.f32.mrb[0].mxu0
    %v653 = vadd.f32 %v460, %v652
    %v654 = vpop.f32.mrb[0].mxu0
    %655 = vmatprep.mubr.bf16.mxu0 0
    %656 = vmatmul.mubr.bf16.gmra.mrb[0].mxu0 %v521
    %v657 = vpop.f32.mrb[0].mxu0
    %v658 = vadd.f32 %v460, %v657
    %v659 = vpop.f32.mrb[0].mxu0
    %v660 = vpop.f32.mrb[0].mxu0
    %v661 = vadd.f32 %v460, %v660
    %v662 = vpop.f32.mrb[0].mxu0
    %663 = vmatprep.mubr.bf16.mxu0 0
    %664 = vmatmul.mubr.bf16.gmra.mrb[0].mxu0 %v524
    %v665 = vpop.f32.mrb[0].mxu0
    %v666 = vadd.f32 %v460, %v665
    %v667 = vpop.f32.mrb[0].mxu0
    %v668 = vpop.f32.mrb[0].mxu0
    %v669 = vadd.f32 %v460, %v668
    %v670 = vpop.f32.mrb[0].mxu0
    %671 = vmatprep.mubr.bf16.mxu0 0
    %672 = vmatmul.mubr.bf16.gmra.mrb[0].mxu0 %v527
    %v673 = vpop.f32.mrb[0].mxu0
    %v674 = vadd.f32 %v460, %v673
    %v675 = vpop.f32.mrb[0].mxu0
    %v676 = vpop.f32.mrb[0].mxu0
    %v677 = vadd.f32 %v460, %v676
    %v678 = vpop.f32.mrb[0].mxu0
    %679 = vmatprep.mubr.bf16.mxu0 0
    %680 = vmatmul.mubr.bf16.gmra.mrb[0].mxu0 %v530
    %v681 = vpop.f32.mrb[0].mxu0
    %v682 = vadd.f32 %v460, %v681
    %v683 = vpop.f32.mrb[0].mxu0
    %v684 = vpop.f32.mrb[0].mxu0
    %v685 = vadd.f32 %v460, %v684
    %v686 = vpop.f32.mrb[0].mxu0
    %687 = vmatprep.mubr.bf16.mxu0 0
    %688 = vmatmul.mubr.bf16.gmra.mrb[0].mxu0 %v533
    %v689 = vpop.f32.mrb[0].mxu0
    %v690 = vadd.f32 %v460, %v689
    %v691 = vpop.f32.mrb[0].mxu0
    %v692 = vpop.f32.mrb[0].mxu0
    %v693 = vadd.f32 %v460, %v692
    %v694 = vpop.f32.mrb[0].mxu0
    %695 = vdwg.mxu0
    %v696 = vmax.f32 %v570, 0.0
    %v697 = vmax.f32 %v573, 0.0
    %v698 = vmax.f32 %v578, 0.0
    %v699 = vmax.f32 %v581, 0.0
    %v700 = vmax.f32 %v586, 0.0
    %v701 = vmax.f32 %v589, 0.0
    %v702 = vmax.f32 %v594, 0.0
    %v703 = vmax.f32 %v597, 0.0
    %v704 = vmax.f32 %v602, 0.0
    %v705 = vmax.f32 %v605, 0.0
    %v706 = vmax.f32 %v610, 0.0
    %v707 = vmax.f32 %v613, 0.0
    %v708 = vmax.f32 %v618, 0.0
    %v709 = vmax.f32 %v621, 0.0
    %v710 = vmax.f32 %v626, 0.0
    %v711 = vmax.f32 %v629, 0.0
    %v712 = vmax.f32 %v634, 0.0
    %v713 = vmax.f32 %v637, 0.0
    %v714 = vmax.f32 %v642, 0.0
    %v715 = vmax.f32 %v645, 0.0
    %v716 = vmax.f32 %v650, 0.0
    %v717 = vmax.f32 %v653, 0.0
    %v718 = vmax.f32 %v658, 0.0
    %v719 = vmax.f32 %v661, 0.0
    %v720 = vmax.f32 %v666, 0.0
    %v721 = vmax.f32 %v669, 0.0
    %v722 = vmax.f32 %v674, 0.0
    %v723 = vmax.f32 %v677, 0.0
    %v724 = vmax.f32 %v682, 0.0
    %v725 = vmax.f32 %v685, 0.0
    %v726 = vmax.f32 %v690, 0.0
    %v727 = vmax.f32 %v693, 0.0
    %v728 = vpack.c.bf16 %v697, %v696
    %v729 = vpack.c.bf16 %v699, %v698
    %v730 = vpack.c.bf16 %v701, %v700
    %v731 = vpack.c.bf16 %v703, %v702
    %v732 = vpack.c.bf16 %v705, %v704
    %v733 = vpack.c.bf16 %v707, %v706
    %v734 = vpack.c.bf16 %v709, %v708
    %v735 = vpack.c.bf16 %v711, %v710
    %v736 = vpack.c.bf16 %v713, %v712
    %v737 = vpack.c.bf16 %v715, %v714
    %v738 = vpack.c.bf16 %v717, %v716
    %v739 = vpack.c.bf16 %v719, %v718
    %v740 = vpack.c.bf16 %v721, %v720
    %v741 = vpack.c.bf16 %v723, %v722
    %v742 = vpack.c.bf16 %v725, %v724
    %v743 = vpack.c.bf16 %v727, %v726
    %v744 = vld [vmem:[#allocation3] sm:$0xff]
    %v745 = vld [vmem:[#allocation3 + $0x8] sm:$0xff]
    %v746 = vld [vmem:[#allocation3 + $0x10] sm:$0xff]
    %v747 = vld [vmem:[#allocation3 + $0x18] sm:$0xff]
    %v748 = vld [vmem:[#allocation3 + $0x20] sm:$0xff]
    %v749 = vld [vmem:[#allocation3 + $0x28] sm:$0xff]
    %v750 = vld [vmem:[#allocation3 + $0x30] sm:$0xff]
    %v751 = vld [vmem:[#allocation3 + $0x38] sm:$0xff]
    %v752 = vld [vmem:[#allocation3 + $0x40] sm:$0xff]
    %v753 = vld [vmem:[#allocation3 + $0x48] sm:$0xff]
    %v754 = vld [vmem:[#allocation3 + $0x50] sm:$0xff]
    %v755 = vld [vmem:[#allocation3 + $0x58] sm:$0xff]
    %v756 = vld [vmem:[#allocation3 + $0x60] sm:$0xff]
    %v757 = vld [vmem:[#allocation3 + $0x68] sm:$0xff]
    %v758 = vld [vmem:[#allocation3 + $0x70] sm:$0xff]
    %v759 = vld [vmem:[#allocation3 + $0x78] sm:$0xff]
    %v760 = vld [vmem:[#allocation3 + $0x80] sm:$0xff]
    %v761 = vld [vmem:[#allocation3 + $0x88] sm:$0xff]
    %v762 = vld [vmem:[#allocation3 + $0x90] sm:$0xff]
    %v763 = vld [vmem:[#allocation3 + $0x98] sm:$0xff]
    %v764 = vld [vmem:[#allocation3 + $0xa0] sm:$0xff]
    %v765 = vld [vmem:[#allocation3 + $0xa8] sm:$0xff]
    %v766 = vld [vmem:[#allocation3 + $0xb0] sm:$0xff]
    %v767 = vld [vmem:[#allocation3 + $0xb8] sm:$0xff]
    %v768 = vld [vmem:[#allocation3 + $0xc0] sm:$0xff]
    %v769 = vld [vmem:[#allocation3 + $0xc8] sm:$0xff]
    %v770 = vld [vmem:[#allocation3 + $0xd0] sm:$0xff]
    %v771 = vld [vmem:[#allocation3 + $0xd8] sm:$0xff]
    %v772 = vld [vmem:[#allocation3 + $0xe0] sm:$0xff]
    %v773 = vld [vmem:[#allocation3 + $0xe8] sm:$0xff]
    %v774 = vld [vmem:[#allocation3 + $0xf0] sm:$0xff]
    %v775 = vld [vmem:[#allocation3 + $0xf8] sm:$0xff]
    %v776 = vld [vmem:[#allocation3 + $0x100] sm:$0xff]
    %v777 = vld [vmem:[#allocation3 + $0x108] sm:$0xff]
    %v778 = vld [vmem:[#allocation3 + $0x110] sm:$0xff]
    %v779 = vld [vmem:[#allocation3 + $0x118] sm:$0xff]
    %v780 = vld [vmem:[#allocation3 + $0x120] sm:$0xff]
    %v781 = vld [vmem:[#allocation3 + $0x128] sm:$0xff]
    %v782 = vld [vmem:[#allocation3 + $0x130] sm:$0xff]
    %v783 = vld [vmem:[#allocation3 + $0x138] sm:$0xff]
    %v784 = vld [vmem:[#allocation3 + $0x140] sm:$0xff]
    %v785 = vld [vmem:[#allocation3 + $0x148] sm:$0xff]
    %v786 = vld [vmem:[#allocation3 + $0x150] sm:$0xff]
    %v787 = vld [vmem:[#allocation3 + $0x158] sm:$0xff]
    %v788 = vld [vmem:[#allocation3 + $0x160] sm:$0xff]
    %v789 = vld [vmem:[#allocation3 + $0x168] sm:$0xff]
    %v790 = vld [vmem:[#allocation3 + $0x170] sm:$0xff]
    %v791 = vld [vmem:[#allocation3 + $0x178] sm:$0xff]
    %v792 = vld [vmem:[#allocation3 + $0x180] sm:$0xff]
    %v793 = vld [vmem:[#allocation3 + $0x188] sm:$0xff]
    %v794 = vld [vmem:[#allocation3 + $0x190] sm:$0xff]
    %v795 = vld [vmem:[#allocation3 + $0x198] sm:$0xff]
    %v796 = vld [vmem:[#allocation3 + $0x1a0] sm:$0xff]
    %v797 = vld [vmem:[#allocation3 + $0x1a8] sm:$0xff]
    %v798 = vld [vmem:[#allocation3 + $0x1b0] sm:$0xff]
    %v799 = vld [vmem:[#allocation3 + $0x1b8] sm:$0xff]
    %v800 = vld [vmem:[#allocation3 + $0x1c0] sm:$0xff]
    %v801 = vld [vmem:[#allocation3 + $0x1c8] sm:$0xff]
    %v802 = vld [vmem:[#allocation3 + $0x1d0] sm:$0xff]
    %v803 = vld [vmem:[#allocation3 + $0x1d8] sm:$0xff]
    %v804 = vld [vmem:[#allocation3 + $0x1e0] sm:$0xff]
    %v805 = vld [vmem:[#allocation3 + $0x1e8] sm:$0xff]
    %v806 = vld [vmem:[#allocation3 + $0x1f0] sm:$0xff]
    %v807 = vld [vmem:[#allocation3 + $0x1f8] sm:$0xff]
    %v872 = vunpack.c.l.b16 %v744
    %v873 = vunpack.c.h.b16 %v744
    %v874 = vunpack.c.l.b16 %v745
    %v875 = vunpack.c.h.b16 %v745
    %v876 = vunpack.c.l.b16 %v746
    %v877 = vunpack.c.h.b16 %v746
    %v878 = vunpack.c.l.b16 %v747
    %v879 = vunpack.c.h.b16 %v747
    %v880 = vunpack.c.l.b16 %v748
    %v881 = vunpack.c.h.b16 %v748
    %v882 = vunpack.c.l.b16 %v749
    %v883 = vunpack.c.h.b16 %v749
    %v884 = vunpack.c.l.b16 %v750
    %v885 = vunpack.c.h.b16 %v750
    %v886 = vunpack.c.l.b16 %v751
    %v887 = vunpack.c.h.b16 %v751
    %v888 = vunpack.c.l.b16 %v752
    %v889 = vunpack.c.h.b16 %v752
    %v890 = vunpack.c.l.b16 %v753
    %v891 = vunpack.c.h.b16 %v753
    %v892 = vunpack.c.l.b16 %v754
    %v893 = vunpack.c.h.b16 %v754
    %v894 = vunpack.c.l.b16 %v755
    %v895 = vunpack.c.h.b16 %v755
    %v896 = vunpack.c.l.b16 %v756
    %v897 = vunpack.c.h.b16 %v756
    %v898 = vunpack.c.l.b16 %v757
    %v899 = vunpack.c.h.b16 %v757
    %v900 = vunpack.c.l.b16 %v758
    %v901 = vunpack.c.h.b16 %v758
    %v902 = vunpack.c.l.b16 %v759
    %v903 = vunpack.c.h.b16 %v759
    %v904 = vunpack.c.l.b16 %v760
    %v905 = vunpack.c.h.b16 %v760
    %v906 = vunpack.c.l.b16 %v761
    %v907 = vunpack.c.h.b16 %v761
    %v908 = vunpack.c.l.b16 %v762
    %v909 = vunpack.c.h.b16 %v762
    %v910 = vunpack.c.l.b16 %v763
    %v911 = vunpack.c.h.b16 %v763
    %v912 = vunpack.c.l.b16 %v764
    %v913 = vunpack.c.h.b16 %v764
    %v914 = vunpack.c.l.b16 %v765
    %v915 = vunpack.c.h.b16 %v765
    %v916 = vunpack.c.l.b16 %v766
    %v917 = vunpack.c.h.b16 %v766
    %v918 = vunpack.c.l.b16 %v767
    %v919 = vunpack.c.h.b16 %v767
    %v920 = vunpack.c.l.b16 %v768
    %v921 = vunpack.c.h.b16 %v768
    %v922 = vunpack.c.l.b16 %v769
    %v923 = vunpack.c.h.b16 %v769
    %v924 = vunpack.c.l.b16 %v770
    %v925 = vunpack.c.h.b16 %v770
    %v926 = vunpack.c.l.b16 %v771
    %v927 = vunpack.c.h.b16 %v771
    %v928 = vunpack.c.l.b16 %v772
    %v929 = vunpack.c.h.b16 %v772
    %v930 = vunpack.c.l.b16 %v773
    %v931 = vunpack.c.h.b16 %v773
    %v932 = vunpack.c.l.b16 %v774
    %v933 = vunpack.c.h.b16 %v774
    %v934 = vunpack.c.l.b16 %v775
    %v935 = vunpack.c.h.b16 %v775
    %v936 = vunpack.c.l.b16 %v776
    %v937 = vunpack.c.h.b16 %v776
    %v938 = vunpack.c.l.b16 %v777
    %v939 = vunpack.c.h.b16 %v777
    %v940 = vunpack.c.l.b16 %v778
    %v941 = vunpack.c.h.b16 %v778
    %v942 = vunpack.c.l.b16 %v779
    %v943 = vunpack.c.h.b16 %v779
    %v944 = vunpack.c.l.b16 %v780
    %v945 = vunpack.c.h.b16 %v780
    %v946 = vunpack.c.l.b16 %v781
    %v947 = vunpack.c.h.b16 %v781
    %v948 = vunpack.c.l.b16 %v782
    %v949 = vunpack.c.h.b16 %v782
    %v950 = vunpack.c.l.b16 %v783
    %v951 = vunpack.c.h.b16 %v783
    %v952 = vunpack.c.l.b16 %v784
    %v953 = vunpack.c.h.b16 %v784
    %v954 = vunpack.c.l.b16 %v785
    %v955 = vunpack.c.h.b16 %v785
    %v956 = vunpack.c.l.b16 %v786
    %v957 = vunpack.c.h.b16 %v786
    %v958 = vunpack.c.l.b16 %v787
    %v959 = vunpack.c.h.b16 %v787
    %v960 = vunpack.c.l.b16 %v788
    %v961 = vunpack.c.h.b16 %v788
    %v962 = vunpack.c.l.b16 %v789
    %v963 = vunpack.c.h.b16 %v789
    %v964 = vunpack.c.l.b16 %v790
    %v965 = vunpack.c.h.b16 %v790
    %v966 = vunpack.c.l.b16 %v791
    %v967 = vunpack.c.h.b16 %v791
    %v968 = vunpack.c.l.b16 %v792
    %v969 = vunpack.c.h.b16 %v792
    %v970 = vunpack.c.l.b16 %v793
    %v971 = vunpack.c.h.b16 %v793
    %v972 = vunpack.c.l.b16 %v794
    %v973 = vunpack.c.h.b16 %v794
    %v974 = vunpack.c.l.b16 %v795
    %v975 = vunpack.c.h.b16 %v795
    %v976 = vunpack.c.l.b16 %v796
    %v977 = vunpack.c.h.b16 %v796
    %v978 = vunpack.c.l.b16 %v797
    %v979 = vunpack.c.h.b16 %v797
    %v980 = vunpack.c.l.b16 %v798
    %v981 = vunpack.c.h.b16 %v798
    %v982 = vunpack.c.l.b16 %v799
    %v983 = vunpack.c.h.b16 %v799
    %v984 = vunpack.c.l.b16 %v800
    %v985 = vunpack.c.h.b16 %v800
    %v986 = vunpack.c.l.b16 %v801
    %v987 = vunpack.c.h.b16 %v801
    %v988 = vunpack.c.l.b16 %v802
    %v989 = vunpack.c.h.b16 %v802
    %v990 = vunpack.c.l.b16 %v803
    %v991 = vunpack.c.h.b16 %v803
    %v992 = vunpack.c.l.b16 %v804
    %v993 = vunpack.c.h.b16 %v804
    %v994 = vunpack.c.l.b16 %v805
    %v995 = vunpack.c.h.b16 %v805
    %v996 = vunpack.c.l.b16 %v806
    %v997 = vunpack.c.h.b16 %v806
    %v998 = vunpack.c.l.b16 %v807
    %v999 = vunpack.c.h.b16 %v807
    %v1000 = vpack.c.b16 %v880, %v872
    %v1001 = vpack.c.b16 %v881, %v873
    %v1002 = vpack.c.b16 %v882, %v874
    %v1003 = vpack.c.b16 %v883, %v875
    %v1004 = vpack.c.b16 %v884, %v876
    %v1005 = vpack.c.b16 %v885, %v877
    %v1006 = vpack.c.b16 %v886, %v878
    %v1007 = vpack.c.b16 %v887, %v879
    %v1008 = vpack.c.b16 %v896, %v888
    %v1009 = vpack.c.b16 %v897, %v889
    %v1010 = vpack.c.b16 %v898, %v890
    %v1011 = vpack.c.b16 %v899, %v891
    %v1012 = vpack.c.b16 %v900, %v892
    %v1013 = vpack.c.b16 %v901, %v893
    %v1014 = vpack.c.b16 %v902, %v894
    %v1015 = vpack.c.b16 %v903, %v895
    %v1016 = vpack.c.b16 %v912, %v904
    %v1017 = vpack.c.b16 %v913, %v905
    %v1018 = vpack.c.b16 %v914, %v906
    %v1019 = vpack.c.b16 %v915, %v907
    %v1020 = vpack.c.b16 %v916, %v908
    %v1021 = vpack.c.b16 %v917, %v909
    %v1022 = vpack.c.b16 %v918, %v910
    %v1023 = vpack.c.b16 %v919, %v911
    %v1024 = vpack.c.b16 %v928, %v920
    %v1025 = vpack.c.b16 %v929, %v921
    %v1026 = vpack.c.b16 %v930, %v922
    %v1027 = vpack.c.b16 %v931, %v923
    %v1028 = vpack.c.b16 %v932, %v924
    %v1029 = vpack.c.b16 %v933, %v925
    %v1030 = vpack.c.b16 %v934, %v926
    %v1031 = vpack.c.b16 %v935, %v927
    %v1032 = vpack.c.b16 %v944, %v936
    %v1033 = vpack.c.b16 %v945, %v937
    %v1034 = vpack.c.b16 %v946, %v938
    %v1035 = vpack.c.b16 %v947, %v939
    %v1036 = vpack.c.b16 %v948, %v940
    %v1037 = vpack.c.b16 %v949, %v941
    %v1038 = vpack.c.b16 %v950, %v942
    %v1039 = vpack.c.b16 %v951, %v943
    %v1040 = vpack.c.b16 %v960, %v952
    %v1041 = vpack.c.b16 %v961, %v953
    %v1042 = vpack.c.b16 %v962, %v954
    %v1043 = vpack.c.b16 %v963, %v955
    %v1044 = vpack.c.b16 %v964, %v956
    %v1045 = vpack.c.b16 %v965, %v957
    %v1046 = vpack.c.b16 %v966, %v958
    %v1047 = vpack.c.b16 %v967, %v959
    %v1048 = vpack.c.b16 %v976, %v968
    %v1049 = vpack.c.b16 %v977, %v969
    %v1050 = vpack.c.b16 %v978, %v970
    %v1051 = vpack.c.b16 %v979, %v971
    %v1052 = vpack.c.b16 %v980, %v972
    %v1053 = vpack.c.b16 %v981, %v973
    %v1054 = vpack.c.b16 %v982, %v974
    %v1055 = vpack.c.b16 %v983, %v975
    %v1056 = vpack.c.b16 %v992, %v984
    %v1057 = vpack.c.b16 %v993, %v985
    %v1058 = vpack.c.b16 %v994, %v986
    %v1059 = vpack.c.b16 %v995, %v987
    %v1060 = vpack.c.b16 %v996, %v988
    %v1061 = vpack.c.b16 %v997, %v989
    %v1062 = vpack.c.b16 %v998, %v990
    %v1063 = vpack.c.b16 %v999, %v991
    %1128 = vmatprep.subr.bf16.mxu0 %v1001
    %1129 = vmatpush1.bf16.msra.mxu0 %v1000
    %1130 = vmatprep.subr.bf16.mxu0 %v1009
    %1131 = vmatpush1.bf16.msra.mxu0 %v1008
    %1132 = vmatprep.subr.bf16.mxu0 %v1017
    %1133 = vmatpush1.bf16.msra.mxu0 %v1016
    %1134 = vmatprep.subr.bf16.mxu0 %v1025
    %1135 = vmatpush1.bf16.msra.mxu0 %v1024
    %1136 = vmatprep.subr.bf16.mxu0 %v1033
    %1137 = vmatpush1.bf16.msra.mxu0 %v1032
    %1138 = vmatprep.subr.bf16.mxu0 %v1041
    %1139 = vmatpush1.bf16.msra.mxu0 %v1040
    %1140 = vmatprep.subr.bf16.mxu0 %v1049
    %1141 = vmatpush1.bf16.msra.mxu0 %v1048
    %1142 = vmatprep.subr.bf16.mxu0 %v1057
    %1143 = vmatpush1.bf16.msra.mxu0 %v1056
    %1144 = vmatprep.subr.bf16.mxu0 0
    %1145 = vmatpush1.bf16.msra.mxu0 0
    %1146 = vmatprep.subr.bf16.mxu0 0
    %1147 = vmatpush1.bf16.msra.mxu0 0
    %1148 = vmatprep.subr.bf16.mxu0 0
    %1149 = vmatpush1.bf16.msra.mxu0 0
    %1150 = vmatprep.subr.bf16.mxu0 0
    %1151 = vmatpush1.bf16.msra.mxu0 0
    %1152 = vmatprep.subr.bf16.mxu0 0
    %1153 = vmatpush1.bf16.msra.mxu0 0
    %1154 = vmatprep.subr.bf16.mxu0 0
    %1155 = vmatpush1.bf16.msra.mxu0 0
    %1156 = vmatprep.subr.bf16.mxu0 0
    %1157 = vmatpush1.bf16.msra.mxu0 0
    %1158 = vmatprep.subr.bf16.mxu0 0
    %1159 = vmatpush1.bf16.msra.mxu0 0
    %1160 = vmatprep.mubr.bf16.mxu0 0
    %1161 = vmatmul.mubr.bf16.gmra.mrb[0].mxu0 %v728
    %v1162 = vpop.f32.mrb[0].mxu0
    %v1163 = vadd.f32 0.0, %v1162
    %v1164 = vpop.f32.mrb[0].mxu0
    %v1165 = vadd.f32 0.0, %v1164
    %v1166 = vpop.f32.mrb[0].mxu0
    %v1167 = vadd.f32 0.0, %v1166
    %v1168 = vpop.f32.mrb[0].mxu0
    %v1169 = vadd.f32 0.0, %v1168
    %1170 = vmatprep.mubr.bf16.mxu0 0
    %1171 = vmatmul.mubr.bf16.gmra.mrb[0].mxu0 %v729
    %v1172 = vpop.f32.mrb[0].mxu0
    %v1173 = vadd.f32 0.0, %v1172
    %v1174 = vpop.f32.mrb[0].mxu0
    %v1175 = vadd.f32 0.0, %v1174
    %v1176 = vpop.f32.mrb[0].mxu0
    %v1177 = vadd.f32 0.0, %v1176
    %v1178 = vpop.f32.mrb[0].mxu0
    %v1179 = vadd.f32 0.0, %v1178
    %1180 = vmatprep.mubr.bf16.mxu0 0
    %1181 = vmatmul.mubr.bf16.gmra.mrb[0].mxu0 %v730
    %v1182 = vpop.f32.mrb[0].mxu0
    %v1183 = vadd.f32 0.0, %v1182
    %v1184 = vpop.f32.mrb[0].mxu0
    %v1185 = vadd.f32 0.0, %v1184
    %v1186 = vpop.f32.mrb[0].mxu0
    %v1187 = vadd.f32 0.0, %v1186
    %v1188 = vpop.f32.mrb[0].mxu0
    %v1189 = vadd.f32 0.0, %v1188
    %1190 = vmatprep.mubr.bf16.mxu0 0
    %1191 = vmatmul.mubr.bf16.gmra.mrb[0].mxu0 %v731
    %v1192 = vpop.f32.mrb[0].mxu0
    %v1193 = vadd.f32 0.0, %v1192
    %v1194 = vpop.f32.mrb[0].mxu0
    %v1195 = vadd.f32 0.0, %v1194
    %v1196 = vpop.f32.mrb[0].mxu0
    %v1197 = vadd.f32 0.0, %v1196
    %v1198 = vpop.f32.mrb[0].mxu0
    %v1199 = vadd.f32 0.0, %v1198
    %1200 = vmatprep.mubr.bf16.mxu0 0
    %1201 = vmatmul.mubr.bf16.gmra.mrb[0].mxu0 %v732
    %v1202 = vpop.f32.mrb[0].mxu0
    %v1203 = vadd.f32 0.0, %v1202
    %v1204 = vpop.f32.mrb[0].mxu0
    %v1205 = vadd.f32 0.0, %v1204
    %v1206 = vpop.f32.mrb[0].mxu0
    %v1207 = vadd.f32 0.0, %v1206
    %v1208 = vpop.f32.mrb[0].mxu0
    %v1209 = vadd.f32 0.0, %v1208
    %1210 = vmatprep.mubr.bf16.mxu0 0
    %1211 = vmatmul.mubr.bf16.gmra.mrb[0].mxu0 %v733
    %v1212 = vpop.f32.mrb[0].mxu0
    %v1213 = vadd.f32 0.0, %v1212
    %v1214 = vpop.f32.mrb[0].mxu0
    %v1215 = vadd.f32 0.0, %v1214
    %v1216 = vpop.f32.mrb[0].mxu0
    %v1217 = vadd.f32 0.0, %v1216
    %v1218 = vpop.f32.mrb[0].mxu0
    %v1219 = vadd.f32 0.0, %v1218
    %1220 = vmatprep.mubr.bf16.mxu0 0
    %1221 = vmatmul.mubr.bf16.gmra.mrb[0].mxu0 %v734
    %v1222 = vpop.f32.mrb[0].mxu0
    %v1223 = vadd.f32 0.0, %v1222
    %v1224 = vpop.f32.mrb[0].mxu0
    %v1225 = vadd.f32 0.0, %v1224
    %v1226 = vpop.f32.mrb[0].mxu0
    %v1227 = vadd.f32 0.0, %v1226
    %v1228 = vpop.f32.mrb[0].mxu0
    %v1229 = vadd.f32 0.0, %v1228
    %1230 = vmatprep.mubr.bf16.mxu0 0
    %1231 = vmatmul.mubr.bf16.gmra.mrb[0].mxu0 %v735
    %v1232 = vpop.f32.mrb[0].mxu0
    %v1233 = vadd.f32 0.0, %v1232
    %v1234 = vpop.f32.mrb[0].mxu0
    %v1235 = vadd.f32 0.0, %v1234
    %v1236 = vpop.f32.mrb[0].mxu0
    %v1237 = vadd.f32 0.0, %v1236
    %v1238 = vpop.f32.mrb[0].mxu0
    %v1239 = vadd.f32 0.0, %v1238
    %1240 = vmatprep.mubr.bf16.mxu0 0
    %1241 = vmatmul.mubr.bf16.gmra.mrb[0].mxu0 %v736
    %v1242 = vpop.f32.mrb[0].mxu0
    %v1243 = vadd.f32 0.0, %v1242
    %v1244 = vpop.f32.mrb[0].mxu0
    %v1245 = vadd.f32 0.0, %v1244
    %v1246 = vpop.f32.mrb[0].mxu0
    %v1247 = vadd.f32 0.0, %v1246
    %v1248 = vpop.f32.mrb[0].mxu0
    %v1249 = vadd.f32 0.0, %v1248
    %1250 = vmatprep.mubr.bf16.mxu0 0
    %1251 = vmatmul.mubr.bf16.gmra.mrb[0].mxu0 %v737
    %v1252 = vpop.f32.mrb[0].mxu0
    %v1253 = vadd.f32 0.0, %v1252
    %v1254 = vpop.f32.mrb[0].mxu0
    %v1255 = vadd.f32 0.0, %v1254
    %v1256 = vpop.f32.mrb[0].mxu0
    %v1257 = vadd.f32 0.0, %v1256
    %v1258 = vpop.f32.mrb[0].mxu0
    %v1259 = vadd.f32 0.0, %v1258
    %1260 = vmatprep.mubr.bf16.mxu0 0
    %1261 = vmatmul.mubr.bf16.gmra.mrb[0].mxu0 %v738
    %v1262 = vpop.f32.mrb[0].mxu0
    %v1263 = vadd.f32 0.0, %v1262
    %v1264 = vpop.f32.mrb[0].mxu0
    %v1265 = vadd.f32 0.0, %v1264
    %v1266 = vpop.f32.mrb[0].mxu0
    %v1267 = vadd.f32 0.0, %v1266
    %v1268 = vpop.f32.mrb[0].mxu0
    %v1269 = vadd.f32 0.0, %v1268
    %1270 = vmatprep.mubr.bf16.mxu0 0
    %1271 = vmatmul.mubr.bf16.gmra.mrb[0].mxu0 %v739
    %v1272 = vpop.f32.mrb[0].mxu0
    %v1273 = vadd.f32 0.0, %v1272
    %v1274 = vpop.f32.mrb[0].mxu0
    %v1275 = vadd.f32 0.0, %v1274
    %v1276 = vpop.f32.mrb[0].mxu0
    %v1277 = vadd.f32 0.0, %v1276
    %v1278 = vpop.f32.mrb[0].mxu0
    %v1279 = vadd.f32 0.0, %v1278
    %1280 = vmatprep.mubr.bf16.mxu0 0
    %1281 = vmatmul.mubr.bf16.gmra.mrb[0].mxu0 %v740
    %v1282 = vpop.f32.mrb[0].mxu0
    %v1283 = vadd.f32 0.0, %v1282
    %v1284 = vpop.f32.mrb[0].mxu0
    %v1285 = vadd.f32 0.0, %v1284
    %v1286 = vpop.f32.mrb[0].mxu0
    %v1287 = vadd.f32 0.0, %v1286
    %v1288 = vpop.f32.mrb[0].mxu0
    %v1289 = vadd.f32 0.0, %v1288
    %1290 = vmatprep.mubr.bf16.mxu0 0
    %1291 = vmatmul.mubr.bf16.gmra.mrb[0].mxu0 %v741
    %v1292 = vpop.f32.mrb[0].mxu0
    %v1293 = vadd.f32 0.0, %v1292
    %v1294 = vpop.f32.mrb[0].mxu0
    %v1295 = vadd.f32 0.0, %v1294
    %v1296 = vpop.f32.mrb[0].mxu0
    %v1297 = vadd.f32 0.0, %v1296
    %v1298 = vpop.f32.mrb[0].mxu0
    %v1299 = vadd.f32 0.0, %v1298
    %1300 = vmatprep.mubr.bf16.mxu0 0
    %1301 = vmatmul.mubr.bf16.gmra.mrb[0].mxu0 %v742
    %v1302 = vpop.f32.mrb[0].mxu0
    %v1303 = vadd.f32 0.0, %v1302
    %v1304 = vpop.f32.mrb[0].mxu0
    %v1305 = vadd.f32 0.0, %v1304
    %v1306 = vpop.f32.mrb[0].mxu0
    %v1307 = vadd.f32 0.0, %v1306
    %v1308 = vpop.f32.mrb[0].mxu0
    %v1309 = vadd.f32 0.0, %v1308
    %1310 = vmatprep.mubr.bf16.mxu0 0
    %1311 = vmatmul.mubr.bf16.gmra.mrb[0].mxu0 %v743
    %v1312 = vpop.f32.mrb[0].mxu0
    %v1313 = vadd.f32 0.0, %v1312
    %v1314 = vpop.f32.mrb[0].mxu0
    %v1315 = vadd.f32 0.0, %v1314
    %v1316 = vpop.f32.mrb[0].mxu0
    %v1317 = vadd.f32 0.0, %v1316
    %v1318 = vpop.f32.mrb[0].mxu0
    %v1319 = vadd.f32 0.0, %v1318
    %1320 = vdwg.mxu0
    %1321 = vmatprep.subr.bf16.mxu0 %v1003
    %1322 = vmatpush1.bf16.msra.mxu0 %v1002
    %1323 = vmatprep.subr.bf16.mxu0 %v1011
    %1324 = vmatpush1.bf16.msra.mxu0 %v1010
    %1325 = vmatprep.subr.bf16.mxu0 %v1019
    %1326 = vmatpush1.bf16.msra.mxu0 %v1018
    %1327 = vmatprep.subr.bf16.mxu0 %v1027
    %1328 = vmatpush1.bf16.msra.mxu0 %v1026
    %1329 = vmatprep.subr.bf16.mxu0 %v1035
    %1330 = vmatpush1.bf16.msra.mxu0 %v1034
    %1331 = vmatprep.subr.bf16.mxu0 %v1043
    %1332 = vmatpush1.bf16.msra.mxu0 %v1042
    %1333 = vmatprep.subr.bf16.mxu0 %v1051
    %1334 = vmatpush1.bf16.msra.mxu0 %v1050
    %1335 = vmatprep.subr.bf16.mxu0 %v1059
    %1336 = vmatpush1.bf16.msra.mxu0 %v1058
    %1337 = vmatprep.subr.bf16.mxu0 0
    %1338 = vmatpush1.bf16.msra.mxu0 0
    %1339 = vmatprep.subr.bf16.mxu0 0
    %1340 = vmatpush1.bf16.msra.mxu0 0
    %1341 = vmatprep.subr.bf16.mxu0 0
    %1342 = vmatpush1.bf16.msra.mxu0 0
    %1343 = vmatprep.subr.bf16.mxu0 0
    %1344 = vmatpush1.bf16.msra.mxu0 0
    %1345 = vmatprep.subr.bf16.mxu0 0
    %1346 = vmatpush1.bf16.msra.mxu0 0
    %1347 = vmatprep.subr.bf16.mxu0 0
    %1348 = vmatpush1.bf16.msra.mxu0 0
    %1349 = vmatprep.subr.bf16.mxu0 0
    %1350 = vmatpush1.bf16.msra.mxu0 0
    %1351 = vmatprep.subr.bf16.mxu0 0
    %1352 = vmatpush1.bf16.msra.mxu0 0
    %1353 = vmatprep.mubr.bf16.mxu0 0
    %1354 = vmatmul.mubr.bf16.gmra.mrb[0].mxu0 %v728
    %v1355 = vpop.f32.mrb[0].mxu0
    %v1356 = vadd.f32 0.0, %v1355
    %v1357 = vpop.f32.mrb[0].mxu0
    %v1358 = vadd.f32 0.0, %v1357
    %v1359 = vpop.f32.mrb[0].mxu0
    %v1360 = vadd.f32 0.0, %v1359
    %v1361 = vpop.f32.mrb[0].mxu0
    %v1362 = vadd.f32 0.0, %v1361
    %1363 = vmatprep.mubr.bf16.mxu0 0
    %1364 = vmatmul.mubr.bf16.gmra.mrb[0].mxu0 %v729
    %v1365 = vpop.f32.mrb[0].mxu0
    %v1366 = vadd.f32 0.0, %v1365
    %v1367 = vpop.f32.mrb[0].mxu0
    %v1368 = vadd.f32 0.0, %v1367
    %v1369 = vpop.f32.mrb[0].mxu0
    %v1370 = vadd.f32 0.0, %v1369
    %v1371 = vpop.f32.mrb[0].mxu0
    %v1372 = vadd.f32 0.0, %v1371
    %1373 = vmatprep.mubr.bf16.mxu0 0
    %1374 = vmatmul.mubr.bf16.gmra.mrb[0].mxu0 %v730
    %v1375 = vpop.f32.mrb[0].mxu0
    %v1376 = vadd.f32 0.0, %v1375
    %v1377 = vpop.f32.mrb[0].mxu0
    %v1378 = vadd.f32 0.0, %v1377
    %v1379 = vpop.f32.mrb[0].mxu0
    %v1380 = vadd.f32 0.0, %v1379
    %v1381 = vpop.f32.mrb[0].mxu0
    %v1382 = vadd.f32 0.0, %v1381
    %1383 = vmatprep.mubr.bf16.mxu0 0
    %1384 = vmatmul.mubr.bf16.gmra.mrb[0].mxu0 %v731
    %v1385 = vpop.f32.mrb[0].mxu0
    %v1386 = vadd.f32 0.0, %v1385
    %v1387 = vpop.f32.mrb[0].mxu0
    %v1388 = vadd.f32 0.0, %v1387
    %v1389 = vpop.f32.mrb[0].mxu0
    %v1390 = vadd.f32 0.0, %v1389
    %v1391 = vpop.f32.mrb[0].mxu0
    %v1392 = vadd.f32 0.0, %v1391
    %1393 = vmatprep.mubr.bf16.mxu0 0
    %1394 = vmatmul.mubr.bf16.gmra.mrb[0].mxu0 %v732
    %v1395 = vpop.f32.mrb[0].mxu0
    %v1396 = vadd.f32 0.0, %v1395
    %v1397 = vpop.f32.mrb[0].mxu0
    %v1398 = vadd.f32 0.0, %v1397
    %v1399 = vpop.f32.mrb[0].mxu0
    %v1400 = vadd.f32 0.0, %v1399
    %v1401 = vpop.f32.mrb[0].mxu0
    %v1402 = vadd.f32 0.0, %v1401
    %1403 = vmatprep.mubr.bf16.mxu0 0
    %1404 = vmatmul.mubr.bf16.gmra.mrb[0].mxu0 %v733
    %v1405 = vpop.f32.mrb[0].mxu0
    %v1406 = vadd.f32 0.0, %v1405
    %v1407 = vpop.f32.mrb[0].mxu0
    %v1408 = vadd.f32 0.0, %v1407
    %v1409 = vpop.f32.mrb[0].mxu0
    %v1410 = vadd.f32 0.0, %v1409
    %v1411 = vpop.f32.mrb[0].mxu0
    %v1412 = vadd.f32 0.0, %v1411
    %1413 = vmatprep.mubr.bf16.mxu0 0
    %1414 = vmatmul.mubr.bf16.gmra.mrb[0].mxu0 %v734
    %v1415 = vpop.f32.mrb[0].mxu0
    %v1416 = vadd.f32 0.0, %v1415
    %v1417 = vpop.f32.mrb[0].mxu0
    %v1418 = vadd.f32 0.0, %v1417
    %v1419 = vpop.f32.mrb[0].mxu0
    %v1420 = vadd.f32 0.0, %v1419
    %v1421 = vpop.f32.mrb[0].mxu0
    %v1422 = vadd.f32 0.0, %v1421
    %1423 = vmatprep.mubr.bf16.mxu0 0
    %1424 = vmatmul.mubr.bf16.gmra.mrb[0].mxu0 %v735
    %v1425 = vpop.f32.mrb[0].mxu0
    %v1426 = vadd.f32 0.0, %v1425
    %v1427 = vpop.f32.mrb[0].mxu0
    %v1428 = vadd.f32 0.0, %v1427
    %v1429 = vpop.f32.mrb[0].mxu0
    %v1430 = vadd.f32 0.0, %v1429
    %v1431 = vpop.f32.mrb[0].mxu0
    %v1432 = vadd.f32 0.0, %v1431
    %1433 = vmatprep.mubr.bf16.mxu0 0
    %1434 = vmatmul.mubr.bf16.gmra.mrb[0].mxu0 %v736
    %v1435 = vpop.f32.mrb[0].mxu0
    %v1436 = vadd.f32 0.0, %v1435
    %v1437 = vpop.f32.mrb[0].mxu0
    %v1438 = vadd.f32 0.0, %v1437
    %v1439 = vpop.f32.mrb[0].mxu0
    %v1440 = vadd.f32 0.0, %v1439
    %v1441 = vpop.f32.mrb[0].mxu0
    %v1442 = vadd.f32 0.0, %v1441
    %1443 = vmatprep.mubr.bf16.mxu0 0
    %1444 = vmatmul.mubr.bf16.gmra.mrb[0].mxu0 %v737
    %v1445 = vpop.f32.mrb[0].mxu0
    %v1446 = vadd.f32 0.0, %v1445
    %v1447 = vpop.f32.mrb[0].mxu0
    %v1448 = vadd.f32 0.0, %v1447
    %v1449 = vpop.f32.mrb[0].mxu0
    %v1450 = vadd.f32 0.0, %v1449
    %v1451 = vpop.f32.mrb[0].mxu0
    %v1452 = vadd.f32 0.0, %v1451
    %1453 = vmatprep.mubr.bf16.mxu0 0
    %1454 = vmatmul.mubr.bf16.gmra.mrb[0].mxu0 %v738
    %v1455 = vpop.f32.mrb[0].mxu0
    %v1456 = vadd.f32 0.0, %v1455
    %v1457 = vpop.f32.mrb[0].mxu0
    %v1458 = vadd.f32 0.0, %v1457
    %v1459 = vpop.f32.mrb[0].mxu0
    %v1460 = vadd.f32 0.0, %v1459
    %v1461 = vpop.f32.mrb[0].mxu0
    %v1462 = vadd.f32 0.0, %v1461
    %1463 = vmatprep.mubr.bf16.mxu0 0
    %1464 = vmatmul.mubr.bf16.gmra.mrb[0].mxu0 %v739
    %v1465 = vpop.f32.mrb[0].mxu0
    %v1466 = vadd.f32 0.0, %v1465
    %v1467 = vpop.f32.mrb[0].mxu0
    %v1468 = vadd.f32 0.0, %v1467
    %v1469 = vpop.f32.mrb[0].mxu0
    %v1470 = vadd.f32 0.0, %v1469
    %v1471 = vpop.f32.mrb[0].mxu0
    %v1472 = vadd.f32 0.0, %v1471
    %1473 = vmatprep.mubr.bf16.mxu0 0
    %1474 = vmatmul.mubr.bf16.gmra.mrb[0].mxu0 %v740
    %v1475 = vpop.f32.mrb[0].mxu0
    %v1476 = vadd.f32 0.0, %v1475
    %v1477 = vpop.f32.mrb[0].mxu0
    %v1478 = vadd.f32 0.0, %v1477
    %v1479 = vpop.f32.mrb[0].mxu0
    %v1480 = vadd.f32 0.0, %v1479
    %v1481 = vpop.f32.mrb[0].mxu0
    %v1482 = vadd.f32 0.0, %v1481
    %1483 = vmatprep.mubr.bf16.mxu0 0
    %1484 = vmatmul.mubr.bf16.gmra.mrb[0].mxu0 %v741
    %v1485 = vpop.f32.mrb[0].mxu0
    %v1486 = vadd.f32 0.0, %v1485
    %v1487 = vpop.f32.mrb[0].mxu0
    %v1488 = vadd.f32 0.0, %v1487
    %v1489 = vpop.f32.mrb[0].mxu0
    %v1490 = vadd.f32 0.0, %v1489
    %v1491 = vpop.f32.mrb[0].mxu0
    %v1492 = vadd.f32 0.0, %v1491
    %1493 = vmatprep.mubr.bf16.mxu0 0
    %1494 = vmatmul.mubr.bf16.gmra.mrb[0].mxu0 %v742
    %v1495 = vpop.f32.mrb[0].mxu0
    %v1496 = vadd.f32 0.0, %v1495
    %v1497 = vpop.f32.mrb[0].mxu0
    %v1498 = vadd.f32 0.0, %v1497
    %v1499 = vpop.f32.mrb[0].mxu0
    %v1500 = vadd.f32 0.0, %v1499
    %v1501 = vpop.f32.mrb[0].mxu0
    %v1502 = vadd.f32 0.0, %v1501
    %1503 = vmatprep.mubr.bf16.mxu0 0
    %1504 = vmatmul.mubr.bf16.gmra.mrb[0].mxu0 %v743
    %v1505 = vpop.f32.mrb[0].mxu0
    %v1506 = vadd.f32 0.0, %v1505
    %v1507 = vpop.f32.mrb[0].mxu0
    %v1508 = vadd.f32 0.0, %v1507
    %v1509 = vpop.f32.mrb[0].mxu0
    %v1510 = vadd.f32 0.0, %v1509
    %v1511 = vpop.f32.mrb[0].mxu0
    %v1512 = vadd.f32 0.0, %v1511
    %1513 = vdwg.mxu0
    %1514 = vmatprep.subr.bf16.mxu0 %v1005
    %1515 = vmatpush1.bf16.msra.mxu0 %v1004
    %1516 = vmatprep.subr.bf16.mxu0 %v1013
    %1517 = vmatpush1.bf16.msra.mxu0 %v1012
    %1518 = vmatprep.subr.bf16.mxu0 %v1021
    %1519 = vmatpush1.bf16.msra.mxu0 %v1020
    %1520 = vmatprep.subr.bf16.mxu0 %v1029
    %1521 = vmatpush1.bf16.msra.mxu0 %v1028
    %1522 = vmatprep.subr.bf16.mxu0 %v1037
    %1523 = vmatpush1.bf16.msra.mxu0 %v1036
    %1524 = vmatprep.subr.bf16.mxu0 %v1045
    %1525 = vmatpush1.bf16.msra.mxu0 %v1044
    %1526 = vmatprep.subr.bf16.mxu0 %v1053
    %1527 = vmatpush1.bf16.msra.mxu0 %v1052
    %1528 = vmatprep.subr.bf16.mxu0 %v1061
    %1529 = vmatpush1.bf16.msra.mxu0 %v1060
    %1530 = vmatprep.subr.bf16.mxu0 0
    %1531 = vmatpush1.bf16.msra.mxu0 0
    %1532 = vmatprep.subr.bf16.mxu0 0
    %1533 = vmatpush1.bf16.msra.mxu0 0
    %1534 = vmatprep.subr.bf16.mxu0 0
    %1535 = vmatpush1.bf16.msra.mxu0 0
    %1536 = vmatprep.subr.bf16.mxu0 0
    %1537 = vmatpush1.bf16.msra.mxu0 0
    %1538 = vmatprep.subr.bf16.mxu0 0
    %1539 = vmatpush1.bf16.msra.mxu0 0
    %1540 = vmatprep.subr.bf16.mxu0 0
    %1541 = vmatpush1.bf16.msra.mxu0 0
    %1542 = vmatprep.subr.bf16.mxu0 0
    %1543 = vmatpush1.bf16.msra.mxu0 0
    %1544 = vmatprep.subr.bf16.mxu0 0
    %1545 = vmatpush1.bf16.msra.mxu0 0
    %1546 = vmatprep.mubr.bf16.mxu0 0
    %1547 = vmatmul.mubr.bf16.gmra.mrb[0].mxu0 %v728
    %v1548 = vpop.f32.mrb[0].mxu0
    %v1549 = vadd.f32 0.0, %v1548
    %v1550 = vpop.f32.mrb[0].mxu0
    %v1551 = vadd.f32 0.0, %v1550
    %v1552 = vpop.f32.mrb[0].mxu0
    %v1553 = vadd.f32 0.0, %v1552
    %v1554 = vpop.f32.mrb[0].mxu0
    %v1555 = vadd.f32 0.0, %v1554
    %1556 = vmatprep.mubr.bf16.mxu0 0
    %1557 = vmatmul.mubr.bf16.gmra.mrb[0].mxu0 %v729
    %v1558 = vpop.f32.mrb[0].mxu0
    %v1559 = vadd.f32 0.0, %v1558
    %v1560 = vpop.f32.mrb[0].mxu0
    %v1561 = vadd.f32 0.0, %v1560
    %v1562 = vpop.f32.mrb[0].mxu0
    %v1563 = vadd.f32 0.0, %v1562
    %v1564 = vpop.f32.mrb[0].mxu0
    %v1565 = vadd.f32 0.0, %v1564
    %1566 = vmatprep.mubr.bf16.mxu0 0
    %1567 = vmatmul.mubr.bf16.gmra.mrb[0].mxu0 %v730
    %v1568 = vpop.f32.mrb[0].mxu0
    %v1569 = vadd.f32 0.0, %v1568
    %v1570 = vpop.f32.mrb[0].mxu0
    %v1571 = vadd.f32 0.0, %v1570
    %v1572 = vpop.f32.mrb[0].mxu0
    %v1573 = vadd.f32 0.0, %v1572
    %v1574 = vpop.f32.mrb[0].mxu0
    %v1575 = vadd.f32 0.0, %v1574
    %1576 = vmatprep.mubr.bf16.mxu0 0
    %1577 = vmatmul.mubr.bf16.gmra.mrb[0].mxu0 %v731
    %v1578 = vpop.f32.mrb[0].mxu0
    %v1579 = vadd.f32 0.0, %v1578
    %v1580 = vpop.f32.mrb[0].mxu0
    %v1581 = vadd.f32 0.0, %v1580
    %v1582 = vpop.f32.mrb[0].mxu0
    %v1583 = vadd.f32 0.0, %v1582
    %v1584 = vpop.f32.mrb[0].mxu0
    %v1585 = vadd.f32 0.0, %v1584
    %1586 = vmatprep.mubr.bf16.mxu0 0
    %1587 = vmatmul.mubr.bf16.gmra.mrb[0].mxu0 %v732
    %v1588 = vpop.f32.mrb[0].mxu0
    %v1589 = vadd.f32 0.0, %v1588
    %v1590 = vpop.f32.mrb[0].mxu0
    %v1591 = vadd.f32 0.0, %v1590
    %v1592 = vpop.f32.mrb[0].mxu0
    %v1593 = vadd.f32 0.0, %v1592
    %v1594 = vpop.f32.mrb[0].mxu0
    %v1595 = vadd.f32 0.0, %v1594
    %1596 = vmatprep.mubr.bf16.mxu0 0
    %1597 = vmatmul.mubr.bf16.gmra.mrb[0].mxu0 %v733
    %v1598 = vpop.f32.mrb[0].mxu0
    %v1599 = vadd.f32 0.0, %v1598
    %v1600 = vpop.f32.mrb[0].mxu0
    %v1601 = vadd.f32 0.0, %v1600
    %v1602 = vpop.f32.mrb[0].mxu0
    %v1603 = vadd.f32 0.0, %v1602
    %v1604 = vpop.f32.mrb[0].mxu0
    %v1605 = vadd.f32 0.0, %v1604
    %1606 = vmatprep.mubr.bf16.mxu0 0
    %1607 = vmatmul.mubr.bf16.gmra.mrb[0].mxu0 %v734
    %v1608 = vpop.f32.mrb[0].mxu0
    %v1609 = vadd.f32 0.0, %v1608
    %v1610 = vpop.f32.mrb[0].mxu0
    %v1611 = vadd.f32 0.0, %v1610
    %v1612 = vpop.f32.mrb[0].mxu0
    %v1613 = vadd.f32 0.0, %v1612
    %v1614 = vpop.f32.mrb[0].mxu0
    %v1615 = vadd.f32 0.0, %v1614
    %1616 = vmatprep.mubr.bf16.mxu0 0
    %1617 = vmatmul.mubr.bf16.gmra.mrb[0].mxu0 %v735
    %v1618 = vpop.f32.mrb[0].mxu0
    %v1619 = vadd.f32 0.0, %v1618
    %v1620 = vpop.f32.mrb[0].mxu0
    %v1621 = vadd.f32 0.0, %v1620
    %v1622 = vpop.f32.mrb[0].mxu0
    %v1623 = vadd.f32 0.0, %v1622
    %v1624 = vpop.f32.mrb[0].mxu0
    %v1625 = vadd.f32 0.0, %v1624
    %1626 = vmatprep.mubr.bf16.mxu0 0
    %1627 = vmatmul.mubr.bf16.gmra.mrb[0].mxu0 %v736
    %v1628 = vpop.f32.mrb[0].mxu0
    %v1629 = vadd.f32 0.0, %v1628
    %v1630 = vpop.f32.mrb[0].mxu0
    %v1631 = vadd.f32 0.0, %v1630
    %v1632 = vpop.f32.mrb[0].mxu0
    %v1633 = vadd.f32 0.0, %v1632
    %v1634 = vpop.f32.mrb[0].mxu0
    %v1635 = vadd.f32 0.0, %v1634
    %1636 = vmatprep.mubr.bf16.mxu0 0
    %1637 = vmatmul.mubr.bf16.gmra.mrb[0].mxu0 %v737
    %v1638 = vpop.f32.mrb[0].mxu0
    %v1639 = vadd.f32 0.0, %v1638
    %v1640 = vpop.f32.mrb[0].mxu0
    %v1641 = vadd.f32 0.0, %v1640
    %v1642 = vpop.f32.mrb[0].mxu0
    %v1643 = vadd.f32 0.0, %v1642
    %v1644 = vpop.f32.mrb[0].mxu0
    %v1645 = vadd.f32 0.0, %v1644
    %1646 = vmatprep.mubr.bf16.mxu0 0
    %1647 = vmatmul.mubr.bf16.gmra.mrb[0].mxu0 %v738
    %v1648 = vpop.f32.mrb[0].mxu0
    %v1649 = vadd.f32 0.0, %v1648
    %v1650 = vpop.f32.mrb[0].mxu0
    %v1651 = vadd.f32 0.0, %v1650
    %v1652 = vpop.f32.mrb[0].mxu0
    %v1653 = vadd.f32 0.0, %v1652
    %v1654 = vpop.f32.mrb[0].mxu0
    %v1655 = vadd.f32 0.0, %v1654
    %1656 = vmatprep.mubr.bf16.mxu0 0
    %1657 = vmatmul.mubr.bf16.gmra.mrb[0].mxu0 %v739
    %v1658 = vpop.f32.mrb[0].mxu0
    %v1659 = vadd.f32 0.0, %v1658
    %v1660 = vpop.f32.mrb[0].mxu0
    %v1661 = vadd.f32 0.0, %v1660
    %v1662 = vpop.f32.mrb[0].mxu0
    %v1663 = vadd.f32 0.0, %v1662
    %v1664 = vpop.f32.mrb[0].mxu0
    %v1665 = vadd.f32 0.0, %v1664
    %1666 = vmatprep.mubr.bf16.mxu0 0
    %1667 = vmatmul.mubr.bf16.gmra.mrb[0].mxu0 %v740
    %v1668 = vpop.f32.mrb[0].mxu0
    %v1669 = vadd.f32 0.0, %v1668
    %v1670 = vpop.f32.mrb[0].mxu0
    %v1671 = vadd.f32 0.0, %v1670
    %v1672 = vpop.f32.mrb[0].mxu0
    %v1673 = vadd.f32 0.0, %v1672
    %v1674 = vpop.f32.mrb[0].mxu0
    %v1675 = vadd.f32 0.0, %v1674
    %1676 = vmatprep.mubr.bf16.mxu0 0
    %1677 = vmatmul.mubr.bf16.gmra.mrb[0].mxu0 %v741
    %v1678 = vpop.f32.mrb[0].mxu0
    %v1679 = vadd.f32 0.0, %v1678
    %v1680 = vpop.f32.mrb[0].mxu0
    %v1681 = vadd.f32 0.0, %v1680
    %v1682 = vpop.f32.mrb[0].mxu0
    %v1683 = vadd.f32 0.0, %v1682
    %v1684 = vpop.f32.mrb[0].mxu0
    %v1685 = vadd.f32 0.0, %v1684
    %1686 = vmatprep.mubr.bf16.mxu0 0
    %1687 = vmatmul.mubr.bf16.gmra.mrb[0].mxu0 %v742
    %v1688 = vpop.f32.mrb[0].mxu0
    %v1689 = vadd.f32 0.0, %v1688
    %v1690 = vpop.f32.mrb[0].mxu0
    %v1691 = vadd.f32 0.0, %v1690
    %v1692 = vpop.f32.mrb[0].mxu0
    %v1693 = vadd.f32 0.0, %v1692
    %v1694 = vpop.f32.mrb[0].mxu0
    %v1695 = vadd.f32 0.0, %v1694
    %1696 = vmatprep.mubr.bf16.mxu0 0
    %1697 = vmatmul.mubr.bf16.gmra.mrb[0].mxu0 %v743
    %v1698 = vpop.f32.mrb[0].mxu0
    %v1699 = vadd.f32 0.0, %v1698
    %v1700 = vpop.f32.mrb[0].mxu0
    %v1701 = vadd.f32 0.0, %v1700
    %v1702 = vpop.f32.mrb[0].mxu0
    %v1703 = vadd.f32 0.0, %v1702
    %v1704 = vpop.f32.mrb[0].mxu0
    %v1705 = vadd.f32 0.0, %v1704
    %1706 = vdwg.mxu0
    %1707 = vmatprep.subr.bf16.mxu0 %v1007
    %1708 = vmatpush1.bf16.msra.mxu0 %v1006
    %1709 = vmatprep.subr.bf16.mxu0 %v1015
    %1710 = vmatpush1.bf16.msra.mxu0 %v1014
    %1711 = vmatprep.subr.bf16.mxu0 %v1023
    %1712 = vmatpush1.bf16.msra.mxu0 %v1022
    %1713 = vmatprep.subr.bf16.mxu0 %v1031
    %1714 = vmatpush1.bf16.msra.mxu0 %v1030
    %1715 = vmatprep.subr.bf16.mxu0 %v1039
    %1716 = vmatpush1.bf16.msra.mxu0 %v1038
    %1717 = vmatprep.subr.bf16.mxu0 %v1047
    %1718 = vmatpush1.bf16.msra.mxu0 %v1046
    %1719 = vmatprep.subr.bf16.mxu0 %v1055
    %1720 = vmatpush1.bf16.msra.mxu0 %v1054
    %1721 = vmatprep.subr.bf16.mxu0 %v1063
    %1722 = vmatpush1.bf16.msra.mxu0 %v1062
    %1723 = vmatprep.subr.bf16.mxu0 0
    %1724 = vmatpush1.bf16.msra.mxu0 0
    %1725 = vmatprep.subr.bf16.mxu0 0
    %1726 = vmatpush1.bf16.msra.mxu0 0
    %1727 = vmatprep.subr.bf16.mxu0 0
    %1728 = vmatpush1.bf16.msra.mxu0 0
    %1729 = vmatprep.subr.bf16.mxu0 0
    %1730 = vmatpush1.bf16.msra.mxu0 0
    %1731 = vmatprep.subr.bf16.mxu0 0
    %1732 = vmatpush1.bf16.msra.mxu0 0
    %1733 = vmatprep.subr.bf16.mxu0 0
    %1734 = vmatpush1.bf16.msra.mxu0 0
    %1735 = vmatprep.subr.bf16.mxu0 0
    %1736 = vmatpush1.bf16.msra.mxu0 0
    %1737 = vmatprep.subr.bf16.mxu0 0
    %1738 = vmatpush1.bf16.msra.mxu0 0
    %1739 = vmatprep.mubr.bf16.mxu0 0
    %1740 = vmatmul.mubr.bf16.gmra.mrb[0].mxu0 %v728
    %v1741 = vpop.f32.mrb[0].mxu0
    %v1742 = vadd.f32 0.0, %v1741
    %v1743 = vpop.f32.mrb[0].mxu0
    %v1744 = vadd.f32 0.0, %v1743
    %v1745 = vpop.f32.mrb[0].mxu0
    %v1746 = vadd.f32 0.0, %v1745
    %v1747 = vpop.f32.mrb[0].mxu0
    %v1748 = vadd.f32 0.0, %v1747
    %1749 = vmatprep.mubr.bf16.mxu0 0
    %1750 = vmatmul.mubr.bf16.gmra.mrb[0].mxu0 %v729
    %v1751 = vpop.f32.mrb[0].mxu0
    %v1752 = vadd.f32 0.0, %v1751
    %v1753 = vpop.f32.mrb[0].mxu0
    %v1754 = vadd.f32 0.0, %v1753
    %v1755 = vpop.f32.mrb[0].mxu0
    %v1756 = vadd.f32 0.0, %v1755
    %v1757 = vpop.f32.mrb[0].mxu0
    %v1758 = vadd.f32 0.0, %v1757
    %1759 = vmatprep.mubr.bf16.mxu0 0
    %1760 = vmatmul.mubr.bf16.gmra.mrb[0].mxu0 %v730
    %v1761 = vpop.f32.mrb[0].mxu0
    %v1762 = vadd.f32 0.0, %v1761
    %v1763 = vpop.f32.mrb[0].mxu0
    %v1764 = vadd.f32 0.0, %v1763
    %v1765 = vpop.f32.mrb[0].mxu0
    %v1766 = vadd.f32 0.0, %v1765
    %v1767 = vpop.f32.mrb[0].mxu0
    %v1768 = vadd.f32 0.0, %v1767
    %1769 = vmatprep.mubr.bf16.mxu0 0
    %1770 = vmatmul.mubr.bf16.gmra.mrb[0].mxu0 %v731
    %v1771 = vpop.f32.mrb[0].mxu0
    %v1772 = vadd.f32 0.0, %v1771
    %v1773 = vpop.f32.mrb[0].mxu0
    %v1774 = vadd.f32 0.0, %v1773
    %v1775 = vpop.f32.mrb[0].mxu0
    %v1776 = vadd.f32 0.0, %v1775
    %v1777 = vpop.f32.mrb[0].mxu0
    %v1778 = vadd.f32 0.0, %v1777
    %1779 = vmatprep.mubr.bf16.mxu0 0
    %1780 = vmatmul.mubr.bf16.gmra.mrb[0].mxu0 %v732
    %v1781 = vpop.f32.mrb[0].mxu0
    %v1782 = vadd.f32 0.0, %v1781
    %v1783 = vpop.f32.mrb[0].mxu0
    %v1784 = vadd.f32 0.0, %v1783
    %v1785 = vpop.f32.mrb[0].mxu0
    %v1786 = vadd.f32 0.0, %v1785
    %v1787 = vpop.f32.mrb[0].mxu0
    %v1788 = vadd.f32 0.0, %v1787
    %1789 = vmatprep.mubr.bf16.mxu0 0
    %1790 = vmatmul.mubr.bf16.gmra.mrb[0].mxu0 %v733
    %v1791 = vpop.f32.mrb[0].mxu0
    %v1792 = vadd.f32 0.0, %v1791
    %v1793 = vpop.f32.mrb[0].mxu0
    %v1794 = vadd.f32 0.0, %v1793
    %v1795 = vpop.f32.mrb[0].mxu0
    %v1796 = vadd.f32 0.0, %v1795
    %v1797 = vpop.f32.mrb[0].mxu0
    %v1798 = vadd.f32 0.0, %v1797
    %1799 = vmatprep.mubr.bf16.mxu0 0
    %1800 = vmatmul.mubr.bf16.gmra.mrb[0].mxu0 %v734
    %v1801 = vpop.f32.mrb[0].mxu0
    %v1802 = vadd.f32 0.0, %v1801
    %v1803 = vpop.f32.mrb[0].mxu0
    %v1804 = vadd.f32 0.0, %v1803
    %v1805 = vpop.f32.mrb[0].mxu0
    %v1806 = vadd.f32 0.0, %v1805
    %v1807 = vpop.f32.mrb[0].mxu0
    %v1808 = vadd.f32 0.0, %v1807
    %1809 = vmatprep.mubr.bf16.mxu0 0
    %1810 = vmatmul.mubr.bf16.gmra.mrb[0].mxu0 %v735
    %v1811 = vpop.f32.mrb[0].mxu0
    %v1812 = vadd.f32 0.0, %v1811
    %v1813 = vpop.f32.mrb[0].mxu0
    %v1814 = vadd.f32 0.0, %v1813
    %v1815 = vpop.f32.mrb[0].mxu0
    %v1816 = vadd.f32 0.0, %v1815
    %v1817 = vpop.f32.mrb[0].mxu0
    %v1818 = vadd.f32 0.0, %v1817
    %1819 = vmatprep.mubr.bf16.mxu0 0
    %1820 = vmatmul.mubr.bf16.gmra.mrb[0].mxu0 %v736
    %v1821 = vpop.f32.mrb[0].mxu0
    %v1822 = vadd.f32 0.0, %v1821
    %v1823 = vpop.f32.mrb[0].mxu0
    %v1824 = vadd.f32 0.0, %v1823
    %v1825 = vpop.f32.mrb[0].mxu0
    %v1826 = vadd.f32 0.0, %v1825
    %v1827 = vpop.f32.mrb[0].mxu0
    %v1828 = vadd.f32 0.0, %v1827
    %1829 = vmatprep.mubr.bf16.mxu0 0
    %1830 = vmatmul.mubr.bf16.gmra.mrb[0].mxu0 %v737
    %v1831 = vpop.f32.mrb[0].mxu0
    %v1832 = vadd.f32 0.0, %v1831
    %v1833 = vpop.f32.mrb[0].mxu0
    %v1834 = vadd.f32 0.0, %v1833
    %v1835 = vpop.f32.mrb[0].mxu0
    %v1836 = vadd.f32 0.0, %v1835
    %v1837 = vpop.f32.mrb[0].mxu0
    %v1838 = vadd.f32 0.0, %v1837
    %1839 = vmatprep.mubr.bf16.mxu0 0
    %1840 = vmatmul.mubr.bf16.gmra.mrb[0].mxu0 %v738
    %v1841 = vpop.f32.mrb[0].mxu0
    %v1842 = vadd.f32 0.0, %v1841
    %v1843 = vpop.f32.mrb[0].mxu0
    %v1844 = vadd.f32 0.0, %v1843
    %v1845 = vpop.f32.mrb[0].mxu0
    %v1846 = vadd.f32 0.0, %v1845
    %v1847 = vpop.f32.mrb[0].mxu0
    %v1848 = vadd.f32 0.0, %v1847
    %1849 = vmatprep.mubr.bf16.mxu0 0
    %1850 = vmatmul.mubr.bf16.gmra.mrb[0].mxu0 %v739
    %v1851 = vpop.f32.mrb[0].mxu0
    %v1852 = vadd.f32 0.0, %v1851
    %v1853 = vpop.f32.mrb[0].mxu0
    %v1854 = vadd.f32 0.0, %v1853
    %v1855 = vpop.f32.mrb[0].mxu0
    %v1856 = vadd.f32 0.0, %v1855
    %v1857 = vpop.f32.mrb[0].mxu0
    %v1858 = vadd.f32 0.0, %v1857
    %1859 = vmatprep.mubr.bf16.mxu0 0
    %1860 = vmatmul.mubr.bf16.gmra.mrb[0].mxu0 %v740
    %v1861 = vpop.f32.mrb[0].mxu0
    %v1862 = vadd.f32 0.0, %v1861
    %v1863 = vpop.f32.mrb[0].mxu0
    %v1864 = vadd.f32 0.0, %v1863
    %v1865 = vpop.f32.mrb[0].mxu0
    %v1866 = vadd.f32 0.0, %v1865
    %v1867 = vpop.f32.mrb[0].mxu0
    %v1868 = vadd.f32 0.0, %v1867
    %1869 = vmatprep.mubr.bf16.mxu0 0
    %1870 = vmatmul.mubr.bf16.gmra.mrb[0].mxu0 %v741
    %v1871 = vpop.f32.mrb[0].mxu0
    %v1872 = vadd.f32 0.0, %v1871
    %v1873 = vpop.f32.mrb[0].mxu0
    %v1874 = vadd.f32 0.0, %v1873
    %v1875 = vpop.f32.mrb[0].mxu0
    %v1876 = vadd.f32 0.0, %v1875
    %v1877 = vpop.f32.mrb[0].mxu0
    %v1878 = vadd.f32 0.0, %v1877
    %1879 = vmatprep.mubr.bf16.mxu0 0
    %1880 = vmatmul.mubr.bf16.gmra.mrb[0].mxu0 %v742
    %v1881 = vpop.f32.mrb[0].mxu0
    %v1882 = vadd.f32 0.0, %v1881
    %v1883 = vpop.f32.mrb[0].mxu0
    %v1884 = vadd.f32 0.0, %v1883
    %v1885 = vpop.f32.mrb[0].mxu0
    %v1886 = vadd.f32 0.0, %v1885
    %v1887 = vpop.f32.mrb[0].mxu0
    %v1888 = vadd.f32 0.0, %v1887
    %1889 = vmatprep.mubr.bf16.mxu0 0
    %1890 = vmatmul.mubr.bf16.gmra.mrb[0].mxu0 %v743
    %v1891 = vpop.f32.mrb[0].mxu0
    %v1892 = vadd.f32 0.0, %v1891
    %v1893 = vpop.f32.mrb[0].mxu0
    %v1894 = vadd.f32 0.0, %v1893
    %v1895 = vpop.f32.mrb[0].mxu0
    %v1896 = vadd.f32 0.0, %v1895
    %v1897 = vpop.f32.mrb[0].mxu0
    %v1898 = vadd.f32 0.0, %v1897
    %1899 = vdwg.mxu0
    %v1900 = vpack.c.bf16 %v1167, %v1163
    %v1901 = vpack.c.bf16 %v1169, %v1165
    %v1902 = vpack.c.bf16 %v1360, %v1356
    %v1903 = vpack.c.bf16 %v1362, %v1358
    %v1904 = vpack.c.bf16 %v1553, %v1549
    %v1905 = vpack.c.bf16 %v1555, %v1551
    %v1906 = vpack.c.bf16 %v1746, %v1742
    %v1907 = vpack.c.bf16 %v1748, %v1744
    %v1908 = vpack.c.bf16 %v1177, %v1173
    %v1909 = vpack.c.bf16 %v1179, %v1175
    %v1910 = vpack.c.bf16 %v1370, %v1366
    %v1911 = vpack.c.bf16 %v1372, %v1368
    %v1912 = vpack.c.bf16 %v1563, %v1559
    %v1913 = vpack.c.bf16 %v1565, %v1561
    %v1914 = vpack.c.bf16 %v1756, %v1752
    %v1915 = vpack.c.bf16 %v1758, %v1754
    %v1916 = vpack.c.bf16 %v1187, %v1183
    %v1917 = vpack.c.bf16 %v1189, %v1185
    %v1918 = vpack.c.bf16 %v1380, %v1376
    %v1919 = vpack.c.bf16 %v1382, %v1378
    %v1920 = vpack.c.bf16 %v1573, %v1569
    %v1921 = vpack.c.bf16 %v1575, %v1571
    %v1922 = vpack.c.bf16 %v1766, %v1762
    %v1923 = vpack.c.bf16 %v1768, %v1764
    %v1924 = vpack.c.bf16 %v1197, %v1193
    %v1925 = vpack.c.bf16 %v1199, %v1195
    %v1926 = vpack.c.bf16 %v1390, %v1386
    %v1927 = vpack.c.bf16 %v1392, %v1388
    %v1928 = vpack.c.bf16 %v1583, %v1579
    %v1929 = vpack.c.bf16 %v1585, %v1581
    %v1930 = vpack.c.bf16 %v1776, %v1772
    %v1931 = vpack.c.bf16 %v1778, %v1774
    %v1932 = vpack.c.bf16 %v1207, %v1203
    %v1933 = vpack.c.bf16 %v1209, %v1205
    %v1934 = vpack.c.bf16 %v1400, %v1396
    %v1935 = vpack.c.bf16 %v1402, %v1398
    %v1936 = vpack.c.bf16 %v1593, %v1589
    %v1937 = vpack.c.bf16 %v1595, %v1591
    %v1938 = vpack.c.bf16 %v1786, %v1782
    %v1939 = vpack.c.bf16 %v1788, %v1784
    %v1940 = vpack.c.bf16 %v1217, %v1213
    %v1941 = vpack.c.bf16 %v1219, %v1215
    %v1942 = vpack.c.bf16 %v1410, %v1406
    %v1943 = vpack.c.bf16 %v1412, %v1408
    %v1944 = vpack.c.bf16 %v1603, %v1599
    %v1945 = vpack.c.bf16 %v1605, %v1601
    %v1946 = vpack.c.bf16 %v1796, %v1792
    %v1947 = vpack.c.bf16 %v1798, %v1794
    %v1948 = vpack.c.bf16 %v1227, %v1223
    %v1949 = vpack.c.bf16 %v1229, %v1225
    %v1950 = vpack.c.bf16 %v1420, %v1416
    %v1951 = vpack.c.bf16 %v1422, %v1418
    %v1952 = vpack.c.bf16 %v1613, %v1609
    %v1953 = vpack.c.bf16 %v1615, %v1611
    %v1954 = vpack.c.bf16 %v1806, %v1802
    %v1955 = vpack.c.bf16 %v1808, %v1804
    %v1956 = vpack.c.bf16 %v1237, %v1233
    %v1957 = vpack.c.bf16 %v1239, %v1235
    %v1958 = vpack.c.bf16 %v1430, %v1426
    %v1959 = vpack.c.bf16 %v1432, %v1428
    %v1960 = vpack.c.bf16 %v1623, %v1619
    %v1961 = vpack.c.bf16 %v1625, %v1621
    %v1962 = vpack.c.bf16 %v1816, %v1812
    %v1963 = vpack.c.bf16 %v1818, %v1814
    %v1964 = vpack.c.bf16 %v1247, %v1243
    %v1965 = vpack.c.bf16 %v1249, %v1245
    %v1966 = vpack.c.bf16 %v1440, %v1436
    %v1967 = vpack.c.bf16 %v1442, %v1438
    %v1968 = vpack.c.bf16 %v1633, %v1629
    %v1969 = vpack.c.bf16 %v1635, %v1631
    %v1970 = vpack.c.bf16 %v1826, %v1822
    %v1971 = vpack.c.bf16 %v1828, %v1824
    %v1972 = vpack.c.bf16 %v1257, %v1253
    %v1973 = vpack.c.bf16 %v1259, %v1255
    %v1974 = vpack.c.bf16 %v1450, %v1446
    %v1975 = vpack.c.bf16 %v1452, %v1448
    %v1976 = vpack.c.bf16 %v1643, %v1639
    %v1977 = vpack.c.bf16 %v1645, %v1641
    %v1978 = vpack.c.bf16 %v1836, %v1832
    %v1979 = vpack.c.bf16 %v1838, %v1834
    %v1980 = vpack.c.bf16 %v1267, %v1263
    %v1981 = vpack.c.bf16 %v1269, %v1265
    %v1982 = vpack.c.bf16 %v1460, %v1456
    %v1983 = vpack.c.bf16 %v1462, %v1458
    %v1984 = vpack.c.bf16 %v1653, %v1649
    %v1985 = vpack.c.bf16 %v1655, %v1651
    %v1986 = vpack.c.bf16 %v1846, %v1842
    %v1987 = vpack.c.bf16 %v1848, %v1844
    %v1988 = vpack.c.bf16 %v1277, %v1273
    %v1989 = vpack.c.bf16 %v1279, %v1275
    %v1990 = vpack.c.bf16 %v1470, %v1466
    %v1991 = vpack.c.bf16 %v1472, %v1468
    %v1992 = vpack.c.bf16 %v1663, %v1659
    %v1993 = vpack.c.bf16 %v1665, %v1661
    %v1994 = vpack.c.bf16 %v1856, %v1852
    %v1995 = vpack.c.bf16 %v1858, %v1854
    %v1996 = vpack.c.bf16 %v1287, %v1283
    %v1997 = vpack.c.bf16 %v1289, %v1285
    %v1998 = vpack.c.bf16 %v1480, %v1476
    %v1999 = vpack.c.bf16 %v1482, %v1478
    %v2000 = vpack.c.bf16 %v1673, %v1669
    %v2001 = vpack.c.bf16 %v1675, %v1671
    %v2002 = vpack.c.bf16 %v1866, %v1862
    %v2003 = vpack.c.bf16 %v1868, %v1864
    %v2004 = vpack.c.bf16 %v1297, %v1293
    %v2005 = vpack.c.bf16 %v1299, %v1295
    %v2006 = vpack.c.bf16 %v1490, %v1486
    %v2007 = vpack.c.bf16 %v1492, %v1488
    %v2008 = vpack.c.bf16 %v1683, %v1679
    %v2009 = vpack.c.bf16 %v1685, %v1681
    %v2010 = vpack.c.bf16 %v1876, %v1872
    %v2011 = vpack.c.bf16 %v1878, %v1874
    %v2012 = vpack.c.bf16 %v1307, %v1303
    %v2013 = vpack.c.bf16 %v1309, %v1305
    %v2014 = vpack.c.bf16 %v1500, %v1496
    %v2015 = vpack.c.bf16 %v1502, %v1498
    %v2016 = vpack.c.bf16 %v1693, %v1689
    %v2017 = vpack.c.bf16 %v1695, %v1691
    %v2018 = vpack.c.bf16 %v1886, %v1882
    %v2019 = vpack.c.bf16 %v1888, %v1884
    %v2020 = vpack.c.bf16 %v1317, %v1313
    %v2021 = vpack.c.bf16 %v1319, %v1315
    %v2022 = vpack.c.bf16 %v1510, %v1506
    %v2023 = vpack.c.bf16 %v1512, %v1508
    %v2024 = vpack.c.bf16 %v1703, %v1699
    %v2025 = vpack.c.bf16 %v1705, %v1701
    %v2026 = vpack.c.bf16 %v1896, %v1892
    %v2027 = vpack.c.bf16 %v1898, %v1894
    %v2028 = vmax.bf16 %v1900, %v1908
    %v2029 = vmax.bf16 %v2028, %v1916
    %v2030 = vmax.bf16 %v2029, %v1924
    %v2031 = vmax.bf16 %v2030, %v1932
    %v2032 = vmax.bf16 %v2031, %v1940
    %v2033 = vmax.bf16 %v2032, %v1948
    %v2034 = vmax.bf16 %v2033, %v1956
    %v2035 = vunpack.i.l.bf16 %v2034
    %v2036 = vunpack.i.h.bf16 %v2034
    %v2037 = vmax.f32 %v2035, %v2036
    %v2038 = vrot.slane %v2037, 4
    %v2039 = vmax.f32 %v2037, %v2038
    %v2040 = vrot.slane %v2039, 2
    %v2041 = vmax.f32 %v2039, %v2040
    %v2042 = vrot.slane %v2041, 1
    %v2043 = vmax.f32 %v2041, %v2042
    %v2044 = vpack.i.bf16 %v2043, %v2043
    %v2045 = vmax.bf16 %v1901, %v1909
    %v2046 = vmax.bf16 %v2045, %v1917
    %v2047 = vmax.bf16 %v2046, %v1925
    %v2048 = vmax.bf16 %v2047, %v1933
    %v2049 = vmax.bf16 %v2048, %v1941
    %v2050 = vmax.bf16 %v2049, %v1949
    %v2051 = vmax.bf16 %v2050, %v1957
    %v2052 = vunpack.i.l.bf16 %v2051
    %v2053 = vunpack.i.h.bf16 %v2051
    %v2054 = vmax.f32 %v2052, %v2053
    %v2055 = vrot.slane %v2054, 4
    %v2056 = vmax.f32 %v2054, %v2055
    %v2057 = vrot.slane %v2056, 2
    %v2058 = vmax.f32 %v2056, %v2057
    %v2059 = vrot.slane %v2058, 1
    %v2060 = vmax.f32 %v2058, %v2059
    %v2061 = vpack.i.bf16 %v2060, %v2060
    %v2062 = vmax.bf16 %v1902, %v1910
    %v2063 = vmax.bf16 %v2062, %v1918
    %v2064 = vmax.bf16 %v2063, %v1926
    %v2065 = vmax.bf16 %v2064, %v1934
    %v2066 = vmax.bf16 %v2065, %v1942
    %v2067 = vmax.bf16 %v2066, %v1950
    %v2068 = vmax.bf16 %v2067, %v1958
    %v2069 = vunpack.i.l.bf16 %v2068
    %v2070 = vunpack.i.h.bf16 %v2068
    %v2071 = vmax.f32 %v2069, %v2070
    %v2072 = vrot.slane %v2071, 4
    %v2073 = vmax.f32 %v2071, %v2072
    %v2074 = vrot.slane %v2073, 2
    %v2075 = vmax.f32 %v2073, %v2074
    %v2076 = vrot.slane %v2075, 1
    %v2077 = vmax.f32 %v2075, %v2076
    %v2078 = vpack.i.bf16 %v2077, %v2077
    %v2079 = vmax.bf16 %v1903, %v1911
    %v2080 = vmax.bf16 %v2079, %v1919
    %v2081 = vmax.bf16 %v2080, %v1927
    %v2082 = vmax.bf16 %v2081, %v1935
    %v2083 = vmax.bf16 %v2082, %v1943
    %v2084 = vmax.bf16 %v2083, %v1951
    %v2085 = vmax.bf16 %v2084, %v1959
    %v2086 = vunpack.i.l.bf16 %v2085
    %v2087 = vunpack.i.h.bf16 %v2085
    %v2088 = vmax.f32 %v2086, %v2087
    %v2089 = vrot.slane %v2088, 4
    %v2090 = vmax.f32 %v2088, %v2089
    %v2091 = vrot.slane %v2090, 2
    %v2092 = vmax.f32 %v2090, %v2091
    %v2093 = vrot.slane %v2092, 1
    %v2094 = vmax.f32 %v2092, %v2093
    %v2095 = vpack.i.bf16 %v2094, %v2094
    %v2096 = vmax.bf16 %v1904, %v1912
    %v2097 = vmax.bf16 %v2096, %v1920
    %v2098 = vmax.bf16 %v2097, %v1928
    %v2099 = vmax.bf16 %v2098, %v1936
    %v2100 = vmax.bf16 %v2099, %v1944
    %v2101 = vmax.bf16 %v2100, %v1952
    %v2102 = vmax.bf16 %v2101, %v1960
    %v2103 = vunpack.i.l.bf16 %v2102
    %v2104 = vunpack.i.h.bf16 %v2102
    %v2105 = vmax.f32 %v2103, %v2104
    %v2106 = vrot.slane %v2105, 4
    %v2107 = vmax.f32 %v2105, %v2106
    %v2108 = vrot.slane %v2107, 2
    %v2109 = vmax.f32 %v2107, %v2108
    %v2110 = vrot.slane %v2109, 1
    %v2111 = vmax.f32 %v2109, %v2110
    %v2112 = vpack.i.bf16 %v2111, %v2111
    %v2113 = vmax.bf16 %v1905, %v1913
    %v2114 = vmax.bf16 %v2113, %v1921
    %v2115 = vmax.bf16 %v2114, %v1929
    %v2116 = vmax.bf16 %v2115, %v1937
    %v2117 = vmax.bf16 %v2116, %v1945
    %v2118 = vmax.bf16 %v2117, %v1953
    %v2119 = vmax.bf16 %v2118, %v1961
    %v2120 = vunpack.i.l.bf16 %v2119
    %v2121 = vunpack.i.h.bf16 %v2119
    %v2122 = vmax.f32 %v2120, %v2121
    %v2123 = vrot.slane %v2122, 4
    %v2124 = vmax.f32 %v2122, %v2123
    %v2125 = vrot.slane %v2124, 2
    %v2126 = vmax.f32 %v2124, %v2125
    %v2127 = vrot.slane %v2126, 1
    %v2128 = vmax.f32 %v2126, %v2127
    %v2129 = vpack.i.bf16 %v2128, %v2128
    %v2130 = vmax.bf16 %v1906, %v1914
    %v2131 = vmax.bf16 %v2130, %v1922
    %v2132 = vmax.bf16 %v2131, %v1930
    %v2133 = vmax.bf16 %v2132, %v1938
    %v2134 = vmax.bf16 %v2133, %v1946
    %v2135 = vmax.bf16 %v2134, %v1954
    %v2136 = vmax.bf16 %v2135, %v1962
    %v2137 = vunpack.i.l.bf16 %v2136
    %v2138 = vunpack.i.h.bf16 %v2136
    %v2139 = vmax.f32 %v2137, %v2138
    %v2140 = vrot.slane %v2139, 4
    %v2141 = vmax.f32 %v2139, %v2140
    %v2142 = vrot.slane %v2141, 2
    %v2143 = vmax.f32 %v2141, %v2142
    %v2144 = vrot.slane %v2143, 1
    %v2145 = vmax.f32 %v2143, %v2144
    %v2146 = vpack.i.bf16 %v2145, %v2145
    %v2147 = vmax.bf16 %v1907, %v1915
    %v2148 = vmax.bf16 %v2147, %v1923
    %v2149 = vmax.bf16 %v2148, %v1931
    %v2150 = vmax.bf16 %v2149, %v1939
    %v2151 = vmax.bf16 %v2150, %v1947
    %v2152 = vmax.bf16 %v2151, %v1955
    %v2153 = vmax.bf16 %v2152, %v1963
    %v2154 = vunpack.i.l.bf16 %v2153
    %v2155 = vunpack.i.h.bf16 %v2153
    %v2156 = vmax.f32 %v2154, %v2155
    %v2157 = vrot.slane %v2156, 4
    %v2158 = vmax.f32 %v2156, %v2157
    %v2159 = vrot.slane %v2158, 2
    %v2160 = vmax.f32 %v2158, %v2159
    %v2161 = vrot.slane %v2160, 1
    %v2162 = vmax.f32 %v2160, %v2161
    %v2163 = vpack.i.bf16 %v2162, %v2162
    %v2164 = vmax.bf16 %v1964, %v1972
    %v2165 = vmax.bf16 %v2164, %v1980
    %v2166 = vmax.bf16 %v2165, %v1988
    %v2167 = vmax.bf16 %v2166, %v1996
    %v2168 = vmax.bf16 %v2167, %v2004
    %v2169 = vmax.bf16 %v2168, %v2012
    %v2170 = vmax.bf16 %v2169, %v2020
    %v2171 = vunpack.i.l.bf16 %v2170
    %v2172 = vunpack.i.h.bf16 %v2170
    %v2173 = vmax.f32 %v2171, %v2172
    %v2174 = vrot.slane %v2173, 4
    %v2175 = vmax.f32 %v2173, %v2174
    %v2176 = vrot.slane %v2175, 2
    %v2177 = vmax.f32 %v2175, %v2176
    %v2178 = vrot.slane %v2177, 1
    %v2179 = vmax.f32 %v2177, %v2178
    %v2180 = vpack.i.bf16 %v2179, %v2179
    %v2181 = vmax.bf16 %v1965, %v1973
    %v2182 = vmax.bf16 %v2181, %v1981
    %v2183 = vmax.bf16 %v2182, %v1989
    %v2184 = vmax.bf16 %v2183, %v1997
    %v2185 = vmax.bf16 %v2184, %v2005
    %v2186 = vmax.bf16 %v2185, %v2013
    %v2187 = vmax.bf16 %v2186, %v2021
    %v2188 = vunpack.i.l.bf16 %v2187
    %v2189 = vunpack.i.h.bf16 %v2187
    %v2190 = vmax.f32 %v2188, %v2189
    %v2191 = vrot.slane %v2190, 4
    %v2192 = vmax.f32 %v2190, %v2191
    %v2193 = vrot.slane %v2192, 2
    %v2194 = vmax.f32 %v2192, %v2193
    %v2195 = vrot.slane %v2194, 1
    %v2196 = vmax.f32 %v2194, %v2195
    %v2197 = vpack.i.bf16 %v2196, %v2196
    %v2198 = vmax.bf16 %v1966, %v1974
    %v2199 = vmax.bf16 %v2198, %v1982
    %v2200 = vmax.bf16 %v2199, %v1990
    %v2201 = vmax.bf16 %v2200, %v1998
    %v2202 = vmax.bf16 %v2201, %v2006
    %v2203 = vmax.bf16 %v2202, %v2014
    %v2204 = vmax.bf16 %v2203, %v2022
    %v2205 = vunpack.i.l.bf16 %v2204
    %v2206 = vunpack.i.h.bf16 %v2204
    %v2207 = vmax.f32 %v2205, %v2206
    %v2208 = vrot.slane %v2207, 4
    %v2209 = vmax.f32 %v2207, %v2208
    %v2210 = vrot.slane %v2209, 2
    %v2211 = vmax.f32 %v2209, %v2210
    %v2212 = vrot.slane %v2211, 1
    %v2213 = vmax.f32 %v2211, %v2212
    %v2214 = vpack.i.bf16 %v2213, %v2213
    %v2215 = vmax.bf16 %v1967, %v1975
    %v2216 = vmax.bf16 %v2215, %v1983
    %v2217 = vmax.bf16 %v2216, %v1991
    %v2218 = vmax.bf16 %v2217, %v1999
    %v2219 = vmax.bf16 %v2218, %v2007
    %v2220 = vmax.bf16 %v2219, %v2015
    %v2221 = vmax.bf16 %v2220, %v2023
    %v2222 = vunpack.i.l.bf16 %v2221
    %v2223 = vunpack.i.h.bf16 %v2221
    %v2224 = vmax.f32 %v2222, %v2223
    %v2225 = vrot.slane %v2224, 4
    %v2226 = vmax.f32 %v2224, %v2225
    %v2227 = vrot.slane %v2226, 2
    %v2228 = vmax.f32 %v2226, %v2227
    %v2229 = vrot.slane %v2228, 1
    %v2230 = vmax.f32 %v2228, %v2229
    %v2231 = vpack.i.bf16 %v2230, %v2230
    %v2232 = vmax.bf16 %v1968, %v1976
    %v2233 = vmax.bf16 %v2232, %v1984
    %v2234 = vmax.bf16 %v2233, %v1992
    %v2235 = vmax.bf16 %v2234, %v2000
    %v2236 = vmax.bf16 %v2235, %v2008
    %v2237 = vmax.bf16 %v2236, %v2016
    %v2238 = vmax.bf16 %v2237, %v2024
    %v2239 = vunpack.i.l.bf16 %v2238
    %v2240 = vunpack.i.h.bf16 %v2238
    %v2241 = vmax.f32 %v2239, %v2240
    %v2242 = vrot.slane %v2241, 4
    %v2243 = vmax.f32 %v2241, %v2242
    %v2244 = vrot.slane %v2243, 2
    %v2245 = vmax.f32 %v2243, %v2244
    %v2246 = vrot.slane %v2245, 1
    %v2247 = vmax.f32 %v2245, %v2246
    %v2248 = vpack.i.bf16 %v2247, %v2247
    %v2249 = vmax.bf16 %v1969, %v1977
    %v2250 = vmax.bf16 %v2249, %v1985
    %v2251 = vmax.bf16 %v2250, %v1993
    %v2252 = vmax.bf16 %v2251, %v2001
    %v2253 = vmax.bf16 %v2252, %v2009
    %v2254 = vmax.bf16 %v2253, %v2017
    %v2255 = vmax.bf16 %v2254, %v2025
    %v2256 = vunpack.i.l.bf16 %v2255
    %v2257 = vunpack.i.h.bf16 %v2255
    %v2258 = vmax.f32 %v2256, %v2257
    %v2259 = vrot.slane %v2258, 4
    %v2260 = vmax.f32 %v2258, %v2259
    %v2261 = vrot.slane %v2260, 2
    %v2262 = vmax.f32 %v2260, %v2261
    %v2263 = vrot.slane %v2262, 1
    %v2264 = vmax.f32 %v2262, %v2263
    %v2265 = vpack.i.bf16 %v2264, %v2264
    %v2266 = vmax.bf16 %v1970, %v1978
    %v2267 = vmax.bf16 %v2266, %v1986
    %v2268 = vmax.bf16 %v2267, %v1994
    %v2269 = vmax.bf16 %v2268, %v2002
    %v2270 = vmax.bf16 %v2269, %v2010
    %v2271 = vmax.bf16 %v2270, %v2018
    %v2272 = vmax.bf16 %v2271, %v2026
    %v2273 = vunpack.i.l.bf16 %v2272
    %v2274 = vunpack.i.h.bf16 %v2272
    %v2275 = vmax.f32 %v2273, %v2274
    %v2276 = vrot.slane %v2275, 4
    %v2277 = vmax.f32 %v2275, %v2276
    %v2278 = vrot.slane %v2277, 2
    %v2279 = vmax.f32 %v2277, %v2278
    %v2280 = vrot.slane %v2279, 1
    %v2281 = vmax.f32 %v2279, %v2280
    %v2282 = vpack.i.bf16 %v2281, %v2281
    %v2283 = vmax.bf16 %v1971, %v1979
    %v2284 = vmax.bf16 %v2283, %v1987
    %v2285 = vmax.bf16 %v2284, %v1995
    %v2286 = vmax.bf16 %v2285, %v2003
    %v2287 = vmax.bf16 %v2286, %v2011
    %v2288 = vmax.bf16 %v2287, %v2019
    %v2289 = vmax.bf16 %v2288, %v2027
    %v2290 = vunpack.i.l.bf16 %v2289
    %v2291 = vunpack.i.h.bf16 %v2289
    %v2292 = vmax.f32 %v2290, %v2291
    %v2293 = vrot.slane %v2292, 4
    %v2294 = vmax.f32 %v2292, %v2293
    %v2295 = vrot.slane %v2294, 2
    %v2296 = vmax.f32 %v2294, %v2295
    %v2297 = vrot.slane %v2296, 1
    %v2298 = vmax.f32 %v2296, %v2297
    %v2299 = vpack.i.bf16 %v2298, %v2298
    %v2300 = vld [vmem:[#allocation2] sm:$0xff]
    %v2301 = vld [vmem:[#allocation2 + $0x8] sm:$0xff]
    %v2302 = vunpack.c.l.bf16 %v2044
    %v2303 = vunpack.c.l.bf16 %v2061
    %v2304 = vunpack.c.l.bf16 %v2078
    %v2305 = vunpack.c.l.bf16 %v2095
    %v2306 = vunpack.c.l.bf16 %v2112
    %v2307 = vunpack.c.l.bf16 %v2129
    %v2308 = vunpack.c.l.bf16 %v2146
    %v2309 = vunpack.c.l.bf16 %v2163
    %v2310 = vunpack.c.l.bf16 %v2180
    %v2311 = vunpack.c.l.bf16 %v2197
    %v2312 = vunpack.c.l.bf16 %v2214
    %v2313 = vunpack.c.l.bf16 %v2231
    %v2314 = vunpack.c.l.bf16 %v2248
    %v2315 = vunpack.c.l.bf16 %v2265
    %v2316 = vunpack.c.l.bf16 %v2282
    %v2317 = vunpack.c.l.bf16 %v2299
    %v2334 = vcombine.low %v2302, %v2303
    %v2335 = vcombine.low %v2304, %v2305
    %v2337 = vunpack.c.l.s4 1983009808
    %v2338 = vunpack.c.0.s8 %v2337
    %v2339 = vlaneseq
    %v2340 = vshrl.u32 %v2339, 7
    %v2341 = vsub.s32 %v2338, %v2340
    %v2342 = vrot.slane %v2334, %v2341
    %v2344 = vunpack.c.l.s4 1983009808
    %v2345 = vunpack.c.0.s8 %v2344
    %v2346 = vlaneseq
    %v2347 = vshrl.u32 %v2346, 7
    %v2348 = vsub.s32 %v2345, %v2347
    %v2349 = vrot.slane %v2335, %v2348
    %v2350 = vcombine.low %v2342, %v2349
    %v2351 = vcombine.low %v2306, %v2307
    %v2352 = vcombine.low %v2308, %v2309
    %v2354 = vunpack.c.l.s4 1983009808
    %v2355 = vunpack.c.0.s8 %v2354
    %v2356 = vlaneseq
    %v2357 = vshrl.u32 %v2356, 7
    %v2358 = vsub.s32 %v2355, %v2357
    %v2359 = vrot.slane %v2351, %v2358
    %v2361 = vunpack.c.l.s4 1983009808
    %v2362 = vunpack.c.0.s8 %v2361
    %v2363 = vlaneseq
    %v2364 = vshrl.u32 %v2363, 7
    %v2365 = vsub.s32 %v2362, %v2364
    %v2366 = vrot.slane %v2352, %v2365
    %v2367 = vcombine.low %v2359, %v2366
    %v2368 = vcombine.low %v2310, %v2311
    %v2369 = vcombine.low %v2312, %v2313
    %v2371 = vunpack.c.l.s4 1983009808
    %v2372 = vunpack.c.0.s8 %v2371
    %v2373 = vlaneseq
    %v2374 = vshrl.u32 %v2373, 7
    %v2375 = vsub.s32 %v2372, %v2374
    %v2376 = vrot.slane %v2368, %v2375
    %v2378 = vunpack.c.l.s4 1983009808
    %v2379 = vunpack.c.0.s8 %v2378
    %v2380 = vlaneseq
    %v2381 = vshrl.u32 %v2380, 7
    %v2382 = vsub.s32 %v2379, %v2381
    %v2383 = vrot.slane %v2369, %v2382
    %v2384 = vcombine.low %v2376, %v2383
    %v2385 = vcombine.low %v2314, %v2315
    %v2386 = vcombine.low %v2316, %v2317
    %v2388 = vunpack.c.l.s4 1983009808
    %v2389 = vunpack.c.0.s8 %v2388
    %v2390 = vlaneseq
    %v2391 = vshrl.u32 %v2390, 7
    %v2392 = vsub.s32 %v2389, %v2391
    %v2393 = vrot.slane %v2385, %v2392
    %v2395 = vunpack.c.l.s4 1983009808
    %v2396 = vunpack.c.0.s8 %v2395
    %v2397 = vlaneseq
    %v2398 = vshrl.u32 %v2397, 7
    %v2399 = vsub.s32 %v2396, %v2398
    %v2400 = vrot.slane %v2386, %v2399
    %v2401 = vcombine.low %v2393, %v2400
    %vm2402 = vcmask 1044484
    %v2403 = vsel %vm2402, %v2350, %v2350
    %vm2404 = vcmask 1046534
    %v2405 = vsel %vm2404, %v2350, %v2403
    %v2406 = vrot.slane %v2384, 7
    %vm2407 = vcmask 1041409
    %v2408 = vsel %vm2407, %v2406, %v2405
    %vm2409 = vcmask 1043459
    %v2410 = vsel %vm2409, %v2406, %v2408
    %vm2411 = vcmask 1045509
    %v2412 = vsel %vm2411, %v2406, %v2410
    %vm2413 = vcmask 1047559
    %v2414 = vsel %vm2413, %v2406, %v2412
    %v2415 = vsel %vm2402, %v2367, %v2367
    %v2416 = vsel %vm2404, %v2367, %v2415
    %v2417 = vrot.slane %v2401, 7
    %v2418 = vsel %vm2407, %v2417, %v2416
    %v2419 = vsel %vm2409, %v2417, %v2418
    %v2420 = vsel %vm2411, %v2417, %v2419
    %v2421 = vsel %vm2413, %v2417, %v2420
    %v2424 = vmax.f32 %v2300, %v2414
    %v2425 = vmax.f32 %v2301, %v2421
    %2426 = vst [vmem:[#allocation2] sm:$0xff] %v2424
    %2427 = vst [vmem:[#allocation2 + $0x8] sm:$0xff] %v2425
    // Predicated region
    $region70: #{rot_encoder_forward.2} parent=1 // pred_check
      %p2428 = pneg %p86
    $region71: #{rot_encoder_forward.2} parent=1 // pred_check_branch
      %2430 = sbr.rel (%p2428) target = $region73
    $region72: #{rot_encoder_forward.2} parent=1 // pred_region
      %v2431 = vld [vmem:[#allocation2] sm:$0xff]
      %v2432 = vld [vmem:[#allocation2 + $0x8] sm:$0xff]
      %v2433 = vld [vmem:[%s6] sm:$0xff]
      %v2435 = vlaneseq
      %v2436 = vshrl.u32 %v2435, 7
      %v2437 = vsub.s32 0, %v2436
      %v2438 = vrot.slane %v2433, %v2437
      %v2439 = vlaneseq
      %v2440 = vshrl.u32 %v2439, 7
      %v2441 = vsub.s32 1, %v2440
      %v2442 = vrot.slane %v2433, %v2441
      %v2443 = vlaneseq
      %v2444 = vshrl.u32 %v2443, 7
      %v2445 = vsub.s32 2, %v2444
      %v2446 = vrot.slane %v2433, %v2445
      %v2447 = vlaneseq
      %v2448 = vshrl.u32 %v2447, 7
      %v2449 = vsub.s32 3, %v2448
      %v2450 = vrot.slane %v2433, %v2449
      %v2451 = vlaneseq
      %v2452 = vshrl.u32 %v2451, 7
      %v2453 = vsub.s32 4, %v2452
      %v2454 = vrot.slane %v2433, %v2453
      %v2455 = vlaneseq
      %v2456 = vshrl.u32 %v2455, 7
      %v2457 = vsub.s32 5, %v2456
      %v2458 = vrot.slane %v2433, %v2457
      %v2459 = vlaneseq
      %v2460 = vshrl.u32 %v2459, 7
      %v2461 = vsub.s32 6, %v2460
      %v2462 = vrot.slane %v2433, %v2461
      %v2463 = vlaneseq
      %v2464 = vshrl.u32 %v2463, 7
      %v2465 = vsub.s32 7, %v2464
      %v2466 = vrot.slane %v2433, %v2465
      %v2467 = vcombine.low %v2438, %v2442
      %v2468 = vcombine.low %v2446, %v2450
      %v2470 = vunpack.c.l.s4 1983009808
      %v2471 = vunpack.c.0.s8 %v2470
      %v2472 = vlaneseq
      %v2473 = vshrl.u32 %v2472, 7
      %v2474 = vsub.s32 %v2471, %v2473
      %v2475 = vrot.slane %v2467, %v2474
      %v2477 = vunpack.c.l.s4 1983009808
      %v2478 = vunpack.c.0.s8 %v2477
      %v2479 = vlaneseq
      %v2480 = vshrl.u32 %v2479, 7
      %v2481 = vsub.s32 %v2478, %v2480
      %v2482 = vrot.slane %v2468, %v2481
      %v2483 = vcombine.low %v2475, %v2482
      %v2484 = vcombine.low %v2454, %v2458
      %v2485 = vcombine.low %v2462, %v2466
      %v2487 = vunpack.c.l.s4 1983009808
      %v2488 = vunpack.c.0.s8 %v2487
      %v2489 = vlaneseq
      %v2490 = vshrl.u32 %v2489, 7
      %v2491 = vsub.s32 %v2488, %v2490
      %v2492 = vrot.slane %v2484, %v2491
      %v2494 = vunpack.c.l.s4 1983009808
      %v2495 = vunpack.c.0.s8 %v2494
      %v2496 = vlaneseq
      %v2497 = vshrl.u32 %v2496, 7
      %v2498 = vsub.s32 %v2495, %v2497
      %v2499 = vrot.slane %v2485, %v2498
      %v2500 = vcombine.low %v2492, %v2499
      %v2503 = vadd.f32 %v2431, %v2483
      %v2504 = vadd.f32 %v2432, %v2500
      %v2505 = vmax.f32 %v2503, 0.0
      %v2506 = vmax.f32 %v2504, 0.0
      %v2509 = vcombine.high %v2505, %v2505
      %v2511 = vunpack.c.l.s4 1983009808
      %v2512 = vunpack.c.0.s8 %v2511
      %v2513 = vlaneseq
      %v2514 = vshrl.u32 %v2513, 7
      %v2515 = vsub.s32 %v2512, %v2514
      %v2516 = vrot.slane %v2505, %v2515
      %v2518 = vunpack.c.l.s4 1983009808
      %v2519 = vunpack.c.0.s8 %v2518
      %v2520 = vlaneseq
      %v2521 = vshrl.u32 %v2520, 7
      %v2522 = vsub.s32 %v2519, %v2521
      %v2523 = vrot.slane %v2509, %v2522
      %v2524 = vcombine.high %v2516, %v2516
      %v2525 = vcombine.high %v2523, %v2523
      %v2526 = vcombine.high %v2506, %v2506
      %v2528 = vunpack.c.l.s4 1983009808
      %v2529 = vunpack.c.0.s8 %v2528
      %v2530 = vlaneseq
      %v2531 = vshrl.u32 %v2530, 7
      %v2532 = vsub.s32 %v2529, %v2531
      %v2533 = vrot.slane %v2506, %v2532
      %v2535 = vunpack.c.l.s4 1983009808
      %v2536 = vunpack.c.0.s8 %v2535
      %v2537 = vlaneseq
      %v2538 = vshrl.u32 %v2537, 7
      %v2539 = vsub.s32 %v2536, %v2538
      %v2540 = vrot.slane %v2526, %v2539
      %v2541 = vcombine.high %v2533, %v2533
      %v2542 = vcombine.high %v2540, %v2540
      %v2551 = vpack.c.bf16 %v2516, %v2516
      %v2552 = vpack.c.bf16 %v2524, %v2524
      %v2553 = vpack.c.bf16 %v2523, %v2523
      %v2554 = vpack.c.bf16 %v2525, %v2525
      %v2555 = vpack.c.bf16 %v2533, %v2533
      %v2556 = vpack.c.bf16 %v2541, %v2541
      %v2557 = vpack.c.bf16 %v2540, %v2540
      %v2558 = vpack.c.bf16 %v2542, %v2542
      %v2559 = vld [vmem:[#allocation5] sm:$0xff]
      %v2560 = vld [vmem:[#allocation5 + $0x8] sm:$0xff]
      %v2561 = vld [vmem:[#allocation5 + $0x10] sm:$0xff]
      %v2562 = vld [vmem:[#allocation5 + $0x18] sm:$0xff]
      %v2563 = vld [vmem:[#allocation5 + $0x20] sm:$0xff]
      %v2564 = vld [vmem:[#allocation5 + $0x28] sm:$0xff]
      %v2565 = vld [vmem:[#allocation5 + $0x30] sm:$0xff]
      %v2566 = vld [vmem:[#allocation5 + $0x38] sm:$0xff]
      %v2567 = vld [vmem:[#allocation5 + $0x40] sm:$0xff]
      %v2568 = vld [vmem:[#allocation5 + $0x48] sm:$0xff]
      %v2569 = vld [vmem:[#allocation5 + $0x50] sm:$0xff]
      %v2570 = vld [vmem:[#allocation5 + $0x58] sm:$0xff]
      %v2571 = vld [vmem:[#allocation5 + $0x60] sm:$0xff]
      %v2572 = vld [vmem:[#allocation5 + $0x68] sm:$0xff]
      %v2573 = vld [vmem:[#allocation5 + $0x70] sm:$0xff]
      %v2574 = vld [vmem:[#allocation5 + $0x78] sm:$0xff]
      %v2575 = vld [vmem:[#allocation5 + $0x80] sm:$0xff]
      %v2576 = vld [vmem:[#allocation5 + $0x88] sm:$0xff]
      %v2577 = vld [vmem:[#allocation5 + $0x90] sm:$0xff]
      %v2578 = vld [vmem:[#allocation5 + $0x98] sm:$0xff]
      %v2579 = vld [vmem:[#allocation5 + $0xa0] sm:$0xff]
      %v2580 = vld [vmem:[#allocation5 + $0xa8] sm:$0xff]
      %v2581 = vld [vmem:[#allocation5 + $0xb0] sm:$0xff]
      %v2582 = vld [vmem:[#allocation5 + $0xb8] sm:$0xff]
      %v2583 = vld [vmem:[#allocation5 + $0xc0] sm:$0xff]
      %v2584 = vld [vmem:[#allocation5 + $0xc8] sm:$0xff]
      %v2585 = vld [vmem:[#allocation5 + $0xd0] sm:$0xff]
      %v2586 = vld [vmem:[#allocation5 + $0xd8] sm:$0xff]
      %v2587 = vld [vmem:[#allocation5 + $0xe0] sm:$0xff]
      %v2588 = vld [vmem:[#allocation5 + $0xe8] sm:$0xff]
      %v2589 = vld [vmem:[#allocation5 + $0xf0] sm:$0xff]
      %v2590 = vld [vmem:[#allocation5 + $0xf8] sm:$0xff]
      %v2591 = vld [vmem:[#allocation5 + $0x100] sm:$0xff]
      %v2592 = vld [vmem:[#allocation5 + $0x108] sm:$0xff]
      %v2593 = vld [vmem:[#allocation5 + $0x110] sm:$0xff]
      %v2594 = vld [vmem:[#allocation5 + $0x118] sm:$0xff]
      %v2595 = vld [vmem:[#allocation5 + $0x120] sm:$0xff]
      %v2596 = vld [vmem:[#allocation5 + $0x128] sm:$0xff]
      %v2597 = vld [vmem:[#allocation5 + $0x130] sm:$0xff]
      %v2598 = vld [vmem:[#allocation5 + $0x138] sm:$0xff]
      %v2599 = vld [vmem:[#allocation5 + $0x140] sm:$0xff]
      %v2600 = vld [vmem:[#allocation5 + $0x148] sm:$0xff]
      %v2601 = vld [vmem:[#allocation5 + $0x150] sm:$0xff]
      %v2602 = vld [vmem:[#allocation5 + $0x158] sm:$0xff]
      %v2603 = vld [vmem:[#allocation5 + $0x160] sm:$0xff]
      %v2604 = vld [vmem:[#allocation5 + $0x168] sm:$0xff]
      %v2605 = vld [vmem:[#allocation5 + $0x170] sm:$0xff]
      %v2606 = vld [vmem:[#allocation5 + $0x178] sm:$0xff]
      %v2607 = vld [vmem:[#allocation5 + $0x180] sm:$0xff]
      %v2608 = vld [vmem:[#allocation5 + $0x188] sm:$0xff]
      %v2609 = vld [vmem:[#allocation5 + $0x190] sm:$0xff]
      %v2610 = vld [vmem:[#allocation5 + $0x198] sm:$0xff]
      %v2611 = vld [vmem:[#allocation5 + $0x1a0] sm:$0xff]
      %v2612 = vld [vmem:[#allocation5 + $0x1a8] sm:$0xff]
      %v2613 = vld [vmem:[#allocation5 + $0x1b0] sm:$0xff]
      %v2614 = vld [vmem:[#allocation5 + $0x1b8] sm:$0xff]
      %v2615 = vld [vmem:[#allocation5 + $0x1c0] sm:$0xff]
      %v2616 = vld [vmem:[#allocation5 + $0x1c8] sm:$0xff]
      %v2617 = vld [vmem:[#allocation5 + $0x1d0] sm:$0xff]
      %v2618 = vld [vmem:[#allocation5 + $0x1d8] sm:$0xff]
      %v2619 = vld [vmem:[#allocation5 + $0x1e0] sm:$0xff]
      %v2620 = vld [vmem:[#allocation5 + $0x1e8] sm:$0xff]
      %v2621 = vld [vmem:[#allocation5 + $0x1f0] sm:$0xff]
      %v2622 = vld [vmem:[#allocation5 + $0x1f8] sm:$0xff]
      %v2623 = vld [vmem:[#allocation5 + $0x200] sm:$0xff]
      %v2624 = vld [vmem:[#allocation5 + $0x208] sm:$0xff]
      %v2625 = vld [vmem:[#allocation5 + $0x210] sm:$0xff]
      %v2626 = vld [vmem:[#allocation5 + $0x218] sm:$0xff]
      %v2627 = vld [vmem:[#allocation5 + $0x220] sm:$0xff]
      %v2628 = vld [vmem:[#allocation5 + $0x228] sm:$0xff]
      %v2629 = vld [vmem:[#allocation5 + $0x230] sm:$0xff]
      %v2630 = vld [vmem:[#allocation5 + $0x238] sm:$0xff]
      %v2631 = vld [vmem:[#allocation5 + $0x240] sm:$0xff]
      %v2632 = vld [vmem:[#allocation5 + $0x248] sm:$0xff]
      %v2633 = vld [vmem:[#allocation5 + $0x250] sm:$0xff]
      %v2634 = vld [vmem:[#allocation5 + $0x258] sm:$0xff]
      %v2635 = vld [vmem:[#allocation5 + $0x260] sm:$0xff]
      %v2636 = vld [vmem:[#allocation5 + $0x268] sm:$0xff]
      %v2637 = vld [vmem:[#allocation5 + $0x270] sm:$0xff]
      %v2638 = vld [vmem:[#allocation5 + $0x278] sm:$0xff]
      %v2639 = vld [vmem:[#allocation5 + $0x280] sm:$0xff]
      %v2640 = vld [vmem:[#allocation5 + $0x288] sm:$0xff]
      %v2641 = vld [vmem:[#allocation5 + $0x290] sm:$0xff]
      %v2642 = vld [vmem:[#allocation5 + $0x298] sm:$0xff]
      %v2643 = vld [vmem:[#allocation5 + $0x2a0] sm:$0xff]
      %v2644 = vld [vmem:[#allocation5 + $0x2a8] sm:$0xff]
      %v2645 = vld [vmem:[#allocation5 + $0x2b0] sm:$0xff]
      %v2646 = vld [vmem:[#allocation5 + $0x2b8] sm:$0xff]
      %v2647 = vld [vmem:[#allocation5 + $0x2c0] sm:$0xff]
      %v2648 = vld [vmem:[#allocation5 + $0x2c8] sm:$0xff]
      %v2649 = vld [vmem:[#allocation5 + $0x2d0] sm:$0xff]
      %v2650 = vld [vmem:[#allocation5 + $0x2d8] sm:$0xff]
      %v2651 = vld [vmem:[#allocation5 + $0x2e0] sm:$0xff]
      %v2652 = vld [vmem:[#allocation5 + $0x2e8] sm:$0xff]
      %v2653 = vld [vmem:[#allocation5 + $0x2f0] sm:$0xff]
      %v2654 = vld [vmem:[#allocation5 + $0x2f8] sm:$0xff]
      %v2655 = vld [vmem:[#allocation5 + $0x300] sm:$0xff]
      %v2656 = vld [vmem:[#allocation5 + $0x308] sm:$0xff]
      %v2657 = vld [vmem:[#allocation5 + $0x310] sm:$0xff]
      %v2658 = vld [vmem:[#allocation5 + $0x318] sm:$0xff]
      %v2659 = vld [vmem:[#allocation5 + $0x320] sm:$0xff]
      %v2660 = vld [vmem:[#allocation5 + $0x328] sm:$0xff]
      %v2661 = vld [vmem:[#allocation5 + $0x330] sm:$0xff]
      %v2662 = vld [vmem:[#allocation5 + $0x338] sm:$0xff]
      %v2663 = vld [vmem:[#allocation5 + $0x340] sm:$0xff]
      %v2664 = vld [vmem:[#allocation5 + $0x348] sm:$0xff]
      %v2665 = vld [vmem:[#allocation5 + $0x350] sm:$0xff]
      %v2666 = vld [vmem:[#allocation5 + $0x358] sm:$0xff]
      %v2667 = vld [vmem:[#allocation5 + $0x360] sm:$0xff]
      %v2668 = vld [vmem:[#allocation5 + $0x368] sm:$0xff]
      %v2669 = vld [vmem:[#allocation5 + $0x370] sm:$0xff]
      %v2670 = vld [vmem:[#allocation5 + $0x378] sm:$0xff]
      %v2671 = vld [vmem:[#allocation5 + $0x380] sm:$0xff]
      %v2672 = vld [vmem:[#allocation5 + $0x388] sm:$0xff]
      %v2673 = vld [vmem:[#allocation5 + $0x390] sm:$0xff]
      %v2674 = vld [vmem:[#allocation5 + $0x398] sm:$0xff]
      %v2675 = vld [vmem:[#allocation5 + $0x3a0] sm:$0xff]
      %v2676 = vld [vmem:[#allocation5 + $0x3a8] sm:$0xff]
      %v2677 = vld [vmem:[#allocation5 + $0x3b0] sm:$0xff]
      %v2678 = vld [vmem:[#allocation5 + $0x3b8] sm:$0xff]
      %v2679 = vld [vmem:[#allocation5 + $0x3c0] sm:$0xff]
      %v2680 = vld [vmem:[#allocation5 + $0x3c8] sm:$0xff]
      %v2681 = vld [vmem:[#allocation5 + $0x3d0] sm:$0xff]
      %v2682 = vld [vmem:[#allocation5 + $0x3d8] sm:$0xff]
      %v2683 = vld [vmem:[#allocation5 + $0x3e0] sm:$0xff]
      %v2684 = vld [vmem:[#allocation5 + $0x3e8] sm:$0xff]
      %v2685 = vld [vmem:[#allocation5 + $0x3f0] sm:$0xff]
      %v2686 = vld [vmem:[#allocation5 + $0x3f8] sm:$0xff]
      %v2687 = vld [vmem:[#allocation5 + $0x400] sm:$0xff]
      %v2688 = vld [vmem:[#allocation5 + $0x408] sm:$0xff]
      %v2689 = vld [vmem:[#allocation5 + $0x410] sm:$0xff]
      %v2690 = vld [vmem:[#allocation5 + $0x418] sm:$0xff]
      %v2691 = vld [vmem:[#allocation5 + $0x420] sm:$0xff]
      %v2692 = vld [vmem:[#allocation5 + $0x428] sm:$0xff]
      %v2693 = vld [vmem:[#allocation5 + $0x430] sm:$0xff]
      %v2694 = vld [vmem:[#allocation5 + $0x438] sm:$0xff]
      %v2695 = vld [vmem:[#allocation5 + $0x440] sm:$0xff]
      %v2696 = vld [vmem:[#allocation5 + $0x448] sm:$0xff]
      %v2697 = vld [vmem:[#allocation5 + $0x450] sm:$0xff]
      %v2698 = vld [vmem:[#allocation5 + $0x458] sm:$0xff]
      %v2699 = vld [vmem:[#allocation5 + $0x460] sm:$0xff]
      %v2700 = vld [vmem:[#allocation5 + $0x468] sm:$0xff]
      %v2701 = vld [vmem:[#allocation5 + $0x470] sm:$0xff]
      %v2702 = vld [vmem:[#allocation5 + $0x478] sm:$0xff]
      %v2703 = vld [vmem:[#allocation5 + $0x480] sm:$0xff]
      %v2704 = vld [vmem:[#allocation5 + $0x488] sm:$0xff]
      %v2705 = vld [vmem:[#allocation5 + $0x490] sm:$0xff]
      %v2706 = vld [vmem:[#allocation5 + $0x498] sm:$0xff]
      %v2707 = vld [vmem:[#allocation5 + $0x4a0] sm:$0xff]
      %v2708 = vld [vmem:[#allocation5 + $0x4a8] sm:$0xff]
      %v2709 = vld [vmem:[#allocation5 + $0x4b0] sm:$0xff]
      %v2710 = vld [vmem:[#allocation5 + $0x4b8] sm:$0xff]
      %v2711 = vld [vmem:[#allocation5 + $0x4c0] sm:$0xff]
      %v2712 = vld [vmem:[#allocation5 + $0x4c8] sm:$0xff]
      %v2713 = vld [vmem:[#allocation5 + $0x4d0] sm:$0xff]
      %v2714 = vld [vmem:[#allocation5 + $0x4d8] sm:$0xff]
      %v2715 = vld [vmem:[#allocation5 + $0x4e0] sm:$0xff]
      %v2716 = vld [vmem:[#allocation5 + $0x4e8] sm:$0xff]
      %v2717 = vld [vmem:[#allocation5 + $0x4f0] sm:$0xff]
      %v2718 = vld [vmem:[#allocation5 + $0x4f8] sm:$0xff]
      %v2719 = vld [vmem:[#allocation5 + $0x500] sm:$0xff]
      %v2720 = vld [vmem:[#allocation5 + $0x508] sm:$0xff]
      %v2721 = vld [vmem:[#allocation5 + $0x510] sm:$0xff]
      %v2722 = vld [vmem:[#allocation5 + $0x518] sm:$0xff]
      %v2723 = vld [vmem:[#allocation5 + $0x520] sm:$0xff]
      %v2724 = vld [vmem:[#allocation5 + $0x528] sm:$0xff]
      %v2725 = vld [vmem:[#allocation5 + $0x530] sm:$0xff]
      %v2726 = vld [vmem:[#allocation5 + $0x538] sm:$0xff]
      %v2727 = vld [vmem:[#allocation5 + $0x540] sm:$0xff]
      %v2728 = vld [vmem:[#allocation5 + $0x548] sm:$0xff]
      %v2729 = vld [vmem:[#allocation5 + $0x550] sm:$0xff]
      %v2730 = vld [vmem:[#allocation5 + $0x558] sm:$0xff]
      %v2731 = vld [vmem:[#allocation5 + $0x560] sm:$0xff]
      %v2732 = vld [vmem:[#allocation5 + $0x568] sm:$0xff]
      %v2733 = vld [vmem:[#allocation5 + $0x570] sm:$0xff]
      %v2734 = vld [vmem:[#allocation5 + $0x578] sm:$0xff]
      %v2735 = vld [vmem:[#allocation5 + $0x580] sm:$0xff]
      %v2736 = vld [vmem:[#allocation5 + $0x588] sm:$0xff]
      %v2737 = vld [vmem:[#allocation5 + $0x590] sm:$0xff]
      %v2738 = vld [vmem:[#allocation5 + $0x598] sm:$0xff]
      %v2739 = vld [vmem:[#allocation5 + $0x5a0] sm:$0xff]
      %v2740 = vld [vmem:[#allocation5 + $0x5a8] sm:$0xff]
      %v2741 = vld [vmem:[#allocation5 + $0x5b0] sm:$0xff]
      %v2742 = vld [vmem:[#allocation5 + $0x5b8] sm:$0xff]
      %v2743 = vld [vmem:[#allocation5 + $0x5c0] sm:$0xff]
      %v2744 = vld [vmem:[#allocation5 + $0x5c8] sm:$0xff]
      %v2745 = vld [vmem:[#allocation5 + $0x5d0] sm:$0xff]
      %v2746 = vld [vmem:[#allocation5 + $0x5d8] sm:$0xff]
      %v2747 = vld [vmem:[#allocation5 + $0x5e0] sm:$0xff]
      %v2748 = vld [vmem:[#allocation5 + $0x5e8] sm:$0xff]
      %v2749 = vld [vmem:[#allocation5 + $0x5f0] sm:$0xff]
      %v2750 = vld [vmem:[#allocation5 + $0x5f8] sm:$0xff]
      %v2751 = vld [vmem:[#allocation5 + $0x600] sm:$0xff]
      %v2752 = vld [vmem:[#allocation5 + $0x608] sm:$0xff]
      %v2753 = vld [vmem:[#allocation5 + $0x610] sm:$0xff]
      %v2754 = vld [vmem:[#allocation5 + $0x618] sm:$0xff]
      %v2755 = vld [vmem:[#allocation5 + $0x620] sm:$0xff]
      %v2756 = vld [vmem:[#allocation5 + $0x628] sm:$0xff]
      %v2757 = vld [vmem:[#allocation5 + $0x630] sm:$0xff]
      %v2758 = vld [vmem:[#allocation5 + $0x638] sm:$0xff]
      %v2759 = vld [vmem:[#allocation5 + $0x640] sm:$0xff]
      %v2760 = vld [vmem:[#allocation5 + $0x648] sm:$0xff]
      %v2761 = vld [vmem:[#allocation5 + $0x650] sm:$0xff]
      %v2762 = vld [vmem:[#allocation5 + $0x658] sm:$0xff]
      %v2763 = vld [vmem:[#allocation5 + $0x660] sm:$0xff]
      %v2764 = vld [vmem:[#allocation5 + $0x668] sm:$0xff]
      %v2765 = vld [vmem:[#allocation5 + $0x670] sm:$0xff]
      %v2766 = vld [vmem:[#allocation5 + $0x678] sm:$0xff]
      %v2767 = vld [vmem:[#allocation5 + $0x680] sm:$0xff]
      %v2768 = vld [vmem:[#allocation5 + $0x688] sm:$0xff]
      %v2769 = vld [vmem:[#allocation5 + $0x690] sm:$0xff]
      %v2770 = vld [vmem:[#allocation5 + $0x698] sm:$0xff]
      %v2771 = vld [vmem:[#allocation5 + $0x6a0] sm:$0xff]
      %v2772 = vld [vmem:[#allocation5 + $0x6a8] sm:$0xff]
      %v2773 = vld [vmem:[#allocation5 + $0x6b0] sm:$0xff]
      %v2774 = vld [vmem:[#allocation5 + $0x6b8] sm:$0xff]
      %v2775 = vld [vmem:[#allocation5 + $0x6c0] sm:$0xff]
      %v2776 = vld [vmem:[#allocation5 + $0x6c8] sm:$0xff]
      %v2777 = vld [vmem:[#allocation5 + $0x6d0] sm:$0xff]
      %v2778 = vld [vmem:[#allocation5 + $0x6d8] sm:$0xff]
      %v2779 = vld [vmem:[#allocation5 + $0x6e0] sm:$0xff]
      %v2780 = vld [vmem:[#allocation5 + $0x6e8] sm:$0xff]
      %v2781 = vld [vmem:[#allocation5 + $0x6f0] sm:$0xff]
      %v2782 = vld [vmem:[#allocation5 + $0x6f8] sm:$0xff]
      %v2783 = vld [vmem:[#allocation5 + $0x700] sm:$0xff]
      %v2784 = vld [vmem:[#allocation5 + $0x708] sm:$0xff]
      %v2785 = vld [vmem:[#allocation5 + $0x710] sm:$0xff]
      %v2786 = vld [vmem:[#allocation5 + $0x718] sm:$0xff]
      %v2787 = vld [vmem:[#allocation5 + $0x720] sm:$0xff]
      %v2788 = vld [vmem:[#allocation5 + $0x728] sm:$0xff]
      %v2789 = vld [vmem:[#allocation5 + $0x730] sm:$0xff]
      %v2790 = vld [vmem:[#allocation5 + $0x738] sm:$0xff]
      %v2791 = vld [vmem:[#allocation5 + $0x740] sm:$0xff]
      %v2792 = vld [vmem:[#allocation5 + $0x748] sm:$0xff]
      %v2793 = vld [vmem:[#allocation5 + $0x750] sm:$0xff]
      %v2794 = vld [vmem:[#allocation5 + $0x758] sm:$0xff]
      %v2795 = vld [vmem:[#allocation5 + $0x760] sm:$0xff]
      %v2796 = vld [vmem:[#allocation5 + $0x768] sm:$0xff]
      %v2797 = vld [vmem:[#allocation5 + $0x770] sm:$0xff]
      %v2798 = vld [vmem:[#allocation5 + $0x778] sm:$0xff]
      %v2799 = vld [vmem:[#allocation5 + $0x780] sm:$0xff]
      %v2800 = vld [vmem:[#allocation5 + $0x788] sm:$0xff]
      %v2801 = vld [vmem:[#allocation5 + $0x790] sm:$0xff]
      %v2802 = vld [vmem:[#allocation5 + $0x798] sm:$0xff]
      %v2803 = vld [vmem:[#allocation5 + $0x7a0] sm:$0xff]
      %v2804 = vld [vmem:[#allocation5 + $0x7a8] sm:$0xff]
      %v2805 = vld [vmem:[#allocation5 + $0x7b0] sm:$0xff]
      %v2806 = vld [vmem:[#allocation5 + $0x7b8] sm:$0xff]
      %v2807 = vld [vmem:[#allocation5 + $0x7c0] sm:$0xff]
      %v2808 = vld [vmem:[#allocation5 + $0x7c8] sm:$0xff]
      %v2809 = vld [vmem:[#allocation5 + $0x7d0] sm:$0xff]
      %v2810 = vld [vmem:[#allocation5 + $0x7d8] sm:$0xff]
      %v2811 = vld [vmem:[#allocation5 + $0x7e0] sm:$0xff]
      %v2812 = vld [vmem:[#allocation5 + $0x7e8] sm:$0xff]
      %v2813 = vld [vmem:[#allocation5 + $0x7f0] sm:$0xff]
      %v2814 = vld [vmem:[#allocation5 + $0x7f8] sm:$0xff]
      %v2815 = vld [vmem:[%s8] sm:$0xf]
      %v2817 = vlaneseq
      %v2818 = vshrl.u32 %v2817, 7
      %v2819 = vsub.s32 0, %v2818
      %v2820 = vrot.slane %v2815, %v2819
      %v2821 = vlaneseq
      %v2822 = vshrl.u32 %v2821, 7
      %v2823 = vsub.s32 1, %v2822
      %v2824 = vrot.slane %v2815, %v2823
      %v2825 = vlaneseq
      %v2826 = vshrl.u32 %v2825, 7
      %v2827 = vsub.s32 2, %v2826
      %v2828 = vrot.slane %v2815, %v2827
      %v2829 = vlaneseq
      %v2830 = vshrl.u32 %v2829, 7
      %v2831 = vsub.s32 3, %v2830
      %v2832 = vrot.slane %v2815, %v2831
      %v3093 = vunpack.c.l.b16 %v2559
      %v3094 = vunpack.c.h.b16 %v2559
      %v3095 = vunpack.c.l.b16 %v2560
      %v3096 = vunpack.c.h.b16 %v2560
      %v3097 = vunpack.c.l.b16 %v2561
      %v3098 = vunpack.c.h.b16 %v2561
      %v3099 = vunpack.c.l.b16 %v2562
      %v3100 = vunpack.c.h.b16 %v2562
      %v3101 = vunpack.c.l.b16 %v2563
      %v3102 = vunpack.c.h.b16 %v2563
      %v3103 = vunpack.c.l.b16 %v2564
      %v3104 = vunpack.c.h.b16 %v2564
      %v3105 = vunpack.c.l.b16 %v2565
      %v3106 = vunpack.c.h.b16 %v2565
      %v3107 = vunpack.c.l.b16 %v2566
      %v3108 = vunpack.c.h.b16 %v2566
      %v3109 = vunpack.c.l.b16 %v2567
      %v3110 = vunpack.c.h.b16 %v2567
      %v3111 = vunpack.c.l.b16 %v2568
      %v3112 = vunpack.c.h.b16 %v2568
      %v3113 = vunpack.c.l.b16 %v2569
      %v3114 = vunpack.c.h.b16 %v2569
      %v3115 = vunpack.c.l.b16 %v2570
      %v3116 = vunpack.c.h.b16 %v2570
      %v3117 = vunpack.c.l.b16 %v2571
      %v3118 = vunpack.c.h.b16 %v2571
      %v3119 = vunpack.c.l.b16 %v2572
      %v3120 = vunpack.c.h.b16 %v2572
      %v3121 = vunpack.c.l.b16 %v2573
      %v3122 = vunpack.c.h.b16 %v2573
      %v3123 = vunpack.c.l.b16 %v2574
      %v3124 = vunpack.c.h.b16 %v2574
      %v3125 = vunpack.c.l.b16 %v2575
      %v3126 = vunpack.c.h.b16 %v2575
      %v3127 = vunpack.c.l.b16 %v2576
      %v3128 = vunpack.c.h.b16 %v2576
      %v3129 = vunpack.c.l.b16 %v2577
      %v3130 = vunpack.c.h.b16 %v2577
      %v3131 = vunpack.c.l.b16 %v2578
      %v3132 = vunpack.c.h.b16 %v2578
      %v3133 = vunpack.c.l.b16 %v2579
      %v3134 = vunpack.c.h.b16 %v2579
      %v3135 = vunpack.c.l.b16 %v2580
      %v3136 = vunpack.c.h.b16 %v2580
      %v3137 = vunpack.c.l.b16 %v2581
      %v3138 = vunpack.c.h.b16 %v2581
      %v3139 = vunpack.c.l.b16 %v2582
      %v3140 = vunpack.c.h.b16 %v2582
      %v3141 = vunpack.c.l.b16 %v2583
      %v3142 = vunpack.c.h.b16 %v2583
      %v3143 = vunpack.c.l.b16 %v2584
      %v3144 = vunpack.c.h.b16 %v2584
      %v3145 = vunpack.c.l.b16 %v2585
      %v3146 = vunpack.c.h.b16 %v2585
      %v3147 = vunpack.c.l.b16 %v2586
      %v3148 = vunpack.c.h.b16 %v2586
      %v3149 = vunpack.c.l.b16 %v2587
      %v3150 = vunpack.c.h.b16 %v2587
      %v3151 = vunpack.c.l.b16 %v2588
      %v3152 = vunpack.c.h.b16 %v2588
      %v3153 = vunpack.c.l.b16 %v2589
      %v3154 = vunpack.c.h.b16 %v2589
      %v3155 = vunpack.c.l.b16 %v2590
      %v3156 = vunpack.c.h.b16 %v2590
      %v3157 = vunpack.c.l.b16 %v2591
      %v3158 = vunpack.c.h.b16 %v2591
      %v3159 = vunpack.c.l.b16 %v2592
      %v3160 = vunpack.c.h.b16 %v2592
      %v3161 = vunpack.c.l.b16 %v2593
      %v3162 = vunpack.c.h.b16 %v2593
      %v3163 = vunpack.c.l.b16 %v2594
      %v3164 = vunpack.c.h.b16 %v2594
      %v3165 = vunpack.c.l.b16 %v2595
      %v3166 = vunpack.c.h.b16 %v2595
      %v3167 = vunpack.c.l.b16 %v2596
      %v3168 = vunpack.c.h.b16 %v2596
      %v3169 = vunpack.c.l.b16 %v2597
      %v3170 = vunpack.c.h.b16 %v2597
      %v3171 = vunpack.c.l.b16 %v2598
      %v3172 = vunpack.c.h.b16 %v2598
      %v3173 = vunpack.c.l.b16 %v2599
      %v3174 = vunpack.c.h.b16 %v2599
      %v3175 = vunpack.c.l.b16 %v2600
      %v3176 = vunpack.c.h.b16 %v2600
      %v3177 = vunpack.c.l.b16 %v2601
      %v3178 = vunpack.c.h.b16 %v2601
      %v3179 = vunpack.c.l.b16 %v2602
      %v3180 = vunpack.c.h.b16 %v2602
      %v3181 = vunpack.c.l.b16 %v2603
      %v3182 = vunpack.c.h.b16 %v2603
      %v3183 = vunpack.c.l.b16 %v2604
      %v3184 = vunpack.c.h.b16 %v2604
      %v3185 = vunpack.c.l.b16 %v2605
      %v3186 = vunpack.c.h.b16 %v2605
      %v3187 = vunpack.c.l.b16 %v2606
      %v3188 = vunpack.c.h.b16 %v2606
      %v3189 = vunpack.c.l.b16 %v2607
      %v3190 = vunpack.c.h.b16 %v2607
      %v3191 = vunpack.c.l.b16 %v2608
      %v3192 = vunpack.c.h.b16 %v2608
      %v3193 = vunpack.c.l.b16 %v2609
      %v3194 = vunpack.c.h.b16 %v2609
      %v3195 = vunpack.c.l.b16 %v2610
      %v3196 = vunpack.c.h.b16 %v2610
      %v3197 = vunpack.c.l.b16 %v2611
      %v3198 = vunpack.c.h.b16 %v2611
      %v3199 = vunpack.c.l.b16 %v2612
      %v3200 = vunpack.c.h.b16 %v2612
      %v3201 = vunpack.c.l.b16 %v2613
      %v3202 = vunpack.c.h.b16 %v2613
      %v3203 = vunpack.c.l.b16 %v2614
      %v3204 = vunpack.c.h.b16 %v2614
      %v3205 = vunpack.c.l.b16 %v2615
      %v3206 = vunpack.c.h.b16 %v2615
      %v3207 = vunpack.c.l.b16 %v2616
      %v3208 = vunpack.c.h.b16 %v2616
      %v3209 = vunpack.c.l.b16 %v2617
      %v3210 = vunpack.c.h.b16 %v2617
      %v3211 = vunpack.c.l.b16 %v2618
      %v3212 = vunpack.c.h.b16 %v2618
      %v3213 = vunpack.c.l.b16 %v2619
      %v3214 = vunpack.c.h.b16 %v2619
      %v3215 = vunpack.c.l.b16 %v2620
      %v3216 = vunpack.c.h.b16 %v2620
      %v3217 = vunpack.c.l.b16 %v2621
      %v3218 = vunpack.c.h.b16 %v2621
      %v3219 = vunpack.c.l.b16 %v2622
      %v3220 = vunpack.c.h.b16 %v2622
      %v3221 = vunpack.c.l.b16 %v2623
      %v3222 = vunpack.c.h.b16 %v2623
      %v3223 = vunpack.c.l.b16 %v2624
      %v3224 = vunpack.c.h.b16 %v2624
      %v3225 = vunpack.c.l.b16 %v2625
      %v3226 = vunpack.c.h.b16 %v2625
      %v3227 = vunpack.c.l.b16 %v2626
      %v3228 = vunpack.c.h.b16 %v2626
      %v3229 = vunpack.c.l.b16 %v2627
      %v3230 = vunpack.c.h.b16 %v2627
      %v3231 = vunpack.c.l.b16 %v2628
      %v3232 = vunpack.c.h.b16 %v2628
      %v3233 = vunpack.c.l.b16 %v2629
      %v3234 = vunpack.c.h.b16 %v2629
      %v3235 = vunpack.c.l.b16 %v2630
      %v3236 = vunpack.c.h.b16 %v2630
      %v3237 = vunpack.c.l.b16 %v2631
      %v3238 = vunpack.c.h.b16 %v2631
      %v3239 = vunpack.c.l.b16 %v2632
      %v3240 = vunpack.c.h.b16 %v2632
      %v3241 = vunpack.c.l.b16 %v2633
      %v3242 = vunpack.c.h.b16 %v2633
      %v3243 = vunpack.c.l.b16 %v2634
      %v3244 = vunpack.c.h.b16 %v2634
      %v3245 = vunpack.c.l.b16 %v2635
      %v3246 = vunpack.c.h.b16 %v2635
      %v3247 = vunpack.c.l.b16 %v2636
      %v3248 = vunpack.c.h.b16 %v2636
      %v3249 = vunpack.c.l.b16 %v2637
      %v3250 = vunpack.c.h.b16 %v2637
      %v3251 = vunpack.c.l.b16 %v2638
      %v3252 = vunpack.c.h.b16 %v2638
      %v3253 = vunpack.c.l.b16 %v2639
      %v3254 = vunpack.c.h.b16 %v2639
      %v3255 = vunpack.c.l.b16 %v2640
      %v3256 = vunpack.c.h.b16 %v2640
      %v3257 = vunpack.c.l.b16 %v2641
      %v3258 = vunpack.c.h.b16 %v2641
      %v3259 = vunpack.c.l.b16 %v2642
      %v3260 = vunpack.c.h.b16 %v2642
      %v3261 = vunpack.c.l.b16 %v2643
      %v3262 = vunpack.c.h.b16 %v2643
      %v3263 = vunpack.c.l.b16 %v2644
      %v3264 = vunpack.c.h.b16 %v2644
      %v3265 = vunpack.c.l.b16 %v2645
      %v3266 = vunpack.c.h.b16 %v2645
      %v3267 = vunpack.c.l.b16 %v2646
      %v3268 = vunpack.c.h.b16 %v2646
      %v3269 = vunpack.c.l.b16 %v2647
      %v3270 = vunpack.c.h.b16 %v2647
      %v3271 = vunpack.c.l.b16 %v2648
      %v3272 = vunpack.c.h.b16 %v2648
      %v3273 = vunpack.c.l.b16 %v2649
      %v3274 = vunpack.c.h.b16 %v2649
      %v3275 = vunpack.c.l.b16 %v2650
      %v3276 = vunpack.c.h.b16 %v2650
      %v3277 = vunpack.c.l.b16 %v2651
      %v3278 = vunpack.c.h.b16 %v2651
      %v3279 = vunpack.c.l.b16 %v2652
      %v3280 = vunpack.c.h.b16 %v2652
      %v3281 = vunpack.c.l.b16 %v2653
      %v3282 = vunpack.c.h.b16 %v2653
      %v3283 = vunpack.c.l.b16 %v2654
      %v3284 = vunpack.c.h.b16 %v2654
      %v3285 = vunpack.c.l.b16 %v2655
      %v3286 = vunpack.c.h.b16 %v2655
      %v3287 = vunpack.c.l.b16 %v2656
      %v3288 = vunpack.c.h.b16 %v2656
      %v3289 = vunpack.c.l.b16 %v2657
      %v3290 = vunpack.c.h.b16 %v2657
      %v3291 = vunpack.c.l.b16 %v2658
      %v3292 = vunpack.c.h.b16 %v2658
      %v3293 = vunpack.c.l.b16 %v2659
      %v3294 = vunpack.c.h.b16 %v2659
      %v3295 = vunpack.c.l.b16 %v2660
      %v3296 = vunpack.c.h.b16 %v2660
      %v3297 = vunpack.c.l.b16 %v2661
      %v3298 = vunpack.c.h.b16 %v2661
      %v3299 = vunpack.c.l.b16 %v2662
      %v3300 = vunpack.c.h.b16 %v2662
      %v3301 = vunpack.c.l.b16 %v2663
      %v3302 = vunpack.c.h.b16 %v2663
      %v3303 = vunpack.c.l.b16 %v2664
      %v3304 = vunpack.c.h.b16 %v2664
      %v3305 = vunpack.c.l.b16 %v2665
      %v3306 = vunpack.c.h.b16 %v2665
      %v3307 = vunpack.c.l.b16 %v2666
      %v3308 = vunpack.c.h.b16 %v2666
      %v3309 = vunpack.c.l.b16 %v2667
      %v3310 = vunpack.c.h.b16 %v2667
      %v3311 = vunpack.c.l.b16 %v2668
      %v3312 = vunpack.c.h.b16 %v2668
      %v3313 = vunpack.c.l.b16 %v2669
      %v3314 = vunpack.c.h.b16 %v2669
      %v3315 = vunpack.c.l.b16 %v2670
      %v3316 = vunpack.c.h.b16 %v2670
      %v3317 = vunpack.c.l.b16 %v2671
      %v3318 = vunpack.c.h.b16 %v2671
      %v3319 = vunpack.c.l.b16 %v2672
      %v3320 = vunpack.c.h.b16 %v2672
      %v3321 = vunpack.c.l.b16 %v2673
      %v3322 = vunpack.c.h.b16 %v2673
      %v3323 = vunpack.c.l.b16 %v2674
      %v3324 = vunpack.c.h.b16 %v2674
      %v3325 = vunpack.c.l.b16 %v2675
      %v3326 = vunpack.c.h.b16 %v2675
      %v3327 = vunpack.c.l.b16 %v2676
      %v3328 = vunpack.c.h.b16 %v2676
      %v3329 = vunpack.c.l.b16 %v2677
      %v3330 = vunpack.c.h.b16 %v2677
      %v3331 = vunpack.c.l.b16 %v2678
      %v3332 = vunpack.c.h.b16 %v2678
      %v3333 = vunpack.c.l.b16 %v2679
      %v3334 = vunpack.c.h.b16 %v2679
      %v3335 = vunpack.c.l.b16 %v2680
      %v3336 = vunpack.c.h.b16 %v2680
      %v3337 = vunpack.c.l.b16 %v2681
      %v3338 = vunpack.c.h.b16 %v2681
      %v3339 = vunpack.c.l.b16 %v2682
      %v3340 = vunpack.c.h.b16 %v2682
      %v3341 = vunpack.c.l.b16 %v2683
      %v3342 = vunpack.c.h.b16 %v2683
      %v3343 = vunpack.c.l.b16 %v2684
      %v3344 = vunpack.c.h.b16 %v2684
      %v3345 = vunpack.c.l.b16 %v2685
      %v3346 = vunpack.c.h.b16 %v2685
      %v3347 = vunpack.c.l.b16 %v2686
      %v3348 = vunpack.c.h.b16 %v2686
      %v3349 = vunpack.c.l.b16 %v2687
      %v3350 = vunpack.c.h.b16 %v2687
      %v3351 = vunpack.c.l.b16 %v2688
      %v3352 = vunpack.c.h.b16 %v2688
      %v3353 = vunpack.c.l.b16 %v2689
      %v3354 = vunpack.c.h.b16 %v2689
      %v3355 = vunpack.c.l.b16 %v2690
      %v3356 = vunpack.c.h.b16 %v2690
      %v3357 = vunpack.c.l.b16 %v2691
      %v3358 = vunpack.c.h.b16 %v2691
      %v3359 = vunpack.c.l.b16 %v2692
      %v3360 = vunpack.c.h.b16 %v2692
      %v3361 = vunpack.c.l.b16 %v2693
      %v3362 = vunpack.c.h.b16 %v2693
      %v3363 = vunpack.c.l.b16 %v2694
      %v3364 = vunpack.c.h.b16 %v2694
      %v3365 = vunpack.c.l.b16 %v2695
      %v3366 = vunpack.c.h.b16 %v2695
      %v3367 = vunpack.c.l.b16 %v2696
      %v3368 = vunpack.c.h.b16 %v2696
      %v3369 = vunpack.c.l.b16 %v2697
      %v3370 = vunpack.c.h.b16 %v2697
      %v3371 = vunpack.c.l.b16 %v2698
      %v3372 = vunpack.c.h.b16 %v2698
      %v3373 = vunpack.c.l.b16 %v2699
      %v3374 = vunpack.c.h.b16 %v2699
      %v3375 = vunpack.c.l.b16 %v2700
      %v3376 = vunpack.c.h.b16 %v2700
      %v3377 = vunpack.c.l.b16 %v2701
      %v3378 = vunpack.c.h.b16 %v2701
      %v3379 = vunpack.c.l.b16 %v2702
      %v3380 = vunpack.c.h.b16 %v2702
      %v3381 = vunpack.c.l.b16 %v2703
      %v3382 = vunpack.c.h.b16 %v2703
      %v3383 = vunpack.c.l.b16 %v2704
      %v3384 = vunpack.c.h.b16 %v2704
      %v3385 = vunpack.c.l.b16 %v2705
      %v3386 = vunpack.c.h.b16 %v2705
      %v3387 = vunpack.c.l.b16 %v2706
      %v3388 = vunpack.c.h.b16 %v2706
      %v3389 = vunpack.c.l.b16 %v2707
      %v3390 = vunpack.c.h.b16 %v2707
      %v3391 = vunpack.c.l.b16 %v2708
      %v3392 = vunpack.c.h.b16 %v2708
      %v3393 = vunpack.c.l.b16 %v2709
      %v3394 = vunpack.c.h.b16 %v2709
      %v3395 = vunpack.c.l.b16 %v2710
      %v3396 = vunpack.c.h.b16 %v2710
      %v3397 = vunpack.c.l.b16 %v2711
      %v3398 = vunpack.c.h.b16 %v2711
      %v3399 = vunpack.c.l.b16 %v2712
      %v3400 = vunpack.c.h.b16 %v2712
      %v3401 = vunpack.c.l.b16 %v2713
      %v3402 = vunpack.c.h.b16 %v2713
      %v3403 = vunpack.c.l.b16 %v2714
      %v3404 = vunpack.c.h.b16 %v2714
      %v3405 = vunpack.c.l.b16 %v2715
      %v3406 = vunpack.c.h.b16 %v2715
      %v3407 = vunpack.c.l.b16 %v2716
      %v3408 = vunpack.c.h.b16 %v2716
      %v3409 = vunpack.c.l.b16 %v2717
      %v3410 = vunpack.c.h.b16 %v2717
      %v3411 = vunpack.c.l.b16 %v2718
      %v3412 = vunpack.c.h.b16 %v2718
      %v3413 = vunpack.c.l.b16 %v2719
      %v3414 = vunpack.c.h.b16 %v2719
      %v3415 = vunpack.c.l.b16 %v2720
      %v3416 = vunpack.c.h.b16 %v2720
      %v3417 = vunpack.c.l.b16 %v2721
      %v3418 = vunpack.c.h.b16 %v2721
      %v3419 = vunpack.c.l.b16 %v2722
      %v3420 = vunpack.c.h.b16 %v2722
      %v3421 = vunpack.c.l.b16 %v2723
      %v3422 = vunpack.c.h.b16 %v2723
      %v3423 = vunpack.c.l.b16 %v2724
      %v3424 = vunpack.c.h.b16 %v2724
      %v3425 = vunpack.c.l.b16 %v2725
      %v3426 = vunpack.c.h.b16 %v2725
      %v3427 = vunpack.c.l.b16 %v2726
      %v3428 = vunpack.c.h.b16 %v2726
      %v3429 = vunpack.c.l.b16 %v2727
      %v3430 = vunpack.c.h.b16 %v2727
      %v3431 = vunpack.c.l.b16 %v2728
      %v3432 = vunpack.c.h.b16 %v2728
      %v3433 = vunpack.c.l.b16 %v2729
      %v3434 = vunpack.c.h.b16 %v2729
      %v3435 = vunpack.c.l.b16 %v2730
      %v3436 = vunpack.c.h.b16 %v2730
      %v3437 = vunpack.c.l.b16 %v2731
      %v3438 = vunpack.c.h.b16 %v2731
      %v3439 = vunpack.c.l.b16 %v2732
      %v3440 = vunpack.c.h.b16 %v2732
      %v3441 = vunpack.c.l.b16 %v2733
      %v3442 = vunpack.c.h.b16 %v2733
      %v3443 = vunpack.c.l.b16 %v2734
      %v3444 = vunpack.c.h.b16 %v2734
      %v3445 = vunpack.c.l.b16 %v2735
      %v3446 = vunpack.c.h.b16 %v2735
      %v3447 = vunpack.c.l.b16 %v2736
      %v3448 = vunpack.c.h.b16 %v2736
      %v3449 = vunpack.c.l.b16 %v2737
      %v3450 = vunpack.c.h.b16 %v2737
      %v3451 = vunpack.c.l.b16 %v2738
      %v3452 = vunpack.c.h.b16 %v2738
      %v3453 = vunpack.c.l.b16 %v2739
      %v3454 = vunpack.c.h.b16 %v2739
      %v3455 = vunpack.c.l.b16 %v2740
      %v3456 = vunpack.c.h.b16 %v2740
      %v3457 = vunpack.c.l.b16 %v2741
      %v3458 = vunpack.c.h.b16 %v2741
      %v3459 = vunpack.c.l.b16 %v2742
      %v3460 = vunpack.c.h.b16 %v2742
      %v3461 = vunpack.c.l.b16 %v2743
      %v3462 = vunpack.c.h.b16 %v2743
      %v3463 = vunpack.c.l.b16 %v2744
      %v3464 = vunpack.c.h.b16 %v2744
      %v3465 = vunpack.c.l.b16 %v2745
      %v3466 = vunpack.c.h.b16 %v2745
      %v3467 = vunpack.c.l.b16 %v2746
      %v3468 = vunpack.c.h.b16 %v2746
      %v3469 = vunpack.c.l.b16 %v2747
      %v3470 = vunpack.c.h.b16 %v2747
      %v3471 = vunpack.c.l.b16 %v2748
      %v3472 = vunpack.c.h.b16 %v2748
      %v3473 = vunpack.c.l.b16 %v2749
      %v3474 = vunpack.c.h.b16 %v2749
      %v3475 = vunpack.c.l.b16 %v2750
      %v3476 = vunpack.c.h.b16 %v2750
      %v3477 = vunpack.c.l.b16 %v2751
      %v3478 = vunpack.c.h.b16 %v2751
      %v3479 = vunpack.c.l.b16 %v2752
      %v3480 = vunpack.c.h.b16 %v2752
      %v3481 = vunpack.c.l.b16 %v2753
      %v3482 = vunpack.c.h.b16 %v2753
      %v3483 = vunpack.c.l.b16 %v2754
      %v3484 = vunpack.c.h.b16 %v2754
      %v3485 = vunpack.c.l.b16 %v2755
      %v3486 = vunpack.c.h.b16 %v2755
      %v3487 = vunpack.c.l.b16 %v2756
      %v3488 = vunpack.c.h.b16 %v2756
      %v3489 = vunpack.c.l.b16 %v2757
      %v3490 = vunpack.c.h.b16 %v2757
      %v3491 = vunpack.c.l.b16 %v2758
      %v3492 = vunpack.c.h.b16 %v2758
      %v3493 = vunpack.c.l.b16 %v2759
      %v3494 = vunpack.c.h.b16 %v2759
      %v3495 = vunpack.c.l.b16 %v2760
      %v3496 = vunpack.c.h.b16 %v2760
      %v3497 = vunpack.c.l.b16 %v2761
      %v3498 = vunpack.c.h.b16 %v2761
      %v3499 = vunpack.c.l.b16 %v2762
      %v3500 = vunpack.c.h.b16 %v2762
      %v3501 = vunpack.c.l.b16 %v2763
      %v3502 = vunpack.c.h.b16 %v2763
      %v3503 = vunpack.c.l.b16 %v2764
      %v3504 = vunpack.c.h.b16 %v2764
      %v3505 = vunpack.c.l.b16 %v2765
      %v3506 = vunpack.c.h.b16 %v2765
      %v3507 = vunpack.c.l.b16 %v2766
      %v3508 = vunpack.c.h.b16 %v2766
      %v3509 = vunpack.c.l.b16 %v2767
      %v3510 = vunpack.c.h.b16 %v2767
      %v3511 = vunpack.c.l.b16 %v2768
      %v3512 = vunpack.c.h.b16 %v2768
      %v3513 = vunpack.c.l.b16 %v2769
      %v3514 = vunpack.c.h.b16 %v2769
      %v3515 = vunpack.c.l.b16 %v2770
      %v3516 = vunpack.c.h.b16 %v2770
      %v3517 = vunpack.c.l.b16 %v2771
      %v3518 = vunpack.c.h.b16 %v2771
      %v3519 = vunpack.c.l.b16 %v2772
      %v3520 = vunpack.c.h.b16 %v2772
      %v3521 = vunpack.c.l.b16 %v2773
      %v3522 = vunpack.c.h.b16 %v2773
      %v3523 = vunpack.c.l.b16 %v2774
      %v3524 = vunpack.c.h.b16 %v2774
      %v3525 = vunpack.c.l.b16 %v2775
      %v3526 = vunpack.c.h.b16 %v2775
      %v3527 = vunpack.c.l.b16 %v2776
      %v3528 = vunpack.c.h.b16 %v2776
      %v3529 = vunpack.c.l.b16 %v2777
      %v3530 = vunpack.c.h.b16 %v2777
      %v3531 = vunpack.c.l.b16 %v2778
      %v3532 = vunpack.c.h.b16 %v2778
      %v3533 = vunpack.c.l.b16 %v2779
      %v3534 = vunpack.c.h.b16 %v2779
      %v3535 = vunpack.c.l.b16 %v2780
      %v3536 = vunpack.c.h.b16 %v2780
      %v3537 = vunpack.c.l.b16 %v2781
      %v3538 = vunpack.c.h.b16 %v2781
      %v3539 = vunpack.c.l.b16 %v2782
      %v3540 = vunpack.c.h.b16 %v2782
      %v3541 = vunpack.c.l.b16 %v2783
      %v3542 = vunpack.c.h.b16 %v2783
      %v3543 = vunpack.c.l.b16 %v2784
      %v3544 = vunpack.c.h.b16 %v2784
      %v3545 = vunpack.c.l.b16 %v2785
      %v3546 = vunpack.c.h.b16 %v2785
      %v3547 = vunpack.c.l.b16 %v2786
      %v3548 = vunpack.c.h.b16 %v2786
      %v3549 = vunpack.c.l.b16 %v2787
      %v3550 = vunpack.c.h.b16 %v2787
      %v3551 = vunpack.c.l.b16 %v2788
      %v3552 = vunpack.c.h.b16 %v2788
      %v3553 = vunpack.c.l.b16 %v2789
      %v3554 = vunpack.c.h.b16 %v2789
      %v3555 = vunpack.c.l.b16 %v2790
      %v3556 = vunpack.c.h.b16 %v2790
      %v3557 = vunpack.c.l.b16 %v2791
      %v3558 = vunpack.c.h.b16 %v2791
      %v3559 = vunpack.c.l.b16 %v2792
      %v3560 = vunpack.c.h.b16 %v2792
      %v3561 = vunpack.c.l.b16 %v2793
      %v3562 = vunpack.c.h.b16 %v2793
      %v3563 = vunpack.c.l.b16 %v2794
      %v3564 = vunpack.c.h.b16 %v2794
      %v3565 = vunpack.c.l.b16 %v2795
      %v3566 = vunpack.c.h.b16 %v2795
      %v3567 = vunpack.c.l.b16 %v2796
      %v3568 = vunpack.c.h.b16 %v2796
      %v3569 = vunpack.c.l.b16 %v2797
      %v3570 = vunpack.c.h.b16 %v2797
      %v3571 = vunpack.c.l.b16 %v2798
      %v3572 = vunpack.c.h.b16 %v2798
      %v3573 = vunpack.c.l.b16 %v2799
      %v3574 = vunpack.c.h.b16 %v2799
      %v3575 = vunpack.c.l.b16 %v2800
      %v3576 = vunpack.c.h.b16 %v2800
      %v3577 = vunpack.c.l.b16 %v2801
      %v3578 = vunpack.c.h.b16 %v2801
      %v3579 = vunpack.c.l.b16 %v2802
      %v3580 = vunpack.c.h.b16 %v2802
      %v3581 = vunpack.c.l.b16 %v2803
      %v3582 = vunpack.c.h.b16 %v2803
      %v3583 = vunpack.c.l.b16 %v2804
      %v3584 = vunpack.c.h.b16 %v2804
      %v3585 = vunpack.c.l.b16 %v2805
      %v3586 = vunpack.c.h.b16 %v2805
      %v3587 = vunpack.c.l.b16 %v2806
      %v3588 = vunpack.c.h.b16 %v2806
      %v3589 = vunpack.c.l.b16 %v2807
      %v3590 = vunpack.c.h.b16 %v2807
      %v3591 = vunpack.c.l.b16 %v2808
      %v3592 = vunpack.c.h.b16 %v2808
      %v3593 = vunpack.c.l.b16 %v2809
      %v3594 = vunpack.c.h.b16 %v2809
      %v3595 = vunpack.c.l.b16 %v2810
      %v3596 = vunpack.c.h.b16 %v2810
      %v3597 = vunpack.c.l.b16 %v2811
      %v3598 = vunpack.c.h.b16 %v2811
      %v3599 = vunpack.c.l.b16 %v2812
      %v3600 = vunpack.c.h.b16 %v2812
      %v3601 = vunpack.c.l.b16 %v2813
      %v3602 = vunpack.c.h.b16 %v2813
      %v3603 = vunpack.c.l.b16 %v2814
      %v3604 = vunpack.c.h.b16 %v2814
      %v3605 = vpack.c.b16 %v3097, %v3093
      %v3606 = vpack.c.b16 %v3098, %v3094
      %v3607 = vpack.c.b16 %v3099, %v3095
      %v3608 = vpack.c.b16 %v3100, %v3096
      %v3609 = vpack.c.b16 %v3105, %v3101
      %v3610 = vpack.c.b16 %v3106, %v3102
      %v3611 = vpack.c.b16 %v3107, %v3103
      %v3612 = vpack.c.b16 %v3108, %v3104
      %v3613 = vpack.c.b16 %v3113, %v3109
      %v3614 = vpack.c.b16 %v3114, %v3110
      %v3615 = vpack.c.b16 %v3115, %v3111
      %v3616 = vpack.c.b16 %v3116, %v3112
      %v3617 = vpack.c.b16 %v3121, %v3117
      %v3618 = vpack.c.b16 %v3122, %v3118
      %v3619 = vpack.c.b16 %v3123, %v3119
      %v3620 = vpack.c.b16 %v3124, %v3120
      %v3621 = vpack.c.b16 %v3129, %v3125
      %v3622 = vpack.c.b16 %v3130, %v3126
      %v3623 = vpack.c.b16 %v3131, %v3127
      %v3624 = vpack.c.b16 %v3132, %v3128
      %v3625 = vpack.c.b16 %v3137, %v3133
      %v3626 = vpack.c.b16 %v3138, %v3134
      %v3627 = vpack.c.b16 %v3139, %v3135
      %v3628 = vpack.c.b16 %v3140, %v3136
      %v3629 = vpack.c.b16 %v3145, %v3141
      %v3630 = vpack.c.b16 %v3146, %v3142
      %v3631 = vpack.c.b16 %v3147, %v3143
      %v3632 = vpack.c.b16 %v3148, %v3144
      %v3633 = vpack.c.b16 %v3153, %v3149
      %v3634 = vpack.c.b16 %v3154, %v3150
      %v3635 = vpack.c.b16 %v3155, %v3151
      %v3636 = vpack.c.b16 %v3156, %v3152
      %v3637 = vpack.c.b16 %v3161, %v3157
      %v3638 = vpack.c.b16 %v3162, %v3158
      %v3639 = vpack.c.b16 %v3163, %v3159
      %v3640 = vpack.c.b16 %v3164, %v3160
      %v3641 = vpack.c.b16 %v3169, %v3165
      %v3642 = vpack.c.b16 %v3170, %v3166
      %v3643 = vpack.c.b16 %v3171, %v3167
      %v3644 = vpack.c.b16 %v3172, %v3168
      %v3645 = vpack.c.b16 %v3177, %v3173
      %v3646 = vpack.c.b16 %v3178, %v3174
      %v3647 = vpack.c.b16 %v3179, %v3175
      %v3648 = vpack.c.b16 %v3180, %v3176
      %v3649 = vpack.c.b16 %v3185, %v3181
      %v3650 = vpack.c.b16 %v3186, %v3182
      %v3651 = vpack.c.b16 %v3187, %v3183
      %v3652 = vpack.c.b16 %v3188, %v3184
      %v3653 = vpack.c.b16 %v3193, %v3189
      %v3654 = vpack.c.b16 %v3194, %v3190
      %v3655 = vpack.c.b16 %v3195, %v3191
      %v3656 = vpack.c.b16 %v3196, %v3192
      %v3657 = vpack.c.b16 %v3201, %v3197
      %v3658 = vpack.c.b16 %v3202, %v3198
      %v3659 = vpack.c.b16 %v3203, %v3199
      %v3660 = vpack.c.b16 %v3204, %v3200
      %v3661 = vpack.c.b16 %v3209, %v3205
      %v3662 = vpack.c.b16 %v3210, %v3206
      %v3663 = vpack.c.b16 %v3211, %v3207
      %v3664 = vpack.c.b16 %v3212, %v3208
      %v3665 = vpack.c.b16 %v3217, %v3213
      %v3666 = vpack.c.b16 %v3218, %v3214
      %v3667 = vpack.c.b16 %v3219, %v3215
      %v3668 = vpack.c.b16 %v3220, %v3216
      %v3669 = vpack.c.b16 %v3225, %v3221
      %v3670 = vpack.c.b16 %v3226, %v3222
      %v3671 = vpack.c.b16 %v3227, %v3223
      %v3672 = vpack.c.b16 %v3228, %v3224
      %v3673 = vpack.c.b16 %v3233, %v3229
      %v3674 = vpack.c.b16 %v3234, %v3230
      %v3675 = vpack.c.b16 %v3235, %v3231
      %v3676 = vpack.c.b16 %v3236, %v3232
      %v3677 = vpack.c.b16 %v3241, %v3237
      %v3678 = vpack.c.b16 %v3242, %v3238
      %v3679 = vpack.c.b16 %v3243, %v3239
      %v3680 = vpack.c.b16 %v3244, %v3240
      %v3681 = vpack.c.b16 %v3249, %v3245
      %v3682 = vpack.c.b16 %v3250, %v3246
      %v3683 = vpack.c.b16 %v3251, %v3247
      %v3684 = vpack.c.b16 %v3252, %v3248
      %v3685 = vpack.c.b16 %v3257, %v3253
      %v3686 = vpack.c.b16 %v3258, %v3254
      %v3687 = vpack.c.b16 %v3259, %v3255
      %v3688 = vpack.c.b16 %v3260, %v3256
      %v3689 = vpack.c.b16 %v3265, %v3261
      %v3690 = vpack.c.b16 %v3266, %v3262
      %v3691 = vpack.c.b16 %v3267, %v3263
      %v3692 = vpack.c.b16 %v3268, %v3264
      %v3693 = vpack.c.b16 %v3273, %v3269
      %v3694 = vpack.c.b16 %v3274, %v3270
      %v3695 = vpack.c.b16 %v3275, %v3271
      %v3696 = vpack.c.b16 %v3276, %v3272
      %v3697 = vpack.c.b16 %v3281, %v3277
      %v3698 = vpack.c.b16 %v3282, %v3278
      %v3699 = vpack.c.b16 %v3283, %v3279
      %v3700 = vpack.c.b16 %v3284, %v3280
      %v3701 = vpack.c.b16 %v3289, %v3285
      %v3702 = vpack.c.b16 %v3290, %v3286
      %v3703 = vpack.c.b16 %v3291, %v3287
      %v3704 = vpack.c.b16 %v3292, %v3288
      %v3705 = vpack.c.b16 %v3297, %v3293
      %v3706 = vpack.c.b16 %v3298, %v3294
      %v3707 = vpack.c.b16 %v3299, %v3295
      %v3708 = vpack.c.b16 %v3300, %v3296
      %v3709 = vpack.c.b16 %v3305, %v3301
      %v3710 = vpack.c.b16 %v3306, %v3302
      %v3711 = vpack.c.b16 %v3307, %v3303
      %v3712 = vpack.c.b16 %v3308, %v3304
      %v3713 = vpack.c.b16 %v3313, %v3309
      %v3714 = vpack.c.b16 %v3314, %v3310
      %v3715 = vpack.c.b16 %v3315, %v3311
      %v3716 = vpack.c.b16 %v3316, %v3312
      %v3717 = vpack.c.b16 %v3321, %v3317
      %v3718 = vpack.c.b16 %v3322, %v3318
      %v3719 = vpack.c.b16 %v3323, %v3319
      %v3720 = vpack.c.b16 %v3324, %v3320
      %v3721 = vpack.c.b16 %v3329, %v3325
      %v3722 = vpack.c.b16 %v3330, %v3326
      %v3723 = vpack.c.b16 %v3331, %v3327
      %v3724 = vpack.c.b16 %v3332, %v3328
      %v3725 = vpack.c.b16 %v3337, %v3333
      %v3726 = vpack.c.b16 %v3338, %v3334
      %v3727 = vpack.c.b16 %v3339, %v3335
      %v3728 = vpack.c.b16 %v3340, %v3336
      %v3729 = vpack.c.b16 %v3345, %v3341
      %v3730 = vpack.c.b16 %v3346, %v3342
      %v3731 = vpack.c.b16 %v3347, %v3343
      %v3732 = vpack.c.b16 %v3348, %v3344
      %v3733 = vpack.c.b16 %v3353, %v3349
      %v3734 = vpack.c.b16 %v3354, %v3350
      %v3735 = vpack.c.b16 %v3355, %v3351
      %v3736 = vpack.c.b16 %v3356, %v3352
      %v3737 = vpack.c.b16 %v3361, %v3357
      %v3738 = vpack.c.b16 %v3362, %v3358
      %v3739 = vpack.c.b16 %v3363, %v3359
      %v3740 = vpack.c.b16 %v3364, %v3360
      %v3741 = vpack.c.b16 %v3369, %v3365
      %v3742 = vpack.c.b16 %v3370, %v3366
      %v3743 = vpack.c.b16 %v3371, %v3367
      %v3744 = vpack.c.b16 %v3372, %v3368
      %v3745 = vpack.c.b16 %v3377, %v3373
      %v3746 = vpack.c.b16 %v3378, %v3374
      %v3747 = vpack.c.b16 %v3379, %v3375
      %v3748 = vpack.c.b16 %v3380, %v3376
      %v3749 = vpack.c.b16 %v3385, %v3381
      %v3750 = vpack.c.b16 %v3386, %v3382
      %v3751 = vpack.c.b16 %v3387, %v3383
      %v3752 = vpack.c.b16 %v3388, %v3384
      %v3753 = vpack.c.b16 %v3393, %v3389
      %v3754 = vpack.c.b16 %v3394, %v3390
      %v3755 = vpack.c.b16 %v3395, %v3391
      %v3756 = vpack.c.b16 %v3396, %v3392
      %v3757 = vpack.c.b16 %v3401, %v3397
      %v3758 = vpack.c.b16 %v3402, %v3398
      %v3759 = vpack.c.b16 %v3403, %v3399
      %v3760 = vpack.c.b16 %v3404, %v3400
      %v3761 = vpack.c.b16 %v3409, %v3405
      %v3762 = vpack.c.b16 %v3410, %v3406
      %v3763 = vpack.c.b16 %v3411, %v3407
      %v3764 = vpack.c.b16 %v3412, %v3408
      %v3765 = vpack.c.b16 %v3417, %v3413
      %v3766 = vpack.c.b16 %v3418, %v3414
      %v3767 = vpack.c.b16 %v3419, %v3415
      %v3768 = vpack.c.b16 %v3420, %v3416
      %v3769 = vpack.c.b16 %v3425, %v3421
      %v3770 = vpack.c.b16 %v3426, %v3422
      %v3771 = vpack.c.b16 %v3427, %v3423
      %v3772 = vpack.c.b16 %v3428, %v3424
      %v3773 = vpack.c.b16 %v3433, %v3429
      %v3774 = vpack.c.b16 %v3434, %v3430
      %v3775 = vpack.c.b16 %v3435, %v3431
      %v3776 = vpack.c.b16 %v3436, %v3432
      %v3777 = vpack.c.b16 %v3441, %v3437
      %v3778 = vpack.c.b16 %v3442, %v3438
      %v3779 = vpack.c.b16 %v3443, %v3439
      %v3780 = vpack.c.b16 %v3444, %v3440
      %v3781 = vpack.c.b16 %v3449, %v3445
      %v3782 = vpack.c.b16 %v3450, %v3446
      %v3783 = vpack.c.b16 %v3451, %v3447
      %v3784 = vpack.c.b16 %v3452, %v3448
      %v3785 = vpack.c.b16 %v3457, %v3453
      %v3786 = vpack.c.b16 %v3458, %v3454
      %v3787 = vpack.c.b16 %v3459, %v3455
      %v3788 = vpack.c.b16 %v3460, %v3456
      %v3789 = vpack.c.b16 %v3465, %v3461
      %v3790 = vpack.c.b16 %v3466, %v3462
      %v3791 = vpack.c.b16 %v3467, %v3463
      %v3792 = vpack.c.b16 %v3468, %v3464
      %v3793 = vpack.c.b16 %v3473, %v3469
      %v3794 = vpack.c.b16 %v3474, %v3470
      %v3795 = vpack.c.b16 %v3475, %v3471
      %v3796 = vpack.c.b16 %v3476, %v3472
      %v3797 = vpack.c.b16 %v3481, %v3477
      %v3798 = vpack.c.b16 %v3482, %v3478
      %v3799 = vpack.c.b16 %v3483, %v3479
      %v3800 = vpack.c.b16 %v3484, %v3480
      %v3801 = vpack.c.b16 %v3489, %v3485
      %v3802 = vpack.c.b16 %v3490, %v3486
      %v3803 = vpack.c.b16 %v3491, %v3487
      %v3804 = vpack.c.b16 %v3492, %v3488
      %v3805 = vpack.c.b16 %v3497, %v3493
      %v3806 = vpack.c.b16 %v3498, %v3494
      %v3807 = vpack.c.b16 %v3499, %v3495
      %v3808 = vpack.c.b16 %v3500, %v3496
      %v3809 = vpack.c.b16 %v3505, %v3501
      %v3810 = vpack.c.b16 %v3506, %v3502
      %v3811 = vpack.c.b16 %v3507, %v3503
      %v3812 = vpack.c.b16 %v3508, %v3504
      %v3813 = vpack.c.b16 %v3513, %v3509
      %v3814 = vpack.c.b16 %v3514, %v3510
      %v3815 = vpack.c.b16 %v3515, %v3511
      %v3816 = vpack.c.b16 %v3516, %v3512
      %v3817 = vpack.c.b16 %v3521, %v3517
      %v3818 = vpack.c.b16 %v3522, %v3518
      %v3819 = vpack.c.b16 %v3523, %v3519
      %v3820 = vpack.c.b16 %v3524, %v3520
      %v3821 = vpack.c.b16 %v3529, %v3525
      %v3822 = vpack.c.b16 %v3530, %v3526
      %v3823 = vpack.c.b16 %v3531, %v3527
      %v3824 = vpack.c.b16 %v3532, %v3528
      %v3825 = vpack.c.b16 %v3537, %v3533
      %v3826 = vpack.c.b16 %v3538, %v3534
      %v3827 = vpack.c.b16 %v3539, %v3535
      %v3828 = vpack.c.b16 %v3540, %v3536
      %v3829 = vpack.c.b16 %v3545, %v3541
      %v3830 = vpack.c.b16 %v3546, %v3542
      %v3831 = vpack.c.b16 %v3547, %v3543
      %v3832 = vpack.c.b16 %v3548, %v3544
      %v3833 = vpack.c.b16 %v3553, %v3549
      %v3834 = vpack.c.b16 %v3554, %v3550
      %v3835 = vpack.c.b16 %v3555, %v3551
      %v3836 = vpack.c.b16 %v3556, %v3552
      %v3837 = vpack.c.b16 %v3561, %v3557
      %v3838 = vpack.c.b16 %v3562, %v3558
      %v3839 = vpack.c.b16 %v3563, %v3559
      %v3840 = vpack.c.b16 %v3564, %v3560
      %v3841 = vpack.c.b16 %v3569, %v3565
      %v3842 = vpack.c.b16 %v3570, %v3566
      %v3843 = vpack.c.b16 %v3571, %v3567
      %v3844 = vpack.c.b16 %v3572, %v3568
      %v3845 = vpack.c.b16 %v3577, %v3573
      %v3846 = vpack.c.b16 %v3578, %v3574
      %v3847 = vpack.c.b16 %v3579, %v3575
      %v3848 = vpack.c.b16 %v3580, %v3576
      %v3849 = vpack.c.b16 %v3585, %v3581
      %v3850 = vpack.c.b16 %v3586, %v3582
      %v3851 = vpack.c.b16 %v3587, %v3583
      %v3852 = vpack.c.b16 %v3588, %v3584
      %v3853 = vpack.c.b16 %v3593, %v3589
      %v3854 = vpack.c.b16 %v3594, %v3590
      %v3855 = vpack.c.b16 %v3595, %v3591
      %v3856 = vpack.c.b16 %v3596, %v3592
      %v3857 = vpack.c.b16 %v3601, %v3597
      %v3858 = vpack.c.b16 %v3602, %v3598
      %v3859 = vpack.c.b16 %v3603, %v3599
      %v3860 = vpack.c.b16 %v3604, %v3600
      %4117 = vmatprep.subr.bf16.mxu0 %v3606
      %4118 = vmatpush1.bf16.msra.mxu0 %v3605
      %4119 = vmatprep.subr.bf16.mxu0 %v3610
      %4120 = vmatpush1.bf16.msra.mxu0 %v3609
      %4121 = vmatprep.subr.bf16.mxu0 %v3614
      %4122 = vmatpush1.bf16.msra.mxu0 %v3613
      %4123 = vmatprep.subr.bf16.mxu0 %v3618
      %4124 = vmatpush1.bf16.msra.mxu0 %v3617
      %4125 = vmatprep.subr.bf16.mxu0 %v3622
      %4126 = vmatpush1.bf16.msra.mxu0 %v3621
      %4127 = vmatprep.subr.bf16.mxu0 %v3626
      %4128 = vmatpush1.bf16.msra.mxu0 %v3625
      %4129 = vmatprep.subr.bf16.mxu0 %v3630
      %4130 = vmatpush1.bf16.msra.mxu0 %v3629
      %4131 = vmatprep.subr.bf16.mxu0 %v3634
      %4132 = vmatpush1.bf16.msra.mxu0 %v3633
      %4133 = vmatprep.subr.bf16.mxu0 %v3638
      %4134 = vmatpush1.bf16.msra.mxu0 %v3637
      %4135 = vmatprep.subr.bf16.mxu0 %v3642
      %4136 = vmatpush1.bf16.msra.mxu0 %v3641
      %4137 = vmatprep.subr.bf16.mxu0 %v3646
      %4138 = vmatpush1.bf16.msra.mxu0 %v3645
      %4139 = vmatprep.subr.bf16.mxu0 %v3650
      %4140 = vmatpush1.bf16.msra.mxu0 %v3649
      %4141 = vmatprep.subr.bf16.mxu0 %v3654
      %4142 = vmatpush1.bf16.msra.mxu0 %v3653
      %4143 = vmatprep.subr.bf16.mxu0 %v3658
      %4144 = vmatpush1.bf16.msra.mxu0 %v3657
      %4145 = vmatprep.subr.bf16.mxu0 %v3662
      %4146 = vmatpush1.bf16.msra.mxu0 %v3661
      %4147 = vmatprep.subr.bf16.mxu0 %v3666
      %4148 = vmatpush1.bf16.msra.mxu0 %v3665
      %4149 = vmatprep.mubr.bf16.mxu0 %v2552
      %4150 = vmatmul.mubr.bf16.gmra.mrb[0].mxu0 %v2551
      %v4151 = vpop.f32.mrb[0].mxu0
      %v4152 = vadd.f32 %v2820, %v4151
      %v4153 = vpop.f32.mrb[0].mxu0
      %v4154 = vadd.f32 %v2824, %v4153
      %v4155 = vpop.f32.mrb[0].mxu0
      %v4156 = vpop.f32.mrb[0].mxu0
      %4157 = vdwg.mxu0
      %4158 = vmatprep.subr.bf16.mxu0 %v3670
      %4159 = vmatpush1.bf16.msra.mxu0 %v3669
      %4160 = vmatprep.subr.bf16.mxu0 %v3674
      %4161 = vmatpush1.bf16.msra.mxu0 %v3673
      %4162 = vmatprep.subr.bf16.mxu0 %v3678
      %4163 = vmatpush1.bf16.msra.mxu0 %v3677
      %4164 = vmatprep.subr.bf16.mxu0 %v3682
      %4165 = vmatpush1.bf16.msra.mxu0 %v3681
      %4166 = vmatprep.subr.bf16.mxu0 %v3686
      %4167 = vmatpush1.bf16.msra.mxu0 %v3685
      %4168 = vmatprep.subr.bf16.mxu0 %v3690
      %4169 = vmatpush1.bf16.msra.mxu0 %v3689
      %4170 = vmatprep.subr.bf16.mxu0 %v3694
      %4171 = vmatpush1.bf16.msra.mxu0 %v3693
      %4172 = vmatprep.subr.bf16.mxu0 %v3698
      %4173 = vmatpush1.bf16.msra.mxu0 %v3697
      %4174 = vmatprep.subr.bf16.mxu0 %v3702
      %4175 = vmatpush1.bf16.msra.mxu0 %v3701
      %4176 = vmatprep.subr.bf16.mxu0 %v3706
      %4177 = vmatpush1.bf16.msra.mxu0 %v3705
      %4178 = vmatprep.subr.bf16.mxu0 %v3710
      %4179 = vmatpush1.bf16.msra.mxu0 %v3709
      %4180 = vmatprep.subr.bf16.mxu0 %v3714
      %4181 = vmatpush1.bf16.msra.mxu0 %v3713
      %4182 = vmatprep.subr.bf16.mxu0 %v3718
      %4183 = vmatpush1.bf16.msra.mxu0 %v3717
      %4184 = vmatprep.subr.bf16.mxu0 %v3722
      %4185 = vmatpush1.bf16.msra.mxu0 %v3721
      %4186 = vmatprep.subr.bf16.mxu0 %v3726
      %4187 = vmatpush1.bf16.msra.mxu0 %v3725
      %4188 = vmatprep.subr.bf16.mxu0 %v3730
      %4189 = vmatpush1.bf16.msra.mxu0 %v3729
      %4190 = vmatprep.mubr.bf16.mxu0 %v2554
      %4191 = vmatmul.mubr.bf16.gmra.mrb[0].mxu0 %v2553
      %v4192 = vpop.f32.mrb[0].mxu0
      %v4193 = vadd.f32 %v4152, %v4192
      %v4194 = vpop.f32.mrb[0].mxu0
      %v4195 = vadd.f32 %v4154, %v4194
      %v4196 = vpop.f32.mrb[0].mxu0
      %v4197 = vpop.f32.mrb[0].mxu0
      %4198 = vdwg.mxu0
      %4199 = vmatprep.subr.bf16.mxu0 %v3734
      %4200 = vmatpush1.bf16.msra.mxu0 %v3733
      %4201 = vmatprep.subr.bf16.mxu0 %v3738
      %4202 = vmatpush1.bf16.msra.mxu0 %v3737
      %4203 = vmatprep.subr.bf16.mxu0 %v3742
      %4204 = vmatpush1.bf16.msra.mxu0 %v3741
      %4205 = vmatprep.subr.bf16.mxu0 %v3746
      %4206 = vmatpush1.bf16.msra.mxu0 %v3745
      %4207 = vmatprep.subr.bf16.mxu0 %v3750
      %4208 = vmatpush1.bf16.msra.mxu0 %v3749
      %4209 = vmatprep.subr.bf16.mxu0 %v3754
      %4210 = vmatpush1.bf16.msra.mxu0 %v3753
      %4211 = vmatprep.subr.bf16.mxu0 %v3758
      %4212 = vmatpush1.bf16.msra.mxu0 %v3757
      %4213 = vmatprep.subr.bf16.mxu0 %v3762
      %4214 = vmatpush1.bf16.msra.mxu0 %v3761
      %4215 = vmatprep.subr.bf16.mxu0 %v3766
      %4216 = vmatpush1.bf16.msra.mxu0 %v3765
      %4217 = vmatprep.subr.bf16.mxu0 %v3770
      %4218 = vmatpush1.bf16.msra.mxu0 %v3769
      %4219 = vmatprep.subr.bf16.mxu0 %v3774
      %4220 = vmatpush1.bf16.msra.mxu0 %v3773
      %4221 = vmatprep.subr.bf16.mxu0 %v3778
      %4222 = vmatpush1.bf16.msra.mxu0 %v3777
      %4223 = vmatprep.subr.bf16.mxu0 %v3782
      %4224 = vmatpush1.bf16.msra.mxu0 %v3781
      %4225 = vmatprep.subr.bf16.mxu0 %v3786
      %4226 = vmatpush1.bf16.msra.mxu0 %v3785
      %4227 = vmatprep.subr.bf16.mxu0 %v3790
      %4228 = vmatpush1.bf16.msra.mxu0 %v3789
      %4229 = vmatprep.subr.bf16.mxu0 %v3794
      %4230 = vmatpush1.bf16.msra.mxu0 %v3793
      %4231 = vmatprep.mubr.bf16.mxu0 %v2556
      %4232 = vmatmul.mubr.bf16.gmra.mrb[0].mxu0 %v2555
      %v4233 = vpop.f32.mrb[0].mxu0
      %v4234 = vadd.f32 %v4193, %v4233
      %v4235 = vpop.f32.mrb[0].mxu0
      %v4236 = vadd.f32 %v4195, %v4235
      %v4237 = vpop.f32.mrb[0].mxu0
      %v4238 = vpop.f32.mrb[0].mxu0
      %4239 = vdwg.mxu0
      %4240 = vmatprep.subr.bf16.mxu0 %v3798
      %4241 = vmatpush1.bf16.msra.mxu0 %v3797
      %4242 = vmatprep.subr.bf16.mxu0 %v3802
      %4243 = vmatpush1.bf16.msra.mxu0 %v3801
      %4244 = vmatprep.subr.bf16.mxu0 %v3806
      %4245 = vmatpush1.bf16.msra.mxu0 %v3805
      %4246 = vmatprep.subr.bf16.mxu0 %v3810
      %4247 = vmatpush1.bf16.msra.mxu0 %v3809
      %4248 = vmatprep.subr.bf16.mxu0 %v3814
      %4249 = vmatpush1.bf16.msra.mxu0 %v3813
      %4250 = vmatprep.subr.bf16.mxu0 %v3818
      %4251 = vmatpush1.bf16.msra.mxu0 %v3817
      %4252 = vmatprep.subr.bf16.mxu0 %v3822
      %4253 = vmatpush1.bf16.msra.mxu0 %v3821
      %4254 = vmatprep.subr.bf16.mxu0 %v3826
      %4255 = vmatpush1.bf16.msra.mxu0 %v3825
      %4256 = vmatprep.subr.bf16.mxu0 %v3830
      %4257 = vmatpush1.bf16.msra.mxu0 %v3829
      %4258 = vmatprep.subr.bf16.mxu0 %v3834
      %4259 = vmatpush1.bf16.msra.mxu0 %v3833
      %4260 = vmatprep.subr.bf16.mxu0 %v3838
      %4261 = vmatpush1.bf16.msra.mxu0 %v3837
      %4262 = vmatprep.subr.bf16.mxu0 %v3842
      %4263 = vmatpush1.bf16.msra.mxu0 %v3841
      %4264 = vmatprep.subr.bf16.mxu0 %v3846
      %4265 = vmatpush1.bf16.msra.mxu0 %v3845
      %4266 = vmatprep.subr.bf16.mxu0 %v3850
      %4267 = vmatpush1.bf16.msra.mxu0 %v3849
      %4268 = vmatprep.subr.bf16.mxu0 %v3854
      %4269 = vmatpush1.bf16.msra.mxu0 %v3853
      %4270 = vmatprep.subr.bf16.mxu0 %v3858
      %4271 = vmatpush1.bf16.msra.mxu0 %v3857
      %4272 = vmatprep.mubr.bf16.mxu0 %v2558
      %4273 = vmatmul.mubr.bf16.gmra.mrb[0].mxu0 %v2557
      %v4274 = vpop.f32.mrb[0].mxu0
      %v4275 = vadd.f32 %v4234, %v4274
      %v4276 = vpop.f32.mrb[0].mxu0
      %v4277 = vadd.f32 %v4236, %v4276
      %v4278 = vpop.f32.mrb[0].mxu0
      %v4279 = vpop.f32.mrb[0].mxu0
      %4280 = vdwg.mxu0
      %4281 = vmatprep.subr.bf16.mxu0 %v3608
      %4282 = vmatpush1.bf16.msra.mxu0 %v3607
      %4283 = vmatprep.subr.bf16.mxu0 %v3612
      %4284 = vmatpush1.bf16.msra.mxu0 %v3611
      %4285 = vmatprep.subr.bf16.mxu0 %v3616
      %4286 = vmatpush1.bf16.msra.mxu0 %v3615
      %4287 = vmatprep.subr.bf16.mxu0 %v3620
      %4288 = vmatpush1.bf16.msra.mxu0 %v3619
      %4289 = vmatprep.subr.bf16.mxu0 %v3624
      %4290 = vmatpush1.bf16.msra.mxu0 %v3623
      %4291 = vmatprep.subr.bf16.mxu0 %v3628
      %4292 = vmatpush1.bf16.msra.mxu0 %v3627
      %4293 = vmatprep.subr.bf16.mxu0 %v3632
      %4294 = vmatpush1.bf16.msra.mxu0 %v3631
      %4295 = vmatprep.subr.bf16.mxu0 %v3636
      %4296 = vmatpush1.bf16.msra.mxu0 %v3635
      %4297 = vmatprep.subr.bf16.mxu0 %v3640
      %4298 = vmatpush1.bf16.msra.mxu0 %v3639
      %4299 = vmatprep.subr.bf16.mxu0 %v3644
      %4300 = vmatpush1.bf16.msra.mxu0 %v3643
      %4301 = vmatprep.subr.bf16.mxu0 %v3648
      %4302 = vmatpush1.bf16.msra.mxu0 %v3647
      %4303 = vmatprep.subr.bf16.mxu0 %v3652
      %4304 = vmatpush1.bf16.msra.mxu0 %v3651
      %4305 = vmatprep.subr.bf16.mxu0 %v3656
      %4306 = vmatpush1.bf16.msra.mxu0 %v3655
      %4307 = vmatprep.subr.bf16.mxu0 %v3660
      %4308 = vmatpush1.bf16.msra.mxu0 %v3659
      %4309 = vmatprep.subr.bf16.mxu0 %v3664
      %4310 = vmatpush1.bf16.msra.mxu0 %v3663
      %4311 = vmatprep.subr.bf16.mxu0 %v3668
      %4312 = vmatpush1.bf16.msra.mxu0 %v3667
      %4313 = vmatprep.mubr.bf16.mxu0 %v2552
      %4314 = vmatmul.mubr.bf16.gmra.mrb[0].mxu0 %v2551
      %v4315 = vpop.f32.mrb[0].mxu0
      %v4316 = vadd.f32 %v2828, %v4315
      %v4317 = vpop.f32.mrb[0].mxu0
      %v4318 = vadd.f32 %v2832, %v4317
      %v4319 = vpop.f32.mrb[0].mxu0
      %v4320 = vpop.f32.mrb[0].mxu0
      %4321 = vdwg.mxu0
      %4322 = vmatprep.subr.bf16.mxu0 %v3672
      %4323 = vmatpush1.bf16.msra.mxu0 %v3671
      %4324 = vmatprep.subr.bf16.mxu0 %v3676
      %4325 = vmatpush1.bf16.msra.mxu0 %v3675
      %4326 = vmatprep.subr.bf16.mxu0 %v3680
      %4327 = vmatpush1.bf16.msra.mxu0 %v3679
      %4328 = vmatprep.subr.bf16.mxu0 %v3684
      %4329 = vmatpush1.bf16.msra.mxu0 %v3683
      %4330 = vmatprep.subr.bf16.mxu0 %v3688
      %4331 = vmatpush1.bf16.msra.mxu0 %v3687
      %4332 = vmatprep.subr.bf16.mxu0 %v3692
      %4333 = vmatpush1.bf16.msra.mxu0 %v3691
      %4334 = vmatprep.subr.bf16.mxu0 %v3696
      %4335 = vmatpush1.bf16.msra.mxu0 %v3695
      %4336 = vmatprep.subr.bf16.mxu0 %v3700
      %4337 = vmatpush1.bf16.msra.mxu0 %v3699
      %4338 = vmatprep.subr.bf16.mxu0 %v3704
      %4339 = vmatpush1.bf16.msra.mxu0 %v3703
      %4340 = vmatprep.subr.bf16.mxu0 %v3708
      %4341 = vmatpush1.bf16.msra.mxu0 %v3707
      %4342 = vmatprep.subr.bf16.mxu0 %v3712
      %4343 = vmatpush1.bf16.msra.mxu0 %v3711
      %4344 = vmatprep.subr.bf16.mxu0 %v3716
      %4345 = vmatpush1.bf16.msra.mxu0 %v3715
      %4346 = vmatprep.subr.bf16.mxu0 %v3720
      %4347 = vmatpush1.bf16.msra.mxu0 %v3719
      %4348 = vmatprep.subr.bf16.mxu0 %v3724
      %4349 = vmatpush1.bf16.msra.mxu0 %v3723
      %4350 = vmatprep.subr.bf16.mxu0 %v3728
      %4351 = vmatpush1.bf16.msra.mxu0 %v3727
      %4352 = vmatprep.subr.bf16.mxu0 %v3732
      %4353 = vmatpush1.bf16.msra.mxu0 %v3731
      %4354 = vmatprep.mubr.bf16.mxu0 %v2554
      %4355 = vmatmul.mubr.bf16.gmra.mrb[0].mxu0 %v2553
      %v4356 = vpop.f32.mrb[0].mxu0
      %v4357 = vadd.f32 %v4316, %v4356
      %v4358 = vpop.f32.mrb[0].mxu0
      %v4359 = vadd.f32 %v4318, %v4358
      %v4360 = vpop.f32.mrb[0].mxu0
      %v4361 = vpop.f32.mrb[0].mxu0
      %4362 = vdwg.mxu0
      %4363 = vmatprep.subr.bf16.mxu0 %v3736
      %4364 = vmatpush1.bf16.msra.mxu0 %v3735
      %4365 = vmatprep.subr.bf16.mxu0 %v3740
      %4366 = vmatpush1.bf16.msra.mxu0 %v3739
      %4367 = vmatprep.subr.bf16.mxu0 %v3744
      %4368 = vmatpush1.bf16.msra.mxu0 %v3743
      %4369 = vmatprep.subr.bf16.mxu0 %v3748
      %4370 = vmatpush1.bf16.msra.mxu0 %v3747
      %4371 = vmatprep.subr.bf16.mxu0 %v3752
      %4372 = vmatpush1.bf16.msra.mxu0 %v3751
      %4373 = vmatprep.subr.bf16.mxu0 %v3756
      %4374 = vmatpush1.bf16.msra.mxu0 %v3755
      %4375 = vmatprep.subr.bf16.mxu0 %v3760
      %4376 = vmatpush1.bf16.msra.mxu0 %v3759
      %4377 = vmatprep.subr.bf16.mxu0 %v3764
      %4378 = vmatpush1.bf16.msra.mxu0 %v3763
      %4379 = vmatprep.subr.bf16.mxu0 %v3768
      %4380 = vmatpush1.bf16.msra.mxu0 %v3767
      %4381 = vmatprep.subr.bf16.mxu0 %v3772
      %4382 = vmatpush1.bf16.msra.mxu0 %v3771
      %4383 = vmatprep.subr.bf16.mxu0 %v3776
      %4384 = vmatpush1.bf16.msra.mxu0 %v3775
      %4385 = vmatprep.subr.bf16.mxu0 %v3780
      %4386 = vmatpush1.bf16.msra.mxu0 %v3779
      %4387 = vmatprep.subr.bf16.mxu0 %v3784
      %4388 = vmatpush1.bf16.msra.mxu0 %v3783
      %4389 = vmatprep.subr.bf16.mxu0 %v3788
      %4390 = vmatpush1.bf16.msra.mxu0 %v3787
      %4391 = vmatprep.subr.bf16.mxu0 %v3792
      %4392 = vmatpush1.bf16.msra.mxu0 %v3791
      %4393 = vmatprep.subr.bf16.mxu0 %v3796
      %4394 = vmatpush1.bf16.msra.mxu0 %v3795
      %4395 = vmatprep.mubr.bf16.mxu0 %v2556
      %4396 = vmatmul.mubr.bf16.gmra.mrb[0].mxu0 %v2555
      %v4397 = vpop.f32.mrb[0].mxu0
      %v4398 = vadd.f32 %v4357, %v4397
      %v4399 = vpop.f32.mrb[0].mxu0
      %v4400 = vadd.f32 %v4359, %v4399
      %v4401 = vpop.f32.mrb[0].mxu0
      %v4402 = vpop.f32.mrb[0].mxu0
      %4403 = vdwg.mxu0
      %4404 = vmatprep.subr.bf16.mxu0 %v3800
      %4405 = vmatpush1.bf16.msra.mxu0 %v3799
      %4406 = vmatprep.subr.bf16.mxu0 %v3804
      %4407 = vmatpush1.bf16.msra.mxu0 %v3803
      %4408 = vmatprep.subr.bf16.mxu0 %v3808
      %4409 = vmatpush1.bf16.msra.mxu0 %v3807
      %4410 = vmatprep.subr.bf16.mxu0 %v3812
      %4411 = vmatpush1.bf16.msra.mxu0 %v3811
      %4412 = vmatprep.subr.bf16.mxu0 %v3816
      %4413 = vmatpush1.bf16.msra.mxu0 %v3815
      %4414 = vmatprep.subr.bf16.mxu0 %v3820
      %4415 = vmatpush1.bf16.msra.mxu0 %v3819
      %4416 = vmatprep.subr.bf16.mxu0 %v3824
      %4417 = vmatpush1.bf16.msra.mxu0 %v3823
      %4418 = vmatprep.subr.bf16.mxu0 %v3828
      %4419 = vmatpush1.bf16.msra.mxu0 %v3827
      %4420 = vmatprep.subr.bf16.mxu0 %v3832
      %4421 = vmatpush1.bf16.msra.mxu0 %v3831
      %4422 = vmatprep.subr.bf16.mxu0 %v3836
      %4423 = vmatpush1.bf16.msra.mxu0 %v3835
      %4424 = vmatprep.subr.bf16.mxu0 %v3840
      %4425 = vmatpush1.bf16.msra.mxu0 %v3839
      %4426 = vmatprep.subr.bf16.mxu0 %v3844
      %4427 = vmatpush1.bf16.msra.mxu0 %v3843
      %4428 = vmatprep.subr.bf16.mxu0 %v3848
      %4429 = vmatpush1.bf16.msra.mxu0 %v3847
      %4430 = vmatprep.subr.bf16.mxu0 %v3852
      %4431 = vmatpush1.bf16.msra.mxu0 %v3851
      %4432 = vmatprep.subr.bf16.mxu0 %v3856
      %4433 = vmatpush1.bf16.msra.mxu0 %v3855
      %4434 = vmatprep.subr.bf16.mxu0 %v3860
      %4435 = vmatpush1.bf16.msra.mxu0 %v3859
      %4436 = vmatprep.mubr.bf16.mxu0 %v2558
      %4437 = vmatmul.mubr.bf16.gmra.mrb[0].mxu0 %v2557
      %v4438 = vpop.f32.mrb[0].mxu0
      %v4439 = vadd.f32 %v4398, %v4438
      %v4440 = vpop.f32.mrb[0].mxu0
      %v4441 = vadd.f32 %v4400, %v4440
      %v4442 = vpop.f32.mrb[0].mxu0
      %v4443 = vpop.f32.mrb[0].mxu0
      %4444 = vdwg.mxu0
      %v4445 = vmax.f32 %v4275, 0.0
      %v4446 = vmax.f32 %v4277, 0.0
      %v4447 = vmax.f32 %v4439, 0.0
      %v4448 = vmax.f32 %v4441, 0.0
      %v4449 = vpack.c.bf16 %v4445, %v4445
      %v4450 = vpack.c.bf16 %v4446, %v4446
      %v4451 = vpack.c.bf16 %v4447, %v4447
      %v4452 = vpack.c.bf16 %v4448, %v4448
      %v4453 = vld [vmem:[#allocation7] sm:$0xff]
      %v4454 = vld [vmem:[#allocation7 + $0x8] sm:$0xff]
      %v4455 = vld [vmem:[#allocation7 + $0x10] sm:$0xff]
      %v4456 = vld [vmem:[#allocation7 + $0x18] sm:$0xff]
      %v4457 = vld [vmem:[#allocation7 + $0x20] sm:$0xff]
      %v4458 = vld [vmem:[#allocation7 + $0x28] sm:$0xff]
      %v4459 = vld [vmem:[#allocation7 + $0x30] sm:$0xff]
      %v4460 = vld [vmem:[#allocation7 + $0x38] sm:$0xff]
      %v4461 = vld [vmem:[#allocation7 + $0x40] sm:$0xff]
      %v4462 = vld [vmem:[#allocation7 + $0x48] sm:$0xff]
      %v4463 = vld [vmem:[#allocation7 + $0x50] sm:$0xff]
      %v4464 = vld [vmem:[#allocation7 + $0x58] sm:$0xff]
      %v4465 = vld [vmem:[#allocation7 + $0x60] sm:$0xff]
      %v4466 = vld [vmem:[#allocation7 + $0x68] sm:$0xff]
      %v4467 = vld [vmem:[#allocation7 + $0x70] sm:$0xff]
      %v4468 = vld [vmem:[#allocation7 + $0x78] sm:$0xff]
      %v4469 = vld [vmem:[#allocation7 + $0x80] sm:$0xff]
      %v4470 = vld [vmem:[#allocation7 + $0x88] sm:$0xff]
      %v4471 = vld [vmem:[#allocation7 + $0x90] sm:$0xff]
      %v4472 = vld [vmem:[#allocation7 + $0x98] sm:$0xff]
      %v4473 = vld [vmem:[#allocation7 + $0xa0] sm:$0xff]
      %v4474 = vld [vmem:[#allocation7 + $0xa8] sm:$0xff]
      %v4475 = vld [vmem:[#allocation7 + $0xb0] sm:$0xff]
      %v4476 = vld [vmem:[#allocation7 + $0xb8] sm:$0xff]
      %v4477 = vld [vmem:[#allocation7 + $0xc0] sm:$0xff]
      %v4478 = vld [vmem:[#allocation7 + $0xc8] sm:$0xff]
      %v4479 = vld [vmem:[#allocation7 + $0xd0] sm:$0xff]
      %v4480 = vld [vmem:[#allocation7 + $0xd8] sm:$0xff]
      %v4481 = vld [vmem:[#allocation7 + $0xe0] sm:$0xff]
      %v4482 = vld [vmem:[#allocation7 + $0xe8] sm:$0xff]
      %v4483 = vld [vmem:[#allocation7 + $0xf0] sm:$0xff]
      %v4484 = vld [vmem:[#allocation7 + $0xf8] sm:$0xff]
      %v4485 = vld [vmem:[#allocation7 + $0x100] sm:$0xff]
      %v4486 = vld [vmem:[#allocation7 + $0x108] sm:$0xff]
      %v4487 = vld [vmem:[#allocation7 + $0x110] sm:$0xff]
      %v4488 = vld [vmem:[#allocation7 + $0x118] sm:$0xff]
      %v4489 = vld [vmem:[#allocation7 + $0x120] sm:$0xff]
      %v4490 = vld [vmem:[#allocation7 + $0x128] sm:$0xff]
      %v4491 = vld [vmem:[#allocation7 + $0x130] sm:$0xff]
      %v4492 = vld [vmem:[#allocation7 + $0x138] sm:$0xff]
      %v4493 = vld [vmem:[#allocation7 + $0x140] sm:$0xff]
      %v4494 = vld [vmem:[#allocation7 + $0x148] sm:$0xff]
      %v4495 = vld [vmem:[#allocation7 + $0x150] sm:$0xff]
      %v4496 = vld [vmem:[#allocation7 + $0x158] sm:$0xff]
      %v4497 = vld [vmem:[#allocation7 + $0x160] sm:$0xff]
      %v4498 = vld [vmem:[#allocation7 + $0x168] sm:$0xff]
      %v4499 = vld [vmem:[#allocation7 + $0x170] sm:$0xff]
      %v4500 = vld [vmem:[#allocation7 + $0x178] sm:$0xff]
      %v4501 = vld [vmem:[#allocation7 + $0x180] sm:$0xff]
      %v4502 = vld [vmem:[#allocation7 + $0x188] sm:$0xff]
      %v4503 = vld [vmem:[#allocation7 + $0x190] sm:$0xff]
      %v4504 = vld [vmem:[#allocation7 + $0x198] sm:$0xff]
      %v4505 = vld [vmem:[#allocation7 + $0x1a0] sm:$0xff]
      %v4506 = vld [vmem:[#allocation7 + $0x1a8] sm:$0xff]
      %v4507 = vld [vmem:[#allocation7 + $0x1b0] sm:$0xff]
      %v4508 = vld [vmem:[#allocation7 + $0x1b8] sm:$0xff]
      %v4509 = vld [vmem:[#allocation7 + $0x1c0] sm:$0xff]
      %v4510 = vld [vmem:[#allocation7 + $0x1c8] sm:$0xff]
      %v4511 = vld [vmem:[#allocation7 + $0x1d0] sm:$0xff]
      %v4512 = vld [vmem:[#allocation7 + $0x1d8] sm:$0xff]
      %v4513 = vld [vmem:[#allocation7 + $0x1e0] sm:$0xff]
      %v4514 = vld [vmem:[#allocation7 + $0x1e8] sm:$0xff]
      %v4515 = vld [vmem:[#allocation7 + $0x1f0] sm:$0xff]
      %v4516 = vld [vmem:[#allocation7 + $0x1f8] sm:$0xff]
      %v4517 = vld [vmem:[%s10] sm:$0x3]
      %v4519 = vlaneseq
      %v4520 = vshrl.u32 %v4519, 7
      %v4521 = vsub.s32 0, %v4520
      %v4522 = vrot.slane %v4517, %v4521
      %v4523 = vlaneseq
      %v4524 = vshrl.u32 %v4523, 7
      %v4525 = vsub.s32 1, %v4524
      %v4526 = vrot.slane %v4517, %v4525
      %v4593 = vunpack.c.l.b16 %v4453
      %v4594 = vunpack.c.h.b16 %v4453
      %v4595 = vunpack.c.l.b16 %v4454
      %v4596 = vunpack.c.h.b16 %v4454
      %v4597 = vunpack.c.l.b16 %v4455
      %v4598 = vunpack.c.h.b16 %v4455
      %v4599 = vunpack.c.l.b16 %v4456
      %v4600 = vunpack.c.h.b16 %v4456
      %v4601 = vunpack.c.l.b16 %v4457
      %v4602 = vunpack.c.h.b16 %v4457
      %v4603 = vunpack.c.l.b16 %v4458
      %v4604 = vunpack.c.h.b16 %v4458
      %v4605 = vunpack.c.l.b16 %v4459
      %v4606 = vunpack.c.h.b16 %v4459
      %v4607 = vunpack.c.l.b16 %v4460
      %v4608 = vunpack.c.h.b16 %v4460
      %v4609 = vunpack.c.l.b16 %v4461
      %v4610 = vunpack.c.h.b16 %v4461
      %v4611 = vunpack.c.l.b16 %v4462
      %v4612 = vunpack.c.h.b16 %v4462
      %v4613 = vunpack.c.l.b16 %v4463
      %v4614 = vunpack.c.h.b16 %v4463
      %v4615 = vunpack.c.l.b16 %v4464
      %v4616 = vunpack.c.h.b16 %v4464
      %v4617 = vunpack.c.l.b16 %v4465
      %v4618 = vunpack.c.h.b16 %v4465
      %v4619 = vunpack.c.l.b16 %v4466
      %v4620 = vunpack.c.h.b16 %v4466
      %v4621 = vunpack.c.l.b16 %v4467
      %v4622 = vunpack.c.h.b16 %v4467
      %v4623 = vunpack.c.l.b16 %v4468
      %v4624 = vunpack.c.h.b16 %v4468
      %v4625 = vunpack.c.l.b16 %v4469
      %v4626 = vunpack.c.h.b16 %v4469
      %v4627 = vunpack.c.l.b16 %v4470
      %v4628 = vunpack.c.h.b16 %v4470
      %v4629 = vunpack.c.l.b16 %v4471
      %v4630 = vunpack.c.h.b16 %v4471
      %v4631 = vunpack.c.l.b16 %v4472
      %v4632 = vunpack.c.h.b16 %v4472
      %v4633 = vunpack.c.l.b16 %v4473
      %v4634 = vunpack.c.h.b16 %v4473
      %v4635 = vunpack.c.l.b16 %v4474
      %v4636 = vunpack.c.h.b16 %v4474
      %v4637 = vunpack.c.l.b16 %v4475
      %v4638 = vunpack.c.h.b16 %v4475
      %v4639 = vunpack.c.l.b16 %v4476
      %v4640 = vunpack.c.h.b16 %v4476
      %v4641 = vunpack.c.l.b16 %v4477
      %v4642 = vunpack.c.h.b16 %v4477
      %v4643 = vunpack.c.l.b16 %v4478
      %v4644 = vunpack.c.h.b16 %v4478
      %v4645 = vunpack.c.l.b16 %v4479
      %v4646 = vunpack.c.h.b16 %v4479
      %v4647 = vunpack.c.l.b16 %v4480
      %v4648 = vunpack.c.h.b16 %v4480
      %v4649 = vunpack.c.l.b16 %v4481
      %v4650 = vunpack.c.h.b16 %v4481
      %v4651 = vunpack.c.l.b16 %v4482
      %v4652 = vunpack.c.h.b16 %v4482
      %v4653 = vunpack.c.l.b16 %v4483
      %v4654 = vunpack.c.h.b16 %v4483
      %v4655 = vunpack.c.l.b16 %v4484
      %v4656 = vunpack.c.h.b16 %v4484
      %v4657 = vunpack.c.l.b16 %v4485
      %v4658 = vunpack.c.h.b16 %v4485
      %v4659 = vunpack.c.l.b16 %v4486
      %v4660 = vunpack.c.h.b16 %v4486
      %v4661 = vunpack.c.l.b16 %v4487
      %v4662 = vunpack.c.h.b16 %v4487
      %v4663 = vunpack.c.l.b16 %v4488
      %v4664 = vunpack.c.h.b16 %v4488
      %v4665 = vunpack.c.l.b16 %v4489
      %v4666 = vunpack.c.h.b16 %v4489
      %v4667 = vunpack.c.l.b16 %v4490
      %v4668 = vunpack.c.h.b16 %v4490
      %v4669 = vunpack.c.l.b16 %v4491
      %v4670 = vunpack.c.h.b16 %v4491
      %v4671 = vunpack.c.l.b16 %v4492
      %v4672 = vunpack.c.h.b16 %v4492
      %v4673 = vunpack.c.l.b16 %v4493
      %v4674 = vunpack.c.h.b16 %v4493
      %v4675 = vunpack.c.l.b16 %v4494
      %v4676 = vunpack.c.h.b16 %v4494
      %v4677 = vunpack.c.l.b16 %v4495
      %v4678 = vunpack.c.h.b16 %v4495
      %v4679 = vunpack.c.l.b16 %v4496
      %v4680 = vunpack.c.h.b16 %v4496
      %v4681 = vunpack.c.l.b16 %v4497
      %v4682 = vunpack.c.h.b16 %v4497
      %v4683 = vunpack.c.l.b16 %v4498
      %v4684 = vunpack.c.h.b16 %v4498
      %v4685 = vunpack.c.l.b16 %v4499
      %v4686 = vunpack.c.h.b16 %v4499
      %v4687 = vunpack.c.l.b16 %v4500
      %v4688 = vunpack.c.h.b16 %v4500
      %v4689 = vunpack.c.l.b16 %v4501
      %v4690 = vunpack.c.h.b16 %v4501
      %v4691 = vunpack.c.l.b16 %v4502
      %v4692 = vunpack.c.h.b16 %v4502
      %v4693 = vunpack.c.l.b16 %v4503
      %v4694 = vunpack.c.h.b16 %v4503
      %v4695 = vunpack.c.l.b16 %v4504
      %v4696 = vunpack.c.h.b16 %v4504
      %v4697 = vunpack.c.l.b16 %v4505
      %v4698 = vunpack.c.h.b16 %v4505
      %v4699 = vunpack.c.l.b16 %v4506
      %v4700 = vunpack.c.h.b16 %v4506
      %v4701 = vunpack.c.l.b16 %v4507
      %v4702 = vunpack.c.h.b16 %v4507
      %v4703 = vunpack.c.l.b16 %v4508
      %v4704 = vunpack.c.h.b16 %v4508
      %v4705 = vunpack.c.l.b16 %v4509
      %v4706 = vunpack.c.h.b16 %v4509
      %v4707 = vunpack.c.l.b16 %v4510
      %v4708 = vunpack.c.h.b16 %v4510
      %v4709 = vunpack.c.l.b16 %v4511
      %v4710 = vunpack.c.h.b16 %v4511
      %v4711 = vunpack.c.l.b16 %v4512
      %v4712 = vunpack.c.h.b16 %v4512
      %v4713 = vunpack.c.l.b16 %v4513
      %v4714 = vunpack.c.h.b16 %v4513
      %v4715 = vunpack.c.l.b16 %v4514
      %v4716 = vunpack.c.h.b16 %v4514
      %v4717 = vunpack.c.l.b16 %v4515
      %v4718 = vunpack.c.h.b16 %v4515
      %v4719 = vunpack.c.l.b16 %v4516
      %v4720 = vunpack.c.h.b16 %v4516
      %v4721 = vpack.c.b16 %v4595, %v4593
      %v4722 = vpack.c.b16 %v4596, %v4594
      %v4723 = vpack.c.b16 %v4599, %v4597
      %v4724 = vpack.c.b16 %v4600, %v4598
      %v4725 = vpack.c.b16 %v4603, %v4601
      %v4726 = vpack.c.b16 %v4604, %v4602
      %v4727 = vpack.c.b16 %v4607, %v4605
      %v4728 = vpack.c.b16 %v4608, %v4606
      %v4729 = vpack.c.b16 %v4611, %v4609
      %v4730 = vpack.c.b16 %v4612, %v4610
      %v4731 = vpack.c.b16 %v4615, %v4613
      %v4732 = vpack.c.b16 %v4616, %v4614
      %v4733 = vpack.c.b16 %v4619, %v4617
      %v4734 = vpack.c.b16 %v4620, %v4618
      %v4735 = vpack.c.b16 %v4623, %v4621
      %v4736 = vpack.c.b16 %v4624, %v4622
      %v4737 = vpack.c.b16 %v4627, %v4625
      %v4738 = vpack.c.b16 %v4628, %v4626
      %v4739 = vpack.c.b16 %v4631, %v4629
      %v4740 = vpack.c.b16 %v4632, %v4630
      %v4741 = vpack.c.b16 %v4635, %v4633
      %v4742 = vpack.c.b16 %v4636, %v4634
      %v4743 = vpack.c.b16 %v4639, %v4637
      %v4744 = vpack.c.b16 %v4640, %v4638
      %v4745 = vpack.c.b16 %v4643, %v4641
      %v4746 = vpack.c.b16 %v4644, %v4642
      %v4747 = vpack.c.b16 %v4647, %v4645
      %v4748 = vpack.c.b16 %v4648, %v4646
      %v4749 = vpack.c.b16 %v4651, %v4649
      %v4750 = vpack.c.b16 %v4652, %v4650
      %v4751 = vpack.c.b16 %v4655, %v4653
      %v4752 = vpack.c.b16 %v4656, %v4654
      %v4753 = vpack.c.b16 %v4659, %v4657
      %v4754 = vpack.c.b16 %v4660, %v4658
      %v4755 = vpack.c.b16 %v4663, %v4661
      %v4756 = vpack.c.b16 %v4664, %v4662
      %v4757 = vpack.c.b16 %v4667, %v4665
      %v4758 = vpack.c.b16 %v4668, %v4666
      %v4759 = vpack.c.b16 %v4671, %v4669
      %v4760 = vpack.c.b16 %v4672, %v4670
      %v4761 = vpack.c.b16 %v4675, %v4673
      %v4762 = vpack.c.b16 %v4676, %v4674
      %v4763 = vpack.c.b16 %v4679, %v4677
      %v4764 = vpack.c.b16 %v4680, %v4678
      %v4765 = vpack.c.b16 %v4683, %v4681
      %v4766 = vpack.c.b16 %v4684, %v4682
      %v4767 = vpack.c.b16 %v4687, %v4685
      %v4768 = vpack.c.b16 %v4688, %v4686
      %v4769 = vpack.c.b16 %v4691, %v4689
      %v4770 = vpack.c.b16 %v4692, %v4690
      %v4771 = vpack.c.b16 %v4695, %v4693
      %v4772 = vpack.c.b16 %v4696, %v4694
      %v4773 = vpack.c.b16 %v4699, %v4697
      %v4774 = vpack.c.b16 %v4700, %v4698
      %v4775 = vpack.c.b16 %v4703, %v4701
      %v4776 = vpack.c.b16 %v4704, %v4702
      %v4777 = vpack.c.b16 %v4707, %v4705
      %v4778 = vpack.c.b16 %v4708, %v4706
      %v4779 = vpack.c.b16 %v4711, %v4709
      %v4780 = vpack.c.b16 %v4712, %v4710
      %v4781 = vpack.c.b16 %v4715, %v4713
      %v4782 = vpack.c.b16 %v4716, %v4714
      %v4783 = vpack.c.b16 %v4719, %v4717
      %v4784 = vpack.c.b16 %v4720, %v4718
      %4849 = vmatprep.subr.bf16.mxu0 %v4722
      %4850 = vmatpush1.bf16.msra.mxu0 %v4721
      %4851 = vmatprep.subr.bf16.mxu0 %v4724
      %4852 = vmatpush1.bf16.msra.mxu0 %v4723
      %4853 = vmatprep.subr.bf16.mxu0 %v4726
      %4854 = vmatpush1.bf16.msra.mxu0 %v4725
      %4855 = vmatprep.subr.bf16.mxu0 %v4728
      %4856 = vmatpush1.bf16.msra.mxu0 %v4727
      %4857 = vmatprep.subr.bf16.mxu0 %v4730
      %4858 = vmatpush1.bf16.msra.mxu0 %v4729
      %4859 = vmatprep.subr.bf16.mxu0 %v4732
      %4860 = vmatpush1.bf16.msra.mxu0 %v4731
      %4861 = vmatprep.subr.bf16.mxu0 %v4734
      %4862 = vmatpush1.bf16.msra.mxu0 %v4733
      %4863 = vmatprep.subr.bf16.mxu0 %v4736
      %4864 = vmatpush1.bf16.msra.mxu0 %v4735
      %4865 = vmatprep.subr.bf16.mxu0 %v4738
      %4866 = vmatpush1.bf16.msra.mxu0 %v4737
      %4867 = vmatprep.subr.bf16.mxu0 %v4740
      %4868 = vmatpush1.bf16.msra.mxu0 %v4739
      %4869 = vmatprep.subr.bf16.mxu0 %v4742
      %4870 = vmatpush1.bf16.msra.mxu0 %v4741
      %4871 = vmatprep.subr.bf16.mxu0 %v4744
      %4872 = vmatpush1.bf16.msra.mxu0 %v4743
      %4873 = vmatprep.subr.bf16.mxu0 %v4746
      %4874 = vmatpush1.bf16.msra.mxu0 %v4745
      %4875 = vmatprep.subr.bf16.mxu0 %v4748
      %4876 = vmatpush1.bf16.msra.mxu0 %v4747
      %4877 = vmatprep.subr.bf16.mxu0 %v4750
      %4878 = vmatpush1.bf16.msra.mxu0 %v4749
      %4879 = vmatprep.subr.bf16.mxu0 %v4752
      %4880 = vmatpush1.bf16.msra.mxu0 %v4751
      %4881 = vmatprep.mubr.bf16.mxu0 %v4450
      %4882 = vmatmul.mubr.bf16.gmra.mrb[0].mxu0 %v4449
      %v4883 = vpop.f32.mrb[0].mxu0
      %v4884 = vadd.f32 %v4522, %v4883
      %v4885 = vpop.f32.mrb[0].mxu0
      %v4886 = vadd.f32 %v4526, %v4885
      %v4887 = vpop.f32.mrb[0].mxu0
      %v4888 = vpop.f32.mrb[0].mxu0
      %4889 = vdwg.mxu0
      %4890 = vmatprep.subr.bf16.mxu0 %v4754
      %4891 = vmatpush1.bf16.msra.mxu0 %v4753
      %4892 = vmatprep.subr.bf16.mxu0 %v4756
      %4893 = vmatpush1.bf16.msra.mxu0 %v4755
      %4894 = vmatprep.subr.bf16.mxu0 %v4758
      %4895 = vmatpush1.bf16.msra.mxu0 %v4757
      %4896 = vmatprep.subr.bf16.mxu0 %v4760
      %4897 = vmatpush1.bf16.msra.mxu0 %v4759
      %4898 = vmatprep.subr.bf16.mxu0 %v4762
      %4899 = vmatpush1.bf16.msra.mxu0 %v4761
      %4900 = vmatprep.subr.bf16.mxu0 %v4764
      %4901 = vmatpush1.bf16.msra.mxu0 %v4763
      %4902 = vmatprep.subr.bf16.mxu0 %v4766
      %4903 = vmatpush1.bf16.msra.mxu0 %v4765
      %4904 = vmatprep.subr.bf16.mxu0 %v4768
      %4905 = vmatpush1.bf16.msra.mxu0 %v4767
      %4906 = vmatprep.subr.bf16.mxu0 %v4770
      %4907 = vmatpush1.bf16.msra.mxu0 %v4769
      %4908 = vmatprep.subr.bf16.mxu0 %v4772
      %4909 = vmatpush1.bf16.msra.mxu0 %v4771
      %4910 = vmatprep.subr.bf16.mxu0 %v4774
      %4911 = vmatpush1.bf16.msra.mxu0 %v4773
      %4912 = vmatprep.subr.bf16.mxu0 %v4776
      %4913 = vmatpush1.bf16.msra.mxu0 %v4775
      %4914 = vmatprep.subr.bf16.mxu0 %v4778
      %4915 = vmatpush1.bf16.msra.mxu0 %v4777
      %4916 = vmatprep.subr.bf16.mxu0 %v4780
      %4917 = vmatpush1.bf16.msra.mxu0 %v4779
      %4918 = vmatprep.subr.bf16.mxu0 %v4782
      %4919 = vmatpush1.bf16.msra.mxu0 %v4781
      %4920 = vmatprep.subr.bf16.mxu0 %v4784
      %4921 = vmatpush1.bf16.msra.mxu0 %v4783
      %4922 = vmatprep.mubr.bf16.mxu0 %v4452
      %4923 = vmatmul.mubr.bf16.gmra.mrb[0].mxu0 %v4451
      %v4924 = vpop.f32.mrb[0].mxu0
      %v4925 = vadd.f32 %v4884, %v4924
      %v4926 = vpop.f32.mrb[0].mxu0
      %v4927 = vadd.f32 %v4886, %v4926
      %v4928 = vpop.f32.mrb[0].mxu0
      %v4929 = vpop.f32.mrb[0].mxu0
      %4930 = vdwg.mxu0
      %v4931 = vmax.f32 %v4925, 0.0
      %v4932 = vmax.f32 %v4927, 0.0
      %v4933 = vpack.c.bf16 %v4931, %v4931
      %v4934 = vpack.c.bf16 %v4932, %v4932
      %v4935 = vld [vmem:[%s11] sm:$0xf]
      %v4936 = vld [vmem:[%s11 + $0x4] sm:$0xf]
      %v4937 = vld [vmem:[%s11 + $0x8] sm:$0xf]
      %v4938 = vld [vmem:[%s11 + $0xc] sm:$0xf]
      %v4939 = vld [vmem:[%s11 + $0x10] sm:$0xf]
      %v4940 = vld [vmem:[%s11 + $0x14] sm:$0xf]
      %v4941 = vld [vmem:[%s11 + $0x18] sm:$0xf]
      %v4942 = vld [vmem:[%s11 + $0x1c] sm:$0xf]
      %v4943 = vld [vmem:[%s11 + $0x20] sm:$0xf]
      %v4944 = vld [vmem:[%s11 + $0x24] sm:$0xf]
      %v4945 = vld [vmem:[%s11 + $0x28] sm:$0xf]
      %v4946 = vld [vmem:[%s11 + $0x2c] sm:$0xf]
      %v4947 = vld [vmem:[%s11 + $0x30] sm:$0xf]
      %v4948 = vld [vmem:[%s11 + $0x34] sm:$0xf]
      %v4949 = vld [vmem:[%s11 + $0x38] sm:$0xf]
      %v4950 = vld [vmem:[%s11 + $0x3c] sm:$0xf]
      %v4951 = vld [vmem:[%s11 + $0x40] sm:$0xf]
      %v4952 = vld [vmem:[%s11 + $0x44] sm:$0xf]
      %v4953 = vld [vmem:[%s11 + $0x48] sm:$0xf]
      %v4954 = vld [vmem:[%s11 + $0x4c] sm:$0xf]
      %v4955 = vld [vmem:[%s11 + $0x50] sm:$0xf]
      %v4956 = vld [vmem:[%s11 + $0x54] sm:$0xf]
      %v4957 = vld [vmem:[%s11 + $0x58] sm:$0xf]
      %v4958 = vld [vmem:[%s11 + $0x5c] sm:$0xf]
      %v4959 = vld [vmem:[%s11 + $0x60] sm:$0xf]
      %v4960 = vld [vmem:[%s11 + $0x64] sm:$0xf]
      %v4961 = vld [vmem:[%s11 + $0x68] sm:$0xf]
      %v4962 = vld [vmem:[%s11 + $0x6c] sm:$0xf]
      %v4963 = vld [vmem:[%s11 + $0x70] sm:$0xf]
      %v4964 = vld [vmem:[%s11 + $0x74] sm:$0xf]
      %v4965 = vld [vmem:[%s11 + $0x78] sm:$0xf]
      %v4966 = vld [vmem:[%s11 + $0x7c] sm:$0xf]
      %v4967 = vld [vmem:[%s12] sm:$0x1]
      %v4969 = vlaneseq
      %v4970 = vshrl.u32 %v4969, 7
      %v4971 = vsub.s32 0, %v4970
      %v4972 = vrot.slane %v4967, %v4971
      %v5006 = vunpack.c.l.b16 %v4935
      %v5007 = vunpack.c.l.b16 %v4936
      %v5008 = vunpack.c.l.b16 %v4937
      %v5009 = vunpack.c.l.b16 %v4938
      %v5010 = vunpack.c.l.b16 %v4939
      %v5011 = vunpack.c.l.b16 %v4940
      %v5012 = vunpack.c.l.b16 %v4941
      %v5013 = vunpack.c.l.b16 %v4942
      %v5014 = vunpack.c.l.b16 %v4943
      %v5015 = vunpack.c.l.b16 %v4944
      %v5016 = vunpack.c.l.b16 %v4945
      %v5017 = vunpack.c.l.b16 %v4946
      %v5018 = vunpack.c.l.b16 %v4947
      %v5019 = vunpack.c.l.b16 %v4948
      %v5020 = vunpack.c.l.b16 %v4949
      %v5021 = vunpack.c.l.b16 %v4950
      %v5022 = vunpack.c.l.b16 %v4951
      %v5023 = vunpack.c.l.b16 %v4952
      %v5024 = vunpack.c.l.b16 %v4953
      %v5025 = vunpack.c.l.b16 %v4954
      %v5026 = vunpack.c.l.b16 %v4955
      %v5027 = vunpack.c.l.b16 %v4956
      %v5028 = vunpack.c.l.b16 %v4957
      %v5029 = vunpack.c.l.b16 %v4958
      %v5030 = vunpack.c.l.b16 %v4959
      %v5031 = vunpack.c.l.b16 %v4960
      %v5032 = vunpack.c.l.b16 %v4961
      %v5033 = vunpack.c.l.b16 %v4962
      %v5034 = vunpack.c.l.b16 %v4963
      %v5035 = vunpack.c.l.b16 %v4964
      %v5036 = vunpack.c.l.b16 %v4965
      %v5037 = vunpack.c.l.b16 %v4966
      %v5038 = vpack.c.b16 %v5007, %v5006
      %v5039 = vpack.c.b16 %v5009, %v5008
      %v5040 = vpack.c.b16 %v5011, %v5010
      %v5041 = vpack.c.b16 %v5013, %v5012
      %v5042 = vpack.c.b16 %v5015, %v5014
      %v5043 = vpack.c.b16 %v5017, %v5016
      %v5044 = vpack.c.b16 %v5019, %v5018
      %v5045 = vpack.c.b16 %v5021, %v5020
      %v5046 = vpack.c.b16 %v5023, %v5022
      %v5047 = vpack.c.b16 %v5025, %v5024
      %v5048 = vpack.c.b16 %v5027, %v5026
      %v5049 = vpack.c.b16 %v5029, %v5028
      %v5050 = vpack.c.b16 %v5031, %v5030
      %v5051 = vpack.c.b16 %v5033, %v5032
      %v5052 = vpack.c.b16 %v5035, %v5034
      %v5053 = vpack.c.b16 %v5037, %v5036
      %5070 = vmatprep.subr.bf16.mxu0 0
      %5071 = vmatpush1.bf16.msra.mxu0 %v5038
      %5072 = vmatprep.subr.bf16.mxu0 0
      %5073 = vmatpush1.bf16.msra.mxu0 %v5039
      %5074 = vmatprep.subr.bf16.mxu0 0
      %5075 = vmatpush1.bf16.msra.mxu0 %v5040
      %5076 = vmatprep.subr.bf16.mxu0 0
      %5077 = vmatpush1.bf16.msra.mxu0 %v5041
      %5078 = vmatprep.subr.bf16.mxu0 0
      %5079 = vmatpush1.bf16.msra.mxu0 %v5042
      %5080 = vmatprep.subr.bf16.mxu0 0
      %5081 = vmatpush1.bf16.msra.mxu0 %v5043
      %5082 = vmatprep.subr.bf16.mxu0 0
      %5083 = vmatpush1.bf16.msra.mxu0 %v5044
      %5084 = vmatprep.subr.bf16.mxu0 0
      %5085 = vmatpush1.bf16.msra.mxu0 %v5045
      %5086 = vmatprep.subr.bf16.mxu0 0
      %5087 = vmatpush1.bf16.msra.mxu0 %v5046
      %5088 = vmatprep.subr.bf16.mxu0 0
      %5089 = vmatpush1.bf16.msra.mxu0 %v5047
      %5090 = vmatprep.subr.bf16.mxu0 0
      %5091 = vmatpush1.bf16.msra.mxu0 %v5048
      %5092 = vmatprep.subr.bf16.mxu0 0
      %5093 = vmatpush1.bf16.msra.mxu0 %v5049
      %5094 = vmatprep.subr.bf16.mxu0 0
      %5095 = vmatpush1.bf16.msra.mxu0 %v5050
      %5096 = vmatprep.subr.bf16.mxu0 0
      %5097 = vmatpush1.bf16.msra.mxu0 %v5051
      %5098 = vmatprep.subr.bf16.mxu0 0
      %5099 = vmatpush1.bf16.msra.mxu0 %v5052
      %5100 = vmatprep.subr.bf16.mxu0 0
      %5101 = vmatpush1.bf16.msra.mxu0 %v5053
      %5102 = vmatprep.mubr.bf16.mxu0 %v4934
      %5103 = vmatmul.mubr.bf16.gmra.mrb[0].mxu0 %v4933
      %v5104 = vpop.f32.mrb[0].mxu0
      %v5105 = vadd.f32 %v4972, %v5104
      %v5106 = vpop.f32.mrb[0].mxu0
      %v5107 = vpop.f32.mrb[0].mxu0
      %v5108 = vpop.f32.mrb[0].mxu0
      %5109 = vdwg.mxu0
      %vm5110 = vcmask 66560
      %5111 = vst.msk [vmem:[%s13] sm:$0x3] %vm5110, %v5105
    $region73: #{rot_encoder_forward.2} parent=1 // pred_fallthru
      _
    // Predicated region
    $region74: #{rot_encoder_forward.2} parent=1 // pred_check
      _
    $region75: #{rot_encoder_forward.2} parent=1 // pred_check_branch
      %5113 = sbr.rel (0) target = $region77
    $region76: #{rot_encoder_forward.2} parent=1 // pred_region
      _
    $region77: #{rot_encoder_forward.2} parent=1 // pred_fallthru
      _
    // Predicated region
    $region78: #{rot_encoder_forward.2} parent=1 // pred_check
      _
    $region79: #{rot_encoder_forward.2} parent=1 // pred_check_branch
      %5115 = sbr.rel (0) target = $region81
    $region80: #{rot_encoder_forward.2} parent=1 // pred_region
      _
    $region81: #{rot_encoder_forward.2} parent=1 // pred_fallthru
      _
    %5116 = vsyncpa [#allocation4], 1
    %5117 = vsyncpa [#allocation6], 1

</llo_original>
